<compile_context>
chip_gen: v7x
topology: tpu7x:2x2x1
jax: 0.10.0
libtpu: 0.0.40
codegen_flags: <defaults>
</compile_context>

<pallas_src>
import functools

import jax
import jax.numpy as jnp
from jax.experimental import pallas as pl
from jax.experimental.pallas import tpu as pltpu


# ---------------------------------------------------------------------------
# Fused Pallas kernel (whole forward pass)
# ---------------------------------------------------------------------------

def _make_fused_kernel(T, B, F, H, num_layers, num_dirs):
    """Builds the fused kernel for static (T, B, F, H, layers, dirs)."""

    def project(parts, wih, bih):
        # parts: list of (B, c_i) feature chunks with sum(c_i) == wih.shape[0]
        # returns x_t @ W_ih^T + b_ih  ==  sum_i parts[i] @ wih[rows_i, :] + bih
        off = 0
        acc = None
        for p in parts:
            c = p.shape[-1]
            term = jnp.dot(p, wih[off:off + c, :],
                           preferred_element_type=jnp.float32)
            acc = term if acc is None else acc + term
            off += c
        return acc + bih

    def cell(gi, h, whh, bhh):
        # PyTorch GRU cell, gate order [r | z | n]
        gh = jnp.dot(h, whh, preferred_element_type=jnp.float32) + bhh
        r = jax.nn.sigmoid(gi[:, 0:H] + gh[:, 0:H])
        z = jax.nn.sigmoid(gi[:, H:2 * H] + gh[:, H:2 * H])
        n = jnp.tanh(gi[:, 2 * H:3 * H] + r * gh[:, 2 * H:3 * H])
        return (1.0 - z) * n + z * h

    def kernel(x_ref, *refs):
        n_gru = num_layers * num_dirs * 4
        w_refs = refs[:n_gru]
        fc_w_ref = refs[n_gru]
        fc_b_ref = refs[n_gru + 1]
        o_ref = refs[n_gru + 2]

        x = x_ref[...]                                   # (T, B, F) time-major
        h0 = jnp.zeros((B, H), dtype=jnp.float32)

        # per-timestep layer input, as a list of feature chunks (avoids concat)
        parts = [[x[t]] for t in range(T)]
        final_parts = None

        for l in range(num_layers):
            base = l * num_dirs * 4
            wih_f = w_refs[base + 0][...]
            whh_f = w_refs[base + 1][...]
            bih_f = w_refs[base + 2][...]
            bhh_f = w_refs[base + 3][...]
            last = (l == num_layers - 1)

            # ---- input projection hoisted out of the recurrence ----
            gi_f = [project(parts[t], wih_f, bih_f) for t in range(T)]

            # ---- forward-direction recurrence (fully unrolled) ----
            h = h0
            hs_f = []
            for t in range(T):
                h = cell(gi_f[t], h, whh_f, bhh_f)
                hs_f.append(h)

            if num_dirs == 2:
                wih_b = w_refs[base + 4][...]
                whh_b = w_refs[base + 5][...]
                bih_b = w_refs[base + 6][...]
                bhh_b = w_refs[base + 7][...]

                if last:
                    # Only outs[-1] is consumed by the FC.  The backward
                    # hidden at forward-time T-1 is a single backward step
                    # from h0 on the input at t = T-1.
                    gi_b_last = project(parts[T - 1], wih_b, bih_b)
                    hb_last = cell(gi_b_last, h0, whh_b, bhh_b)
                    final_parts = [hs_f[-1], hb_last]
                else:
                    gi_b = [project(parts[t], wih_b, bih_b) for t in range(T)]
                    hb = h0
                    hs_b = [None] * T
                    for t in range(T - 1, -1, -1):       # reversed time, no flip
                        hb = cell(gi_b[t], hb, whh_b, bhh_b)
                        hs_b[t] = hb
                    parts = [[hs_f[t], hs_b[t]] for t in range(T)]
            else:
                if last:
                    final_parts = [hs_f[-1]]
                else:
                    parts = [[hs_f[t]] for t in range(T)]

        # ---- FC + residual epilogue fused into the same kernel ----
        fc_w = fc_w_ref[...]
        fc_b = fc_b_ref[...]
        o_ref[...] = project(final_parts, fc_w, fc_b) + x[0]

    return kernel


# ---------------------------------------------------------------------------
# Wrapper
# ---------------------------------------------------------------------------

def baseline_forward(x_btf, params, *, hidden_size, num_layers, bidirectional=True):
    """Mirrors BaseLine.forward.  x_btf: (batch, seq, n_features) float32."""
    num_dirs = 2 if bidirectional else 1
    x_tbf = jnp.transpose(x_btf, (1, 0, 2)).astype(jnp.float32)  # x.transpose(0,1)
    T, B, F = x_tbf.shape

    flat = []
    for l in range(num_layers):
        for d in range(num_dirs):
            flat.extend(params["gru"][l][d])      # wih_t, whh_t, bih, bhh
    flat.append(params["fc_w_t"])
    flat.append(params["fc_b"])

    kernel = _make_fused_kernel(T, B, F, hidden_size, num_layers, num_dirs)
    vmem = pl.BlockSpec(memory_space=pltpu.MemorySpace.VMEM)

    return pl.pallas_call(
        kernel,
        out_shape=jax.ShapeDtypeStruct((B, F), jnp.float32),
        in_specs=[vmem] * (1 + len(flat)),
        out_specs=vmem,
    )(x_tbf, *flat)


# ---------------------------------------------------------------------------
# Pure-JAX reference (for a built-in correctness check)
# ---------------------------------------------------------------------------

def _reference_forward(x_btf, params, *, hidden_size, num_layers, bidirectional=True):
    H = hidden_size
    num_dirs = 2 if bidirectional else 1
    hi = jax.lax.Precision.HIGHEST
    x = jnp.transpose(x_btf, (1, 0, 2))
    T, B, _ = x.shape

    def cell(x_t, h, wih_t, whh_t, bih, bhh):
        gi = jnp.dot(x_t, wih_t, precision=hi) + bih
        gh = jnp.dot(h, whh_t, precision=hi) + bhh
        r = jax.nn.sigmoid(gi[:, :H] + gh[:, :H])
        z = jax.nn.sigmoid(gi[:, H:2 * H] + gh[:, H:2 * H])
        n = jnp.tanh(gi[:, 2 * H:] + r * gh[:, 2 * H:])
        return (1.0 - z) * n + z * h

    layer_in = x
    for l in range(num_layers):
        outs = []
        wih_t, whh_t, bih, bhh = params["gru"][l][0]
        h = jnp.zeros((B, H), jnp.float32)
        hs = []
        for t in range(T):
            h = cell(layer_in[t], h, wih_t, whh_t, bih, bhh)
            hs.append(h)
        outs.append(jnp.stack(hs))
        if num_dirs == 2:
            wih_t, whh_t, bih, bhh = params["gru"][l][1]
            h = jnp.zeros((B, H), jnp.float32)
            hs = [None] * T
            for t in range(T - 1, -1, -1):
                h = cell(layer_in[t], h, wih_t, whh_t, bih, bhh)
                hs[t] = h
            outs.append(jnp.stack(hs))
        layer_in = jnp.concatenate(outs, axis=-1)

    return (jnp.dot(layer_in[-1], params["fc_w_t"], precision=hi)
            + params["fc_b"] + x[0])


# ---------------------------------------------------------------------------
# Deterministic parameter init (matches PyTorch shapes / gate order [r|z|n])
# ---------------------------------------------------------------------------

def init_params(key, n_features, hidden_size, num_layers, bidirectional=True):
    num_dirs = 2 if bidirectional else 1
    k_gru = 1.0 / jnp.sqrt(hidden_size)
    params = {"gru": []}
    for l in range(num_layers):
        in_size = n_features if l == 0 else num_dirs * hidden_size
        dirs = []
        for _ in range(num_dirs):
            key, k1, k2, k3, k4 = jax.random.split(key, 5)
            w_ih = jax.random.uniform(k1, (3 * hidden_size, in_size),
                                      jnp.float32, -k_gru, k_gru)
            w_hh = jax.random.uniform(k2, (3 * hidden_size, hidden_size),
                                      jnp.float32, -k_gru, k_gru)
            b_ih = jax.random.uniform(k3, (1, 3 * hidden_size),
                                      jnp.float32, -k_gru, k_gru)
            b_hh = jax.random.uniform(k4, (1, 3 * hidden_size),
                                      jnp.float32, -k_gru, k_gru)
            dirs.append((w_ih.T, w_hh.T, b_ih, b_hh))
        params["gru"].append(dirs)

    fc_in = num_dirs * hidden_size
    k_fc = 1.0 / jnp.sqrt(fc_in)
    key, kw, kb = jax.random.split(key, 3)
    fc_w = jax.random.uniform(kw, (n_features, fc_in), jnp.float32, -k_fc, k_fc)
    fc_b = jax.random.uniform(kb, (1, n_features), jnp.float32, -k_fc, k_fc)
    params["fc_w_t"] = fc_w.T
    params["fc_b"] = fc_b
    return params


# ---------------------------------------------------------------------------
# Main
# ---------------------------------------------------------------------------

if __name__ == "__main__":
    n_features = 4
    hidden_size = 32
    num_layers = 3
    bidirectional = True
    batch, seq = 2, 8

    key = jax.random.PRNGKey(0)
    key, kx = jax.random.split(key)
    x = jax.random.normal(kx, (batch, seq, n_features), dtype=jnp.float32)
    params = init_params(key, n_features, hidden_size, num_layers, bidirectional)

    fwd = jax.jit(functools.partial(
        baseline_forward, hidden_size=hidden_size, num_layers=num_layers,
        bidirectional=bidirectional))
    out = jax.block_until_ready(fwd(x, params))

    assert out.shape == (batch, n_features), out.shape
    assert bool(jnp.all(jnp.isfinite(out)))

    ref = _reference_forward(x, params, hidden_size=hidden_size,
                             num_layers=num_layers, bidirectional=bidirectional)
    assert bool(jnp.allclose(out, ref, atol=1e-3, rtol=1e-3)), (
        float(jnp.max(jnp.abs(out - ref))))

    print("KERNEL_OK")
</pallas_src>

<mosaic_0001>
module attributes {stable_mosaic.version = 11 : i64} {
  func.func @kernel(%arg0: memref<8x2x4xf32, #tpu.memory_space<vmem>>, %arg1: memref<4x96xf32, #tpu.memory_space<vmem>>, %arg2: memref<32x96xf32, #tpu.memory_space<vmem>>, %arg3: memref<1x96xf32, #tpu.memory_space<vmem>>, %arg4: memref<1x96xf32, #tpu.memory_space<vmem>>, %arg5: memref<4x96xf32, #tpu.memory_space<vmem>>, %arg6: memref<32x96xf32, #tpu.memory_space<vmem>>, %arg7: memref<1x96xf32, #tpu.memory_space<vmem>>, %arg8: memref<1x96xf32, #tpu.memory_space<vmem>>, %arg9: memref<64x96xf32, #tpu.memory_space<vmem>>, %arg10: memref<32x96xf32, #tpu.memory_space<vmem>>, %arg11: memref<1x96xf32, #tpu.memory_space<vmem>>, %arg12: memref<1x96xf32, #tpu.memory_space<vmem>>, %arg13: memref<64x96xf32, #tpu.memory_space<vmem>>, %arg14: memref<32x96xf32, #tpu.memory_space<vmem>>, %arg15: memref<1x96xf32, #tpu.memory_space<vmem>>, %arg16: memref<1x96xf32, #tpu.memory_space<vmem>>, %arg17: memref<64x96xf32, #tpu.memory_space<vmem>>, %arg18: memref<32x96xf32, #tpu.memory_space<vmem>>, %arg19: memref<1x96xf32, #tpu.memory_space<vmem>>, %arg20: memref<1x96xf32, #tpu.memory_space<vmem>>, %arg21: memref<64x96xf32, #tpu.memory_space<vmem>>, %arg22: memref<32x96xf32, #tpu.memory_space<vmem>>, %arg23: memref<1x96xf32, #tpu.memory_space<vmem>>, %arg24: memref<1x96xf32, #tpu.memory_space<vmem>>, %arg25: memref<64x4xf32, #tpu.memory_space<vmem>>, %arg26: memref<1x4xf32, #tpu.memory_space<vmem>>, %arg27: memref<2x4xf32, #tpu.memory_space<vmem>>) attributes {dimension_semantics = [], scalar_prefetch = 0 : i64, scratch_operands = 0 : i64, tpu.core_type = #tpu.core_type<tc>} {
    %c0 = arith.constant 0 : index
    %c0_0 = arith.constant 0 : index
    %c0_1 = arith.constant 0 : index
    %0 = vector.load %arg0[%c0, %c0_0, %c0_1] : memref<8x2x4xf32, #tpu.memory_space<vmem>>, vector<8x2x4xf32>
    %cst = arith.constant 0.000000e+00 : f32
    %1 = vector.broadcast %cst : f32 to vector<2x32xf32>
    %2 = vector.extract_strided_slice %0 {offsets = [0, 0, 0], sizes = [1, 2, 4], strides = [1, 1, 1]} : vector<8x2x4xf32> to vector<1x2x4xf32>
    %3 = vector.shape_cast %2 : vector<1x2x4xf32> to vector<2x4xf32>
    %4 = vector.extract_strided_slice %0 {offsets = [1, 0, 0], sizes = [1, 2, 4], strides = [1, 1, 1]} : vector<8x2x4xf32> to vector<1x2x4xf32>
    %5 = vector.shape_cast %4 : vector<1x2x4xf32> to vector<2x4xf32>
    %6 = vector.extract_strided_slice %0 {offsets = [2, 0, 0], sizes = [1, 2, 4], strides = [1, 1, 1]} : vector<8x2x4xf32> to vector<1x2x4xf32>
    %7 = vector.shape_cast %6 : vector<1x2x4xf32> to vector<2x4xf32>
    %8 = vector.extract_strided_slice %0 {offsets = [3, 0, 0], sizes = [1, 2, 4], strides = [1, 1, 1]} : vector<8x2x4xf32> to vector<1x2x4xf32>
    %9 = vector.shape_cast %8 : vector<1x2x4xf32> to vector<2x4xf32>
    %10 = vector.extract_strided_slice %0 {offsets = [4, 0, 0], sizes = [1, 2, 4], strides = [1, 1, 1]} : vector<8x2x4xf32> to vector<1x2x4xf32>
    %11 = vector.shape_cast %10 : vector<1x2x4xf32> to vector<2x4xf32>
    %12 = vector.extract_strided_slice %0 {offsets = [5, 0, 0], sizes = [1, 2, 4], strides = [1, 1, 1]} : vector<8x2x4xf32> to vector<1x2x4xf32>
    %13 = vector.shape_cast %12 : vector<1x2x4xf32> to vector<2x4xf32>
    %14 = vector.extract_strided_slice %0 {offsets = [6, 0, 0], sizes = [1, 2, 4], strides = [1, 1, 1]} : vector<8x2x4xf32> to vector<1x2x4xf32>
    %15 = vector.shape_cast %14 : vector<1x2x4xf32> to vector<2x4xf32>
    %16 = vector.extract_strided_slice %0 {offsets = [7, 0, 0], sizes = [1, 2, 4], strides = [1, 1, 1]} : vector<8x2x4xf32> to vector<1x2x4xf32>
    %17 = vector.shape_cast %16 : vector<1x2x4xf32> to vector<2x4xf32>
    %c0_2 = arith.constant 0 : index
    %c0_3 = arith.constant 0 : index
    %18 = vector.load %arg1[%c0_2, %c0_3] : memref<4x96xf32, #tpu.memory_space<vmem>>, vector<4x96xf32>
    %c0_4 = arith.constant 0 : index
    %c0_5 = arith.constant 0 : index
    %19 = vector.load %arg2[%c0_4, %c0_5] : memref<32x96xf32, #tpu.memory_space<vmem>>, vector<32x96xf32>
    %c0_6 = arith.constant 0 : index
    %c0_7 = arith.constant 0 : index
    %20 = vector.load %arg3[%c0_6, %c0_7] : memref<1x96xf32, #tpu.memory_space<vmem>>, vector<1x96xf32>
    %c0_8 = arith.constant 0 : index
    %c0_9 = arith.constant 0 : index
    %21 = vector.load %arg4[%c0_8, %c0_9] : memref<1x96xf32, #tpu.memory_space<vmem>>, vector<1x96xf32>
    %cst_10 = arith.constant dense<0.000000e+00> : vector<2x96xf32>
    %22 = tpu.matmul %3, %18, %cst_10 {dimension_numbers = #tpu.dot_dimension_numbers<[1], [0], [0], [1], [0, 0, 1, 1], [], []>} : vector<2x4xf32>, vector<4x96xf32>, vector<2x96xf32> -> vector<2x96xf32>
    %23 = vector.broadcast %20 : vector<1x96xf32> to vector<2x96xf32>
    %24 = arith.addf %22, %23 : vector<2x96xf32>
    %cst_11 = arith.constant dense<0.000000e+00> : vector<2x96xf32>
    %25 = tpu.matmul %5, %18, %cst_11 {dimension_numbers = #tpu.dot_dimension_numbers<[1], [0], [0], [1], [0, 0, 1, 1], [], []>} : vector<2x4xf32>, vector<4x96xf32>, vector<2x96xf32> -> vector<2x96xf32>
    %26 = vector.broadcast %20 : vector<1x96xf32> to vector<2x96xf32>
    %27 = arith.addf %25, %26 : vector<2x96xf32>
    %cst_12 = arith.constant dense<0.000000e+00> : vector<2x96xf32>
    %28 = tpu.matmul %7, %18, %cst_12 {dimension_numbers = #tpu.dot_dimension_numbers<[1], [0], [0], [1], [0, 0, 1, 1], [], []>} : vector<2x4xf32>, vector<4x96xf32>, vector<2x96xf32> -> vector<2x96xf32>
    %29 = vector.broadcast %20 : vector<1x96xf32> to vector<2x96xf32>
    %30 = arith.addf %28, %29 : vector<2x96xf32>
    %cst_13 = arith.constant dense<0.000000e+00> : vector<2x96xf32>
    %31 = tpu.matmul %9, %18, %cst_13 {dimension_numbers = #tpu.dot_dimension_numbers<[1], [0], [0], [1], [0, 0, 1, 1], [], []>} : vector<2x4xf32>, vector<4x96xf32>, vector<2x96xf32> -> vector<2x96xf32>
    %32 = vector.broadcast %20 : vector<1x96xf32> to vector<2x96xf32>
    %33 = arith.addf %31, %32 : vector<2x96xf32>
    %cst_14 = arith.constant dense<0.000000e+00> : vector<2x96xf32>
    %34 = tpu.matmul %11, %18, %cst_14 {dimension_numbers = #tpu.dot_dimension_numbers<[1], [0], [0], [1], [0, 0, 1, 1], [], []>} : vector<2x4xf32>, vector<4x96xf32>, vector<2x96xf32> -> vector<2x96xf32>
    %35 = vector.broadcast %20 : vector<1x96xf32> to vector<2x96xf32>
    %36 = arith.addf %34, %35 : vector<2x96xf32>
    %cst_15 = arith.constant dense<0.000000e+00> : vector<2x96xf32>
    %37 = tpu.matmul %13, %18, %cst_15 {dimension_numbers = #tpu.dot_dimension_numbers<[1], [0], [0], [1], [0, 0, 1, 1], [], []>} : vector<2x4xf32>, vector<4x96xf32>, vector<2x96xf32> -> vector<2x96xf32>
    %38 = vector.broadcast %20 : vector<1x96xf32> to vector<2x96xf32>
    %39 = arith.addf %37, %38 : vector<2x96xf32>
    %cst_16 = arith.constant dense<0.000000e+00> : vector<2x96xf32>
    %40 = tpu.matmul %15, %18, %cst_16 {dimension_numbers = #tpu.dot_dimension_numbers<[1], [0], [0], [1], [0, 0, 1, 1], [], []>} : vector<2x4xf32>, vector<4x96xf32>, vector<2x96xf32> -> vector<2x96xf32>
    %41 = vector.broadcast %20 : vector<1x96xf32> to vector<2x96xf32>
    %42 = arith.addf %40, %41 : vector<2x96xf32>
    %cst_17 = arith.constant dense<0.000000e+00> : vector<2x96xf32>
    %43 = tpu.matmul %17, %18, %cst_17 {dimension_numbers = #tpu.dot_dimension_numbers<[1], [0], [0], [1], [0, 0, 1, 1], [], []>} : vector<2x4xf32>, vector<4x96xf32>, vector<2x96xf32> -> vector<2x96xf32>
    %44 = vector.broadcast %20 : vector<1x96xf32> to vector<2x96xf32>
    %45 = arith.addf %43, %44 : vector<2x96xf32>
    %cst_18 = arith.constant dense<0.000000e+00> : vector<2x96xf32>
    %46 = tpu.matmul %1, %19, %cst_18 {dimension_numbers = #tpu.dot_dimension_numbers<[1], [0], [0], [1], [0, 0, 1, 1], [], []>} : vector<2x32xf32>, vector<32x96xf32>, vector<2x96xf32> -> vector<2x96xf32>
    %47 = vector.broadcast %21 : vector<1x96xf32> to vector<2x96xf32>
    %48 = arith.addf %46, %47 : vector<2x96xf32>
    %49 = vector.extract_strided_slice %24 {offsets = [0, 0], sizes = [2, 32], strides = [1, 1]} : vector<2x96xf32> to vector<2x32xf32>
    %50 = vector.extract_strided_slice %48 {offsets = [0, 0], sizes = [2, 32], strides = [1, 1]} : vector<2x96xf32> to vector<2x32xf32>
    %51 = arith.addf %49, %50 : vector<2x32xf32>
    %52 = arith.negf %51 : vector<2x32xf32>
    %53 = math.exp %52 : vector<2x32xf32>
    %cst_19 = arith.constant 1.000000e+00 : f32
    %54 = vector.broadcast %cst_19 : f32 to vector<2x32xf32>
    %55 = arith.addf %54, %53 : vector<2x32xf32>
    %56 = arith.divf %54, %55 : vector<2x32xf32>
    %57 = vector.extract_strided_slice %24 {offsets = [0, 32], sizes = [2, 32], strides = [1, 1]} : vector<2x96xf32> to vector<2x32xf32>
    %58 = vector.extract_strided_slice %48 {offsets = [0, 32], sizes = [2, 32], strides = [1, 1]} : vector<2x96xf32> to vector<2x32xf32>
    %59 = arith.addf %57, %58 : vector<2x32xf32>
    %60 = arith.negf %59 : vector<2x32xf32>
    %61 = math.exp %60 : vector<2x32xf32>
    %cst_20 = arith.constant 1.000000e+00 : f32
    %62 = vector.broadcast %cst_20 : f32 to vector<2x32xf32>
    %63 = arith.addf %62, %61 : vector<2x32xf32>
    %64 = arith.divf %62, %63 : vector<2x32xf32>
    %65 = vector.extract_strided_slice %24 {offsets = [0, 64], sizes = [2, 32], strides = [1, 1]} : vector<2x96xf32> to vector<2x32xf32>
    %66 = vector.extract_strided_slice %48 {offsets = [0, 64], sizes = [2, 32], strides = [1, 1]} : vector<2x96xf32> to vector<2x32xf32>
    %67 = arith.mulf %56, %66 : vector<2x32xf32>
    %68 = arith.addf %65, %67 : vector<2x32xf32>
    %69 = math.tanh %68 : vector<2x32xf32>
    %cst_21 = arith.constant 1.000000e+00 : f32
    %70 = vector.broadcast %cst_21 : f32 to vector<2x32xf32>
    %71 = arith.subf %70, %64 : vector<2x32xf32>
    %72 = arith.mulf %71, %69 : vector<2x32xf32>
    %73 = arith.mulf %64, %1 : vector<2x32xf32>
    %74 = arith.addf %72, %73 : vector<2x32xf32>
    %cst_22 = arith.constant dense<0.000000e+00> : vector<2x96xf32>
    %75 = tpu.matmul %74, %19, %cst_22 {dimension_numbers = #tpu.dot_dimension_numbers<[1], [0], [0], [1], [0, 0, 1, 1], [], []>} : vector<2x32xf32>, vector<32x96xf32>, vector<2x96xf32> -> vector<2x96xf32>
    %76 = vector.broadcast %21 : vector<1x96xf32> to vector<2x96xf32>
    %77 = arith.addf %75, %76 : vector<2x96xf32>
    %78 = vector.extract_strided_slice %27 {offsets = [0, 0], sizes = [2, 32], strides = [1, 1]} : vector<2x96xf32> to vector<2x32xf32>
    %79 = vector.extract_strided_slice %77 {offsets = [0, 0], sizes = [2, 32], strides = [1, 1]} : vector<2x96xf32> to vector<2x32xf32>
    %80 = arith.addf %78, %79 : vector<2x32xf32>
    %81 = arith.negf %80 : vector<2x32xf32>
    %82 = math.exp %81 : vector<2x32xf32>
    %cst_23 = arith.constant 1.000000e+00 : f32
    %83 = vector.broadcast %cst_23 : f32 to vector<2x32xf32>
    %84 = arith.addf %83, %82 : vector<2x32xf32>
    %85 = arith.divf %83, %84 : vector<2x32xf32>
    %86 = vector.extract_strided_slice %27 {offsets = [0, 32], sizes = [2, 32], strides = [1, 1]} : vector<2x96xf32> to vector<2x32xf32>
    %87 = vector.extract_strided_slice %77 {offsets = [0, 32], sizes = [2, 32], strides = [1, 1]} : vector<2x96xf32> to vector<2x32xf32>
    %88 = arith.addf %86, %87 : vector<2x32xf32>
    %89 = arith.negf %88 : vector<2x32xf32>
    %90 = math.exp %89 : vector<2x32xf32>
    %cst_24 = arith.constant 1.000000e+00 : f32
    %91 = vector.broadcast %cst_24 : f32 to vector<2x32xf32>
    %92 = arith.addf %91, %90 : vector<2x32xf32>
    %93 = arith.divf %91, %92 : vector<2x32xf32>
    %94 = vector.extract_strided_slice %27 {offsets = [0, 64], sizes = [2, 32], strides = [1, 1]} : vector<2x96xf32> to vector<2x32xf32>
    %95 = vector.extract_strided_slice %77 {offsets = [0, 64], sizes = [2, 32], strides = [1, 1]} : vector<2x96xf32> to vector<2x32xf32>
    %96 = arith.mulf %85, %95 : vector<2x32xf32>
    %97 = arith.addf %94, %96 : vector<2x32xf32>
    %98 = math.tanh %97 : vector<2x32xf32>
    %cst_25 = arith.constant 1.000000e+00 : f32
    %99 = vector.broadcast %cst_25 : f32 to vector<2x32xf32>
    %100 = arith.subf %99, %93 : vector<2x32xf32>
    %101 = arith.mulf %100, %98 : vector<2x32xf32>
    %102 = arith.mulf %93, %74 : vector<2x32xf32>
    %103 = arith.addf %101, %102 : vector<2x32xf32>
    %cst_26 = arith.constant dense<0.000000e+00> : vector<2x96xf32>
    %104 = tpu.matmul %103, %19, %cst_26 {dimension_numbers = #tpu.dot_dimension_numbers<[1], [0], [0], [1], [0, 0, 1, 1], [], []>} : vector<2x32xf32>, vector<32x96xf32>, vector<2x96xf32> -> vector<2x96xf32>
    %105 = vector.broadcast %21 : vector<1x96xf32> to vector<2x96xf32>
    %106 = arith.addf %104, %105 : vector<2x96xf32>
    %107 = vector.extract_strided_slice %30 {offsets = [0, 0], sizes = [2, 32], strides = [1, 1]} : vector<2x96xf32> to vector<2x32xf32>
    %108 = vector.extract_strided_slice %106 {offsets = [0, 0], sizes = [2, 32], strides = [1, 1]} : vector<2x96xf32> to vector<2x32xf32>
    %109 = arith.addf %107, %108 : vector<2x32xf32>
    %110 = arith.negf %109 : vector<2x32xf32>
    %111 = math.exp %110 : vector<2x32xf32>
    %cst_27 = arith.constant 1.000000e+00 : f32
    %112 = vector.broadcast %cst_27 : f32 to vector<2x32xf32>
    %113 = arith.addf %112, %111 : vector<2x32xf32>
    %114 = arith.divf %112, %113 : vector<2x32xf32>
    %115 = vector.extract_strided_slice %30 {offsets = [0, 32], sizes = [2, 32], strides = [1, 1]} : vector<2x96xf32> to vector<2x32xf32>
    %116 = vector.extract_strided_slice %106 {offsets = [0, 32], sizes = [2, 32], strides = [1, 1]} : vector<2x96xf32> to vector<2x32xf32>
    %117 = arith.addf %115, %116 : vector<2x32xf32>
    %118 = arith.negf %117 : vector<2x32xf32>
    %119 = math.exp %118 : vector<2x32xf32>
    %cst_28 = arith.constant 1.000000e+00 : f32
    %120 = vector.broadcast %cst_28 : f32 to vector<2x32xf32>
    %121 = arith.addf %120, %119 : vector<2x32xf32>
    %122 = arith.divf %120, %121 : vector<2x32xf32>
    %123 = vector.extract_strided_slice %30 {offsets = [0, 64], sizes = [2, 32], strides = [1, 1]} : vector<2x96xf32> to vector<2x32xf32>
    %124 = vector.extract_strided_slice %106 {offsets = [0, 64], sizes = [2, 32], strides = [1, 1]} : vector<2x96xf32> to vector<2x32xf32>
    %125 = arith.mulf %114, %124 : vector<2x32xf32>
    %126 = arith.addf %123, %125 : vector<2x32xf32>
    %127 = math.tanh %126 : vector<2x32xf32>
    %cst_29 = arith.constant 1.000000e+00 : f32
    %128 = vector.broadcast %cst_29 : f32 to vector<2x32xf32>
    %129 = arith.subf %128, %122 : vector<2x32xf32>
    %130 = arith.mulf %129, %127 : vector<2x32xf32>
    %131 = arith.mulf %122, %103 : vector<2x32xf32>
    %132 = arith.addf %130, %131 : vector<2x32xf32>
    %cst_30 = arith.constant dense<0.000000e+00> : vector<2x96xf32>
    %133 = tpu.matmul %132, %19, %cst_30 {dimension_numbers = #tpu.dot_dimension_numbers<[1], [0], [0], [1], [0, 0, 1, 1], [], []>} : vector<2x32xf32>, vector<32x96xf32>, vector<2x96xf32> -> vector<2x96xf32>
    %134 = vector.broadcast %21 : vector<1x96xf32> to vector<2x96xf32>
    %135 = arith.addf %133, %134 : vector<2x96xf32>
    %136 = vector.extract_strided_slice %33 {offsets = [0, 0], sizes = [2, 32], strides = [1, 1]} : vector<2x96xf32> to vector<2x32xf32>
    %137 = vector.extract_strided_slice %135 {offsets = [0, 0], sizes = [2, 32], strides = [1, 1]} : vector<2x96xf32> to vector<2x32xf32>
    %138 = arith.addf %136, %137 : vector<2x32xf32>
    %139 = arith.negf %138 : vector<2x32xf32>
    %140 = math.exp %139 : vector<2x32xf32>
    %cst_31 = arith.constant 1.000000e+00 : f32
    %141 = vector.broadcast %cst_31 : f32 to vector<2x32xf32>
    %142 = arith.addf %141, %140 : vector<2x32xf32>
    %143 = arith.divf %141, %142 : vector<2x32xf32>
    %144 = vector.extract_strided_slice %33 {offsets = [0, 32], sizes = [2, 32], strides = [1, 1]} : vector<2x96xf32> to vector<2x32xf32>
    %145 = vector.extract_strided_slice %135 {offsets = [0, 32], sizes = [2, 32], strides = [1, 1]} : vector<2x96xf32> to vector<2x32xf32>
    %146 = arith.addf %144, %145 : vector<2x32xf32>
    %147 = arith.negf %146 : vector<2x32xf32>
    %148 = math.exp %147 : vector<2x32xf32>
    %cst_32 = arith.constant 1.000000e+00 : f32
    %149 = vector.broadcast %cst_32 : f32 to vector<2x32xf32>
    %150 = arith.addf %149, %148 : vector<2x32xf32>
    %151 = arith.divf %149, %150 : vector<2x32xf32>
    %152 = vector.extract_strided_slice %33 {offsets = [0, 64], sizes = [2, 32], strides = [1, 1]} : vector<2x96xf32> to vector<2x32xf32>
    %153 = vector.extract_strided_slice %135 {offsets = [0, 64], sizes = [2, 32], strides = [1, 1]} : vector<2x96xf32> to vector<2x32xf32>
    %154 = arith.mulf %143, %153 : vector<2x32xf32>
    %155 = arith.addf %152, %154 : vector<2x32xf32>
    %156 = math.tanh %155 : vector<2x32xf32>
    %cst_33 = arith.constant 1.000000e+00 : f32
    %157 = vector.broadcast %cst_33 : f32 to vector<2x32xf32>
    %158 = arith.subf %157, %151 : vector<2x32xf32>
    %159 = arith.mulf %158, %156 : vector<2x32xf32>
    %160 = arith.mulf %151, %132 : vector<2x32xf32>
    %161 = arith.addf %159, %160 : vector<2x32xf32>
    %cst_34 = arith.constant dense<0.000000e+00> : vector<2x96xf32>
    %162 = tpu.matmul %161, %19, %cst_34 {dimension_numbers = #tpu.dot_dimension_numbers<[1], [0], [0], [1], [0, 0, 1, 1], [], []>} : vector<2x32xf32>, vector<32x96xf32>, vector<2x96xf32> -> vector<2x96xf32>
    %163 = vector.broadcast %21 : vector<1x96xf32> to vector<2x96xf32>
    %164 = arith.addf %162, %163 : vector<2x96xf32>
    %165 = vector.extract_strided_slice %36 {offsets = [0, 0], sizes = [2, 32], strides = [1, 1]} : vector<2x96xf32> to vector<2x32xf32>
    %166 = vector.extract_strided_slice %164 {offsets = [0, 0], sizes = [2, 32], strides = [1, 1]} : vector<2x96xf32> to vector<2x32xf32>
    %167 = arith.addf %165, %166 : vector<2x32xf32>
    %168 = arith.negf %167 : vector<2x32xf32>
    %169 = math.exp %168 : vector<2x32xf32>
    %cst_35 = arith.constant 1.000000e+00 : f32
    %170 = vector.broadcast %cst_35 : f32 to vector<2x32xf32>
    %171 = arith.addf %170, %169 : vector<2x32xf32>
    %172 = arith.divf %170, %171 : vector<2x32xf32>
    %173 = vector.extract_strided_slice %36 {offsets = [0, 32], sizes = [2, 32], strides = [1, 1]} : vector<2x96xf32> to vector<2x32xf32>
    %174 = vector.extract_strided_slice %164 {offsets = [0, 32], sizes = [2, 32], strides = [1, 1]} : vector<2x96xf32> to vector<2x32xf32>
    %175 = arith.addf %173, %174 : vector<2x32xf32>
    %176 = arith.negf %175 : vector<2x32xf32>
    %177 = math.exp %176 : vector<2x32xf32>
    %cst_36 = arith.constant 1.000000e+00 : f32
    %178 = vector.broadcast %cst_36 : f32 to vector<2x32xf32>
    %179 = arith.addf %178, %177 : vector<2x32xf32>
    %180 = arith.divf %178, %179 : vector<2x32xf32>
    %181 = vector.extract_strided_slice %36 {offsets = [0, 64], sizes = [2, 32], strides = [1, 1]} : vector<2x96xf32> to vector<2x32xf32>
    %182 = vector.extract_strided_slice %164 {offsets = [0, 64], sizes = [2, 32], strides = [1, 1]} : vector<2x96xf32> to vector<2x32xf32>
    %183 = arith.mulf %172, %182 : vector<2x32xf32>
    %184 = arith.addf %181, %183 : vector<2x32xf32>
    %185 = math.tanh %184 : vector<2x32xf32>
    %cst_37 = arith.constant 1.000000e+00 : f32
    %186 = vector.broadcast %cst_37 : f32 to vector<2x32xf32>
    %187 = arith.subf %186, %180 : vector<2x32xf32>
    %188 = arith.mulf %187, %185 : vector<2x32xf32>
    %189 = arith.mulf %180, %161 : vector<2x32xf32>
    %190 = arith.addf %188, %189 : vector<2x32xf32>
    %cst_38 = arith.constant dense<0.000000e+00> : vector<2x96xf32>
    %191 = tpu.matmul %190, %19, %cst_38 {dimension_numbers = #tpu.dot_dimension_numbers<[1], [0], [0], [1], [0, 0, 1, 1], [], []>} : vector<2x32xf32>, vector<32x96xf32>, vector<2x96xf32> -> vector<2x96xf32>
    %192 = vector.broadcast %21 : vector<1x96xf32> to vector<2x96xf32>
    %193 = arith.addf %191, %192 : vector<2x96xf32>
    %194 = vector.extract_strided_slice %39 {offsets = [0, 0], sizes = [2, 32], strides = [1, 1]} : vector<2x96xf32> to vector<2x32xf32>
    %195 = vector.extract_strided_slice %193 {offsets = [0, 0], sizes = [2, 32], strides = [1, 1]} : vector<2x96xf32> to vector<2x32xf32>
    %196 = arith.addf %194, %195 : vector<2x32xf32>
    %197 = arith.negf %196 : vector<2x32xf32>
    %198 = math.exp %197 : vector<2x32xf32>
    %cst_39 = arith.constant 1.000000e+00 : f32
    %199 = vector.broadcast %cst_39 : f32 to vector<2x32xf32>
    %200 = arith.addf %199, %198 : vector<2x32xf32>
    %201 = arith.divf %199, %200 : vector<2x32xf32>
    %202 = vector.extract_strided_slice %39 {offsets = [0, 32], sizes = [2, 32], strides = [1, 1]} : vector<2x96xf32> to vector<2x32xf32>
    %203 = vector.extract_strided_slice %193 {offsets = [0, 32], sizes = [2, 32], strides = [1, 1]} : vector<2x96xf32> to vector<2x32xf32>
    %204 = arith.addf %202, %203 : vector<2x32xf32>
    %205 = arith.negf %204 : vector<2x32xf32>
    %206 = math.exp %205 : vector<2x32xf32>
    %cst_40 = arith.constant 1.000000e+00 : f32
    %207 = vector.broadcast %cst_40 : f32 to vector<2x32xf32>
    %208 = arith.addf %207, %206 : vector<2x32xf32>
    %209 = arith.divf %207, %208 : vector<2x32xf32>
    %210 = vector.extract_strided_slice %39 {offsets = [0, 64], sizes = [2, 32], strides = [1, 1]} : vector<2x96xf32> to vector<2x32xf32>
    %211 = vector.extract_strided_slice %193 {offsets = [0, 64], sizes = [2, 32], strides = [1, 1]} : vector<2x96xf32> to vector<2x32xf32>
    %212 = arith.mulf %201, %211 : vector<2x32xf32>
    %213 = arith.addf %210, %212 : vector<2x32xf32>
    %214 = math.tanh %213 : vector<2x32xf32>
    %cst_41 = arith.constant 1.000000e+00 : f32
    %215 = vector.broadcast %cst_41 : f32 to vector<2x32xf32>
    %216 = arith.subf %215, %209 : vector<2x32xf32>
    %217 = arith.mulf %216, %214 : vector<2x32xf32>
    %218 = arith.mulf %209, %190 : vector<2x32xf32>
    %219 = arith.addf %217, %218 : vector<2x32xf32>
    %cst_42 = arith.constant dense<0.000000e+00> : vector<2x96xf32>
    %220 = tpu.matmul %219, %19, %cst_42 {dimension_numbers = #tpu.dot_dimension_numbers<[1], [0], [0], [1], [0, 0, 1, 1], [], []>} : vector<2x32xf32>, vector<32x96xf32>, vector<2x96xf32> -> vector<2x96xf32>
    %221 = vector.broadcast %21 : vector<1x96xf32> to vector<2x96xf32>
    %222 = arith.addf %220, %221 : vector<2x96xf32>
    %223 = vector.extract_strided_slice %42 {offsets = [0, 0], sizes = [2, 32], strides = [1, 1]} : vector<2x96xf32> to vector<2x32xf32>
    %224 = vector.extract_strided_slice %222 {offsets = [0, 0], sizes = [2, 32], strides = [1, 1]} : vector<2x96xf32> to vector<2x32xf32>
    %225 = arith.addf %223, %224 : vector<2x32xf32>
    %226 = arith.negf %225 : vector<2x32xf32>
    %227 = math.exp %226 : vector<2x32xf32>
    %cst_43 = arith.constant 1.000000e+00 : f32
    %228 = vector.broadcast %cst_43 : f32 to vector<2x32xf32>
    %229 = arith.addf %228, %227 : vector<2x32xf32>
    %230 = arith.divf %228, %229 : vector<2x32xf32>
    %231 = vector.extract_strided_slice %42 {offsets = [0, 32], sizes = [2, 32], strides = [1, 1]} : vector<2x96xf32> to vector<2x32xf32>
    %232 = vector.extract_strided_slice %222 {offsets = [0, 32], sizes = [2, 32], strides = [1, 1]} : vector<2x96xf32> to vector<2x32xf32>
    %233 = arith.addf %231, %232 : vector<2x32xf32>
    %234 = arith.negf %233 : vector<2x32xf32>
    %235 = math.exp %234 : vector<2x32xf32>
    %cst_44 = arith.constant 1.000000e+00 : f32
    %236 = vector.broadcast %cst_44 : f32 to vector<2x32xf32>
    %237 = arith.addf %236, %235 : vector<2x32xf32>
    %238 = arith.divf %236, %237 : vector<2x32xf32>
    %239 = vector.extract_strided_slice %42 {offsets = [0, 64], sizes = [2, 32], strides = [1, 1]} : vector<2x96xf32> to vector<2x32xf32>
    %240 = vector.extract_strided_slice %222 {offsets = [0, 64], sizes = [2, 32], strides = [1, 1]} : vector<2x96xf32> to vector<2x32xf32>
    %241 = arith.mulf %230, %240 : vector<2x32xf32>
    %242 = arith.addf %239, %241 : vector<2x32xf32>
    %243 = math.tanh %242 : vector<2x32xf32>
    %cst_45 = arith.constant 1.000000e+00 : f32
    %244 = vector.broadcast %cst_45 : f32 to vector<2x32xf32>
    %245 = arith.subf %244, %238 : vector<2x32xf32>
    %246 = arith.mulf %245, %243 : vector<2x32xf32>
    %247 = arith.mulf %238, %219 : vector<2x32xf32>
    %248 = arith.addf %246, %247 : vector<2x32xf32>
    %cst_46 = arith.constant dense<0.000000e+00> : vector<2x96xf32>
    %249 = tpu.matmul %248, %19, %cst_46 {dimension_numbers = #tpu.dot_dimension_numbers<[1], [0], [0], [1], [0, 0, 1, 1], [], []>} : vector<2x32xf32>, vector<32x96xf32>, vector<2x96xf32> -> vector<2x96xf32>
    %250 = vector.broadcast %21 : vector<1x96xf32> to vector<2x96xf32>
    %251 = arith.addf %249, %250 : vector<2x96xf32>
    %252 = vector.extract_strided_slice %45 {offsets = [0, 0], sizes = [2, 32], strides = [1, 1]} : vector<2x96xf32> to vector<2x32xf32>
    %253 = vector.extract_strided_slice %251 {offsets = [0, 0], sizes = [2, 32], strides = [1, 1]} : vector<2x96xf32> to vector<2x32xf32>
    %254 = arith.addf %252, %253 : vector<2x32xf32>
    %255 = arith.negf %254 : vector<2x32xf32>
    %256 = math.exp %255 : vector<2x32xf32>
    %cst_47 = arith.constant 1.000000e+00 : f32
    %257 = vector.broadcast %cst_47 : f32 to vector<2x32xf32>
    %258 = arith.addf %257, %256 : vector<2x32xf32>
    %259 = arith.divf %257, %258 : vector<2x32xf32>
    %260 = vector.extract_strided_slice %45 {offsets = [0, 32], sizes = [2, 32], strides = [1, 1]} : vector<2x96xf32> to vector<2x32xf32>
    %261 = vector.extract_strided_slice %251 {offsets = [0, 32], sizes = [2, 32], strides = [1, 1]} : vector<2x96xf32> to vector<2x32xf32>
    %262 = arith.addf %260, %261 : vector<2x32xf32>
    %263 = arith.negf %262 : vector<2x32xf32>
    %264 = math.exp %263 : vector<2x32xf32>
    %cst_48 = arith.constant 1.000000e+00 : f32
    %265 = vector.broadcast %cst_48 : f32 to vector<2x32xf32>
    %266 = arith.addf %265, %264 : vector<2x32xf32>
    %267 = arith.divf %265, %266 : vector<2x32xf32>
    %268 = vector.extract_strided_slice %45 {offsets = [0, 64], sizes = [2, 32], strides = [1, 1]} : vector<2x96xf32> to vector<2x32xf32>
    %269 = vector.extract_strided_slice %251 {offsets = [0, 64], sizes = [2, 32], strides = [1, 1]} : vector<2x96xf32> to vector<2x32xf32>
    %270 = arith.mulf %259, %269 : vector<2x32xf32>
    %271 = arith.addf %268, %270 : vector<2x32xf32>
    %272 = math.tanh %271 : vector<2x32xf32>
    %cst_49 = arith.constant 1.000000e+00 : f32
    %273 = vector.broadcast %cst_49 : f32 to vector<2x32xf32>
    %274 = arith.subf %273, %267 : vector<2x32xf32>
    %275 = arith.mulf %274, %272 : vector<2x32xf32>
    %276 = arith.mulf %267, %248 : vector<2x32xf32>
    %277 = arith.addf %275, %276 : vector<2x32xf32>
    %c0_50 = arith.constant 0 : index
    %c0_51 = arith.constant 0 : index
    %278 = vector.load %arg5[%c0_50, %c0_51] : memref<4x96xf32, #tpu.memory_space<vmem>>, vector<4x96xf32>
    %c0_52 = arith.constant 0 : index
    %c0_53 = arith.constant 0 : index
    %279 = vector.load %arg6[%c0_52, %c0_53] : memref<32x96xf32, #tpu.memory_space<vmem>>, vector<32x96xf32>
    %c0_54 = arith.constant 0 : index
    %c0_55 = arith.constant 0 : index
    %280 = vector.load %arg7[%c0_54, %c0_55] : memref<1x96xf32, #tpu.memory_space<vmem>>, vector<1x96xf32>
    %c0_56 = arith.constant 0 : index
    %c0_57 = arith.constant 0 : index
    %281 = vector.load %arg8[%c0_56, %c0_57] : memref<1x96xf32, #tpu.memory_space<vmem>>, vector<1x96xf32>
    %cst_58 = arith.constant dense<0.000000e+00> : vector<2x96xf32>
    %282 = tpu.matmul %3, %278, %cst_58 {dimension_numbers = #tpu.dot_dimension_numbers<[1], [0], [0], [1], [0, 0, 1, 1], [], []>} : vector<2x4xf32>, vector<4x96xf32>, vector<2x96xf32> -> vector<2x96xf32>
    %283 = vector.broadcast %280 : vector<1x96xf32> to vector<2x96xf32>
    %284 = arith.addf %282, %283 : vector<2x96xf32>
    %cst_59 = arith.constant dense<0.000000e+00> : vector<2x96xf32>
    %285 = tpu.matmul %5, %278, %cst_59 {dimension_numbers = #tpu.dot_dimension_numbers<[1], [0], [0], [1], [0, 0, 1, 1], [], []>} : vector<2x4xf32>, vector<4x96xf32>, vector<2x96xf32> -> vector<2x96xf32>
    %286 = vector.broadcast %280 : vector<1x96xf32> to vector<2x96xf32>
    %287 = arith.addf %285, %286 : vector<2x96xf32>
    %cst_60 = arith.constant dense<0.000000e+00> : vector<2x96xf32>
    %288 = tpu.matmul %7, %278, %cst_60 {dimension_numbers = #tpu.dot_dimension_numbers<[1], [0], [0], [1], [0, 0, 1, 1], [], []>} : vector<2x4xf32>, vector<4x96xf32>, vector<2x96xf32> -> vector<2x96xf32>
    %289 = vector.broadcast %280 : vector<1x96xf32> to vector<2x96xf32>
    %290 = arith.addf %288, %289 : vector<2x96xf32>
    %cst_61 = arith.constant dense<0.000000e+00> : vector<2x96xf32>
    %291 = tpu.matmul %9, %278, %cst_61 {dimension_numbers = #tpu.dot_dimension_numbers<[1], [0], [0], [1], [0, 0, 1, 1], [], []>} : vector<2x4xf32>, vector<4x96xf32>, vector<2x96xf32> -> vector<2x96xf32>
    %292 = vector.broadcast %280 : vector<1x96xf32> to vector<2x96xf32>
    %293 = arith.addf %291, %292 : vector<2x96xf32>
    %cst_62 = arith.constant dense<0.000000e+00> : vector<2x96xf32>
    %294 = tpu.matmul %11, %278, %cst_62 {dimension_numbers = #tpu.dot_dimension_numbers<[1], [0], [0], [1], [0, 0, 1, 1], [], []>} : vector<2x4xf32>, vector<4x96xf32>, vector<2x96xf32> -> vector<2x96xf32>
    %295 = vector.broadcast %280 : vector<1x96xf32> to vector<2x96xf32>
    %296 = arith.addf %294, %295 : vector<2x96xf32>
    %cst_63 = arith.constant dense<0.000000e+00> : vector<2x96xf32>
    %297 = tpu.matmul %13, %278, %cst_63 {dimension_numbers = #tpu.dot_dimension_numbers<[1], [0], [0], [1], [0, 0, 1, 1], [], []>} : vector<2x4xf32>, vector<4x96xf32>, vector<2x96xf32> -> vector<2x96xf32>
    %298 = vector.broadcast %280 : vector<1x96xf32> to vector<2x96xf32>
    %299 = arith.addf %297, %298 : vector<2x96xf32>
    %cst_64 = arith.constant dense<0.000000e+00> : vector<2x96xf32>
    %300 = tpu.matmul %15, %278, %cst_64 {dimension_numbers = #tpu.dot_dimension_numbers<[1], [0], [0], [1], [0, 0, 1, 1], [], []>} : vector<2x4xf32>, vector<4x96xf32>, vector<2x96xf32> -> vector<2x96xf32>
    %301 = vector.broadcast %280 : vector<1x96xf32> to vector<2x96xf32>
    %302 = arith.addf %300, %301 : vector<2x96xf32>
    %cst_65 = arith.constant dense<0.000000e+00> : vector<2x96xf32>
    %303 = tpu.matmul %17, %278, %cst_65 {dimension_numbers = #tpu.dot_dimension_numbers<[1], [0], [0], [1], [0, 0, 1, 1], [], []>} : vector<2x4xf32>, vector<4x96xf32>, vector<2x96xf32> -> vector<2x96xf32>
    %304 = vector.broadcast %280 : vector<1x96xf32> to vector<2x96xf32>
    %305 = arith.addf %303, %304 : vector<2x96xf32>
    %cst_66 = arith.constant dense<0.000000e+00> : vector<2x96xf32>
    %306 = tpu.matmul %1, %279, %cst_66 {dimension_numbers = #tpu.dot_dimension_numbers<[1], [0], [0], [1], [0, 0, 1, 1], [], []>} : vector<2x32xf32>, vector<32x96xf32>, vector<2x96xf32> -> vector<2x96xf32>
    %307 = vector.broadcast %281 : vector<1x96xf32> to vector<2x96xf32>
    %308 = arith.addf %306, %307 : vector<2x96xf32>
    %309 = vector.extract_strided_slice %305 {offsets = [0, 0], sizes = [2, 32], strides = [1, 1]} : vector<2x96xf32> to vector<2x32xf32>
    %310 = vector.extract_strided_slice %308 {offsets = [0, 0], sizes = [2, 32], strides = [1, 1]} : vector<2x96xf32> to vector<2x32xf32>
    %311 = arith.addf %309, %310 : vector<2x32xf32>
    %312 = arith.negf %311 : vector<2x32xf32>
    %313 = math.exp %312 : vector<2x32xf32>
    %cst_67 = arith.constant 1.000000e+00 : f32
    %314 = vector.broadcast %cst_67 : f32 to vector<2x32xf32>
    %315 = arith.addf %314, %313 : vector<2x32xf32>
    %316 = arith.divf %314, %315 : vector<2x32xf32>
    %317 = vector.extract_strided_slice %305 {offsets = [0, 32], sizes = [2, 32], strides = [1, 1]} : vector<2x96xf32> to vector<2x32xf32>
    %318 = vector.extract_strided_slice %308 {offsets = [0, 32], sizes = [2, 32], strides = [1, 1]} : vector<2x96xf32> to vector<2x32xf32>
    %319 = arith.addf %317, %318 : vector<2x32xf32>
    %320 = arith.negf %319 : vector<2x32xf32>
    %321 = math.exp %320 : vector<2x32xf32>
    %cst_68 = arith.constant 1.000000e+00 : f32
    %322 = vector.broadcast %cst_68 : f32 to vector<2x32xf32>
    %323 = arith.addf %322, %321 : vector<2x32xf32>
    %324 = arith.divf %322, %323 : vector<2x32xf32>
    %325 = vector.extract_strided_slice %305 {offsets = [0, 64], sizes = [2, 32], strides = [1, 1]} : vector<2x96xf32> to vector<2x32xf32>
    %326 = vector.extract_strided_slice %308 {offsets = [0, 64], sizes = [2, 32], strides = [1, 1]} : vector<2x96xf32> to vector<2x32xf32>
    %327 = arith.mulf %316, %326 : vector<2x32xf32>
    %328 = arith.addf %325, %327 : vector<2x32xf32>
    %329 = math.tanh %328 : vector<2x32xf32>
    %cst_69 = arith.constant 1.000000e+00 : f32
    %330 = vector.broadcast %cst_69 : f32 to vector<2x32xf32>
    %331 = arith.subf %330, %324 : vector<2x32xf32>
    %332 = arith.mulf %331, %329 : vector<2x32xf32>
    %333 = arith.mulf %324, %1 : vector<2x32xf32>
    %334 = arith.addf %332, %333 : vector<2x32xf32>
    %cst_70 = arith.constant dense<0.000000e+00> : vector<2x96xf32>
    %335 = tpu.matmul %334, %279, %cst_70 {dimension_numbers = #tpu.dot_dimension_numbers<[1], [0], [0], [1], [0, 0, 1, 1], [], []>} : vector<2x32xf32>, vector<32x96xf32>, vector<2x96xf32> -> vector<2x96xf32>
    %336 = vector.broadcast %281 : vector<1x96xf32> to vector<2x96xf32>
    %337 = arith.addf %335, %336 : vector<2x96xf32>
    %338 = vector.extract_strided_slice %302 {offsets = [0, 0], sizes = [2, 32], strides = [1, 1]} : vector<2x96xf32> to vector<2x32xf32>
    %339 = vector.extract_strided_slice %337 {offsets = [0, 0], sizes = [2, 32], strides = [1, 1]} : vector<2x96xf32> to vector<2x32xf32>
    %340 = arith.addf %338, %339 : vector<2x32xf32>
    %341 = arith.negf %340 : vector<2x32xf32>
    %342 = math.exp %341 : vector<2x32xf32>
    %cst_71 = arith.constant 1.000000e+00 : f32
    %343 = vector.broadcast %cst_71 : f32 to vector<2x32xf32>
    %344 = arith.addf %343, %342 : vector<2x32xf32>
    %345 = arith.divf %343, %344 : vector<2x32xf32>
    %346 = vector.extract_strided_slice %302 {offsets = [0, 32], sizes = [2, 32], strides = [1, 1]} : vector<2x96xf32> to vector<2x32xf32>
    %347 = vector.extract_strided_slice %337 {offsets = [0, 32], sizes = [2, 32], strides = [1, 1]} : vector<2x96xf32> to vector<2x32xf32>
    %348 = arith.addf %346, %347 : vector<2x32xf32>
    %349 = arith.negf %348 : vector<2x32xf32>
    %350 = math.exp %349 : vector<2x32xf32>
    %cst_72 = arith.constant 1.000000e+00 : f32
    %351 = vector.broadcast %cst_72 : f32 to vector<2x32xf32>
    %352 = arith.addf %351, %350 : vector<2x32xf32>
    %353 = arith.divf %351, %352 : vector<2x32xf32>
    %354 = vector.extract_strided_slice %302 {offsets = [0, 64], sizes = [2, 32], strides = [1, 1]} : vector<2x96xf32> to vector<2x32xf32>
    %355 = vector.extract_strided_slice %337 {offsets = [0, 64], sizes = [2, 32], strides = [1, 1]} : vector<2x96xf32> to vector<2x32xf32>
    %356 = arith.mulf %345, %355 : vector<2x32xf32>
    %357 = arith.addf %354, %356 : vector<2x32xf32>
    %358 = math.tanh %357 : vector<2x32xf32>
    %cst_73 = arith.constant 1.000000e+00 : f32
    %359 = vector.broadcast %cst_73 : f32 to vector<2x32xf32>
    %360 = arith.subf %359, %353 : vector<2x32xf32>
    %361 = arith.mulf %360, %358 : vector<2x32xf32>
    %362 = arith.mulf %353, %334 : vector<2x32xf32>
    %363 = arith.addf %361, %362 : vector<2x32xf32>
    %cst_74 = arith.constant dense<0.000000e+00> : vector<2x96xf32>
    %364 = tpu.matmul %363, %279, %cst_74 {dimension_numbers = #tpu.dot_dimension_numbers<[1], [0], [0], [1], [0, 0, 1, 1], [], []>} : vector<2x32xf32>, vector<32x96xf32>, vector<2x96xf32> -> vector<2x96xf32>
    %365 = vector.broadcast %281 : vector<1x96xf32> to vector<2x96xf32>
    %366 = arith.addf %364, %365 : vector<2x96xf32>
    %367 = vector.extract_strided_slice %299 {offsets = [0, 0], sizes = [2, 32], strides = [1, 1]} : vector<2x96xf32> to vector<2x32xf32>
    %368 = vector.extract_strided_slice %366 {offsets = [0, 0], sizes = [2, 32], strides = [1, 1]} : vector<2x96xf32> to vector<2x32xf32>
    %369 = arith.addf %367, %368 : vector<2x32xf32>
    %370 = arith.negf %369 : vector<2x32xf32>
    %371 = math.exp %370 : vector<2x32xf32>
    %cst_75 = arith.constant 1.000000e+00 : f32
    %372 = vector.broadcast %cst_75 : f32 to vector<2x32xf32>
    %373 = arith.addf %372, %371 : vector<2x32xf32>
    %374 = arith.divf %372, %373 : vector<2x32xf32>
    %375 = vector.extract_strided_slice %299 {offsets = [0, 32], sizes = [2, 32], strides = [1, 1]} : vector<2x96xf32> to vector<2x32xf32>
    %376 = vector.extract_strided_slice %366 {offsets = [0, 32], sizes = [2, 32], strides = [1, 1]} : vector<2x96xf32> to vector<2x32xf32>
    %377 = arith.addf %375, %376 : vector<2x32xf32>
    %378 = arith.negf %377 : vector<2x32xf32>
    %379 = math.exp %378 : vector<2x32xf32>
    %cst_76 = arith.constant 1.000000e+00 : f32
    %380 = vector.broadcast %cst_76 : f32 to vector<2x32xf32>
    %381 = arith.addf %380, %379 : vector<2x32xf32>
    %382 = arith.divf %380, %381 : vector<2x32xf32>
    %383 = vector.extract_strided_slice %299 {offsets = [0, 64], sizes = [2, 32], strides = [1, 1]} : vector<2x96xf32> to vector<2x32xf32>
    %384 = vector.extract_strided_slice %366 {offsets = [0, 64], sizes = [2, 32], strides = [1, 1]} : vector<2x96xf32> to vector<2x32xf32>
    %385 = arith.mulf %374, %384 : vector<2x32xf32>
    %386 = arith.addf %383, %385 : vector<2x32xf32>
    %387 = math.tanh %386 : vector<2x32xf32>
    %cst_77 = arith.constant 1.000000e+00 : f32
    %388 = vector.broadcast %cst_77 : f32 to vector<2x32xf32>
    %389 = arith.subf %388, %382 : vector<2x32xf32>
    %390 = arith.mulf %389, %387 : vector<2x32xf32>
    %391 = arith.mulf %382, %363 : vector<2x32xf32>
    %392 = arith.addf %390, %391 : vector<2x32xf32>
    %cst_78 = arith.constant dense<0.000000e+00> : vector<2x96xf32>
    %393 = tpu.matmul %392, %279, %cst_78 {dimension_numbers = #tpu.dot_dimension_numbers<[1], [0], [0], [1], [0, 0, 1, 1], [], []>} : vector<2x32xf32>, vector<32x96xf32>, vector<2x96xf32> -> vector<2x96xf32>
    %394 = vector.broadcast %281 : vector<1x96xf32> to vector<2x96xf32>
    %395 = arith.addf %393, %394 : vector<2x96xf32>
    %396 = vector.extract_strided_slice %296 {offsets = [0, 0], sizes = [2, 32], strides = [1, 1]} : vector<2x96xf32> to vector<2x32xf32>
    %397 = vector.extract_strided_slice %395 {offsets = [0, 0], sizes = [2, 32], strides = [1, 1]} : vector<2x96xf32> to vector<2x32xf32>
    %398 = arith.addf %396, %397 : vector<2x32xf32>
    %399 = arith.negf %398 : vector<2x32xf32>
    %400 = math.exp %399 : vector<2x32xf32>
    %cst_79 = arith.constant 1.000000e+00 : f32
    %401 = vector.broadcast %cst_79 : f32 to vector<2x32xf32>
    %402 = arith.addf %401, %400 : vector<2x32xf32>
    %403 = arith.divf %401, %402 : vector<2x32xf32>
    %404 = vector.extract_strided_slice %296 {offsets = [0, 32], sizes = [2, 32], strides = [1, 1]} : vector<2x96xf32> to vector<2x32xf32>
    %405 = vector.extract_strided_slice %395 {offsets = [0, 32], sizes = [2, 32], strides = [1, 1]} : vector<2x96xf32> to vector<2x32xf32>
    %406 = arith.addf %404, %405 : vector<2x32xf32>
    %407 = arith.negf %406 : vector<2x32xf32>
    %408 = math.exp %407 : vector<2x32xf32>
    %cst_80 = arith.constant 1.000000e+00 : f32
    %409 = vector.broadcast %cst_80 : f32 to vector<2x32xf32>
    %410 = arith.addf %409, %408 : vector<2x32xf32>
    %411 = arith.divf %409, %410 : vector<2x32xf32>
    %412 = vector.extract_strided_slice %296 {offsets = [0, 64], sizes = [2, 32], strides = [1, 1]} : vector<2x96xf32> to vector<2x32xf32>
    %413 = vector.extract_strided_slice %395 {offsets = [0, 64], sizes = [2, 32], strides = [1, 1]} : vector<2x96xf32> to vector<2x32xf32>
    %414 = arith.mulf %403, %413 : vector<2x32xf32>
    %415 = arith.addf %412, %414 : vector<2x32xf32>
    %416 = math.tanh %415 : vector<2x32xf32>
    %cst_81 = arith.constant 1.000000e+00 : f32
    %417 = vector.broadcast %cst_81 : f32 to vector<2x32xf32>
    %418 = arith.subf %417, %411 : vector<2x32xf32>
    %419 = arith.mulf %418, %416 : vector<2x32xf32>
    %420 = arith.mulf %411, %392 : vector<2x32xf32>
    %421 = arith.addf %419, %420 : vector<2x32xf32>
    %cst_82 = arith.constant dense<0.000000e+00> : vector<2x96xf32>
    %422 = tpu.matmul %421, %279, %cst_82 {dimension_numbers = #tpu.dot_dimension_numbers<[1], [0], [0], [1], [0, 0, 1, 1], [], []>} : vector<2x32xf32>, vector<32x96xf32>, vector<2x96xf32> -> vector<2x96xf32>
    %423 = vector.broadcast %281 : vector<1x96xf32> to vector<2x96xf32>
    %424 = arith.addf %422, %423 : vector<2x96xf32>
    %425 = vector.extract_strided_slice %293 {offsets = [0, 0], sizes = [2, 32], strides = [1, 1]} : vector<2x96xf32> to vector<2x32xf32>
    %426 = vector.extract_strided_slice %424 {offsets = [0, 0], sizes = [2, 32], strides = [1, 1]} : vector<2x96xf32> to vector<2x32xf32>
    %427 = arith.addf %425, %426 : vector<2x32xf32>
    %428 = arith.negf %427 : vector<2x32xf32>
    %429 = math.exp %428 : vector<2x32xf32>
    %cst_83 = arith.constant 1.000000e+00 : f32
    %430 = vector.broadcast %cst_83 : f32 to vector<2x32xf32>
    %431 = arith.addf %430, %429 : vector<2x32xf32>
    %432 = arith.divf %430, %431 : vector<2x32xf32>
    %433 = vector.extract_strided_slice %293 {offsets = [0, 32], sizes = [2, 32], strides = [1, 1]} : vector<2x96xf32> to vector<2x32xf32>
    %434 = vector.extract_strided_slice %424 {offsets = [0, 32], sizes = [2, 32], strides = [1, 1]} : vector<2x96xf32> to vector<2x32xf32>
    %435 = arith.addf %433, %434 : vector<2x32xf32>
    %436 = arith.negf %435 : vector<2x32xf32>
    %437 = math.exp %436 : vector<2x32xf32>
    %cst_84 = arith.constant 1.000000e+00 : f32
    %438 = vector.broadcast %cst_84 : f32 to vector<2x32xf32>
    %439 = arith.addf %438, %437 : vector<2x32xf32>
    %440 = arith.divf %438, %439 : vector<2x32xf32>
    %441 = vector.extract_strided_slice %293 {offsets = [0, 64], sizes = [2, 32], strides = [1, 1]} : vector<2x96xf32> to vector<2x32xf32>
    %442 = vector.extract_strided_slice %424 {offsets = [0, 64], sizes = [2, 32], strides = [1, 1]} : vector<2x96xf32> to vector<2x32xf32>
    %443 = arith.mulf %432, %442 : vector<2x32xf32>
    %444 = arith.addf %441, %443 : vector<2x32xf32>
    %445 = math.tanh %444 : vector<2x32xf32>
    %cst_85 = arith.constant 1.000000e+00 : f32
    %446 = vector.broadcast %cst_85 : f32 to vector<2x32xf32>
    %447 = arith.subf %446, %440 : vector<2x32xf32>
    %448 = arith.mulf %447, %445 : vector<2x32xf32>
    %449 = arith.mulf %440, %421 : vector<2x32xf32>
    %450 = arith.addf %448, %449 : vector<2x32xf32>
    %cst_86 = arith.constant dense<0.000000e+00> : vector<2x96xf32>
    %451 = tpu.matmul %450, %279, %cst_86 {dimension_numbers = #tpu.dot_dimension_numbers<[1], [0], [0], [1], [0, 0, 1, 1], [], []>} : vector<2x32xf32>, vector<32x96xf32>, vector<2x96xf32> -> vector<2x96xf32>
    %452 = vector.broadcast %281 : vector<1x96xf32> to vector<2x96xf32>
    %453 = arith.addf %451, %452 : vector<2x96xf32>
    %454 = vector.extract_strided_slice %290 {offsets = [0, 0], sizes = [2, 32], strides = [1, 1]} : vector<2x96xf32> to vector<2x32xf32>
    %455 = vector.extract_strided_slice %453 {offsets = [0, 0], sizes = [2, 32], strides = [1, 1]} : vector<2x96xf32> to vector<2x32xf32>
    %456 = arith.addf %454, %455 : vector<2x32xf32>
    %457 = arith.negf %456 : vector<2x32xf32>
    %458 = math.exp %457 : vector<2x32xf32>
    %cst_87 = arith.constant 1.000000e+00 : f32
    %459 = vector.broadcast %cst_87 : f32 to vector<2x32xf32>
    %460 = arith.addf %459, %458 : vector<2x32xf32>
    %461 = arith.divf %459, %460 : vector<2x32xf32>
    %462 = vector.extract_strided_slice %290 {offsets = [0, 32], sizes = [2, 32], strides = [1, 1]} : vector<2x96xf32> to vector<2x32xf32>
    %463 = vector.extract_strided_slice %453 {offsets = [0, 32], sizes = [2, 32], strides = [1, 1]} : vector<2x96xf32> to vector<2x32xf32>
    %464 = arith.addf %462, %463 : vector<2x32xf32>
    %465 = arith.negf %464 : vector<2x32xf32>
    %466 = math.exp %465 : vector<2x32xf32>
    %cst_88 = arith.constant 1.000000e+00 : f32
    %467 = vector.broadcast %cst_88 : f32 to vector<2x32xf32>
    %468 = arith.addf %467, %466 : vector<2x32xf32>
    %469 = arith.divf %467, %468 : vector<2x32xf32>
    %470 = vector.extract_strided_slice %290 {offsets = [0, 64], sizes = [2, 32], strides = [1, 1]} : vector<2x96xf32> to vector<2x32xf32>
    %471 = vector.extract_strided_slice %453 {offsets = [0, 64], sizes = [2, 32], strides = [1, 1]} : vector<2x96xf32> to vector<2x32xf32>
    %472 = arith.mulf %461, %471 : vector<2x32xf32>
    %473 = arith.addf %470, %472 : vector<2x32xf32>
    %474 = math.tanh %473 : vector<2x32xf32>
    %cst_89 = arith.constant 1.000000e+00 : f32
    %475 = vector.broadcast %cst_89 : f32 to vector<2x32xf32>
    %476 = arith.subf %475, %469 : vector<2x32xf32>
    %477 = arith.mulf %476, %474 : vector<2x32xf32>
    %478 = arith.mulf %469, %450 : vector<2x32xf32>
    %479 = arith.addf %477, %478 : vector<2x32xf32>
    %cst_90 = arith.constant dense<0.000000e+00> : vector<2x96xf32>
    %480 = tpu.matmul %479, %279, %cst_90 {dimension_numbers = #tpu.dot_dimension_numbers<[1], [0], [0], [1], [0, 0, 1, 1], [], []>} : vector<2x32xf32>, vector<32x96xf32>, vector<2x96xf32> -> vector<2x96xf32>
    %481 = vector.broadcast %281 : vector<1x96xf32> to vector<2x96xf32>
    %482 = arith.addf %480, %481 : vector<2x96xf32>
    %483 = vector.extract_strided_slice %287 {offsets = [0, 0], sizes = [2, 32], strides = [1, 1]} : vector<2x96xf32> to vector<2x32xf32>
    %484 = vector.extract_strided_slice %482 {offsets = [0, 0], sizes = [2, 32], strides = [1, 1]} : vector<2x96xf32> to vector<2x32xf32>
    %485 = arith.addf %483, %484 : vector<2x32xf32>
    %486 = arith.negf %485 : vector<2x32xf32>
    %487 = math.exp %486 : vector<2x32xf32>
    %cst_91 = arith.constant 1.000000e+00 : f32
    %488 = vector.broadcast %cst_91 : f32 to vector<2x32xf32>
    %489 = arith.addf %488, %487 : vector<2x32xf32>
    %490 = arith.divf %488, %489 : vector<2x32xf32>
    %491 = vector.extract_strided_slice %287 {offsets = [0, 32], sizes = [2, 32], strides = [1, 1]} : vector<2x96xf32> to vector<2x32xf32>
    %492 = vector.extract_strided_slice %482 {offsets = [0, 32], sizes = [2, 32], strides = [1, 1]} : vector<2x96xf32> to vector<2x32xf32>
    %493 = arith.addf %491, %492 : vector<2x32xf32>
    %494 = arith.negf %493 : vector<2x32xf32>
    %495 = math.exp %494 : vector<2x32xf32>
    %cst_92 = arith.constant 1.000000e+00 : f32
    %496 = vector.broadcast %cst_92 : f32 to vector<2x32xf32>
    %497 = arith.addf %496, %495 : vector<2x32xf32>
    %498 = arith.divf %496, %497 : vector<2x32xf32>
    %499 = vector.extract_strided_slice %287 {offsets = [0, 64], sizes = [2, 32], strides = [1, 1]} : vector<2x96xf32> to vector<2x32xf32>
    %500 = vector.extract_strided_slice %482 {offsets = [0, 64], sizes = [2, 32], strides = [1, 1]} : vector<2x96xf32> to vector<2x32xf32>
    %501 = arith.mulf %490, %500 : vector<2x32xf32>
    %502 = arith.addf %499, %501 : vector<2x32xf32>
    %503 = math.tanh %502 : vector<2x32xf32>
    %cst_93 = arith.constant 1.000000e+00 : f32
    %504 = vector.broadcast %cst_93 : f32 to vector<2x32xf32>
    %505 = arith.subf %504, %498 : vector<2x32xf32>
    %506 = arith.mulf %505, %503 : vector<2x32xf32>
    %507 = arith.mulf %498, %479 : vector<2x32xf32>
    %508 = arith.addf %506, %507 : vector<2x32xf32>
    %cst_94 = arith.constant dense<0.000000e+00> : vector<2x96xf32>
    %509 = tpu.matmul %508, %279, %cst_94 {dimension_numbers = #tpu.dot_dimension_numbers<[1], [0], [0], [1], [0, 0, 1, 1], [], []>} : vector<2x32xf32>, vector<32x96xf32>, vector<2x96xf32> -> vector<2x96xf32>
    %510 = vector.broadcast %281 : vector<1x96xf32> to vector<2x96xf32>
    %511 = arith.addf %509, %510 : vector<2x96xf32>
    %512 = vector.extract_strided_slice %284 {offsets = [0, 0], sizes = [2, 32], strides = [1, 1]} : vector<2x96xf32> to vector<2x32xf32>
    %513 = vector.extract_strided_slice %511 {offsets = [0, 0], sizes = [2, 32], strides = [1, 1]} : vector<2x96xf32> to vector<2x32xf32>
    %514 = arith.addf %512, %513 : vector<2x32xf32>
    %515 = arith.negf %514 : vector<2x32xf32>
    %516 = math.exp %515 : vector<2x32xf32>
    %cst_95 = arith.constant 1.000000e+00 : f32
    %517 = vector.broadcast %cst_95 : f32 to vector<2x32xf32>
    %518 = arith.addf %517, %516 : vector<2x32xf32>
    %519 = arith.divf %517, %518 : vector<2x32xf32>
    %520 = vector.extract_strided_slice %284 {offsets = [0, 32], sizes = [2, 32], strides = [1, 1]} : vector<2x96xf32> to vector<2x32xf32>
    %521 = vector.extract_strided_slice %511 {offsets = [0, 32], sizes = [2, 32], strides = [1, 1]} : vector<2x96xf32> to vector<2x32xf32>
    %522 = arith.addf %520, %521 : vector<2x32xf32>
    %523 = arith.negf %522 : vector<2x32xf32>
    %524 = math.exp %523 : vector<2x32xf32>
    %cst_96 = arith.constant 1.000000e+00 : f32
    %525 = vector.broadcast %cst_96 : f32 to vector<2x32xf32>
    %526 = arith.addf %525, %524 : vector<2x32xf32>
    %527 = arith.divf %525, %526 : vector<2x32xf32>
    %528 = vector.extract_strided_slice %284 {offsets = [0, 64], sizes = [2, 32], strides = [1, 1]} : vector<2x96xf32> to vector<2x32xf32>
    %529 = vector.extract_strided_slice %511 {offsets = [0, 64], sizes = [2, 32], strides = [1, 1]} : vector<2x96xf32> to vector<2x32xf32>
    %530 = arith.mulf %519, %529 : vector<2x32xf32>
    %531 = arith.addf %528, %530 : vector<2x32xf32>
    %532 = math.tanh %531 : vector<2x32xf32>
    %cst_97 = arith.constant 1.000000e+00 : f32
    %533 = vector.broadcast %cst_97 : f32 to vector<2x32xf32>
    %534 = arith.subf %533, %527 : vector<2x32xf32>
    %535 = arith.mulf %534, %532 : vector<2x32xf32>
    %536 = arith.mulf %527, %508 : vector<2x32xf32>
    %537 = arith.addf %535, %536 : vector<2x32xf32>
    %c0_98 = arith.constant 0 : index
    %c0_99 = arith.constant 0 : index
    %538 = vector.load %arg9[%c0_98, %c0_99] : memref<64x96xf32, #tpu.memory_space<vmem>>, vector<64x96xf32>
    %c0_100 = arith.constant 0 : index
    %c0_101 = arith.constant 0 : index
    %539 = vector.load %arg10[%c0_100, %c0_101] : memref<32x96xf32, #tpu.memory_space<vmem>>, vector<32x96xf32>
    %c0_102 = arith.constant 0 : index
    %c0_103 = arith.constant 0 : index
    %540 = vector.load %arg11[%c0_102, %c0_103] : memref<1x96xf32, #tpu.memory_space<vmem>>, vector<1x96xf32>
    %c0_104 = arith.constant 0 : index
    %c0_105 = arith.constant 0 : index
    %541 = vector.load %arg12[%c0_104, %c0_105] : memref<1x96xf32, #tpu.memory_space<vmem>>, vector<1x96xf32>
    %542 = vector.extract_strided_slice %538 {offsets = [0, 0], sizes = [32, 96], strides = [1, 1]} : vector<64x96xf32> to vector<32x96xf32>
    %cst_106 = arith.constant dense<0.000000e+00> : vector<2x96xf32>
    %543 = tpu.matmul %74, %542, %cst_106 {dimension_numbers = #tpu.dot_dimension_numbers<[1], [0], [0], [1], [0, 0, 1, 1], [], []>} : vector<2x32xf32>, vector<32x96xf32>, vector<2x96xf32> -> vector<2x96xf32>
    %544 = vector.extract_strided_slice %538 {offsets = [32, 0], sizes = [32, 96], strides = [1, 1]} : vector<64x96xf32> to vector<32x96xf32>
    %cst_107 = arith.constant dense<0.000000e+00> : vector<2x96xf32>
    %545 = tpu.matmul %537, %544, %cst_107 {dimension_numbers = #tpu.dot_dimension_numbers<[1], [0], [0], [1], [0, 0, 1, 1], [], []>} : vector<2x32xf32>, vector<32x96xf32>, vector<2x96xf32> -> vector<2x96xf32>
    %546 = arith.addf %543, %545 : vector<2x96xf32>
    %547 = vector.broadcast %540 : vector<1x96xf32> to vector<2x96xf32>
    %548 = arith.addf %546, %547 : vector<2x96xf32>
    %549 = vector.extract_strided_slice %538 {offsets = [0, 0], sizes = [32, 96], strides = [1, 1]} : vector<64x96xf32> to vector<32x96xf32>
    %cst_108 = arith.constant dense<0.000000e+00> : vector<2x96xf32>
    %550 = tpu.matmul %103, %549, %cst_108 {dimension_numbers = #tpu.dot_dimension_numbers<[1], [0], [0], [1], [0, 0, 1, 1], [], []>} : vector<2x32xf32>, vector<32x96xf32>, vector<2x96xf32> -> vector<2x96xf32>
    %551 = vector.extract_strided_slice %538 {offsets = [32, 0], sizes = [32, 96], strides = [1, 1]} : vector<64x96xf32> to vector<32x96xf32>
    %cst_109 = arith.constant dense<0.000000e+00> : vector<2x96xf32>
    %552 = tpu.matmul %508, %551, %cst_109 {dimension_numbers = #tpu.dot_dimension_numbers<[1], [0], [0], [1], [0, 0, 1, 1], [], []>} : vector<2x32xf32>, vector<32x96xf32>, vector<2x96xf32> -> vector<2x96xf32>
    %553 = arith.addf %550, %552 : vector<2x96xf32>
    %554 = vector.broadcast %540 : vector<1x96xf32> to vector<2x96xf32>
    %555 = arith.addf %553, %554 : vector<2x96xf32>
    %556 = vector.extract_strided_slice %538 {offsets = [0, 0], sizes = [32, 96], strides = [1, 1]} : vector<64x96xf32> to vector<32x96xf32>
    %cst_110 = arith.constant dense<0.000000e+00> : vector<2x96xf32>
    %557 = tpu.matmul %132, %556, %cst_110 {dimension_numbers = #tpu.dot_dimension_numbers<[1], [0], [0], [1], [0, 0, 1, 1], [], []>} : vector<2x32xf32>, vector<32x96xf32>, vector<2x96xf32> -> vector<2x96xf32>
    %558 = vector.extract_strided_slice %538 {offsets = [32, 0], sizes = [32, 96], strides = [1, 1]} : vector<64x96xf32> to vector<32x96xf32>
    %cst_111 = arith.constant dense<0.000000e+00> : vector<2x96xf32>
    %559 = tpu.matmul %479, %558, %cst_111 {dimension_numbers = #tpu.dot_dimension_numbers<[1], [0], [0], [1], [0, 0, 1, 1], [], []>} : vector<2x32xf32>, vector<32x96xf32>, vector<2x96xf32> -> vector<2x96xf32>
    %560 = arith.addf %557, %559 : vector<2x96xf32>
    %561 = vector.broadcast %540 : vector<1x96xf32> to vector<2x96xf32>
    %562 = arith.addf %560, %561 : vector<2x96xf32>
    %563 = vector.extract_strided_slice %538 {offsets = [0, 0], sizes = [32, 96], strides = [1, 1]} : vector<64x96xf32> to vector<32x96xf32>
    %cst_112 = arith.constant dense<0.000000e+00> : vector<2x96xf32>
    %564 = tpu.matmul %161, %563, %cst_112 {dimension_numbers = #tpu.dot_dimension_numbers<[1], [0], [0], [1], [0, 0, 1, 1], [], []>} : vector<2x32xf32>, vector<32x96xf32>, vector<2x96xf32> -> vector<2x96xf32>
    %565 = vector.extract_strided_slice %538 {offsets = [32, 0], sizes = [32, 96], strides = [1, 1]} : vector<64x96xf32> to vector<32x96xf32>
    %cst_113 = arith.constant dense<0.000000e+00> : vector<2x96xf32>
    %566 = tpu.matmul %450, %565, %cst_113 {dimension_numbers = #tpu.dot_dimension_numbers<[1], [0], [0], [1], [0, 0, 1, 1], [], []>} : vector<2x32xf32>, vector<32x96xf32>, vector<2x96xf32> -> vector<2x96xf32>
    %567 = arith.addf %564, %566 : vector<2x96xf32>
    %568 = vector.broadcast %540 : vector<1x96xf32> to vector<2x96xf32>
    %569 = arith.addf %567, %568 : vector<2x96xf32>
    %570 = vector.extract_strided_slice %538 {offsets = [0, 0], sizes = [32, 96], strides = [1, 1]} : vector<64x96xf32> to vector<32x96xf32>
    %cst_114 = arith.constant dense<0.000000e+00> : vector<2x96xf32>
    %571 = tpu.matmul %190, %570, %cst_114 {dimension_numbers = #tpu.dot_dimension_numbers<[1], [0], [0], [1], [0, 0, 1, 1], [], []>} : vector<2x32xf32>, vector<32x96xf32>, vector<2x96xf32> -> vector<2x96xf32>
    %572 = vector.extract_strided_slice %538 {offsets = [32, 0], sizes = [32, 96], strides = [1, 1]} : vector<64x96xf32> to vector<32x96xf32>
    %cst_115 = arith.constant dense<0.000000e+00> : vector<2x96xf32>
    %573 = tpu.matmul %421, %572, %cst_115 {dimension_numbers = #tpu.dot_dimension_numbers<[1], [0], [0], [1], [0, 0, 1, 1], [], []>} : vector<2x32xf32>, vector<32x96xf32>, vector<2x96xf32> -> vector<2x96xf32>
    %574 = arith.addf %571, %573 : vector<2x96xf32>
    %575 = vector.broadcast %540 : vector<1x96xf32> to vector<2x96xf32>
    %576 = arith.addf %574, %575 : vector<2x96xf32>
    %577 = vector.extract_strided_slice %538 {offsets = [0, 0], sizes = [32, 96], strides = [1, 1]} : vector<64x96xf32> to vector<32x96xf32>
    %cst_116 = arith.constant dense<0.000000e+00> : vector<2x96xf32>
    %578 = tpu.matmul %219, %577, %cst_116 {dimension_numbers = #tpu.dot_dimension_numbers<[1], [0], [0], [1], [0, 0, 1, 1], [], []>} : vector<2x32xf32>, vector<32x96xf32>, vector<2x96xf32> -> vector<2x96xf32>
    %579 = vector.extract_strided_slice %538 {offsets = [32, 0], sizes = [32, 96], strides = [1, 1]} : vector<64x96xf32> to vector<32x96xf32>
    %cst_117 = arith.constant dense<0.000000e+00> : vector<2x96xf32>
    %580 = tpu.matmul %392, %579, %cst_117 {dimension_numbers = #tpu.dot_dimension_numbers<[1], [0], [0], [1], [0, 0, 1, 1], [], []>} : vector<2x32xf32>, vector<32x96xf32>, vector<2x96xf32> -> vector<2x96xf32>
    %581 = arith.addf %578, %580 : vector<2x96xf32>
    %582 = vector.broadcast %540 : vector<1x96xf32> to vector<2x96xf32>
    %583 = arith.addf %581, %582 : vector<2x96xf32>
    %584 = vector.extract_strided_slice %538 {offsets = [0, 0], sizes = [32, 96], strides = [1, 1]} : vector<64x96xf32> to vector<32x96xf32>
    %cst_118 = arith.constant dense<0.000000e+00> : vector<2x96xf32>
    %585 = tpu.matmul %248, %584, %cst_118 {dimension_numbers = #tpu.dot_dimension_numbers<[1], [0], [0], [1], [0, 0, 1, 1], [], []>} : vector<2x32xf32>, vector<32x96xf32>, vector<2x96xf32> -> vector<2x96xf32>
    %586 = vector.extract_strided_slice %538 {offsets = [32, 0], sizes = [32, 96], strides = [1, 1]} : vector<64x96xf32> to vector<32x96xf32>
    %cst_119 = arith.constant dense<0.000000e+00> : vector<2x96xf32>
    %587 = tpu.matmul %363, %586, %cst_119 {dimension_numbers = #tpu.dot_dimension_numbers<[1], [0], [0], [1], [0, 0, 1, 1], [], []>} : vector<2x32xf32>, vector<32x96xf32>, vector<2x96xf32> -> vector<2x96xf32>
    %588 = arith.addf %585, %587 : vector<2x96xf32>
    %589 = vector.broadcast %540 : vector<1x96xf32> to vector<2x96xf32>
    %590 = arith.addf %588, %589 : vector<2x96xf32>
    %591 = vector.extract_strided_slice %538 {offsets = [0, 0], sizes = [32, 96], strides = [1, 1]} : vector<64x96xf32> to vector<32x96xf32>
    %cst_120 = arith.constant dense<0.000000e+00> : vector<2x96xf32>
    %592 = tpu.matmul %277, %591, %cst_120 {dimension_numbers = #tpu.dot_dimension_numbers<[1], [0], [0], [1], [0, 0, 1, 1], [], []>} : vector<2x32xf32>, vector<32x96xf32>, vector<2x96xf32> -> vector<2x96xf32>
    %593 = vector.extract_strided_slice %538 {offsets = [32, 0], sizes = [32, 96], strides = [1, 1]} : vector<64x96xf32> to vector<32x96xf32>
    %cst_121 = arith.constant dense<0.000000e+00> : vector<2x96xf32>
    %594 = tpu.matmul %334, %593, %cst_121 {dimension_numbers = #tpu.dot_dimension_numbers<[1], [0], [0], [1], [0, 0, 1, 1], [], []>} : vector<2x32xf32>, vector<32x96xf32>, vector<2x96xf32> -> vector<2x96xf32>
    %595 = arith.addf %592, %594 : vector<2x96xf32>
    %596 = vector.broadcast %540 : vector<1x96xf32> to vector<2x96xf32>
    %597 = arith.addf %595, %596 : vector<2x96xf32>
    %cst_122 = arith.constant dense<0.000000e+00> : vector<2x96xf32>
    %598 = tpu.matmul %1, %539, %cst_122 {dimension_numbers = #tpu.dot_dimension_numbers<[1], [0], [0], [1], [0, 0, 1, 1], [], []>} : vector<2x32xf32>, vector<32x96xf32>, vector<2x96xf32> -> vector<2x96xf32>
    %599 = vector.broadcast %541 : vector<1x96xf32> to vector<2x96xf32>
    %600 = arith.addf %598, %599 : vector<2x96xf32>
    %601 = vector.extract_strided_slice %548 {offsets = [0, 0], sizes = [2, 32], strides = [1, 1]} : vector<2x96xf32> to vector<2x32xf32>
    %602 = vector.extract_strided_slice %600 {offsets = [0, 0], sizes = [2, 32], strides = [1, 1]} : vector<2x96xf32> to vector<2x32xf32>
    %603 = arith.addf %601, %602 : vector<2x32xf32>
    %604 = arith.negf %603 : vector<2x32xf32>
    %605 = math.exp %604 : vector<2x32xf32>
    %cst_123 = arith.constant 1.000000e+00 : f32
    %606 = vector.broadcast %cst_123 : f32 to vector<2x32xf32>
    %607 = arith.addf %606, %605 : vector<2x32xf32>
    %608 = arith.divf %606, %607 : vector<2x32xf32>
    %609 = vector.extract_strided_slice %548 {offsets = [0, 32], sizes = [2, 32], strides = [1, 1]} : vector<2x96xf32> to vector<2x32xf32>
    %610 = vector.extract_strided_slice %600 {offsets = [0, 32], sizes = [2, 32], strides = [1, 1]} : vector<2x96xf32> to vector<2x32xf32>
    %611 = arith.addf %609, %610 : vector<2x32xf32>
    %612 = arith.negf %611 : vector<2x32xf32>
    %613 = math.exp %612 : vector<2x32xf32>
    %cst_124 = arith.constant 1.000000e+00 : f32
    %614 = vector.broadcast %cst_124 : f32 to vector<2x32xf32>
    %615 = arith.addf %614, %613 : vector<2x32xf32>
    %616 = arith.divf %614, %615 : vector<2x32xf32>
    %617 = vector.extract_strided_slice %548 {offsets = [0, 64], sizes = [2, 32], strides = [1, 1]} : vector<2x96xf32> to vector<2x32xf32>
    %618 = vector.extract_strided_slice %600 {offsets = [0, 64], sizes = [2, 32], strides = [1, 1]} : vector<2x96xf32> to vector<2x32xf32>
    %619 = arith.mulf %608, %618 : vector<2x32xf32>
    %620 = arith.addf %617, %619 : vector<2x32xf32>
    %621 = math.tanh %620 : vector<2x32xf32>
    %cst_125 = arith.constant 1.000000e+00 : f32
    %622 = vector.broadcast %cst_125 : f32 to vector<2x32xf32>
    %623 = arith.subf %622, %616 : vector<2x32xf32>
    %624 = arith.mulf %623, %621 : vector<2x32xf32>
    %625 = arith.mulf %616, %1 : vector<2x32xf32>
    %626 = arith.addf %624, %625 : vector<2x32xf32>
    %cst_126 = arith.constant dense<0.000000e+00> : vector<2x96xf32>
    %627 = tpu.matmul %626, %539, %cst_126 {dimension_numbers = #tpu.dot_dimension_numbers<[1], [0], [0], [1], [0, 0, 1, 1], [], []>} : vector<2x32xf32>, vector<32x96xf32>, vector<2x96xf32> -> vector<2x96xf32>
    %628 = vector.broadcast %541 : vector<1x96xf32> to vector<2x96xf32>
    %629 = arith.addf %627, %628 : vector<2x96xf32>
    %630 = vector.extract_strided_slice %555 {offsets = [0, 0], sizes = [2, 32], strides = [1, 1]} : vector<2x96xf32> to vector<2x32xf32>
    %631 = vector.extract_strided_slice %629 {offsets = [0, 0], sizes = [2, 32], strides = [1, 1]} : vector<2x96xf32> to vector<2x32xf32>
    %632 = arith.addf %630, %631 : vector<2x32xf32>
    %633 = arith.negf %632 : vector<2x32xf32>
    %634 = math.exp %633 : vector<2x32xf32>
    %cst_127 = arith.constant 1.000000e+00 : f32
    %635 = vector.broadcast %cst_127 : f32 to vector<2x32xf32>
    %636 = arith.addf %635, %634 : vector<2x32xf32>
    %637 = arith.divf %635, %636 : vector<2x32xf32>
    %638 = vector.extract_strided_slice %555 {offsets = [0, 32], sizes = [2, 32], strides = [1, 1]} : vector<2x96xf32> to vector<2x32xf32>
    %639 = vector.extract_strided_slice %629 {offsets = [0, 32], sizes = [2, 32], strides = [1, 1]} : vector<2x96xf32> to vector<2x32xf32>
    %640 = arith.addf %638, %639 : vector<2x32xf32>
    %641 = arith.negf %640 : vector<2x32xf32>
    %642 = math.exp %641 : vector<2x32xf32>
    %cst_128 = arith.constant 1.000000e+00 : f32
    %643 = vector.broadcast %cst_128 : f32 to vector<2x32xf32>
    %644 = arith.addf %643, %642 : vector<2x32xf32>
    %645 = arith.divf %643, %644 : vector<2x32xf32>
    %646 = vector.extract_strided_slice %555 {offsets = [0, 64], sizes = [2, 32], strides = [1, 1]} : vector<2x96xf32> to vector<2x32xf32>
    %647 = vector.extract_strided_slice %629 {offsets = [0, 64], sizes = [2, 32], strides = [1, 1]} : vector<2x96xf32> to vector<2x32xf32>
    %648 = arith.mulf %637, %647 : vector<2x32xf32>
    %649 = arith.addf %646, %648 : vector<2x32xf32>
    %650 = math.tanh %649 : vector<2x32xf32>
    %cst_129 = arith.constant 1.000000e+00 : f32
    %651 = vector.broadcast %cst_129 : f32 to vector<2x32xf32>
    %652 = arith.subf %651, %645 : vector<2x32xf32>
    %653 = arith.mulf %652, %650 : vector<2x32xf32>
    %654 = arith.mulf %645, %626 : vector<2x32xf32>
    %655 = arith.addf %653, %654 : vector<2x32xf32>
    %cst_130 = arith.constant dense<0.000000e+00> : vector<2x96xf32>
    %656 = tpu.matmul %655, %539, %cst_130 {dimension_numbers = #tpu.dot_dimension_numbers<[1], [0], [0], [1], [0, 0, 1, 1], [], []>} : vector<2x32xf32>, vector<32x96xf32>, vector<2x96xf32> -> vector<2x96xf32>
    %657 = vector.broadcast %541 : vector<1x96xf32> to vector<2x96xf32>
    %658 = arith.addf %656, %657 : vector<2x96xf32>
    %659 = vector.extract_strided_slice %562 {offsets = [0, 0], sizes = [2, 32], strides = [1, 1]} : vector<2x96xf32> to vector<2x32xf32>
    %660 = vector.extract_strided_slice %658 {offsets = [0, 0], sizes = [2, 32], strides = [1, 1]} : vector<2x96xf32> to vector<2x32xf32>
    %661 = arith.addf %659, %660 : vector<2x32xf32>
    %662 = arith.negf %661 : vector<2x32xf32>
    %663 = math.exp %662 : vector<2x32xf32>
    %cst_131 = arith.constant 1.000000e+00 : f32
    %664 = vector.broadcast %cst_131 : f32 to vector<2x32xf32>
    %665 = arith.addf %664, %663 : vector<2x32xf32>
    %666 = arith.divf %664, %665 : vector<2x32xf32>
    %667 = vector.extract_strided_slice %562 {offsets = [0, 32], sizes = [2, 32], strides = [1, 1]} : vector<2x96xf32> to vector<2x32xf32>
    %668 = vector.extract_strided_slice %658 {offsets = [0, 32], sizes = [2, 32], strides = [1, 1]} : vector<2x96xf32> to vector<2x32xf32>
    %669 = arith.addf %667, %668 : vector<2x32xf32>
    %670 = arith.negf %669 : vector<2x32xf32>
    %671 = math.exp %670 : vector<2x32xf32>
    %cst_132 = arith.constant 1.000000e+00 : f32
    %672 = vector.broadcast %cst_132 : f32 to vector<2x32xf32>
    %673 = arith.addf %672, %671 : vector<2x32xf32>
    %674 = arith.divf %672, %673 : vector<2x32xf32>
    %675 = vector.extract_strided_slice %562 {offsets = [0, 64], sizes = [2, 32], strides = [1, 1]} : vector<2x96xf32> to vector<2x32xf32>
    %676 = vector.extract_strided_slice %658 {offsets = [0, 64], sizes = [2, 32], strides = [1, 1]} : vector<2x96xf32> to vector<2x32xf32>
    %677 = arith.mulf %666, %676 : vector<2x32xf32>
    %678 = arith.addf %675, %677 : vector<2x32xf32>
    %679 = math.tanh %678 : vector<2x32xf32>
    %cst_133 = arith.constant 1.000000e+00 : f32
    %680 = vector.broadcast %cst_133 : f32 to vector<2x32xf32>
    %681 = arith.subf %680, %674 : vector<2x32xf32>
    %682 = arith.mulf %681, %679 : vector<2x32xf32>
    %683 = arith.mulf %674, %655 : vector<2x32xf32>
    %684 = arith.addf %682, %683 : vector<2x32xf32>
    %cst_134 = arith.constant dense<0.000000e+00> : vector<2x96xf32>
    %685 = tpu.matmul %684, %539, %cst_134 {dimension_numbers = #tpu.dot_dimension_numbers<[1], [0], [0], [1], [0, 0, 1, 1], [], []>} : vector<2x32xf32>, vector<32x96xf32>, vector<2x96xf32> -> vector<2x96xf32>
    %686 = vector.broadcast %541 : vector<1x96xf32> to vector<2x96xf32>
    %687 = arith.addf %685, %686 : vector<2x96xf32>
    %688 = vector.extract_strided_slice %569 {offsets = [0, 0], sizes = [2, 32], strides = [1, 1]} : vector<2x96xf32> to vector<2x32xf32>
    %689 = vector.extract_strided_slice %687 {offsets = [0, 0], sizes = [2, 32], strides = [1, 1]} : vector<2x96xf32> to vector<2x32xf32>
    %690 = arith.addf %688, %689 : vector<2x32xf32>
    %691 = arith.negf %690 : vector<2x32xf32>
    %692 = math.exp %691 : vector<2x32xf32>
    %cst_135 = arith.constant 1.000000e+00 : f32
    %693 = vector.broadcast %cst_135 : f32 to vector<2x32xf32>
    %694 = arith.addf %693, %692 : vector<2x32xf32>
    %695 = arith.divf %693, %694 : vector<2x32xf32>
    %696 = vector.extract_strided_slice %569 {offsets = [0, 32], sizes = [2, 32], strides = [1, 1]} : vector<2x96xf32> to vector<2x32xf32>
    %697 = vector.extract_strided_slice %687 {offsets = [0, 32], sizes = [2, 32], strides = [1, 1]} : vector<2x96xf32> to vector<2x32xf32>
    %698 = arith.addf %696, %697 : vector<2x32xf32>
    %699 = arith.negf %698 : vector<2x32xf32>
    %700 = math.exp %699 : vector<2x32xf32>
    %cst_136 = arith.constant 1.000000e+00 : f32
    %701 = vector.broadcast %cst_136 : f32 to vector<2x32xf32>
    %702 = arith.addf %701, %700 : vector<2x32xf32>
    %703 = arith.divf %701, %702 : vector<2x32xf32>
    %704 = vector.extract_strided_slice %569 {offsets = [0, 64], sizes = [2, 32], strides = [1, 1]} : vector<2x96xf32> to vector<2x32xf32>
    %705 = vector.extract_strided_slice %687 {offsets = [0, 64], sizes = [2, 32], strides = [1, 1]} : vector<2x96xf32> to vector<2x32xf32>
    %706 = arith.mulf %695, %705 : vector<2x32xf32>
    %707 = arith.addf %704, %706 : vector<2x32xf32>
    %708 = math.tanh %707 : vector<2x32xf32>
    %cst_137 = arith.constant 1.000000e+00 : f32
    %709 = vector.broadcast %cst_137 : f32 to vector<2x32xf32>
    %710 = arith.subf %709, %703 : vector<2x32xf32>
    %711 = arith.mulf %710, %708 : vector<2x32xf32>
    %712 = arith.mulf %703, %684 : vector<2x32xf32>
    %713 = arith.addf %711, %712 : vector<2x32xf32>
    %cst_138 = arith.constant dense<0.000000e+00> : vector<2x96xf32>
    %714 = tpu.matmul %713, %539, %cst_138 {dimension_numbers = #tpu.dot_dimension_numbers<[1], [0], [0], [1], [0, 0, 1, 1], [], []>} : vector<2x32xf32>, vector<32x96xf32>, vector<2x96xf32> -> vector<2x96xf32>
    %715 = vector.broadcast %541 : vector<1x96xf32> to vector<2x96xf32>
    %716 = arith.addf %714, %715 : vector<2x96xf32>
    %717 = vector.extract_strided_slice %576 {offsets = [0, 0], sizes = [2, 32], strides = [1, 1]} : vector<2x96xf32> to vector<2x32xf32>
    %718 = vector.extract_strided_slice %716 {offsets = [0, 0], sizes = [2, 32], strides = [1, 1]} : vector<2x96xf32> to vector<2x32xf32>
    %719 = arith.addf %717, %718 : vector<2x32xf32>
    %720 = arith.negf %719 : vector<2x32xf32>
    %721 = math.exp %720 : vector<2x32xf32>
    %cst_139 = arith.constant 1.000000e+00 : f32
    %722 = vector.broadcast %cst_139 : f32 to vector<2x32xf32>
    %723 = arith.addf %722, %721 : vector<2x32xf32>
    %724 = arith.divf %722, %723 : vector<2x32xf32>
    %725 = vector.extract_strided_slice %576 {offsets = [0, 32], sizes = [2, 32], strides = [1, 1]} : vector<2x96xf32> to vector<2x32xf32>
    %726 = vector.extract_strided_slice %716 {offsets = [0, 32], sizes = [2, 32], strides = [1, 1]} : vector<2x96xf32> to vector<2x32xf32>
    %727 = arith.addf %725, %726 : vector<2x32xf32>
    %728 = arith.negf %727 : vector<2x32xf32>
    %729 = math.exp %728 : vector<2x32xf32>
    %cst_140 = arith.constant 1.000000e+00 : f32
    %730 = vector.broadcast %cst_140 : f32 to vector<2x32xf32>
    %731 = arith.addf %730, %729 : vector<2x32xf32>
    %732 = arith.divf %730, %731 : vector<2x32xf32>
    %733 = vector.extract_strided_slice %576 {offsets = [0, 64], sizes = [2, 32], strides = [1, 1]} : vector<2x96xf32> to vector<2x32xf32>
    %734 = vector.extract_strided_slice %716 {offsets = [0, 64], sizes = [2, 32], strides = [1, 1]} : vector<2x96xf32> to vector<2x32xf32>
    %735 = arith.mulf %724, %734 : vector<2x32xf32>
    %736 = arith.addf %733, %735 : vector<2x32xf32>
    %737 = math.tanh %736 : vector<2x32xf32>
    %cst_141 = arith.constant 1.000000e+00 : f32
    %738 = vector.broadcast %cst_141 : f32 to vector<2x32xf32>
    %739 = arith.subf %738, %732 : vector<2x32xf32>
    %740 = arith.mulf %739, %737 : vector<2x32xf32>
    %741 = arith.mulf %732, %713 : vector<2x32xf32>
    %742 = arith.addf %740, %741 : vector<2x32xf32>
    %cst_142 = arith.constant dense<0.000000e+00> : vector<2x96xf32>
    %743 = tpu.matmul %742, %539, %cst_142 {dimension_numbers = #tpu.dot_dimension_numbers<[1], [0], [0], [1], [0, 0, 1, 1], [], []>} : vector<2x32xf32>, vector<32x96xf32>, vector<2x96xf32> -> vector<2x96xf32>
    %744 = vector.broadcast %541 : vector<1x96xf32> to vector<2x96xf32>
    %745 = arith.addf %743, %744 : vector<2x96xf32>
    %746 = vector.extract_strided_slice %583 {offsets = [0, 0], sizes = [2, 32], strides = [1, 1]} : vector<2x96xf32> to vector<2x32xf32>
    %747 = vector.extract_strided_slice %745 {offsets = [0, 0], sizes = [2, 32], strides = [1, 1]} : vector<2x96xf32> to vector<2x32xf32>
    %748 = arith.addf %746, %747 : vector<2x32xf32>
    %749 = arith.negf %748 : vector<2x32xf32>
    %750 = math.exp %749 : vector<2x32xf32>
    %cst_143 = arith.constant 1.000000e+00 : f32
    %751 = vector.broadcast %cst_143 : f32 to vector<2x32xf32>
    %752 = arith.addf %751, %750 : vector<2x32xf32>
    %753 = arith.divf %751, %752 : vector<2x32xf32>
    %754 = vector.extract_strided_slice %583 {offsets = [0, 32], sizes = [2, 32], strides = [1, 1]} : vector<2x96xf32> to vector<2x32xf32>
    %755 = vector.extract_strided_slice %745 {offsets = [0, 32], sizes = [2, 32], strides = [1, 1]} : vector<2x96xf32> to vector<2x32xf32>
    %756 = arith.addf %754, %755 : vector<2x32xf32>
    %757 = arith.negf %756 : vector<2x32xf32>
    %758 = math.exp %757 : vector<2x32xf32>
    %cst_144 = arith.constant 1.000000e+00 : f32
    %759 = vector.broadcast %cst_144 : f32 to vector<2x32xf32>
    %760 = arith.addf %759, %758 : vector<2x32xf32>
    %761 = arith.divf %759, %760 : vector<2x32xf32>
    %762 = vector.extract_strided_slice %583 {offsets = [0, 64], sizes = [2, 32], strides = [1, 1]} : vector<2x96xf32> to vector<2x32xf32>
    %763 = vector.extract_strided_slice %745 {offsets = [0, 64], sizes = [2, 32], strides = [1, 1]} : vector<2x96xf32> to vector<2x32xf32>
    %764 = arith.mulf %753, %763 : vector<2x32xf32>
    %765 = arith.addf %762, %764 : vector<2x32xf32>
    %766 = math.tanh %765 : vector<2x32xf32>
    %cst_145 = arith.constant 1.000000e+00 : f32
    %767 = vector.broadcast %cst_145 : f32 to vector<2x32xf32>
    %768 = arith.subf %767, %761 : vector<2x32xf32>
    %769 = arith.mulf %768, %766 : vector<2x32xf32>
    %770 = arith.mulf %761, %742 : vector<2x32xf32>
    %771 = arith.addf %769, %770 : vector<2x32xf32>
    %cst_146 = arith.constant dense<0.000000e+00> : vector<2x96xf32>
    %772 = tpu.matmul %771, %539, %cst_146 {dimension_numbers = #tpu.dot_dimension_numbers<[1], [0], [0], [1], [0, 0, 1, 1], [], []>} : vector<2x32xf32>, vector<32x96xf32>, vector<2x96xf32> -> vector<2x96xf32>
    %773 = vector.broadcast %541 : vector<1x96xf32> to vector<2x96xf32>
    %774 = arith.addf %772, %773 : vector<2x96xf32>
    %775 = vector.extract_strided_slice %590 {offsets = [0, 0], sizes = [2, 32], strides = [1, 1]} : vector<2x96xf32> to vector<2x32xf32>
    %776 = vector.extract_strided_slice %774 {offsets = [0, 0], sizes = [2, 32], strides = [1, 1]} : vector<2x96xf32> to vector<2x32xf32>
    %777 = arith.addf %775, %776 : vector<2x32xf32>
    %778 = arith.negf %777 : vector<2x32xf32>
    %779 = math.exp %778 : vector<2x32xf32>
    %cst_147 = arith.constant 1.000000e+00 : f32
    %780 = vector.broadcast %cst_147 : f32 to vector<2x32xf32>
    %781 = arith.addf %780, %779 : vector<2x32xf32>
    %782 = arith.divf %780, %781 : vector<2x32xf32>
    %783 = vector.extract_strided_slice %590 {offsets = [0, 32], sizes = [2, 32], strides = [1, 1]} : vector<2x96xf32> to vector<2x32xf32>
    %784 = vector.extract_strided_slice %774 {offsets = [0, 32], sizes = [2, 32], strides = [1, 1]} : vector<2x96xf32> to vector<2x32xf32>
    %785 = arith.addf %783, %784 : vector<2x32xf32>
    %786 = arith.negf %785 : vector<2x32xf32>
    %787 = math.exp %786 : vector<2x32xf32>
    %cst_148 = arith.constant 1.000000e+00 : f32
    %788 = vector.broadcast %cst_148 : f32 to vector<2x32xf32>
    %789 = arith.addf %788, %787 : vector<2x32xf32>
    %790 = arith.divf %788, %789 : vector<2x32xf32>
    %791 = vector.extract_strided_slice %590 {offsets = [0, 64], sizes = [2, 32], strides = [1, 1]} : vector<2x96xf32> to vector<2x32xf32>
    %792 = vector.extract_strided_slice %774 {offsets = [0, 64], sizes = [2, 32], strides = [1, 1]} : vector<2x96xf32> to vector<2x32xf32>
    %793 = arith.mulf %782, %792 : vector<2x32xf32>
    %794 = arith.addf %791, %793 : vector<2x32xf32>
    %795 = math.tanh %794 : vector<2x32xf32>
    %cst_149 = arith.constant 1.000000e+00 : f32
    %796 = vector.broadcast %cst_149 : f32 to vector<2x32xf32>
    %797 = arith.subf %796, %790 : vector<2x32xf32>
    %798 = arith.mulf %797, %795 : vector<2x32xf32>
    %799 = arith.mulf %790, %771 : vector<2x32xf32>
    %800 = arith.addf %798, %799 : vector<2x32xf32>
    %cst_150 = arith.constant dense<0.000000e+00> : vector<2x96xf32>
    %801 = tpu.matmul %800, %539, %cst_150 {dimension_numbers = #tpu.dot_dimension_numbers<[1], [0], [0], [1], [0, 0, 1, 1], [], []>} : vector<2x32xf32>, vector<32x96xf32>, vector<2x96xf32> -> vector<2x96xf32>
    %802 = vector.broadcast %541 : vector<1x96xf32> to vector<2x96xf32>
    %803 = arith.addf %801, %802 : vector<2x96xf32>
    %804 = vector.extract_strided_slice %597 {offsets = [0, 0], sizes = [2, 32], strides = [1, 1]} : vector<2x96xf32> to vector<2x32xf32>
    %805 = vector.extract_strided_slice %803 {offsets = [0, 0], sizes = [2, 32], strides = [1, 1]} : vector<2x96xf32> to vector<2x32xf32>
    %806 = arith.addf %804, %805 : vector<2x32xf32>
    %807 = arith.negf %806 : vector<2x32xf32>
    %808 = math.exp %807 : vector<2x32xf32>
    %cst_151 = arith.constant 1.000000e+00 : f32
    %809 = vector.broadcast %cst_151 : f32 to vector<2x32xf32>
    %810 = arith.addf %809, %808 : vector<2x32xf32>
    %811 = arith.divf %809, %810 : vector<2x32xf32>
    %812 = vector.extract_strided_slice %597 {offsets = [0, 32], sizes = [2, 32], strides = [1, 1]} : vector<2x96xf32> to vector<2x32xf32>
    %813 = vector.extract_strided_slice %803 {offsets = [0, 32], sizes = [2, 32], strides = [1, 1]} : vector<2x96xf32> to vector<2x32xf32>
    %814 = arith.addf %812, %813 : vector<2x32xf32>
    %815 = arith.negf %814 : vector<2x32xf32>
    %816 = math.exp %815 : vector<2x32xf32>
    %cst_152 = arith.constant 1.000000e+00 : f32
    %817 = vector.broadcast %cst_152 : f32 to vector<2x32xf32>
    %818 = arith.addf %817, %816 : vector<2x32xf32>
    %819 = arith.divf %817, %818 : vector<2x32xf32>
    %820 = vector.extract_strided_slice %597 {offsets = [0, 64], sizes = [2, 32], strides = [1, 1]} : vector<2x96xf32> to vector<2x32xf32>
    %821 = vector.extract_strided_slice %803 {offsets = [0, 64], sizes = [2, 32], strides = [1, 1]} : vector<2x96xf32> to vector<2x32xf32>
    %822 = arith.mulf %811, %821 : vector<2x32xf32>
    %823 = arith.addf %820, %822 : vector<2x32xf32>
    %824 = math.tanh %823 : vector<2x32xf32>
    %cst_153 = arith.constant 1.000000e+00 : f32
    %825 = vector.broadcast %cst_153 : f32 to vector<2x32xf32>
    %826 = arith.subf %825, %819 : vector<2x32xf32>
    %827 = arith.mulf %826, %824 : vector<2x32xf32>
    %828 = arith.mulf %819, %800 : vector<2x32xf32>
    %829 = arith.addf %827, %828 : vector<2x32xf32>
    %c0_154 = arith.constant 0 : index
    %c0_155 = arith.constant 0 : index
    %830 = vector.load %arg13[%c0_154, %c0_155] : memref<64x96xf32, #tpu.memory_space<vmem>>, vector<64x96xf32>
    %c0_156 = arith.constant 0 : index
    %c0_157 = arith.constant 0 : index
    %831 = vector.load %arg14[%c0_156, %c0_157] : memref<32x96xf32, #tpu.memory_space<vmem>>, vector<32x96xf32>
    %c0_158 = arith.constant 0 : index
    %c0_159 = arith.constant 0 : index
    %832 = vector.load %arg15[%c0_158, %c0_159] : memref<1x96xf32, #tpu.memory_space<vmem>>, vector<1x96xf32>
    %c0_160 = arith.constant 0 : index
    %c0_161 = arith.constant 0 : index
    %833 = vector.load %arg16[%c0_160, %c0_161] : memref<1x96xf32, #tpu.memory_space<vmem>>, vector<1x96xf32>
    %834 = vector.extract_strided_slice %830 {offsets = [0, 0], sizes = [32, 96], strides = [1, 1]} : vector<64x96xf32> to vector<32x96xf32>
    %cst_162 = arith.constant dense<0.000000e+00> : vector<2x96xf32>
    %835 = tpu.matmul %74, %834, %cst_162 {dimension_numbers = #tpu.dot_dimension_numbers<[1], [0], [0], [1], [0, 0, 1, 1], [], []>} : vector<2x32xf32>, vector<32x96xf32>, vector<2x96xf32> -> vector<2x96xf32>
    %836 = vector.extract_strided_slice %830 {offsets = [32, 0], sizes = [32, 96], strides = [1, 1]} : vector<64x96xf32> to vector<32x96xf32>
    %cst_163 = arith.constant dense<0.000000e+00> : vector<2x96xf32>
    %837 = tpu.matmul %537, %836, %cst_163 {dimension_numbers = #tpu.dot_dimension_numbers<[1], [0], [0], [1], [0, 0, 1, 1], [], []>} : vector<2x32xf32>, vector<32x96xf32>, vector<2x96xf32> -> vector<2x96xf32>
    %838 = arith.addf %835, %837 : vector<2x96xf32>
    %839 = vector.broadcast %832 : vector<1x96xf32> to vector<2x96xf32>
    %840 = arith.addf %838, %839 : vector<2x96xf32>
    %841 = vector.extract_strided_slice %830 {offsets = [0, 0], sizes = [32, 96], strides = [1, 1]} : vector<64x96xf32> to vector<32x96xf32>
    %cst_164 = arith.constant dense<0.000000e+00> : vector<2x96xf32>
    %842 = tpu.matmul %103, %841, %cst_164 {dimension_numbers = #tpu.dot_dimension_numbers<[1], [0], [0], [1], [0, 0, 1, 1], [], []>} : vector<2x32xf32>, vector<32x96xf32>, vector<2x96xf32> -> vector<2x96xf32>
    %843 = vector.extract_strided_slice %830 {offsets = [32, 0], sizes = [32, 96], strides = [1, 1]} : vector<64x96xf32> to vector<32x96xf32>
    %cst_165 = arith.constant dense<0.000000e+00> : vector<2x96xf32>
    %844 = tpu.matmul %508, %843, %cst_165 {dimension_numbers = #tpu.dot_dimension_numbers<[1], [0], [0], [1], [0, 0, 1, 1], [], []>} : vector<2x32xf32>, vector<32x96xf32>, vector<2x96xf32> -> vector<2x96xf32>
    %845 = arith.addf %842, %844 : vector<2x96xf32>
    %846 = vector.broadcast %832 : vector<1x96xf32> to vector<2x96xf32>
    %847 = arith.addf %845, %846 : vector<2x96xf32>
    %848 = vector.extract_strided_slice %830 {offsets = [0, 0], sizes = [32, 96], strides = [1, 1]} : vector<64x96xf32> to vector<32x96xf32>
    %cst_166 = arith.constant dense<0.000000e+00> : vector<2x96xf32>
    %849 = tpu.matmul %132, %848, %cst_166 {dimension_numbers = #tpu.dot_dimension_numbers<[1], [0], [0], [1], [0, 0, 1, 1], [], []>} : vector<2x32xf32>, vector<32x96xf32>, vector<2x96xf32> -> vector<2x96xf32>
    %850 = vector.extract_strided_slice %830 {offsets = [32, 0], sizes = [32, 96], strides = [1, 1]} : vector<64x96xf32> to vector<32x96xf32>
    %cst_167 = arith.constant dense<0.000000e+00> : vector<2x96xf32>
    %851 = tpu.matmul %479, %850, %cst_167 {dimension_numbers = #tpu.dot_dimension_numbers<[1], [0], [0], [1], [0, 0, 1, 1], [], []>} : vector<2x32xf32>, vector<32x96xf32>, vector<2x96xf32> -> vector<2x96xf32>
    %852 = arith.addf %849, %851 : vector<2x96xf32>
    %853 = vector.broadcast %832 : vector<1x96xf32> to vector<2x96xf32>
    %854 = arith.addf %852, %853 : vector<2x96xf32>
    %855 = vector.extract_strided_slice %830 {offsets = [0, 0], sizes = [32, 96], strides = [1, 1]} : vector<64x96xf32> to vector<32x96xf32>
    %cst_168 = arith.constant dense<0.000000e+00> : vector<2x96xf32>
    %856 = tpu.matmul %161, %855, %cst_168 {dimension_numbers = #tpu.dot_dimension_numbers<[1], [0], [0], [1], [0, 0, 1, 1], [], []>} : vector<2x32xf32>, vector<32x96xf32>, vector<2x96xf32> -> vector<2x96xf32>
    %857 = vector.extract_strided_slice %830 {offsets = [32, 0], sizes = [32, 96], strides = [1, 1]} : vector<64x96xf32> to vector<32x96xf32>
    %cst_169 = arith.constant dense<0.000000e+00> : vector<2x96xf32>
    %858 = tpu.matmul %450, %857, %cst_169 {dimension_numbers = #tpu.dot_dimension_numbers<[1], [0], [0], [1], [0, 0, 1, 1], [], []>} : vector<2x32xf32>, vector<32x96xf32>, vector<2x96xf32> -> vector<2x96xf32>
    %859 = arith.addf %856, %858 : vector<2x96xf32>
    %860 = vector.broadcast %832 : vector<1x96xf32> to vector<2x96xf32>
    %861 = arith.addf %859, %860 : vector<2x96xf32>
    %862 = vector.extract_strided_slice %830 {offsets = [0, 0], sizes = [32, 96], strides = [1, 1]} : vector<64x96xf32> to vector<32x96xf32>
    %cst_170 = arith.constant dense<0.000000e+00> : vector<2x96xf32>
    %863 = tpu.matmul %190, %862, %cst_170 {dimension_numbers = #tpu.dot_dimension_numbers<[1], [0], [0], [1], [0, 0, 1, 1], [], []>} : vector<2x32xf32>, vector<32x96xf32>, vector<2x96xf32> -> vector<2x96xf32>
    %864 = vector.extract_strided_slice %830 {offsets = [32, 0], sizes = [32, 96], strides = [1, 1]} : vector<64x96xf32> to vector<32x96xf32>
    %cst_171 = arith.constant dense<0.000000e+00> : vector<2x96xf32>
    %865 = tpu.matmul %421, %864, %cst_171 {dimension_numbers = #tpu.dot_dimension_numbers<[1], [0], [0], [1], [0, 0, 1, 1], [], []>} : vector<2x32xf32>, vector<32x96xf32>, vector<2x96xf32> -> vector<2x96xf32>
    %866 = arith.addf %863, %865 : vector<2x96xf32>
    %867 = vector.broadcast %832 : vector<1x96xf32> to vector<2x96xf32>
    %868 = arith.addf %866, %867 : vector<2x96xf32>
    %869 = vector.extract_strided_slice %830 {offsets = [0, 0], sizes = [32, 96], strides = [1, 1]} : vector<64x96xf32> to vector<32x96xf32>
    %cst_172 = arith.constant dense<0.000000e+00> : vector<2x96xf32>
    %870 = tpu.matmul %219, %869, %cst_172 {dimension_numbers = #tpu.dot_dimension_numbers<[1], [0], [0], [1], [0, 0, 1, 1], [], []>} : vector<2x32xf32>, vector<32x96xf32>, vector<2x96xf32> -> vector<2x96xf32>
    %871 = vector.extract_strided_slice %830 {offsets = [32, 0], sizes = [32, 96], strides = [1, 1]} : vector<64x96xf32> to vector<32x96xf32>
    %cst_173 = arith.constant dense<0.000000e+00> : vector<2x96xf32>
    %872 = tpu.matmul %392, %871, %cst_173 {dimension_numbers = #tpu.dot_dimension_numbers<[1], [0], [0], [1], [0, 0, 1, 1], [], []>} : vector<2x32xf32>, vector<32x96xf32>, vector<2x96xf32> -> vector<2x96xf32>
    %873 = arith.addf %870, %872 : vector<2x96xf32>
    %874 = vector.broadcast %832 : vector<1x96xf32> to vector<2x96xf32>
    %875 = arith.addf %873, %874 : vector<2x96xf32>
    %876 = vector.extract_strided_slice %830 {offsets = [0, 0], sizes = [32, 96], strides = [1, 1]} : vector<64x96xf32> to vector<32x96xf32>
    %cst_174 = arith.constant dense<0.000000e+00> : vector<2x96xf32>
    %877 = tpu.matmul %248, %876, %cst_174 {dimension_numbers = #tpu.dot_dimension_numbers<[1], [0], [0], [1], [0, 0, 1, 1], [], []>} : vector<2x32xf32>, vector<32x96xf32>, vector<2x96xf32> -> vector<2x96xf32>
    %878 = vector.extract_strided_slice %830 {offsets = [32, 0], sizes = [32, 96], strides = [1, 1]} : vector<64x96xf32> to vector<32x96xf32>
    %cst_175 = arith.constant dense<0.000000e+00> : vector<2x96xf32>
    %879 = tpu.matmul %363, %878, %cst_175 {dimension_numbers = #tpu.dot_dimension_numbers<[1], [0], [0], [1], [0, 0, 1, 1], [], []>} : vector<2x32xf32>, vector<32x96xf32>, vector<2x96xf32> -> vector<2x96xf32>
    %880 = arith.addf %877, %879 : vector<2x96xf32>
    %881 = vector.broadcast %832 : vector<1x96xf32> to vector<2x96xf32>
    %882 = arith.addf %880, %881 : vector<2x96xf32>
    %883 = vector.extract_strided_slice %830 {offsets = [0, 0], sizes = [32, 96], strides = [1, 1]} : vector<64x96xf32> to vector<32x96xf32>
    %cst_176 = arith.constant dense<0.000000e+00> : vector<2x96xf32>
    %884 = tpu.matmul %277, %883, %cst_176 {dimension_numbers = #tpu.dot_dimension_numbers<[1], [0], [0], [1], [0, 0, 1, 1], [], []>} : vector<2x32xf32>, vector<32x96xf32>, vector<2x96xf32> -> vector<2x96xf32>
    %885 = vector.extract_strided_slice %830 {offsets = [32, 0], sizes = [32, 96], strides = [1, 1]} : vector<64x96xf32> to vector<32x96xf32>
    %cst_177 = arith.constant dense<0.000000e+00> : vector<2x96xf32>
    %886 = tpu.matmul %334, %885, %cst_177 {dimension_numbers = #tpu.dot_dimension_numbers<[1], [0], [0], [1], [0, 0, 1, 1], [], []>} : vector<2x32xf32>, vector<32x96xf32>, vector<2x96xf32> -> vector<2x96xf32>
    %887 = arith.addf %884, %886 : vector<2x96xf32>
    %888 = vector.broadcast %832 : vector<1x96xf32> to vector<2x96xf32>
    %889 = arith.addf %887, %888 : vector<2x96xf32>
    %cst_178 = arith.constant dense<0.000000e+00> : vector<2x96xf32>
    %890 = tpu.matmul %1, %831, %cst_178 {dimension_numbers = #tpu.dot_dimension_numbers<[1], [0], [0], [1], [0, 0, 1, 1], [], []>} : vector<2x32xf32>, vector<32x96xf32>, vector<2x96xf32> -> vector<2x96xf32>
    %891 = vector.broadcast %833 : vector<1x96xf32> to vector<2x96xf32>
    %892 = arith.addf %890, %891 : vector<2x96xf32>
    %893 = vector.extract_strided_slice %889 {offsets = [0, 0], sizes = [2, 32], strides = [1, 1]} : vector<2x96xf32> to vector<2x32xf32>
    %894 = vector.extract_strided_slice %892 {offsets = [0, 0], sizes = [2, 32], strides = [1, 1]} : vector<2x96xf32> to vector<2x32xf32>
    %895 = arith.addf %893, %894 : vector<2x32xf32>
    %896 = arith.negf %895 : vector<2x32xf32>
    %897 = math.exp %896 : vector<2x32xf32>
    %cst_179 = arith.constant 1.000000e+00 : f32
    %898 = vector.broadcast %cst_179 : f32 to vector<2x32xf32>
    %899 = arith.addf %898, %897 : vector<2x32xf32>
    %900 = arith.divf %898, %899 : vector<2x32xf32>
    %901 = vector.extract_strided_slice %889 {offsets = [0, 32], sizes = [2, 32], strides = [1, 1]} : vector<2x96xf32> to vector<2x32xf32>
    %902 = vector.extract_strided_slice %892 {offsets = [0, 32], sizes = [2, 32], strides = [1, 1]} : vector<2x96xf32> to vector<2x32xf32>
    %903 = arith.addf %901, %902 : vector<2x32xf32>
    %904 = arith.negf %903 : vector<2x32xf32>
    %905 = math.exp %904 : vector<2x32xf32>
    %cst_180 = arith.constant 1.000000e+00 : f32
    %906 = vector.broadcast %cst_180 : f32 to vector<2x32xf32>
    %907 = arith.addf %906, %905 : vector<2x32xf32>
    %908 = arith.divf %906, %907 : vector<2x32xf32>
    %909 = vector.extract_strided_slice %889 {offsets = [0, 64], sizes = [2, 32], strides = [1, 1]} : vector<2x96xf32> to vector<2x32xf32>
    %910 = vector.extract_strided_slice %892 {offsets = [0, 64], sizes = [2, 32], strides = [1, 1]} : vector<2x96xf32> to vector<2x32xf32>
    %911 = arith.mulf %900, %910 : vector<2x32xf32>
    %912 = arith.addf %909, %911 : vector<2x32xf32>
    %913 = math.tanh %912 : vector<2x32xf32>
    %cst_181 = arith.constant 1.000000e+00 : f32
    %914 = vector.broadcast %cst_181 : f32 to vector<2x32xf32>
    %915 = arith.subf %914, %908 : vector<2x32xf32>
    %916 = arith.mulf %915, %913 : vector<2x32xf32>
    %917 = arith.mulf %908, %1 : vector<2x32xf32>
    %918 = arith.addf %916, %917 : vector<2x32xf32>
    %cst_182 = arith.constant dense<0.000000e+00> : vector<2x96xf32>
    %919 = tpu.matmul %918, %831, %cst_182 {dimension_numbers = #tpu.dot_dimension_numbers<[1], [0], [0], [1], [0, 0, 1, 1], [], []>} : vector<2x32xf32>, vector<32x96xf32>, vector<2x96xf32> -> vector<2x96xf32>
    %920 = vector.broadcast %833 : vector<1x96xf32> to vector<2x96xf32>
    %921 = arith.addf %919, %920 : vector<2x96xf32>
    %922 = vector.extract_strided_slice %882 {offsets = [0, 0], sizes = [2, 32], strides = [1, 1]} : vector<2x96xf32> to vector<2x32xf32>
    %923 = vector.extract_strided_slice %921 {offsets = [0, 0], sizes = [2, 32], strides = [1, 1]} : vector<2x96xf32> to vector<2x32xf32>
    %924 = arith.addf %922, %923 : vector<2x32xf32>
    %925 = arith.negf %924 : vector<2x32xf32>
    %926 = math.exp %925 : vector<2x32xf32>
    %cst_183 = arith.constant 1.000000e+00 : f32
    %927 = vector.broadcast %cst_183 : f32 to vector<2x32xf32>
    %928 = arith.addf %927, %926 : vector<2x32xf32>
    %929 = arith.divf %927, %928 : vector<2x32xf32>
    %930 = vector.extract_strided_slice %882 {offsets = [0, 32], sizes = [2, 32], strides = [1, 1]} : vector<2x96xf32> to vector<2x32xf32>
    %931 = vector.extract_strided_slice %921 {offsets = [0, 32], sizes = [2, 32], strides = [1, 1]} : vector<2x96xf32> to vector<2x32xf32>
    %932 = arith.addf %930, %931 : vector<2x32xf32>
    %933 = arith.negf %932 : vector<2x32xf32>
    %934 = math.exp %933 : vector<2x32xf32>
    %cst_184 = arith.constant 1.000000e+00 : f32
    %935 = vector.broadcast %cst_184 : f32 to vector<2x32xf32>
    %936 = arith.addf %935, %934 : vector<2x32xf32>
    %937 = arith.divf %935, %936 : vector<2x32xf32>
    %938 = vector.extract_strided_slice %882 {offsets = [0, 64], sizes = [2, 32], strides = [1, 1]} : vector<2x96xf32> to vector<2x32xf32>
    %939 = vector.extract_strided_slice %921 {offsets = [0, 64], sizes = [2, 32], strides = [1, 1]} : vector<2x96xf32> to vector<2x32xf32>
    %940 = arith.mulf %929, %939 : vector<2x32xf32>
    %941 = arith.addf %938, %940 : vector<2x32xf32>
    %942 = math.tanh %941 : vector<2x32xf32>
    %cst_185 = arith.constant 1.000000e+00 : f32
    %943 = vector.broadcast %cst_185 : f32 to vector<2x32xf32>
    %944 = arith.subf %943, %937 : vector<2x32xf32>
    %945 = arith.mulf %944, %942 : vector<2x32xf32>
    %946 = arith.mulf %937, %918 : vector<2x32xf32>
    %947 = arith.addf %945, %946 : vector<2x32xf32>
    %cst_186 = arith.constant dense<0.000000e+00> : vector<2x96xf32>
    %948 = tpu.matmul %947, %831, %cst_186 {dimension_numbers = #tpu.dot_dimension_numbers<[1], [0], [0], [1], [0, 0, 1, 1], [], []>} : vector<2x32xf32>, vector<32x96xf32>, vector<2x96xf32> -> vector<2x96xf32>
    %949 = vector.broadcast %833 : vector<1x96xf32> to vector<2x96xf32>
    %950 = arith.addf %948, %949 : vector<2x96xf32>
    %951 = vector.extract_strided_slice %875 {offsets = [0, 0], sizes = [2, 32], strides = [1, 1]} : vector<2x96xf32> to vector<2x32xf32>
    %952 = vector.extract_strided_slice %950 {offsets = [0, 0], sizes = [2, 32], strides = [1, 1]} : vector<2x96xf32> to vector<2x32xf32>
    %953 = arith.addf %951, %952 : vector<2x32xf32>
    %954 = arith.negf %953 : vector<2x32xf32>
    %955 = math.exp %954 : vector<2x32xf32>
    %cst_187 = arith.constant 1.000000e+00 : f32
    %956 = vector.broadcast %cst_187 : f32 to vector<2x32xf32>
    %957 = arith.addf %956, %955 : vector<2x32xf32>
    %958 = arith.divf %956, %957 : vector<2x32xf32>
    %959 = vector.extract_strided_slice %875 {offsets = [0, 32], sizes = [2, 32], strides = [1, 1]} : vector<2x96xf32> to vector<2x32xf32>
    %960 = vector.extract_strided_slice %950 {offsets = [0, 32], sizes = [2, 32], strides = [1, 1]} : vector<2x96xf32> to vector<2x32xf32>
    %961 = arith.addf %959, %960 : vector<2x32xf32>
    %962 = arith.negf %961 : vector<2x32xf32>
    %963 = math.exp %962 : vector<2x32xf32>
    %cst_188 = arith.constant 1.000000e+00 : f32
    %964 = vector.broadcast %cst_188 : f32 to vector<2x32xf32>
    %965 = arith.addf %964, %963 : vector<2x32xf32>
    %966 = arith.divf %964, %965 : vector<2x32xf32>
    %967 = vector.extract_strided_slice %875 {offsets = [0, 64], sizes = [2, 32], strides = [1, 1]} : vector<2x96xf32> to vector<2x32xf32>
    %968 = vector.extract_strided_slice %950 {offsets = [0, 64], sizes = [2, 32], strides = [1, 1]} : vector<2x96xf32> to vector<2x32xf32>
    %969 = arith.mulf %958, %968 : vector<2x32xf32>
    %970 = arith.addf %967, %969 : vector<2x32xf32>
    %971 = math.tanh %970 : vector<2x32xf32>
    %cst_189 = arith.constant 1.000000e+00 : f32
    %972 = vector.broadcast %cst_189 : f32 to vector<2x32xf32>
    %973 = arith.subf %972, %966 : vector<2x32xf32>
    %974 = arith.mulf %973, %971 : vector<2x32xf32>
    %975 = arith.mulf %966, %947 : vector<2x32xf32>
    %976 = arith.addf %974, %975 : vector<2x32xf32>
    %cst_190 = arith.constant dense<0.000000e+00> : vector<2x96xf32>
    %977 = tpu.matmul %976, %831, %cst_190 {dimension_numbers = #tpu.dot_dimension_numbers<[1], [0], [0], [1], [0, 0, 1, 1], [], []>} : vector<2x32xf32>, vector<32x96xf32>, vector<2x96xf32> -> vector<2x96xf32>
    %978 = vector.broadcast %833 : vector<1x96xf32> to vector<2x96xf32>
    %979 = arith.addf %977, %978 : vector<2x96xf32>
    %980 = vector.extract_strided_slice %868 {offsets = [0, 0], sizes = [2, 32], strides = [1, 1]} : vector<2x96xf32> to vector<2x32xf32>
    %981 = vector.extract_strided_slice %979 {offsets = [0, 0], sizes = [2, 32], strides = [1, 1]} : vector<2x96xf32> to vector<2x32xf32>
    %982 = arith.addf %980, %981 : vector<2x32xf32>
    %983 = arith.negf %982 : vector<2x32xf32>
    %984 = math.exp %983 : vector<2x32xf32>
    %cst_191 = arith.constant 1.000000e+00 : f32
    %985 = vector.broadcast %cst_191 : f32 to vector<2x32xf32>
    %986 = arith.addf %985, %984 : vector<2x32xf32>
    %987 = arith.divf %985, %986 : vector<2x32xf32>
    %988 = vector.extract_strided_slice %868 {offsets = [0, 32], sizes = [2, 32], strides = [1, 1]} : vector<2x96xf32> to vector<2x32xf32>
    %989 = vector.extract_strided_slice %979 {offsets = [0, 32], sizes = [2, 32], strides = [1, 1]} : vector<2x96xf32> to vector<2x32xf32>
    %990 = arith.addf %988, %989 : vector<2x32xf32>
    %991 = arith.negf %990 : vector<2x32xf32>
    %992 = math.exp %991 : vector<2x32xf32>
    %cst_192 = arith.constant 1.000000e+00 : f32
    %993 = vector.broadcast %cst_192 : f32 to vector<2x32xf32>
    %994 = arith.addf %993, %992 : vector<2x32xf32>
    %995 = arith.divf %993, %994 : vector<2x32xf32>
    %996 = vector.extract_strided_slice %868 {offsets = [0, 64], sizes = [2, 32], strides = [1, 1]} : vector<2x96xf32> to vector<2x32xf32>
    %997 = vector.extract_strided_slice %979 {offsets = [0, 64], sizes = [2, 32], strides = [1, 1]} : vector<2x96xf32> to vector<2x32xf32>
    %998 = arith.mulf %987, %997 : vector<2x32xf32>
    %999 = arith.addf %996, %998 : vector<2x32xf32>
    %1000 = math.tanh %999 : vector<2x32xf32>
    %cst_193 = arith.constant 1.000000e+00 : f32
    %1001 = vector.broadcast %cst_193 : f32 to vector<2x32xf32>
    %1002 = arith.subf %1001, %995 : vector<2x32xf32>
    %1003 = arith.mulf %1002, %1000 : vector<2x32xf32>
    %1004 = arith.mulf %995, %976 : vector<2x32xf32>
    %1005 = arith.addf %1003, %1004 : vector<2x32xf32>
    %cst_194 = arith.constant dense<0.000000e+00> : vector<2x96xf32>
    %1006 = tpu.matmul %1005, %831, %cst_194 {dimension_numbers = #tpu.dot_dimension_numbers<[1], [0], [0], [1], [0, 0, 1, 1], [], []>} : vector<2x32xf32>, vector<32x96xf32>, vector<2x96xf32> -> vector<2x96xf32>
    %1007 = vector.broadcast %833 : vector<1x96xf32> to vector<2x96xf32>
    %1008 = arith.addf %1006, %1007 : vector<2x96xf32>
    %1009 = vector.extract_strided_slice %861 {offsets = [0, 0], sizes = [2, 32], strides = [1, 1]} : vector<2x96xf32> to vector<2x32xf32>
    %1010 = vector.extract_strided_slice %1008 {offsets = [0, 0], sizes = [2, 32], strides = [1, 1]} : vector<2x96xf32> to vector<2x32xf32>
    %1011 = arith.addf %1009, %1010 : vector<2x32xf32>
    %1012 = arith.negf %1011 : vector<2x32xf32>
    %1013 = math.exp %1012 : vector<2x32xf32>
    %cst_195 = arith.constant 1.000000e+00 : f32
    %1014 = vector.broadcast %cst_195 : f32 to vector<2x32xf32>
    %1015 = arith.addf %1014, %1013 : vector<2x32xf32>
    %1016 = arith.divf %1014, %1015 : vector<2x32xf32>
    %1017 = vector.extract_strided_slice %861 {offsets = [0, 32], sizes = [2, 32], strides = [1, 1]} : vector<2x96xf32> to vector<2x32xf32>
    %1018 = vector.extract_strided_slice %1008 {offsets = [0, 32], sizes = [2, 32], strides = [1, 1]} : vector<2x96xf32> to vector<2x32xf32>
    %1019 = arith.addf %1017, %1018 : vector<2x32xf32>
    %1020 = arith.negf %1019 : vector<2x32xf32>
    %1021 = math.exp %1020 : vector<2x32xf32>
    %cst_196 = arith.constant 1.000000e+00 : f32
    %1022 = vector.broadcast %cst_196 : f32 to vector<2x32xf32>
    %1023 = arith.addf %1022, %1021 : vector<2x32xf32>
    %1024 = arith.divf %1022, %1023 : vector<2x32xf32>
    %1025 = vector.extract_strided_slice %861 {offsets = [0, 64], sizes = [2, 32], strides = [1, 1]} : vector<2x96xf32> to vector<2x32xf32>
    %1026 = vector.extract_strided_slice %1008 {offsets = [0, 64], sizes = [2, 32], strides = [1, 1]} : vector<2x96xf32> to vector<2x32xf32>
    %1027 = arith.mulf %1016, %1026 : vector<2x32xf32>
    %1028 = arith.addf %1025, %1027 : vector<2x32xf32>
    %1029 = math.tanh %1028 : vector<2x32xf32>
    %cst_197 = arith.constant 1.000000e+00 : f32
    %1030 = vector.broadcast %cst_197 : f32 to vector<2x32xf32>
    %1031 = arith.subf %1030, %1024 : vector<2x32xf32>
    %1032 = arith.mulf %1031, %1029 : vector<2x32xf32>
    %1033 = arith.mulf %1024, %1005 : vector<2x32xf32>
    %1034 = arith.addf %1032, %1033 : vector<2x32xf32>
    %cst_198 = arith.constant dense<0.000000e+00> : vector<2x96xf32>
    %1035 = tpu.matmul %1034, %831, %cst_198 {dimension_numbers = #tpu.dot_dimension_numbers<[1], [0], [0], [1], [0, 0, 1, 1], [], []>} : vector<2x32xf32>, vector<32x96xf32>, vector<2x96xf32> -> vector<2x96xf32>
    %1036 = vector.broadcast %833 : vector<1x96xf32> to vector<2x96xf32>
    %1037 = arith.addf %1035, %1036 : vector<2x96xf32>
    %1038 = vector.extract_strided_slice %854 {offsets = [0, 0], sizes = [2, 32], strides = [1, 1]} : vector<2x96xf32> to vector<2x32xf32>
    %1039 = vector.extract_strided_slice %1037 {offsets = [0, 0], sizes = [2, 32], strides = [1, 1]} : vector<2x96xf32> to vector<2x32xf32>
    %1040 = arith.addf %1038, %1039 : vector<2x32xf32>
    %1041 = arith.negf %1040 : vector<2x32xf32>
    %1042 = math.exp %1041 : vector<2x32xf32>
    %cst_199 = arith.constant 1.000000e+00 : f32
    %1043 = vector.broadcast %cst_199 : f32 to vector<2x32xf32>
    %1044 = arith.addf %1043, %1042 : vector<2x32xf32>
    %1045 = arith.divf %1043, %1044 : vector<2x32xf32>
    %1046 = vector.extract_strided_slice %854 {offsets = [0, 32], sizes = [2, 32], strides = [1, 1]} : vector<2x96xf32> to vector<2x32xf32>
    %1047 = vector.extract_strided_slice %1037 {offsets = [0, 32], sizes = [2, 32], strides = [1, 1]} : vector<2x96xf32> to vector<2x32xf32>
    %1048 = arith.addf %1046, %1047 : vector<2x32xf32>
    %1049 = arith.negf %1048 : vector<2x32xf32>
    %1050 = math.exp %1049 : vector<2x32xf32>
    %cst_200 = arith.constant 1.000000e+00 : f32
    %1051 = vector.broadcast %cst_200 : f32 to vector<2x32xf32>
    %1052 = arith.addf %1051, %1050 : vector<2x32xf32>
    %1053 = arith.divf %1051, %1052 : vector<2x32xf32>
    %1054 = vector.extract_strided_slice %854 {offsets = [0, 64], sizes = [2, 32], strides = [1, 1]} : vector<2x96xf32> to vector<2x32xf32>
    %1055 = vector.extract_strided_slice %1037 {offsets = [0, 64], sizes = [2, 32], strides = [1, 1]} : vector<2x96xf32> to vector<2x32xf32>
    %1056 = arith.mulf %1045, %1055 : vector<2x32xf32>
    %1057 = arith.addf %1054, %1056 : vector<2x32xf32>
    %1058 = math.tanh %1057 : vector<2x32xf32>
    %cst_201 = arith.constant 1.000000e+00 : f32
    %1059 = vector.broadcast %cst_201 : f32 to vector<2x32xf32>
    %1060 = arith.subf %1059, %1053 : vector<2x32xf32>
    %1061 = arith.mulf %1060, %1058 : vector<2x32xf32>
    %1062 = arith.mulf %1053, %1034 : vector<2x32xf32>
    %1063 = arith.addf %1061, %1062 : vector<2x32xf32>
    %cst_202 = arith.constant dense<0.000000e+00> : vector<2x96xf32>
    %1064 = tpu.matmul %1063, %831, %cst_202 {dimension_numbers = #tpu.dot_dimension_numbers<[1], [0], [0], [1], [0, 0, 1, 1], [], []>} : vector<2x32xf32>, vector<32x96xf32>, vector<2x96xf32> -> vector<2x96xf32>
    %1065 = vector.broadcast %833 : vector<1x96xf32> to vector<2x96xf32>
    %1066 = arith.addf %1064, %1065 : vector<2x96xf32>
    %1067 = vector.extract_strided_slice %847 {offsets = [0, 0], sizes = [2, 32], strides = [1, 1]} : vector<2x96xf32> to vector<2x32xf32>
    %1068 = vector.extract_strided_slice %1066 {offsets = [0, 0], sizes = [2, 32], strides = [1, 1]} : vector<2x96xf32> to vector<2x32xf32>
    %1069 = arith.addf %1067, %1068 : vector<2x32xf32>
    %1070 = arith.negf %1069 : vector<2x32xf32>
    %1071 = math.exp %1070 : vector<2x32xf32>
    %cst_203 = arith.constant 1.000000e+00 : f32
    %1072 = vector.broadcast %cst_203 : f32 to vector<2x32xf32>
    %1073 = arith.addf %1072, %1071 : vector<2x32xf32>
    %1074 = arith.divf %1072, %1073 : vector<2x32xf32>
    %1075 = vector.extract_strided_slice %847 {offsets = [0, 32], sizes = [2, 32], strides = [1, 1]} : vector<2x96xf32> to vector<2x32xf32>
    %1076 = vector.extract_strided_slice %1066 {offsets = [0, 32], sizes = [2, 32], strides = [1, 1]} : vector<2x96xf32> to vector<2x32xf32>
    %1077 = arith.addf %1075, %1076 : vector<2x32xf32>
    %1078 = arith.negf %1077 : vector<2x32xf32>
    %1079 = math.exp %1078 : vector<2x32xf32>
    %cst_204 = arith.constant 1.000000e+00 : f32
    %1080 = vector.broadcast %cst_204 : f32 to vector<2x32xf32>
    %1081 = arith.addf %1080, %1079 : vector<2x32xf32>
    %1082 = arith.divf %1080, %1081 : vector<2x32xf32>
    %1083 = vector.extract_strided_slice %847 {offsets = [0, 64], sizes = [2, 32], strides = [1, 1]} : vector<2x96xf32> to vector<2x32xf32>
    %1084 = vector.extract_strided_slice %1066 {offsets = [0, 64], sizes = [2, 32], strides = [1, 1]} : vector<2x96xf32> to vector<2x32xf32>
    %1085 = arith.mulf %1074, %1084 : vector<2x32xf32>
    %1086 = arith.addf %1083, %1085 : vector<2x32xf32>
    %1087 = math.tanh %1086 : vector<2x32xf32>
    %cst_205 = arith.constant 1.000000e+00 : f32
    %1088 = vector.broadcast %cst_205 : f32 to vector<2x32xf32>
    %1089 = arith.subf %1088, %1082 : vector<2x32xf32>
    %1090 = arith.mulf %1089, %1087 : vector<2x32xf32>
    %1091 = arith.mulf %1082, %1063 : vector<2x32xf32>
    %1092 = arith.addf %1090, %1091 : vector<2x32xf32>
    %cst_206 = arith.constant dense<0.000000e+00> : vector<2x96xf32>
    %1093 = tpu.matmul %1092, %831, %cst_206 {dimension_numbers = #tpu.dot_dimension_numbers<[1], [0], [0], [1], [0, 0, 1, 1], [], []>} : vector<2x32xf32>, vector<32x96xf32>, vector<2x96xf32> -> vector<2x96xf32>
    %1094 = vector.broadcast %833 : vector<1x96xf32> to vector<2x96xf32>
    %1095 = arith.addf %1093, %1094 : vector<2x96xf32>
    %1096 = vector.extract_strided_slice %840 {offsets = [0, 0], sizes = [2, 32], strides = [1, 1]} : vector<2x96xf32> to vector<2x32xf32>
    %1097 = vector.extract_strided_slice %1095 {offsets = [0, 0], sizes = [2, 32], strides = [1, 1]} : vector<2x96xf32> to vector<2x32xf32>
    %1098 = arith.addf %1096, %1097 : vector<2x32xf32>
    %1099 = arith.negf %1098 : vector<2x32xf32>
    %1100 = math.exp %1099 : vector<2x32xf32>
    %cst_207 = arith.constant 1.000000e+00 : f32
    %1101 = vector.broadcast %cst_207 : f32 to vector<2x32xf32>
    %1102 = arith.addf %1101, %1100 : vector<2x32xf32>
    %1103 = arith.divf %1101, %1102 : vector<2x32xf32>
    %1104 = vector.extract_strided_slice %840 {offsets = [0, 32], sizes = [2, 32], strides = [1, 1]} : vector<2x96xf32> to vector<2x32xf32>
    %1105 = vector.extract_strided_slice %1095 {offsets = [0, 32], sizes = [2, 32], strides = [1, 1]} : vector<2x96xf32> to vector<2x32xf32>
    %1106 = arith.addf %1104, %1105 : vector<2x32xf32>
    %1107 = arith.negf %1106 : vector<2x32xf32>
    %1108 = math.exp %1107 : vector<2x32xf32>
    %cst_208 = arith.constant 1.000000e+00 : f32
    %1109 = vector.broadcast %cst_208 : f32 to vector<2x32xf32>
    %1110 = arith.addf %1109, %1108 : vector<2x32xf32>
    %1111 = arith.divf %1109, %1110 : vector<2x32xf32>
    %1112 = vector.extract_strided_slice %840 {offsets = [0, 64], sizes = [2, 32], strides = [1, 1]} : vector<2x96xf32> to vector<2x32xf32>
    %1113 = vector.extract_strided_slice %1095 {offsets = [0, 64], sizes = [2, 32], strides = [1, 1]} : vector<2x96xf32> to vector<2x32xf32>
    %1114 = arith.mulf %1103, %1113 : vector<2x32xf32>
    %1115 = arith.addf %1112, %1114 : vector<2x32xf32>
    %1116 = math.tanh %1115 : vector<2x32xf32>
    %cst_209 = arith.constant 1.000000e+00 : f32
    %1117 = vector.broadcast %cst_209 : f32 to vector<2x32xf32>
    %1118 = arith.subf %1117, %1111 : vector<2x32xf32>
    %1119 = arith.mulf %1118, %1116 : vector<2x32xf32>
    %1120 = arith.mulf %1111, %1092 : vector<2x32xf32>
    %1121 = arith.addf %1119, %1120 : vector<2x32xf32>
    %c0_210 = arith.constant 0 : index
    %c0_211 = arith.constant 0 : index
    %1122 = vector.load %arg17[%c0_210, %c0_211] : memref<64x96xf32, #tpu.memory_space<vmem>>, vector<64x96xf32>
    %c0_212 = arith.constant 0 : index
    %c0_213 = arith.constant 0 : index
    %1123 = vector.load %arg18[%c0_212, %c0_213] : memref<32x96xf32, #tpu.memory_space<vmem>>, vector<32x96xf32>
    %c0_214 = arith.constant 0 : index
    %c0_215 = arith.constant 0 : index
    %1124 = vector.load %arg19[%c0_214, %c0_215] : memref<1x96xf32, #tpu.memory_space<vmem>>, vector<1x96xf32>
    %c0_216 = arith.constant 0 : index
    %c0_217 = arith.constant 0 : index
    %1125 = vector.load %arg20[%c0_216, %c0_217] : memref<1x96xf32, #tpu.memory_space<vmem>>, vector<1x96xf32>
    %1126 = vector.extract_strided_slice %1122 {offsets = [0, 0], sizes = [32, 96], strides = [1, 1]} : vector<64x96xf32> to vector<32x96xf32>
    %cst_218 = arith.constant dense<0.000000e+00> : vector<2x96xf32>
    %1127 = tpu.matmul %626, %1126, %cst_218 {dimension_numbers = #tpu.dot_dimension_numbers<[1], [0], [0], [1], [0, 0, 1, 1], [], []>} : vector<2x32xf32>, vector<32x96xf32>, vector<2x96xf32> -> vector<2x96xf32>
    %1128 = vector.extract_strided_slice %1122 {offsets = [32, 0], sizes = [32, 96], strides = [1, 1]} : vector<64x96xf32> to vector<32x96xf32>
    %cst_219 = arith.constant dense<0.000000e+00> : vector<2x96xf32>
    %1129 = tpu.matmul %1121, %1128, %cst_219 {dimension_numbers = #tpu.dot_dimension_numbers<[1], [0], [0], [1], [0, 0, 1, 1], [], []>} : vector<2x32xf32>, vector<32x96xf32>, vector<2x96xf32> -> vector<2x96xf32>
    %1130 = arith.addf %1127, %1129 : vector<2x96xf32>
    %1131 = vector.broadcast %1124 : vector<1x96xf32> to vector<2x96xf32>
    %1132 = arith.addf %1130, %1131 : vector<2x96xf32>
    %1133 = vector.extract_strided_slice %1122 {offsets = [0, 0], sizes = [32, 96], strides = [1, 1]} : vector<64x96xf32> to vector<32x96xf32>
    %cst_220 = arith.constant dense<0.000000e+00> : vector<2x96xf32>
    %1134 = tpu.matmul %655, %1133, %cst_220 {dimension_numbers = #tpu.dot_dimension_numbers<[1], [0], [0], [1], [0, 0, 1, 1], [], []>} : vector<2x32xf32>, vector<32x96xf32>, vector<2x96xf32> -> vector<2x96xf32>
    %1135 = vector.extract_strided_slice %1122 {offsets = [32, 0], sizes = [32, 96], strides = [1, 1]} : vector<64x96xf32> to vector<32x96xf32>
    %cst_221 = arith.constant dense<0.000000e+00> : vector<2x96xf32>
    %1136 = tpu.matmul %1092, %1135, %cst_221 {dimension_numbers = #tpu.dot_dimension_numbers<[1], [0], [0], [1], [0, 0, 1, 1], [], []>} : vector<2x32xf32>, vector<32x96xf32>, vector<2x96xf32> -> vector<2x96xf32>
    %1137 = arith.addf %1134, %1136 : vector<2x96xf32>
    %1138 = vector.broadcast %1124 : vector<1x96xf32> to vector<2x96xf32>
    %1139 = arith.addf %1137, %1138 : vector<2x96xf32>
    %1140 = vector.extract_strided_slice %1122 {offsets = [0, 0], sizes = [32, 96], strides = [1, 1]} : vector<64x96xf32> to vector<32x96xf32>
    %cst_222 = arith.constant dense<0.000000e+00> : vector<2x96xf32>
    %1141 = tpu.matmul %684, %1140, %cst_222 {dimension_numbers = #tpu.dot_dimension_numbers<[1], [0], [0], [1], [0, 0, 1, 1], [], []>} : vector<2x32xf32>, vector<32x96xf32>, vector<2x96xf32> -> vector<2x96xf32>
    %1142 = vector.extract_strided_slice %1122 {offsets = [32, 0], sizes = [32, 96], strides = [1, 1]} : vector<64x96xf32> to vector<32x96xf32>
    %cst_223 = arith.constant dense<0.000000e+00> : vector<2x96xf32>
    %1143 = tpu.matmul %1063, %1142, %cst_223 {dimension_numbers = #tpu.dot_dimension_numbers<[1], [0], [0], [1], [0, 0, 1, 1], [], []>} : vector<2x32xf32>, vector<32x96xf32>, vector<2x96xf32> -> vector<2x96xf32>
    %1144 = arith.addf %1141, %1143 : vector<2x96xf32>
    %1145 = vector.broadcast %1124 : vector<1x96xf32> to vector<2x96xf32>
    %1146 = arith.addf %1144, %1145 : vector<2x96xf32>
    %1147 = vector.extract_strided_slice %1122 {offsets = [0, 0], sizes = [32, 96], strides = [1, 1]} : vector<64x96xf32> to vector<32x96xf32>
    %cst_224 = arith.constant dense<0.000000e+00> : vector<2x96xf32>
    %1148 = tpu.matmul %713, %1147, %cst_224 {dimension_numbers = #tpu.dot_dimension_numbers<[1], [0], [0], [1], [0, 0, 1, 1], [], []>} : vector<2x32xf32>, vector<32x96xf32>, vector<2x96xf32> -> vector<2x96xf32>
    %1149 = vector.extract_strided_slice %1122 {offsets = [32, 0], sizes = [32, 96], strides = [1, 1]} : vector<64x96xf32> to vector<32x96xf32>
    %cst_225 = arith.constant dense<0.000000e+00> : vector<2x96xf32>
    %1150 = tpu.matmul %1034, %1149, %cst_225 {dimension_numbers = #tpu.dot_dimension_numbers<[1], [0], [0], [1], [0, 0, 1, 1], [], []>} : vector<2x32xf32>, vector<32x96xf32>, vector<2x96xf32> -> vector<2x96xf32>
    %1151 = arith.addf %1148, %1150 : vector<2x96xf32>
    %1152 = vector.broadcast %1124 : vector<1x96xf32> to vector<2x96xf32>
    %1153 = arith.addf %1151, %1152 : vector<2x96xf32>
    %1154 = vector.extract_strided_slice %1122 {offsets = [0, 0], sizes = [32, 96], strides = [1, 1]} : vector<64x96xf32> to vector<32x96xf32>
    %cst_226 = arith.constant dense<0.000000e+00> : vector<2x96xf32>
    %1155 = tpu.matmul %742, %1154, %cst_226 {dimension_numbers = #tpu.dot_dimension_numbers<[1], [0], [0], [1], [0, 0, 1, 1], [], []>} : vector<2x32xf32>, vector<32x96xf32>, vector<2x96xf32> -> vector<2x96xf32>
    %1156 = vector.extract_strided_slice %1122 {offsets = [32, 0], sizes = [32, 96], strides = [1, 1]} : vector<64x96xf32> to vector<32x96xf32>
    %cst_227 = arith.constant dense<0.000000e+00> : vector<2x96xf32>
    %1157 = tpu.matmul %1005, %1156, %cst_227 {dimension_numbers = #tpu.dot_dimension_numbers<[1], [0], [0], [1], [0, 0, 1, 1], [], []>} : vector<2x32xf32>, vector<32x96xf32>, vector<2x96xf32> -> vector<2x96xf32>
    %1158 = arith.addf %1155, %1157 : vector<2x96xf32>
    %1159 = vector.broadcast %1124 : vector<1x96xf32> to vector<2x96xf32>
    %1160 = arith.addf %1158, %1159 : vector<2x96xf32>
    %1161 = vector.extract_strided_slice %1122 {offsets = [0, 0], sizes = [32, 96], strides = [1, 1]} : vector<64x96xf32> to vector<32x96xf32>
    %cst_228 = arith.constant dense<0.000000e+00> : vector<2x96xf32>
    %1162 = tpu.matmul %771, %1161, %cst_228 {dimension_numbers = #tpu.dot_dimension_numbers<[1], [0], [0], [1], [0, 0, 1, 1], [], []>} : vector<2x32xf32>, vector<32x96xf32>, vector<2x96xf32> -> vector<2x96xf32>
    %1163 = vector.extract_strided_slice %1122 {offsets = [32, 0], sizes = [32, 96], strides = [1, 1]} : vector<64x96xf32> to vector<32x96xf32>
    %cst_229 = arith.constant dense<0.000000e+00> : vector<2x96xf32>
    %1164 = tpu.matmul %976, %1163, %cst_229 {dimension_numbers = #tpu.dot_dimension_numbers<[1], [0], [0], [1], [0, 0, 1, 1], [], []>} : vector<2x32xf32>, vector<32x96xf32>, vector<2x96xf32> -> vector<2x96xf32>
    %1165 = arith.addf %1162, %1164 : vector<2x96xf32>
    %1166 = vector.broadcast %1124 : vector<1x96xf32> to vector<2x96xf32>
    %1167 = arith.addf %1165, %1166 : vector<2x96xf32>
    %1168 = vector.extract_strided_slice %1122 {offsets = [0, 0], sizes = [32, 96], strides = [1, 1]} : vector<64x96xf32> to vector<32x96xf32>
    %cst_230 = arith.constant dense<0.000000e+00> : vector<2x96xf32>
    %1169 = tpu.matmul %800, %1168, %cst_230 {dimension_numbers = #tpu.dot_dimension_numbers<[1], [0], [0], [1], [0, 0, 1, 1], [], []>} : vector<2x32xf32>, vector<32x96xf32>, vector<2x96xf32> -> vector<2x96xf32>
    %1170 = vector.extract_strided_slice %1122 {offsets = [32, 0], sizes = [32, 96], strides = [1, 1]} : vector<64x96xf32> to vector<32x96xf32>
    %cst_231 = arith.constant dense<0.000000e+00> : vector<2x96xf32>
    %1171 = tpu.matmul %947, %1170, %cst_231 {dimension_numbers = #tpu.dot_dimension_numbers<[1], [0], [0], [1], [0, 0, 1, 1], [], []>} : vector<2x32xf32>, vector<32x96xf32>, vector<2x96xf32> -> vector<2x96xf32>
    %1172 = arith.addf %1169, %1171 : vector<2x96xf32>
    %1173 = vector.broadcast %1124 : vector<1x96xf32> to vector<2x96xf32>
    %1174 = arith.addf %1172, %1173 : vector<2x96xf32>
    %1175 = vector.extract_strided_slice %1122 {offsets = [0, 0], sizes = [32, 96], strides = [1, 1]} : vector<64x96xf32> to vector<32x96xf32>
    %cst_232 = arith.constant dense<0.000000e+00> : vector<2x96xf32>
    %1176 = tpu.matmul %829, %1175, %cst_232 {dimension_numbers = #tpu.dot_dimension_numbers<[1], [0], [0], [1], [0, 0, 1, 1], [], []>} : vector<2x32xf32>, vector<32x96xf32>, vector<2x96xf32> -> vector<2x96xf32>
    %1177 = vector.extract_strided_slice %1122 {offsets = [32, 0], sizes = [32, 96], strides = [1, 1]} : vector<64x96xf32> to vector<32x96xf32>
    %cst_233 = arith.constant dense<0.000000e+00> : vector<2x96xf32>
    %1178 = tpu.matmul %918, %1177, %cst_233 {dimension_numbers = #tpu.dot_dimension_numbers<[1], [0], [0], [1], [0, 0, 1, 1], [], []>} : vector<2x32xf32>, vector<32x96xf32>, vector<2x96xf32> -> vector<2x96xf32>
    %1179 = arith.addf %1176, %1178 : vector<2x96xf32>
    %1180 = vector.broadcast %1124 : vector<1x96xf32> to vector<2x96xf32>
    %1181 = arith.addf %1179, %1180 : vector<2x96xf32>
    %cst_234 = arith.constant dense<0.000000e+00> : vector<2x96xf32>
    %1182 = tpu.matmul %1, %1123, %cst_234 {dimension_numbers = #tpu.dot_dimension_numbers<[1], [0], [0], [1], [0, 0, 1, 1], [], []>} : vector<2x32xf32>, vector<32x96xf32>, vector<2x96xf32> -> vector<2x96xf32>
    %1183 = vector.broadcast %1125 : vector<1x96xf32> to vector<2x96xf32>
    %1184 = arith.addf %1182, %1183 : vector<2x96xf32>
    %1185 = vector.extract_strided_slice %1132 {offsets = [0, 0], sizes = [2, 32], strides = [1, 1]} : vector<2x96xf32> to vector<2x32xf32>
    %1186 = vector.extract_strided_slice %1184 {offsets = [0, 0], sizes = [2, 32], strides = [1, 1]} : vector<2x96xf32> to vector<2x32xf32>
    %1187 = arith.addf %1185, %1186 : vector<2x32xf32>
    %1188 = arith.negf %1187 : vector<2x32xf32>
    %1189 = math.exp %1188 : vector<2x32xf32>
    %cst_235 = arith.constant 1.000000e+00 : f32
    %1190 = vector.broadcast %cst_235 : f32 to vector<2x32xf32>
    %1191 = arith.addf %1190, %1189 : vector<2x32xf32>
    %1192 = arith.divf %1190, %1191 : vector<2x32xf32>
    %1193 = vector.extract_strided_slice %1132 {offsets = [0, 32], sizes = [2, 32], strides = [1, 1]} : vector<2x96xf32> to vector<2x32xf32>
    %1194 = vector.extract_strided_slice %1184 {offsets = [0, 32], sizes = [2, 32], strides = [1, 1]} : vector<2x96xf32> to vector<2x32xf32>
    %1195 = arith.addf %1193, %1194 : vector<2x32xf32>
    %1196 = arith.negf %1195 : vector<2x32xf32>
    %1197 = math.exp %1196 : vector<2x32xf32>
    %cst_236 = arith.constant 1.000000e+00 : f32
    %1198 = vector.broadcast %cst_236 : f32 to vector<2x32xf32>
    %1199 = arith.addf %1198, %1197 : vector<2x32xf32>
    %1200 = arith.divf %1198, %1199 : vector<2x32xf32>
    %1201 = vector.extract_strided_slice %1132 {offsets = [0, 64], sizes = [2, 32], strides = [1, 1]} : vector<2x96xf32> to vector<2x32xf32>
    %1202 = vector.extract_strided_slice %1184 {offsets = [0, 64], sizes = [2, 32], strides = [1, 1]} : vector<2x96xf32> to vector<2x32xf32>
    %1203 = arith.mulf %1192, %1202 : vector<2x32xf32>
    %1204 = arith.addf %1201, %1203 : vector<2x32xf32>
    %1205 = math.tanh %1204 : vector<2x32xf32>
    %cst_237 = arith.constant 1.000000e+00 : f32
    %1206 = vector.broadcast %cst_237 : f32 to vector<2x32xf32>
    %1207 = arith.subf %1206, %1200 : vector<2x32xf32>
    %1208 = arith.mulf %1207, %1205 : vector<2x32xf32>
    %1209 = arith.mulf %1200, %1 : vector<2x32xf32>
    %1210 = arith.addf %1208, %1209 : vector<2x32xf32>
    %cst_238 = arith.constant dense<0.000000e+00> : vector<2x96xf32>
    %1211 = tpu.matmul %1210, %1123, %cst_238 {dimension_numbers = #tpu.dot_dimension_numbers<[1], [0], [0], [1], [0, 0, 1, 1], [], []>} : vector<2x32xf32>, vector<32x96xf32>, vector<2x96xf32> -> vector<2x96xf32>
    %1212 = vector.broadcast %1125 : vector<1x96xf32> to vector<2x96xf32>
    %1213 = arith.addf %1211, %1212 : vector<2x96xf32>
    %1214 = vector.extract_strided_slice %1139 {offsets = [0, 0], sizes = [2, 32], strides = [1, 1]} : vector<2x96xf32> to vector<2x32xf32>
    %1215 = vector.extract_strided_slice %1213 {offsets = [0, 0], sizes = [2, 32], strides = [1, 1]} : vector<2x96xf32> to vector<2x32xf32>
    %1216 = arith.addf %1214, %1215 : vector<2x32xf32>
    %1217 = arith.negf %1216 : vector<2x32xf32>
    %1218 = math.exp %1217 : vector<2x32xf32>
    %cst_239 = arith.constant 1.000000e+00 : f32
    %1219 = vector.broadcast %cst_239 : f32 to vector<2x32xf32>
    %1220 = arith.addf %1219, %1218 : vector<2x32xf32>
    %1221 = arith.divf %1219, %1220 : vector<2x32xf32>
    %1222 = vector.extract_strided_slice %1139 {offsets = [0, 32], sizes = [2, 32], strides = [1, 1]} : vector<2x96xf32> to vector<2x32xf32>
    %1223 = vector.extract_strided_slice %1213 {offsets = [0, 32], sizes = [2, 32], strides = [1, 1]} : vector<2x96xf32> to vector<2x32xf32>
    %1224 = arith.addf %1222, %1223 : vector<2x32xf32>
    %1225 = arith.negf %1224 : vector<2x32xf32>
    %1226 = math.exp %1225 : vector<2x32xf32>
    %cst_240 = arith.constant 1.000000e+00 : f32
    %1227 = vector.broadcast %cst_240 : f32 to vector<2x32xf32>
    %1228 = arith.addf %1227, %1226 : vector<2x32xf32>
    %1229 = arith.divf %1227, %1228 : vector<2x32xf32>
    %1230 = vector.extract_strided_slice %1139 {offsets = [0, 64], sizes = [2, 32], strides = [1, 1]} : vector<2x96xf32> to vector<2x32xf32>
    %1231 = vector.extract_strided_slice %1213 {offsets = [0, 64], sizes = [2, 32], strides = [1, 1]} : vector<2x96xf32> to vector<2x32xf32>
    %1232 = arith.mulf %1221, %1231 : vector<2x32xf32>
    %1233 = arith.addf %1230, %1232 : vector<2x32xf32>
    %1234 = math.tanh %1233 : vector<2x32xf32>
    %cst_241 = arith.constant 1.000000e+00 : f32
    %1235 = vector.broadcast %cst_241 : f32 to vector<2x32xf32>
    %1236 = arith.subf %1235, %1229 : vector<2x32xf32>
    %1237 = arith.mulf %1236, %1234 : vector<2x32xf32>
    %1238 = arith.mulf %1229, %1210 : vector<2x32xf32>
    %1239 = arith.addf %1237, %1238 : vector<2x32xf32>
    %cst_242 = arith.constant dense<0.000000e+00> : vector<2x96xf32>
    %1240 = tpu.matmul %1239, %1123, %cst_242 {dimension_numbers = #tpu.dot_dimension_numbers<[1], [0], [0], [1], [0, 0, 1, 1], [], []>} : vector<2x32xf32>, vector<32x96xf32>, vector<2x96xf32> -> vector<2x96xf32>
    %1241 = vector.broadcast %1125 : vector<1x96xf32> to vector<2x96xf32>
    %1242 = arith.addf %1240, %1241 : vector<2x96xf32>
    %1243 = vector.extract_strided_slice %1146 {offsets = [0, 0], sizes = [2, 32], strides = [1, 1]} : vector<2x96xf32> to vector<2x32xf32>
    %1244 = vector.extract_strided_slice %1242 {offsets = [0, 0], sizes = [2, 32], strides = [1, 1]} : vector<2x96xf32> to vector<2x32xf32>
    %1245 = arith.addf %1243, %1244 : vector<2x32xf32>
    %1246 = arith.negf %1245 : vector<2x32xf32>
    %1247 = math.exp %1246 : vector<2x32xf32>
    %cst_243 = arith.constant 1.000000e+00 : f32
    %1248 = vector.broadcast %cst_243 : f32 to vector<2x32xf32>
    %1249 = arith.addf %1248, %1247 : vector<2x32xf32>
    %1250 = arith.divf %1248, %1249 : vector<2x32xf32>
    %1251 = vector.extract_strided_slice %1146 {offsets = [0, 32], sizes = [2, 32], strides = [1, 1]} : vector<2x96xf32> to vector<2x32xf32>
    %1252 = vector.extract_strided_slice %1242 {offsets = [0, 32], sizes = [2, 32], strides = [1, 1]} : vector<2x96xf32> to vector<2x32xf32>
    %1253 = arith.addf %1251, %1252 : vector<2x32xf32>
    %1254 = arith.negf %1253 : vector<2x32xf32>
    %1255 = math.exp %1254 : vector<2x32xf32>
    %cst_244 = arith.constant 1.000000e+00 : f32
    %1256 = vector.broadcast %cst_244 : f32 to vector<2x32xf32>
    %1257 = arith.addf %1256, %1255 : vector<2x32xf32>
    %1258 = arith.divf %1256, %1257 : vector<2x32xf32>
    %1259 = vector.extract_strided_slice %1146 {offsets = [0, 64], sizes = [2, 32], strides = [1, 1]} : vector<2x96xf32> to vector<2x32xf32>
    %1260 = vector.extract_strided_slice %1242 {offsets = [0, 64], sizes = [2, 32], strides = [1, 1]} : vector<2x96xf32> to vector<2x32xf32>
    %1261 = arith.mulf %1250, %1260 : vector<2x32xf32>
    %1262 = arith.addf %1259, %1261 : vector<2x32xf32>
    %1263 = math.tanh %1262 : vector<2x32xf32>
    %cst_245 = arith.constant 1.000000e+00 : f32
    %1264 = vector.broadcast %cst_245 : f32 to vector<2x32xf32>
    %1265 = arith.subf %1264, %1258 : vector<2x32xf32>
    %1266 = arith.mulf %1265, %1263 : vector<2x32xf32>
    %1267 = arith.mulf %1258, %1239 : vector<2x32xf32>
    %1268 = arith.addf %1266, %1267 : vector<2x32xf32>
    %cst_246 = arith.constant dense<0.000000e+00> : vector<2x96xf32>
    %1269 = tpu.matmul %1268, %1123, %cst_246 {dimension_numbers = #tpu.dot_dimension_numbers<[1], [0], [0], [1], [0, 0, 1, 1], [], []>} : vector<2x32xf32>, vector<32x96xf32>, vector<2x96xf32> -> vector<2x96xf32>
    %1270 = vector.broadcast %1125 : vector<1x96xf32> to vector<2x96xf32>
    %1271 = arith.addf %1269, %1270 : vector<2x96xf32>
    %1272 = vector.extract_strided_slice %1153 {offsets = [0, 0], sizes = [2, 32], strides = [1, 1]} : vector<2x96xf32> to vector<2x32xf32>
    %1273 = vector.extract_strided_slice %1271 {offsets = [0, 0], sizes = [2, 32], strides = [1, 1]} : vector<2x96xf32> to vector<2x32xf32>
    %1274 = arith.addf %1272, %1273 : vector<2x32xf32>
    %1275 = arith.negf %1274 : vector<2x32xf32>
    %1276 = math.exp %1275 : vector<2x32xf32>
    %cst_247 = arith.constant 1.000000e+00 : f32
    %1277 = vector.broadcast %cst_247 : f32 to vector<2x32xf32>
    %1278 = arith.addf %1277, %1276 : vector<2x32xf32>
    %1279 = arith.divf %1277, %1278 : vector<2x32xf32>
    %1280 = vector.extract_strided_slice %1153 {offsets = [0, 32], sizes = [2, 32], strides = [1, 1]} : vector<2x96xf32> to vector<2x32xf32>
    %1281 = vector.extract_strided_slice %1271 {offsets = [0, 32], sizes = [2, 32], strides = [1, 1]} : vector<2x96xf32> to vector<2x32xf32>
    %1282 = arith.addf %1280, %1281 : vector<2x32xf32>
    %1283 = arith.negf %1282 : vector<2x32xf32>
    %1284 = math.exp %1283 : vector<2x32xf32>
    %cst_248 = arith.constant 1.000000e+00 : f32
    %1285 = vector.broadcast %cst_248 : f32 to vector<2x32xf32>
    %1286 = arith.addf %1285, %1284 : vector<2x32xf32>
    %1287 = arith.divf %1285, %1286 : vector<2x32xf32>
    %1288 = vector.extract_strided_slice %1153 {offsets = [0, 64], sizes = [2, 32], strides = [1, 1]} : vector<2x96xf32> to vector<2x32xf32>
    %1289 = vector.extract_strided_slice %1271 {offsets = [0, 64], sizes = [2, 32], strides = [1, 1]} : vector<2x96xf32> to vector<2x32xf32>
    %1290 = arith.mulf %1279, %1289 : vector<2x32xf32>
    %1291 = arith.addf %1288, %1290 : vector<2x32xf32>
    %1292 = math.tanh %1291 : vector<2x32xf32>
    %cst_249 = arith.constant 1.000000e+00 : f32
    %1293 = vector.broadcast %cst_249 : f32 to vector<2x32xf32>
    %1294 = arith.subf %1293, %1287 : vector<2x32xf32>
    %1295 = arith.mulf %1294, %1292 : vector<2x32xf32>
    %1296 = arith.mulf %1287, %1268 : vector<2x32xf32>
    %1297 = arith.addf %1295, %1296 : vector<2x32xf32>
    %cst_250 = arith.constant dense<0.000000e+00> : vector<2x96xf32>
    %1298 = tpu.matmul %1297, %1123, %cst_250 {dimension_numbers = #tpu.dot_dimension_numbers<[1], [0], [0], [1], [0, 0, 1, 1], [], []>} : vector<2x32xf32>, vector<32x96xf32>, vector<2x96xf32> -> vector<2x96xf32>
    %1299 = vector.broadcast %1125 : vector<1x96xf32> to vector<2x96xf32>
    %1300 = arith.addf %1298, %1299 : vector<2x96xf32>
    %1301 = vector.extract_strided_slice %1160 {offsets = [0, 0], sizes = [2, 32], strides = [1, 1]} : vector<2x96xf32> to vector<2x32xf32>
    %1302 = vector.extract_strided_slice %1300 {offsets = [0, 0], sizes = [2, 32], strides = [1, 1]} : vector<2x96xf32> to vector<2x32xf32>
    %1303 = arith.addf %1301, %1302 : vector<2x32xf32>
    %1304 = arith.negf %1303 : vector<2x32xf32>
    %1305 = math.exp %1304 : vector<2x32xf32>
    %cst_251 = arith.constant 1.000000e+00 : f32
    %1306 = vector.broadcast %cst_251 : f32 to vector<2x32xf32>
    %1307 = arith.addf %1306, %1305 : vector<2x32xf32>
    %1308 = arith.divf %1306, %1307 : vector<2x32xf32>
    %1309 = vector.extract_strided_slice %1160 {offsets = [0, 32], sizes = [2, 32], strides = [1, 1]} : vector<2x96xf32> to vector<2x32xf32>
    %1310 = vector.extract_strided_slice %1300 {offsets = [0, 32], sizes = [2, 32], strides = [1, 1]} : vector<2x96xf32> to vector<2x32xf32>
    %1311 = arith.addf %1309, %1310 : vector<2x32xf32>
    %1312 = arith.negf %1311 : vector<2x32xf32>
    %1313 = math.exp %1312 : vector<2x32xf32>
    %cst_252 = arith.constant 1.000000e+00 : f32
    %1314 = vector.broadcast %cst_252 : f32 to vector<2x32xf32>
    %1315 = arith.addf %1314, %1313 : vector<2x32xf32>
    %1316 = arith.divf %1314, %1315 : vector<2x32xf32>
    %1317 = vector.extract_strided_slice %1160 {offsets = [0, 64], sizes = [2, 32], strides = [1, 1]} : vector<2x96xf32> to vector<2x32xf32>
    %1318 = vector.extract_strided_slice %1300 {offsets = [0, 64], sizes = [2, 32], strides = [1, 1]} : vector<2x96xf32> to vector<2x32xf32>
    %1319 = arith.mulf %1308, %1318 : vector<2x32xf32>
    %1320 = arith.addf %1317, %1319 : vector<2x32xf32>
    %1321 = math.tanh %1320 : vector<2x32xf32>
    %cst_253 = arith.constant 1.000000e+00 : f32
    %1322 = vector.broadcast %cst_253 : f32 to vector<2x32xf32>
    %1323 = arith.subf %1322, %1316 : vector<2x32xf32>
    %1324 = arith.mulf %1323, %1321 : vector<2x32xf32>
    %1325 = arith.mulf %1316, %1297 : vector<2x32xf32>
    %1326 = arith.addf %1324, %1325 : vector<2x32xf32>
    %cst_254 = arith.constant dense<0.000000e+00> : vector<2x96xf32>
    %1327 = tpu.matmul %1326, %1123, %cst_254 {dimension_numbers = #tpu.dot_dimension_numbers<[1], [0], [0], [1], [0, 0, 1, 1], [], []>} : vector<2x32xf32>, vector<32x96xf32>, vector<2x96xf32> -> vector<2x96xf32>
    %1328 = vector.broadcast %1125 : vector<1x96xf32> to vector<2x96xf32>
    %1329 = arith.addf %1327, %1328 : vector<2x96xf32>
    %1330 = vector.extract_strided_slice %1167 {offsets = [0, 0], sizes = [2, 32], strides = [1, 1]} : vector<2x96xf32> to vector<2x32xf32>
    %1331 = vector.extract_strided_slice %1329 {offsets = [0, 0], sizes = [2, 32], strides = [1, 1]} : vector<2x96xf32> to vector<2x32xf32>
    %1332 = arith.addf %1330, %1331 : vector<2x32xf32>
    %1333 = arith.negf %1332 : vector<2x32xf32>
    %1334 = math.exp %1333 : vector<2x32xf32>
    %cst_255 = arith.constant 1.000000e+00 : f32
    %1335 = vector.broadcast %cst_255 : f32 to vector<2x32xf32>
    %1336 = arith.addf %1335, %1334 : vector<2x32xf32>
    %1337 = arith.divf %1335, %1336 : vector<2x32xf32>
    %1338 = vector.extract_strided_slice %1167 {offsets = [0, 32], sizes = [2, 32], strides = [1, 1]} : vector<2x96xf32> to vector<2x32xf32>
    %1339 = vector.extract_strided_slice %1329 {offsets = [0, 32], sizes = [2, 32], strides = [1, 1]} : vector<2x96xf32> to vector<2x32xf32>
    %1340 = arith.addf %1338, %1339 : vector<2x32xf32>
    %1341 = arith.negf %1340 : vector<2x32xf32>
    %1342 = math.exp %1341 : vector<2x32xf32>
    %cst_256 = arith.constant 1.000000e+00 : f32
    %1343 = vector.broadcast %cst_256 : f32 to vector<2x32xf32>
    %1344 = arith.addf %1343, %1342 : vector<2x32xf32>
    %1345 = arith.divf %1343, %1344 : vector<2x32xf32>
    %1346 = vector.extract_strided_slice %1167 {offsets = [0, 64], sizes = [2, 32], strides = [1, 1]} : vector<2x96xf32> to vector<2x32xf32>
    %1347 = vector.extract_strided_slice %1329 {offsets = [0, 64], sizes = [2, 32], strides = [1, 1]} : vector<2x96xf32> to vector<2x32xf32>
    %1348 = arith.mulf %1337, %1347 : vector<2x32xf32>
    %1349 = arith.addf %1346, %1348 : vector<2x32xf32>
    %1350 = math.tanh %1349 : vector<2x32xf32>
    %cst_257 = arith.constant 1.000000e+00 : f32
    %1351 = vector.broadcast %cst_257 : f32 to vector<2x32xf32>
    %1352 = arith.subf %1351, %1345 : vector<2x32xf32>
    %1353 = arith.mulf %1352, %1350 : vector<2x32xf32>
    %1354 = arith.mulf %1345, %1326 : vector<2x32xf32>
    %1355 = arith.addf %1353, %1354 : vector<2x32xf32>
    %cst_258 = arith.constant dense<0.000000e+00> : vector<2x96xf32>
    %1356 = tpu.matmul %1355, %1123, %cst_258 {dimension_numbers = #tpu.dot_dimension_numbers<[1], [0], [0], [1], [0, 0, 1, 1], [], []>} : vector<2x32xf32>, vector<32x96xf32>, vector<2x96xf32> -> vector<2x96xf32>
    %1357 = vector.broadcast %1125 : vector<1x96xf32> to vector<2x96xf32>
    %1358 = arith.addf %1356, %1357 : vector<2x96xf32>
    %1359 = vector.extract_strided_slice %1174 {offsets = [0, 0], sizes = [2, 32], strides = [1, 1]} : vector<2x96xf32> to vector<2x32xf32>
    %1360 = vector.extract_strided_slice %1358 {offsets = [0, 0], sizes = [2, 32], strides = [1, 1]} : vector<2x96xf32> to vector<2x32xf32>
    %1361 = arith.addf %1359, %1360 : vector<2x32xf32>
    %1362 = arith.negf %1361 : vector<2x32xf32>
    %1363 = math.exp %1362 : vector<2x32xf32>
    %cst_259 = arith.constant 1.000000e+00 : f32
    %1364 = vector.broadcast %cst_259 : f32 to vector<2x32xf32>
    %1365 = arith.addf %1364, %1363 : vector<2x32xf32>
    %1366 = arith.divf %1364, %1365 : vector<2x32xf32>
    %1367 = vector.extract_strided_slice %1174 {offsets = [0, 32], sizes = [2, 32], strides = [1, 1]} : vector<2x96xf32> to vector<2x32xf32>
    %1368 = vector.extract_strided_slice %1358 {offsets = [0, 32], sizes = [2, 32], strides = [1, 1]} : vector<2x96xf32> to vector<2x32xf32>
    %1369 = arith.addf %1367, %1368 : vector<2x32xf32>
    %1370 = arith.negf %1369 : vector<2x32xf32>
    %1371 = math.exp %1370 : vector<2x32xf32>
    %cst_260 = arith.constant 1.000000e+00 : f32
    %1372 = vector.broadcast %cst_260 : f32 to vector<2x32xf32>
    %1373 = arith.addf %1372, %1371 : vector<2x32xf32>
    %1374 = arith.divf %1372, %1373 : vector<2x32xf32>
    %1375 = vector.extract_strided_slice %1174 {offsets = [0, 64], sizes = [2, 32], strides = [1, 1]} : vector<2x96xf32> to vector<2x32xf32>
    %1376 = vector.extract_strided_slice %1358 {offsets = [0, 64], sizes = [2, 32], strides = [1, 1]} : vector<2x96xf32> to vector<2x32xf32>
    %1377 = arith.mulf %1366, %1376 : vector<2x32xf32>
    %1378 = arith.addf %1375, %1377 : vector<2x32xf32>
    %1379 = math.tanh %1378 : vector<2x32xf32>
    %cst_261 = arith.constant 1.000000e+00 : f32
    %1380 = vector.broadcast %cst_261 : f32 to vector<2x32xf32>
    %1381 = arith.subf %1380, %1374 : vector<2x32xf32>
    %1382 = arith.mulf %1381, %1379 : vector<2x32xf32>
    %1383 = arith.mulf %1374, %1355 : vector<2x32xf32>
    %1384 = arith.addf %1382, %1383 : vector<2x32xf32>
    %cst_262 = arith.constant dense<0.000000e+00> : vector<2x96xf32>
    %1385 = tpu.matmul %1384, %1123, %cst_262 {dimension_numbers = #tpu.dot_dimension_numbers<[1], [0], [0], [1], [0, 0, 1, 1], [], []>} : vector<2x32xf32>, vector<32x96xf32>, vector<2x96xf32> -> vector<2x96xf32>
    %1386 = vector.broadcast %1125 : vector<1x96xf32> to vector<2x96xf32>
    %1387 = arith.addf %1385, %1386 : vector<2x96xf32>
    %1388 = vector.extract_strided_slice %1181 {offsets = [0, 0], sizes = [2, 32], strides = [1, 1]} : vector<2x96xf32> to vector<2x32xf32>
    %1389 = vector.extract_strided_slice %1387 {offsets = [0, 0], sizes = [2, 32], strides = [1, 1]} : vector<2x96xf32> to vector<2x32xf32>
    %1390 = arith.addf %1388, %1389 : vector<2x32xf32>
    %1391 = arith.negf %1390 : vector<2x32xf32>
    %1392 = math.exp %1391 : vector<2x32xf32>
    %cst_263 = arith.constant 1.000000e+00 : f32
    %1393 = vector.broadcast %cst_263 : f32 to vector<2x32xf32>
    %1394 = arith.addf %1393, %1392 : vector<2x32xf32>
    %1395 = arith.divf %1393, %1394 : vector<2x32xf32>
    %1396 = vector.extract_strided_slice %1181 {offsets = [0, 32], sizes = [2, 32], strides = [1, 1]} : vector<2x96xf32> to vector<2x32xf32>
    %1397 = vector.extract_strided_slice %1387 {offsets = [0, 32], sizes = [2, 32], strides = [1, 1]} : vector<2x96xf32> to vector<2x32xf32>
    %1398 = arith.addf %1396, %1397 : vector<2x32xf32>
    %1399 = arith.negf %1398 : vector<2x32xf32>
    %1400 = math.exp %1399 : vector<2x32xf32>
    %cst_264 = arith.constant 1.000000e+00 : f32
    %1401 = vector.broadcast %cst_264 : f32 to vector<2x32xf32>
    %1402 = arith.addf %1401, %1400 : vector<2x32xf32>
    %1403 = arith.divf %1401, %1402 : vector<2x32xf32>
    %1404 = vector.extract_strided_slice %1181 {offsets = [0, 64], sizes = [2, 32], strides = [1, 1]} : vector<2x96xf32> to vector<2x32xf32>
    %1405 = vector.extract_strided_slice %1387 {offsets = [0, 64], sizes = [2, 32], strides = [1, 1]} : vector<2x96xf32> to vector<2x32xf32>
    %1406 = arith.mulf %1395, %1405 : vector<2x32xf32>
    %1407 = arith.addf %1404, %1406 : vector<2x32xf32>
    %1408 = math.tanh %1407 : vector<2x32xf32>
    %cst_265 = arith.constant 1.000000e+00 : f32
    %1409 = vector.broadcast %cst_265 : f32 to vector<2x32xf32>
    %1410 = arith.subf %1409, %1403 : vector<2x32xf32>
    %1411 = arith.mulf %1410, %1408 : vector<2x32xf32>
    %1412 = arith.mulf %1403, %1384 : vector<2x32xf32>
    %1413 = arith.addf %1411, %1412 : vector<2x32xf32>
    %c0_266 = arith.constant 0 : index
    %c0_267 = arith.constant 0 : index
    %1414 = vector.load %arg21[%c0_266, %c0_267] : memref<64x96xf32, #tpu.memory_space<vmem>>, vector<64x96xf32>
    %c0_268 = arith.constant 0 : index
    %c0_269 = arith.constant 0 : index
    %1415 = vector.load %arg22[%c0_268, %c0_269] : memref<32x96xf32, #tpu.memory_space<vmem>>, vector<32x96xf32>
    %c0_270 = arith.constant 0 : index
    %c0_271 = arith.constant 0 : index
    %1416 = vector.load %arg23[%c0_270, %c0_271] : memref<1x96xf32, #tpu.memory_space<vmem>>, vector<1x96xf32>
    %c0_272 = arith.constant 0 : index
    %c0_273 = arith.constant 0 : index
    %1417 = vector.load %arg24[%c0_272, %c0_273] : memref<1x96xf32, #tpu.memory_space<vmem>>, vector<1x96xf32>
    %1418 = vector.extract_strided_slice %1414 {offsets = [0, 0], sizes = [32, 96], strides = [1, 1]} : vector<64x96xf32> to vector<32x96xf32>
    %cst_274 = arith.constant dense<0.000000e+00> : vector<2x96xf32>
    %1419 = tpu.matmul %829, %1418, %cst_274 {dimension_numbers = #tpu.dot_dimension_numbers<[1], [0], [0], [1], [0, 0, 1, 1], [], []>} : vector<2x32xf32>, vector<32x96xf32>, vector<2x96xf32> -> vector<2x96xf32>
    %1420 = vector.extract_strided_slice %1414 {offsets = [32, 0], sizes = [32, 96], strides = [1, 1]} : vector<64x96xf32> to vector<32x96xf32>
    %cst_275 = arith.constant dense<0.000000e+00> : vector<2x96xf32>
    %1421 = tpu.matmul %918, %1420, %cst_275 {dimension_numbers = #tpu.dot_dimension_numbers<[1], [0], [0], [1], [0, 0, 1, 1], [], []>} : vector<2x32xf32>, vector<32x96xf32>, vector<2x96xf32> -> vector<2x96xf32>
    %1422 = arith.addf %1419, %1421 : vector<2x96xf32>
    %1423 = vector.broadcast %1416 : vector<1x96xf32> to vector<2x96xf32>
    %1424 = arith.addf %1422, %1423 : vector<2x96xf32>
    %cst_276 = arith.constant dense<0.000000e+00> : vector<2x96xf32>
    %1425 = tpu.matmul %1, %1415, %cst_276 {dimension_numbers = #tpu.dot_dimension_numbers<[1], [0], [0], [1], [0, 0, 1, 1], [], []>} : vector<2x32xf32>, vector<32x96xf32>, vector<2x96xf32> -> vector<2x96xf32>
    %1426 = vector.broadcast %1417 : vector<1x96xf32> to vector<2x96xf32>
    %1427 = arith.addf %1425, %1426 : vector<2x96xf32>
    %1428 = vector.extract_strided_slice %1424 {offsets = [0, 0], sizes = [2, 32], strides = [1, 1]} : vector<2x96xf32> to vector<2x32xf32>
    %1429 = vector.extract_strided_slice %1427 {offsets = [0, 0], sizes = [2, 32], strides = [1, 1]} : vector<2x96xf32> to vector<2x32xf32>
    %1430 = arith.addf %1428, %1429 : vector<2x32xf32>
    %1431 = arith.negf %1430 : vector<2x32xf32>
    %1432 = math.exp %1431 : vector<2x32xf32>
    %cst_277 = arith.constant 1.000000e+00 : f32
    %1433 = vector.broadcast %cst_277 : f32 to vector<2x32xf32>
    %1434 = arith.addf %1433, %1432 : vector<2x32xf32>
    %1435 = arith.divf %1433, %1434 : vector<2x32xf32>
    %1436 = vector.extract_strided_slice %1424 {offsets = [0, 32], sizes = [2, 32], strides = [1, 1]} : vector<2x96xf32> to vector<2x32xf32>
    %1437 = vector.extract_strided_slice %1427 {offsets = [0, 32], sizes = [2, 32], strides = [1, 1]} : vector<2x96xf32> to vector<2x32xf32>
    %1438 = arith.addf %1436, %1437 : vector<2x32xf32>
    %1439 = arith.negf %1438 : vector<2x32xf32>
    %1440 = math.exp %1439 : vector<2x32xf32>
    %cst_278 = arith.constant 1.000000e+00 : f32
    %1441 = vector.broadcast %cst_278 : f32 to vector<2x32xf32>
    %1442 = arith.addf %1441, %1440 : vector<2x32xf32>
    %1443 = arith.divf %1441, %1442 : vector<2x32xf32>
    %1444 = vector.extract_strided_slice %1424 {offsets = [0, 64], sizes = [2, 32], strides = [1, 1]} : vector<2x96xf32> to vector<2x32xf32>
    %1445 = vector.extract_strided_slice %1427 {offsets = [0, 64], sizes = [2, 32], strides = [1, 1]} : vector<2x96xf32> to vector<2x32xf32>
    %1446 = arith.mulf %1435, %1445 : vector<2x32xf32>
    %1447 = arith.addf %1444, %1446 : vector<2x32xf32>
    %1448 = math.tanh %1447 : vector<2x32xf32>
    %cst_279 = arith.constant 1.000000e+00 : f32
    %1449 = vector.broadcast %cst_279 : f32 to vector<2x32xf32>
    %1450 = arith.subf %1449, %1443 : vector<2x32xf32>
    %1451 = arith.mulf %1450, %1448 : vector<2x32xf32>
    %1452 = arith.mulf %1443, %1 : vector<2x32xf32>
    %1453 = arith.addf %1451, %1452 : vector<2x32xf32>
    %c0_280 = arith.constant 0 : index
    %c0_281 = arith.constant 0 : index
    %1454 = vector.load %arg25[%c0_280, %c0_281] : memref<64x4xf32, #tpu.memory_space<vmem>>, vector<64x4xf32>
    %c0_282 = arith.constant 0 : index
    %c0_283 = arith.constant 0 : index
    %1455 = vector.load %arg26[%c0_282, %c0_283] : memref<1x4xf32, #tpu.memory_space<vmem>>, vector<1x4xf32>
    %1456 = vector.extract_strided_slice %1454 {offsets = [0, 0], sizes = [32, 4], strides = [1, 1]} : vector<64x4xf32> to vector<32x4xf32>
    %cst_284 = arith.constant dense<0.000000e+00> : vector<2x4xf32>
    %1457 = tpu.matmul %1413, %1456, %cst_284 {dimension_numbers = #tpu.dot_dimension_numbers<[1], [0], [0], [1], [0, 0, 1, 1], [], []>} : vector<2x32xf32>, vector<32x4xf32>, vector<2x4xf32> -> vector<2x4xf32>
    %1458 = vector.extract_strided_slice %1454 {offsets = [32, 0], sizes = [32, 4], strides = [1, 1]} : vector<64x4xf32> to vector<32x4xf32>
    %cst_285 = arith.constant dense<0.000000e+00> : vector<2x4xf32>
    %1459 = tpu.matmul %1453, %1458, %cst_285 {dimension_numbers = #tpu.dot_dimension_numbers<[1], [0], [0], [1], [0, 0, 1, 1], [], []>} : vector<2x32xf32>, vector<32x4xf32>, vector<2x4xf32> -> vector<2x4xf32>
    %1460 = arith.addf %1457, %1459 : vector<2x4xf32>
    %1461 = vector.broadcast %1455 : vector<1x4xf32> to vector<2x4xf32>
    %1462 = arith.addf %1460, %1461 : vector<2x4xf32>
    %1463 = vector.extract_strided_slice %0 {offsets = [0, 0, 0], sizes = [1, 2, 4], strides = [1, 1, 1]} : vector<8x2x4xf32> to vector<1x2x4xf32>
    %1464 = vector.shape_cast %1463 : vector<1x2x4xf32> to vector<2x4xf32>
    %1465 = arith.addf %1462, %1464 : vector<2x4xf32>
    %c0_286 = arith.constant 0 : index
    %c0_287 = arith.constant 0 : index
    %1466 = vector.load %arg27[%c0_286, %c0_287] : memref<2x4xf32, #tpu.memory_space<vmem>>, vector<2x4xf32>
    tpu.vector_store %arg27[%c0_286, %c0_287], %1465 {strides = array<i32>} : memref<2x4xf32, #tpu.memory_space<vmem>>, vector<2x4xf32>,
    return
  }
}

</mosaic_0001>

<llo_original>
// kernel: baseline_forward.1
$region0: #{baseline_forward.1}
  #allocation0 [shape = 'u32[]', space=smem, size = 0x4, offset = 0x4, fixed_abs, tag = 'smem constant byte address 0x4 - core index']
  #allocation1 [shape = 'u32[144,128]{1,0:T(1,128)}', space=vmem, size = 0x12000, scoped, tag = 'internal scratch']
  %s0 = inlined_call_operand.vmem [shape: f32[8,2,4], index: 0, kind: input, shape index: {}]
  %s1 = inlined_call_operand.hbm [shape: f32[4,96], index: 1, kind: input, shape index: {}]
  %s2 = inlined_call_operand.hbm [shape: f32[32,96], index: 2, kind: input, shape index: {}]
  %s3 = inlined_call_operand.hbm [shape: f32[1,96], index: 3, kind: input, shape index: {}]
  %s4 = inlined_call_operand.hbm [shape: f32[1,96], index: 4, kind: input, shape index: {}]
  %s5 = inlined_call_operand.hbm [shape: f32[4,96], index: 5, kind: input, shape index: {}]
  %s6 = inlined_call_operand.hbm [shape: f32[32,96], index: 6, kind: input, shape index: {}]
  %s7 = inlined_call_operand.hbm [shape: f32[1,96], index: 7, kind: input, shape index: {}]
  %s8 = inlined_call_operand.hbm [shape: f32[1,96], index: 8, kind: input, shape index: {}]
  %s9 = inlined_call_operand.vmem [shape: f32[64,96], index: 9, kind: input, shape index: {}]
  %s10 = inlined_call_operand.hbm [shape: f32[32,96], index: 10, kind: input, shape index: {}]
  %s11 = inlined_call_operand.hbm [shape: f32[1,96], index: 11, kind: input, shape index: {}]
  %s12 = inlined_call_operand.hbm [shape: f32[1,96], index: 12, kind: input, shape index: {}]
  %s13 = inlined_call_operand.vmem [shape: f32[64,96], index: 13, kind: input, shape index: {}]
  %s14 = inlined_call_operand.hbm [shape: f32[32,96], index: 14, kind: input, shape index: {}]
  %s15 = inlined_call_operand.hbm [shape: f32[1,96], index: 15, kind: input, shape index: {}]
  %s16 = inlined_call_operand.vmem [shape: f32[1,96], index: 16, kind: input, shape index: {}]
  %s17 = inlined_call_operand.hbm [shape: f32[64,96], index: 17, kind: input, shape index: {}]
  %s18 = inlined_call_operand.vmem [shape: f32[32,96], index: 18, kind: input, shape index: {}]
  %s19 = inlined_call_operand.vmem [shape: f32[1,96], index: 19, kind: input, shape index: {}]
  %s20 = inlined_call_operand.vmem [shape: f32[1,96], index: 20, kind: input, shape index: {}]
  %s21 = inlined_call_operand.hbm [shape: f32[64,96], index: 21, kind: input, shape index: {}]
  %s22 = inlined_call_operand.hbm [shape: f32[32,96], index: 22, kind: input, shape index: {}]
  %s23 = inlined_call_operand.vmem [shape: f32[1,96], index: 23, kind: input, shape index: {}]
  %s24 = inlined_call_operand.vmem [shape: f32[1,96], index: 24, kind: input, shape index: {}]
  %s25 = inlined_call_operand.vmem [shape: f32[64,4], index: 25, kind: input, shape index: {}]
  %s26 = inlined_call_operand.hbm [shape: f32[1,4], index: 26, kind: input, shape index: {}]
  %s27 = inlined_call_operand.hbm [shape: f32[2,4], index: 27, kind: output, shape index: {}]
  %s28 = sld [smem:[#allocation0]]
  $region186: #{baseline_forward.1} parent=0
    _
  %s30 = ssub.s32 1, %s28
  %s31 = scalar_select 0, %s30, %s28
  $region1: #{baseline_forward.1} parent=0
    #allocation2 [shape = 'u8[2048]{0}', space=vmem, size = 0x800, scoped, tag = 'input window, operand 1, single buffered']
    #allocation3 [shape = 's32[1]{0}', space=sflag, size = 0x4, scoped, tag = 'scoped memory for baseline_forward.1']
    #allocation4 [shape = 's32[1]{0}', space=sflag, size = 0x4, scoped, tag = 'scoped memory for baseline_forward.1']
    #allocation5 [shape = 'u8[16384]{0}', space=vmem, size = 0x4000, scoped, tag = 'input window, operand 2, single buffered']
    #allocation6 [shape = 's32[1]{0}', space=sflag, size = 0x4, scoped, tag = 'scoped memory for baseline_forward.1']
    #allocation7 [shape = 'u8[512]{0}', space=vmem, size = 0x400, scoped, tag = 'input window, operand 3, single buffered']
    #allocation8 [shape = 'u8[512]{0}', space=vmem, size = 0x400, scoped, tag = 'input window, operand 4, single buffered']
    #allocation9 [shape = 's32[1]{0}', space=sflag, size = 0x4, scoped, tag = 'scoped memory for baseline_forward.1']
    #allocation10 [shape = 'u8[2048]{0}', space=vmem, size = 0x800, scoped, tag = 'input window, operand 5, single buffered']
    #allocation11 [shape = 'u8[16384]{0}', space=vmem, size = 0x4000, scoped, tag = 'input window, operand 6, single buffered']
    #allocation12 [shape = 's32[1]{0}', space=sflag, size = 0x4, scoped, tag = 'scoped memory for baseline_forward.1']
    #allocation13 [shape = 'u8[512]{0}', space=vmem, size = 0x400, scoped, tag = 'input window, operand 7, single buffered']
    #allocation14 [shape = 'u8[512]{0}', space=vmem, size = 0x400, scoped, tag = 'input window, operand 8, single buffered']
    #allocation15 [shape = 's32[1]{0}', space=sflag, size = 0x4, scoped, tag = 'scoped memory for baseline_forward.1']
    #allocation16 [shape = 'u8[16384]{0}', space=vmem, size = 0x4000, scoped, tag = 'input window, operand 10, single buffered']
    #allocation17 [shape = 'u8[512]{0}', space=vmem, size = 0x400, scoped, tag = 'input window, operand 11, single buffered']
    #allocation18 [shape = 's32[1]{0}', space=sflag, size = 0x4, scoped, tag = 'scoped memory for baseline_forward.1']
    #allocation19 [shape = 'u8[512]{0}', space=vmem, size = 0x400, scoped, tag = 'input window, operand 12, single buffered']
    #allocation20 [shape = 'u8[16384]{0}', space=vmem, size = 0x4000, scoped, tag = 'input window, operand 14, single buffered']
    #allocation21 [shape = 's32[1]{0}', space=sflag, size = 0x4, scoped, tag = 'scoped memory for baseline_forward.1']
    #allocation22 [shape = 'u8[512]{0}', space=vmem, size = 0x400, scoped, tag = 'input window, operand 15, single buffered']
    #allocation23 [shape = 'u8[32768]{0}', space=vmem, size = 0x8000, scoped, tag = 'input window, operand 17, single buffered']
    #allocation24 [shape = 's32[1]{0}', space=sflag, size = 0x4, scoped, tag = 'scoped memory for baseline_forward.1']
    #allocation25 [shape = 'u8[32768]{0}', space=vmem, size = 0x8000, scoped, tag = 'input window, operand 21, single buffered']
    #allocation26 [shape = 'u8[16384]{0}', space=vmem, size = 0x4000, scoped, tag = 'input window, operand 22, single buffered']
    #allocation27 [shape = 's32[1]{0}', space=sflag, size = 0x4, scoped, tag = 'scoped memory for baseline_forward.1']
    #allocation28 [shape = 'u8[512]{0}', space=vmem, size = 0x400, scoped, tag = 'input window, operand 26, single buffered']
    #allocation29 [shape = 'u8[1024]{0}', space=vmem, size = 0x400, scoped, tag = 'output window, operand 0, single buffered']
    %32 = vsyncpa [#allocation3], 0
    %33 = vsyncpa [#allocation6], 0
    %34 = vsyncpa [#allocation9], 0
    %35 = vsyncpa [#allocation12], 0
    %36 = vsyncpa [#allocation15], 0
    %37 = vsyncpa [#allocation18], 0
    %38 = vsyncpa [#allocation21], 0
    %39 = vsyncpa [#allocation24], 0
    %40 = vsyncpa [#allocation27], 0
    %41 = vsyncpa [#allocation4], 0
    // Predicated region
    $region2: #{baseline_forward.1} parent=1 // pred_check
      _
    $region3: #{baseline_forward.1} parent=1 // pred_check_branch
      %43 = sbr.rel (0) target = $region5
    $region4: #{baseline_forward.1} parent=1 // pred_region
      _
    $region5: #{baseline_forward.1} parent=1 // pred_fallthru
      _
    // Predicated region
    $region6: #{baseline_forward.1} parent=1 // pred_check
      _
    $region7: #{baseline_forward.1} parent=1 // pred_check_branch
      %45 = sbr.rel (0) target = $region9
    $region8: #{baseline_forward.1} parent=1 // pred_region
      %s47 = ssub.s32 64, 64
      %48 = vsyncadd [#allocation3], %s47
      %s50 = sshll.u32 [#allocation2], 4
      %s51 = int_to_ptr.vmem [resolvable:$true] %s50
      %53 = dma.hbm_to_vmem [thread:$0]  %s1, 64, %s51, [#allocation3]
    $region9: #{baseline_forward.1} parent=1 // pred_fallthru
      _
    // Predicated region
    $region10: #{baseline_forward.1} parent=1 // pred_check
      _
    $region11: #{baseline_forward.1} parent=1 // pred_check_branch
      %55 = sbr.rel (0) target = $region13
    $region12: #{baseline_forward.1} parent=1 // pred_region
      %s57 = ssub.s32 512, 512
      %58 = vsyncadd [#allocation6], %s57
      %s59 = sshll.u32 [#allocation5], 4
      %s60 = int_to_ptr.vmem [resolvable:$true] %s59
      %65 = dma.hbm_to_vmem [thread:$0]  %s2, 512, %s60, [#allocation6], 128, 128, 8
    $region13: #{baseline_forward.1} parent=1 // pred_fallthru
      _
    // Predicated region
    $region14: #{baseline_forward.1} parent=1 // pred_check
      _
    $region15: #{baseline_forward.1} parent=1 // pred_check_branch
      %67 = sbr.rel (0) target = $region17
    $region16: #{baseline_forward.1} parent=1 // pred_region
      %s69 = ssub.s32 16, 16
      %70 = vsyncadd [#allocation6], %s69
      %s72 = sshll.u32 [#allocation7], 4
      %s73 = int_to_ptr.vmem [resolvable:$true] %s72
      %75 = dma.hbm_to_vmem [thread:$0]  %s3, 16, %s73, [#allocation6]
    $region17: #{baseline_forward.1} parent=1 // pred_fallthru
      _
    // Predicated region
    $region18: #{baseline_forward.1} parent=1 // pred_check
      _
    $region19: #{baseline_forward.1} parent=1 // pred_check_branch
      %77 = sbr.rel (0) target = $region21
    $region20: #{baseline_forward.1} parent=1 // pred_region
      %s79 = ssub.s32 16, 16
      %80 = vsyncadd [#allocation9], %s79
      %s82 = sshll.u32 [#allocation8], 4
      %s83 = int_to_ptr.vmem [resolvable:$true] %s82
      %85 = dma.hbm_to_vmem [thread:$0]  %s4, 16, %s83, [#allocation9]
    $region21: #{baseline_forward.1} parent=1 // pred_fallthru
      _
    // Predicated region
    $region22: #{baseline_forward.1} parent=1 // pred_check
      _
    $region23: #{baseline_forward.1} parent=1 // pred_check_branch
      %87 = sbr.rel (0) target = $region25
    $region24: #{baseline_forward.1} parent=1 // pred_region
      %s89 = ssub.s32 64, 64
      %90 = vsyncadd [#allocation9], %s89
      %s92 = sshll.u32 [#allocation10], 4
      %s93 = int_to_ptr.vmem [resolvable:$true] %s92
      %95 = dma.hbm_to_vmem [thread:$0]  %s5, 64, %s93, [#allocation9]
    $region25: #{baseline_forward.1} parent=1 // pred_fallthru
      _
    // Predicated region
    $region26: #{baseline_forward.1} parent=1 // pred_check
      _
    $region27: #{baseline_forward.1} parent=1 // pred_check_branch
      %97 = sbr.rel (0) target = $region29
    $region28: #{baseline_forward.1} parent=1 // pred_region
      %s99 = ssub.s32 512, 512
      %100 = vsyncadd [#allocation12], %s99
      %s101 = sshll.u32 [#allocation11], 4
      %s102 = int_to_ptr.vmem [resolvable:$true] %s101
      %107 = dma.hbm_to_vmem [thread:$0]  %s6, 512, %s102, [#allocation12], 128, 128, 8
    $region29: #{baseline_forward.1} parent=1 // pred_fallthru
      _
    // Predicated region
    $region30: #{baseline_forward.1} parent=1 // pred_check
      _
    $region31: #{baseline_forward.1} parent=1 // pred_check_branch
      %109 = sbr.rel (0) target = $region33
    $region32: #{baseline_forward.1} parent=1 // pred_region
      %s111 = ssub.s32 16, 16
      %112 = vsyncadd [#allocation12], %s111
      %s114 = sshll.u32 [#allocation13], 4
      %s115 = int_to_ptr.vmem [resolvable:$true] %s114
      %117 = dma.hbm_to_vmem [thread:$0]  %s7, 16, %s115, [#allocation12]
    $region33: #{baseline_forward.1} parent=1 // pred_fallthru
      _
    // Predicated region
    $region34: #{baseline_forward.1} parent=1 // pred_check
      _
    $region35: #{baseline_forward.1} parent=1 // pred_check_branch
      %119 = sbr.rel (0) target = $region37
    $region36: #{baseline_forward.1} parent=1 // pred_region
      %s121 = ssub.s32 16, 16
      %122 = vsyncadd [#allocation15], %s121
      %s124 = sshll.u32 [#allocation14], 4
      %s125 = int_to_ptr.vmem [resolvable:$true] %s124
      %127 = dma.hbm_to_vmem [thread:$0]  %s8, 16, %s125, [#allocation15]
    $region37: #{baseline_forward.1} parent=1 // pred_fallthru
      _
    // Predicated region
    $region38: #{baseline_forward.1} parent=1 // pred_check
      _
    $region39: #{baseline_forward.1} parent=1 // pred_check_branch
      %129 = sbr.rel (0) target = $region41
    $region40: #{baseline_forward.1} parent=1 // pred_region
      _
    $region41: #{baseline_forward.1} parent=1 // pred_fallthru
      _
    // Predicated region
    $region42: #{baseline_forward.1} parent=1 // pred_check
      _
    $region43: #{baseline_forward.1} parent=1 // pred_check_branch
      %131 = sbr.rel (0) target = $region45
    $region44: #{baseline_forward.1} parent=1 // pred_region
      %s133 = ssub.s32 512, 512
      %134 = vsyncadd [#allocation15], %s133
      %s135 = sshll.u32 [#allocation16], 4
      %s136 = int_to_ptr.vmem [resolvable:$true] %s135
      %141 = dma.hbm_to_vmem [thread:$0]  %s10, 512, %s136, [#allocation15], 128, 128, 8
    $region45: #{baseline_forward.1} parent=1 // pred_fallthru
      _
    // Predicated region
    $region46: #{baseline_forward.1} parent=1 // pred_check
      _
    $region47: #{baseline_forward.1} parent=1 // pred_check_branch
      %143 = sbr.rel (0) target = $region49
    $region48: #{baseline_forward.1} parent=1 // pred_region
      %s145 = ssub.s32 16, 16
      %146 = vsyncadd [#allocation18], %s145
      %s148 = sshll.u32 [#allocation17], 4
      %s149 = int_to_ptr.vmem [resolvable:$true] %s148
      %151 = dma.hbm_to_vmem [thread:$0]  %s11, 16, %s149, [#allocation18]
    $region49: #{baseline_forward.1} parent=1 // pred_fallthru
      _
    // Predicated region
    $region50: #{baseline_forward.1} parent=1 // pred_check
      _
    $region51: #{baseline_forward.1} parent=1 // pred_check_branch
      %153 = sbr.rel (0) target = $region53
    $region52: #{baseline_forward.1} parent=1 // pred_region
      %s155 = ssub.s32 16, 16
      %156 = vsyncadd [#allocation18], %s155
      %s158 = sshll.u32 [#allocation19], 4
      %s159 = int_to_ptr.vmem [resolvable:$true] %s158
      %161 = dma.hbm_to_vmem [thread:$0]  %s12, 16, %s159, [#allocation18]
    $region53: #{baseline_forward.1} parent=1 // pred_fallthru
      _
    // Predicated region
    $region54: #{baseline_forward.1} parent=1 // pred_check
      _
    $region55: #{baseline_forward.1} parent=1 // pred_check_branch
      %163 = sbr.rel (0) target = $region57
    $region56: #{baseline_forward.1} parent=1 // pred_region
      _
    $region57: #{baseline_forward.1} parent=1 // pred_fallthru
      _
    // Predicated region
    $region58: #{baseline_forward.1} parent=1 // pred_check
      _
    $region59: #{baseline_forward.1} parent=1 // pred_check_branch
      %165 = sbr.rel (0) target = $region61
    $region60: #{baseline_forward.1} parent=1 // pred_region
      %s167 = ssub.s32 512, 512
      %168 = vsyncadd [#allocation21], %s167
      %s169 = sshll.u32 [#allocation20], 4
      %s170 = int_to_ptr.vmem [resolvable:$true] %s169
      %175 = dma.hbm_to_vmem [thread:$0]  %s14, 512, %s170, [#allocation21], 128, 128, 8
    $region61: #{baseline_forward.1} parent=1 // pred_fallthru
      _
    // Predicated region
    $region62: #{baseline_forward.1} parent=1 // pred_check
      _
    $region63: #{baseline_forward.1} parent=1 // pred_check_branch
      %177 = sbr.rel (0) target = $region65
    $region64: #{baseline_forward.1} parent=1 // pred_region
      %s179 = ssub.s32 16, 16
      %180 = vsyncadd [#allocation21], %s179
      %s182 = sshll.u32 [#allocation22], 4
      %s183 = int_to_ptr.vmem [resolvable:$true] %s182
      %185 = dma.hbm_to_vmem [thread:$0]  %s15, 16, %s183, [#allocation21]
    $region65: #{baseline_forward.1} parent=1 // pred_fallthru
      _
    // Predicated region
    $region66: #{baseline_forward.1} parent=1 // pred_check
      _
    $region67: #{baseline_forward.1} parent=1 // pred_check_branch
      %187 = sbr.rel (0) target = $region69
    $region68: #{baseline_forward.1} parent=1 // pred_region
      _
    $region69: #{baseline_forward.1} parent=1 // pred_fallthru
      _
    // Predicated region
    $region70: #{baseline_forward.1} parent=1 // pred_check
      _
    $region71: #{baseline_forward.1} parent=1 // pred_check_branch
      %189 = sbr.rel (0) target = $region73
    $region72: #{baseline_forward.1} parent=1 // pred_region
      %s191 = ssub.s32 1024, 1024
      %192 = vsyncadd [#allocation24], %s191
      %s193 = sshll.u32 [#allocation23], 4
      %s194 = int_to_ptr.vmem [resolvable:$true] %s193
      %199 = dma.hbm_to_vmem [thread:$0]  %s17, 1024, %s194, [#allocation24], 128, 128, 8
    $region73: #{baseline_forward.1} parent=1 // pred_fallthru
      _
    // Predicated region
    $region74: #{baseline_forward.1} parent=1 // pred_check
      _
    $region75: #{baseline_forward.1} parent=1 // pred_check_branch
      %201 = sbr.rel (0) target = $region77
    $region76: #{baseline_forward.1} parent=1 // pred_region
      _
    $region77: #{baseline_forward.1} parent=1 // pred_fallthru
      _
    // Predicated region
    $region78: #{baseline_forward.1} parent=1 // pred_check
      _
    $region79: #{baseline_forward.1} parent=1 // pred_check_branch
      %203 = sbr.rel (0) target = $region81
    $region80: #{baseline_forward.1} parent=1 // pred_region
      _
    $region81: #{baseline_forward.1} parent=1 // pred_fallthru
      _
    // Predicated region
    $region82: #{baseline_forward.1} parent=1 // pred_check
      _
    $region83: #{baseline_forward.1} parent=1 // pred_check_branch
      %205 = sbr.rel (0) target = $region85
    $region84: #{baseline_forward.1} parent=1 // pred_region
      _
    $region85: #{baseline_forward.1} parent=1 // pred_fallthru
      _
    // Predicated region
    $region86: #{baseline_forward.1} parent=1 // pred_check
      _
    $region87: #{baseline_forward.1} parent=1 // pred_check_branch
      %207 = sbr.rel (0) target = $region89
    $region88: #{baseline_forward.1} parent=1 // pred_region
      %s209 = ssub.s32 1024, 1024
      %210 = vsyncadd [#allocation24], %s209
      %s211 = sshll.u32 [#allocation25], 4
      %s212 = int_to_ptr.vmem [resolvable:$true] %s211
      %217 = dma.hbm_to_vmem [thread:$0]  %s21, 1024, %s212, [#allocation24], 128, 128, 8
    $region89: #{baseline_forward.1} parent=1 // pred_fallthru
      _
    // Predicated region
    $region90: #{baseline_forward.1} parent=1 // pred_check
      _
    $region91: #{baseline_forward.1} parent=1 // pred_check_branch
      %219 = sbr.rel (0) target = $region93
    $region92: #{baseline_forward.1} parent=1 // pred_region
      %s221 = ssub.s32 512, 512
      %222 = vsyncadd [#allocation27], %s221
      %s223 = sshll.u32 [#allocation26], 4
      %s224 = int_to_ptr.vmem [resolvable:$true] %s223
      %229 = dma.hbm_to_vmem [thread:$0]  %s22, 512, %s224, [#allocation27], 128, 128, 8
    $region93: #{baseline_forward.1} parent=1 // pred_fallthru
      _
    // Predicated region
    $region94: #{baseline_forward.1} parent=1 // pred_check
      _
    $region95: #{baseline_forward.1} parent=1 // pred_check_branch
      %231 = sbr.rel (0) target = $region97
    $region96: #{baseline_forward.1} parent=1 // pred_region
      _
    $region97: #{baseline_forward.1} parent=1 // pred_fallthru
      _
    // Predicated region
    $region98: #{baseline_forward.1} parent=1 // pred_check
      _
    $region99: #{baseline_forward.1} parent=1 // pred_check_branch
      %233 = sbr.rel (0) target = $region101
    $region100: #{baseline_forward.1} parent=1 // pred_region
      _
    $region101: #{baseline_forward.1} parent=1 // pred_fallthru
      _
    // Predicated region
    $region102: #{baseline_forward.1} parent=1 // pred_check
      _
    $region103: #{baseline_forward.1} parent=1 // pred_check_branch
      %235 = sbr.rel (0) target = $region105
    $region104: #{baseline_forward.1} parent=1 // pred_region
      _
    $region105: #{baseline_forward.1} parent=1 // pred_fallthru
      _
    // Predicated region
    $region106: #{baseline_forward.1} parent=1 // pred_check
      _
    $region107: #{baseline_forward.1} parent=1 // pred_check_branch
      %237 = sbr.rel (0) target = $region109
    $region108: #{baseline_forward.1} parent=1 // pred_region
      %s239 = ssub.s32 16, 16
      %240 = vsyncadd [#allocation27], %s239
      %s242 = sshll.u32 [#allocation28], 4
      %s243 = int_to_ptr.vmem [resolvable:$true] %s242
      %245 = dma.hbm_to_vmem [thread:$0]  %s26, 16, %s243, [#allocation27]
    $region109: #{baseline_forward.1} parent=1 // pred_fallthru
      _
    // Predicated region
    $region110: #{baseline_forward.1} parent=1 // pred_check
      _
    $region111: #{baseline_forward.1} parent=1 // pred_check_branch
      %247 = sbr.rel (0) target = $region113
    $region112: #{baseline_forward.1} parent=1 // pred_region
      %248 = dma.done [#allocation3], 64
    $region113: #{baseline_forward.1} parent=1 // pred_fallthru
      _
    // Predicated region
    $region114: #{baseline_forward.1} parent=1 // pred_check
      _
    $region115: #{baseline_forward.1} parent=1 // pred_check_branch
      %250 = sbr.rel (0) target = $region117
    $region116: #{baseline_forward.1} parent=1 // pred_region
      %251 = dma.done [#allocation6], 512
    $region117: #{baseline_forward.1} parent=1 // pred_fallthru
      _
    // Predicated region
    $region118: #{baseline_forward.1} parent=1 // pred_check
      _
    $region119: #{baseline_forward.1} parent=1 // pred_check_branch
      %253 = sbr.rel (0) target = $region121
    $region120: #{baseline_forward.1} parent=1 // pred_region
      %254 = dma.done [#allocation6], 16
    $region121: #{baseline_forward.1} parent=1 // pred_fallthru
      _
    // Predicated region
    $region122: #{baseline_forward.1} parent=1 // pred_check
      _
    $region123: #{baseline_forward.1} parent=1 // pred_check_branch
      %256 = sbr.rel (0) target = $region125
    $region124: #{baseline_forward.1} parent=1 // pred_region
      %257 = dma.done [#allocation9], 16
    $region125: #{baseline_forward.1} parent=1 // pred_fallthru
      _
    // Predicated region
    $region126: #{baseline_forward.1} parent=1 // pred_check
      _
    $region127: #{baseline_forward.1} parent=1 // pred_check_branch
      %259 = sbr.rel (0) target = $region129
    $region128: #{baseline_forward.1} parent=1 // pred_region
      %260 = dma.done [#allocation9], 64
    $region129: #{baseline_forward.1} parent=1 // pred_fallthru
      _
    // Predicated region
    $region130: #{baseline_forward.1} parent=1 // pred_check
      _
    $region131: #{baseline_forward.1} parent=1 // pred_check_branch
      %262 = sbr.rel (0) target = $region133
    $region132: #{baseline_forward.1} parent=1 // pred_region
      %263 = dma.done [#allocation12], 512
    $region133: #{baseline_forward.1} parent=1 // pred_fallthru
      _
    // Predicated region
    $region134: #{baseline_forward.1} parent=1 // pred_check
      _
    $region135: #{baseline_forward.1} parent=1 // pred_check_branch
      %265 = sbr.rel (0) target = $region137
    $region136: #{baseline_forward.1} parent=1 // pred_region
      %266 = dma.done [#allocation12], 16
    $region137: #{baseline_forward.1} parent=1 // pred_fallthru
      _
    // Predicated region
    $region138: #{baseline_forward.1} parent=1 // pred_check
      _
    $region139: #{baseline_forward.1} parent=1 // pred_check_branch
      %268 = sbr.rel (0) target = $region141
    $region140: #{baseline_forward.1} parent=1 // pred_region
      %269 = dma.done [#allocation15], 16
    $region141: #{baseline_forward.1} parent=1 // pred_fallthru
      _
    // Predicated region
    $region142: #{baseline_forward.1} parent=1 // pred_check
      _
    $region143: #{baseline_forward.1} parent=1 // pred_check_branch
      %271 = sbr.rel (0) target = $region145
    $region144: #{baseline_forward.1} parent=1 // pred_region
      %272 = dma.done [#allocation15], 512
    $region145: #{baseline_forward.1} parent=1 // pred_fallthru
      _
    // Predicated region
    $region146: #{baseline_forward.1} parent=1 // pred_check
      _
    $region147: #{baseline_forward.1} parent=1 // pred_check_branch
      %274 = sbr.rel (0) target = $region149
    $region148: #{baseline_forward.1} parent=1 // pred_region
      %275 = dma.done [#allocation18], 16
    $region149: #{baseline_forward.1} parent=1 // pred_fallthru
      _
    // Predicated region
    $region150: #{baseline_forward.1} parent=1 // pred_check
      _
    $region151: #{baseline_forward.1} parent=1 // pred_check_branch
      %277 = sbr.rel (0) target = $region153
    $region152: #{baseline_forward.1} parent=1 // pred_region
      %278 = dma.done [#allocation18], 16
    $region153: #{baseline_forward.1} parent=1 // pred_fallthru
      _
    // Predicated region
    $region154: #{baseline_forward.1} parent=1 // pred_check
      _
    $region155: #{baseline_forward.1} parent=1 // pred_check_branch
      %280 = sbr.rel (0) target = $region157
    $region156: #{baseline_forward.1} parent=1 // pred_region
      %281 = dma.done [#allocation21], 512
    $region157: #{baseline_forward.1} parent=1 // pred_fallthru
      _
    // Predicated region
    $region158: #{baseline_forward.1} parent=1 // pred_check
      _
    $region159: #{baseline_forward.1} parent=1 // pred_check_branch
      %283 = sbr.rel (0) target = $region161
    $region160: #{baseline_forward.1} parent=1 // pred_region
      %284 = dma.done [#allocation21], 16
    $region161: #{baseline_forward.1} parent=1 // pred_fallthru
      _
    // Predicated region
    $region162: #{baseline_forward.1} parent=1 // pred_check
      _
    $region163: #{baseline_forward.1} parent=1 // pred_check_branch
      %286 = sbr.rel (0) target = $region165
    $region164: #{baseline_forward.1} parent=1 // pred_region
      %287 = dma.done [#allocation24], 1024
    $region165: #{baseline_forward.1} parent=1 // pred_fallthru
      _
    // Predicated region
    $region166: #{baseline_forward.1} parent=1 // pred_check
      _
    $region167: #{baseline_forward.1} parent=1 // pred_check_branch
      %289 = sbr.rel (0) target = $region169
    $region168: #{baseline_forward.1} parent=1 // pred_region
      %290 = dma.done [#allocation24], 1024
    $region169: #{baseline_forward.1} parent=1 // pred_fallthru
      _
    // Predicated region
    $region170: #{baseline_forward.1} parent=1 // pred_check
      _
    $region171: #{baseline_forward.1} parent=1 // pred_check_branch
      %292 = sbr.rel (0) target = $region173
    $region172: #{baseline_forward.1} parent=1 // pred_region
      %293 = dma.done [#allocation27], 512
    $region173: #{baseline_forward.1} parent=1 // pred_fallthru
      _
    // Predicated region
    $region174: #{baseline_forward.1} parent=1 // pred_check
      _
    $region175: #{baseline_forward.1} parent=1 // pred_check_branch
      %295 = sbr.rel (0) target = $region177
    $region176: #{baseline_forward.1} parent=1 // pred_region
      %296 = dma.done [#allocation27], 16
    $region177: #{baseline_forward.1} parent=1 // pred_fallthru
      _
    %v297 = vld [vmem:[%s0] sm:$0x3]
    %v298 = vld [vmem:[%s0 + $0x2] sm:$0x3]
    %v299 = vld [vmem:[%s0 + $0x4] sm:$0x3]
    %v300 = vld [vmem:[%s0 + $0x6] sm:$0x3]
    %v301 = vld [vmem:[%s0 + $0x8] sm:$0x3]
    %v302 = vld [vmem:[%s0 + $0xa] sm:$0x3]
    %v303 = vld [vmem:[%s0 + $0xc] sm:$0x3]
    %v304 = vld [vmem:[%s0 + $0xe] sm:$0x3]
    %v305 = vld [vmem:[#allocation2] sm:$0xf]
    %v306 = vld [vmem:[#allocation5] sm:$0xff]
    %v307 = vld [vmem:[#allocation5 + $0x8] sm:$0xff]
    %v308 = vld [vmem:[#allocation5 + $0x10] sm:$0xff]
    %v309 = vld [vmem:[#allocation5 + $0x18] sm:$0xff]
    %v310 = vld [vmem:[#allocation7] sm:$0x1]
    %v311 = vld [vmem:[#allocation8] sm:$0x1]
    %v313 = vlaneseq
    %v314 = vshrl.u32 %v313, 7
    %v315 = vsub.s32 0, %v314
    %v316 = vrot.slane %v310, %v315
    %vm318 = vcmask 31744
    %v320 = vsel %vm318, %v297, 0
    %vm322 = vcmask 1043456
    %v324 = vsel %vm322, %v305, 0
    %326 = vmatprep.subr.mxu0 0.0
    %327 = vmatpush1.msra.mxu0 %v324
    %328 = vmatprep.subr.mxu0 0.0
    %329 = vmatpush1.msra.mxu0 0.0
    %330 = vmatprep.subr.mxu0 0.0
    %331 = vmatpush1.msra.mxu0 0.0
    %332 = vmatprep.subr.mxu0 0.0
    %333 = vmatpush1.msra.mxu0 0.0
    %334 = vmatprep.subr.mxu0 0.0
    %335 = vmatpush1.msra.mxu0 0.0
    %336 = vmatprep.subr.mxu0 0.0
    %337 = vmatpush1.msra.mxu0 0.0
    %338 = vmatprep.subr.mxu0 0.0
    %339 = vmatpush1.msra.mxu0 0.0
    %340 = vmatprep.subr.mxu0 0.0
    %341 = vmatpush1.msra.mxu0 0.0
    %342 = vmatprep.subr.mxu0 0.0
    %343 = vmatpush1.msra.mxu0 0.0
    %344 = vmatprep.subr.mxu0 0.0
    %345 = vmatpush1.msra.mxu0 0.0
    %346 = vmatprep.subr.mxu0 0.0
    %347 = vmatpush1.msra.mxu0 0.0
    %348 = vmatprep.subr.mxu0 0.0
    %349 = vmatpush1.msra.mxu0 0.0
    %350 = vmatprep.subr.mxu0 0.0
    %351 = vmatpush1.msra.mxu0 0.0
    %352 = vmatprep.subr.mxu0 0.0
    %353 = vmatpush1.msra.mxu0 0.0
    %354 = vmatprep.subr.mxu0 0.0
    %355 = vmatpush1.msra.mxu0 0.0
    %356 = vmatprep.subr.mxu0 0.0
    %357 = vmatpush1.msra.mxu0 0.0
    %358 = vmatprep.subr.mxu0 0.0
    %359 = vmatpush1.msra.mxu0 0.0
    %360 = vmatprep.subr.mxu0 0.0
    %361 = vmatpush1.msra.mxu0 0.0
    %362 = vmatprep.subr.mxu0 0.0
    %363 = vmatpush1.msra.mxu0 0.0
    %364 = vmatprep.subr.mxu0 0.0
    %365 = vmatpush1.msra.mxu0 0.0
    %366 = vmatprep.subr.mxu0 0.0
    %367 = vmatpush1.msra.mxu0 0.0
    %368 = vmatprep.subr.mxu0 0.0
    %369 = vmatpush1.msra.mxu0 0.0
    %370 = vmatprep.subr.mxu0 0.0
    %371 = vmatpush1.msra.mxu0 0.0
    %372 = vmatprep.subr.mxu0 0.0
    %373 = vmatpush1.msra.mxu0 0.0
    %374 = vmatprep.subr.mxu0 0.0
    %375 = vmatpush1.msra.mxu0 0.0
    %376 = vmatprep.subr.mxu0 0.0
    %377 = vmatpush1.msra.mxu0 0.0
    %378 = vmatprep.subr.mxu0 0.0
    %379 = vmatpush1.msra.mxu0 0.0
    %380 = vmatprep.subr.mxu0 0.0
    %381 = vmatpush1.msra.mxu0 0.0
    %382 = vmatprep.subr.mxu0 0.0
    %383 = vmatpush1.msra.mxu0 0.0
    %384 = vmatprep.subr.mxu0 0.0
    %385 = vmatpush1.msra.mxu0 0.0
    %386 = vmatprep.subr.mxu0 0.0
    %387 = vmatpush1.msra.mxu0 0.0
    %388 = vmatprep.subr.mxu0 0.0
    %389 = vmatpush1.msra.mxu0 0.0
    %390 = vmatprep.mubr.f32.mxu0 0.0
    %391 = vmatmul.mubr.f32.gmra.mrb[0].mxu0 %v320
    %v392 = vpop.f32.mrb[0].mxu0
    %v393 = vadd.f32 %v316, %v392
    %v394 = vpop.f32.mrb[0].mxu0
    %395 = vdwg.mxu0
    %v397 = vsel %vm318, %v298, 0
    %399 = vmatprep.subr.mxu0 0.0
    %400 = vmatpush1.msra.mxu0 %v324
    %401 = vmatprep.subr.mxu0 0.0
    %402 = vmatpush1.msra.mxu0 0.0
    %403 = vmatprep.subr.mxu0 0.0
    %404 = vmatpush1.msra.mxu0 0.0
    %405 = vmatprep.subr.mxu0 0.0
    %406 = vmatpush1.msra.mxu0 0.0
    %407 = vmatprep.subr.mxu0 0.0
    %408 = vmatpush1.msra.mxu0 0.0
    %409 = vmatprep.subr.mxu0 0.0
    %410 = vmatpush1.msra.mxu0 0.0
    %411 = vmatprep.subr.mxu0 0.0
    %412 = vmatpush1.msra.mxu0 0.0
    %413 = vmatprep.subr.mxu0 0.0
    %414 = vmatpush1.msra.mxu0 0.0
    %415 = vmatprep.subr.mxu0 0.0
    %416 = vmatpush1.msra.mxu0 0.0
    %417 = vmatprep.subr.mxu0 0.0
    %418 = vmatpush1.msra.mxu0 0.0
    %419 = vmatprep.subr.mxu0 0.0
    %420 = vmatpush1.msra.mxu0 0.0
    %421 = vmatprep.subr.mxu0 0.0
    %422 = vmatpush1.msra.mxu0 0.0
    %423 = vmatprep.subr.mxu0 0.0
    %424 = vmatpush1.msra.mxu0 0.0
    %425 = vmatprep.subr.mxu0 0.0
    %426 = vmatpush1.msra.mxu0 0.0
    %427 = vmatprep.subr.mxu0 0.0
    %428 = vmatpush1.msra.mxu0 0.0
    %429 = vmatprep.subr.mxu0 0.0
    %430 = vmatpush1.msra.mxu0 0.0
    %431 = vmatprep.subr.mxu0 0.0
    %432 = vmatpush1.msra.mxu0 0.0
    %433 = vmatprep.subr.mxu0 0.0
    %434 = vmatpush1.msra.mxu0 0.0
    %435 = vmatprep.subr.mxu0 0.0
    %436 = vmatpush1.msra.mxu0 0.0
    %437 = vmatprep.subr.mxu0 0.0
    %438 = vmatpush1.msra.mxu0 0.0
    %439 = vmatprep.subr.mxu0 0.0
    %440 = vmatpush1.msra.mxu0 0.0
    %441 = vmatprep.subr.mxu0 0.0
    %442 = vmatpush1.msra.mxu0 0.0
    %443 = vmatprep.subr.mxu0 0.0
    %444 = vmatpush1.msra.mxu0 0.0
    %445 = vmatprep.subr.mxu0 0.0
    %446 = vmatpush1.msra.mxu0 0.0
    %447 = vmatprep.subr.mxu0 0.0
    %448 = vmatpush1.msra.mxu0 0.0
    %449 = vmatprep.subr.mxu0 0.0
    %450 = vmatpush1.msra.mxu0 0.0
    %451 = vmatprep.subr.mxu0 0.0
    %452 = vmatpush1.msra.mxu0 0.0
    %453 = vmatprep.subr.mxu0 0.0
    %454 = vmatpush1.msra.mxu0 0.0
    %455 = vmatprep.subr.mxu0 0.0
    %456 = vmatpush1.msra.mxu0 0.0
    %457 = vmatprep.subr.mxu0 0.0
    %458 = vmatpush1.msra.mxu0 0.0
    %459 = vmatprep.subr.mxu0 0.0
    %460 = vmatpush1.msra.mxu0 0.0
    %461 = vmatprep.subr.mxu0 0.0
    %462 = vmatpush1.msra.mxu0 0.0
    %463 = vmatprep.mubr.f32.mxu0 0.0
    %464 = vmatmul.mubr.f32.gmra.mrb[0].mxu0 %v397
    %v465 = vpop.f32.mrb[0].mxu0
    %v466 = vadd.f32 %v316, %v465
    %v467 = vpop.f32.mrb[0].mxu0
    %468 = vdwg.mxu0
    %v470 = vsel %vm318, %v299, 0
    %472 = vmatprep.subr.mxu0 0.0
    %473 = vmatpush1.msra.mxu0 %v324
    %474 = vmatprep.subr.mxu0 0.0
    %475 = vmatpush1.msra.mxu0 0.0
    %476 = vmatprep.subr.mxu0 0.0
    %477 = vmatpush1.msra.mxu0 0.0
    %478 = vmatprep.subr.mxu0 0.0
    %479 = vmatpush1.msra.mxu0 0.0
    %480 = vmatprep.subr.mxu0 0.0
    %481 = vmatpush1.msra.mxu0 0.0
    %482 = vmatprep.subr.mxu0 0.0
    %483 = vmatpush1.msra.mxu0 0.0
    %484 = vmatprep.subr.mxu0 0.0
    %485 = vmatpush1.msra.mxu0 0.0
    %486 = vmatprep.subr.mxu0 0.0
    %487 = vmatpush1.msra.mxu0 0.0
    %488 = vmatprep.subr.mxu0 0.0
    %489 = vmatpush1.msra.mxu0 0.0
    %490 = vmatprep.subr.mxu0 0.0
    %491 = vmatpush1.msra.mxu0 0.0
    %492 = vmatprep.subr.mxu0 0.0
    %493 = vmatpush1.msra.mxu0 0.0
    %494 = vmatprep.subr.mxu0 0.0
    %495 = vmatpush1.msra.mxu0 0.0
    %496 = vmatprep.subr.mxu0 0.0
    %497 = vmatpush1.msra.mxu0 0.0
    %498 = vmatprep.subr.mxu0 0.0
    %499 = vmatpush1.msra.mxu0 0.0
    %500 = vmatprep.subr.mxu0 0.0
    %501 = vmatpush1.msra.mxu0 0.0
    %502 = vmatprep.subr.mxu0 0.0
    %503 = vmatpush1.msra.mxu0 0.0
    %504 = vmatprep.subr.mxu0 0.0
    %505 = vmatpush1.msra.mxu0 0.0
    %506 = vmatprep.subr.mxu0 0.0
    %507 = vmatpush1.msra.mxu0 0.0
    %508 = vmatprep.subr.mxu0 0.0
    %509 = vmatpush1.msra.mxu0 0.0
    %510 = vmatprep.subr.mxu0 0.0
    %511 = vmatpush1.msra.mxu0 0.0
    %512 = vmatprep.subr.mxu0 0.0
    %513 = vmatpush1.msra.mxu0 0.0
    %514 = vmatprep.subr.mxu0 0.0
    %515 = vmatpush1.msra.mxu0 0.0
    %516 = vmatprep.subr.mxu0 0.0
    %517 = vmatpush1.msra.mxu0 0.0
    %518 = vmatprep.subr.mxu0 0.0
    %519 = vmatpush1.msra.mxu0 0.0
    %520 = vmatprep.subr.mxu0 0.0
    %521 = vmatpush1.msra.mxu0 0.0
    %522 = vmatprep.subr.mxu0 0.0
    %523 = vmatpush1.msra.mxu0 0.0
    %524 = vmatprep.subr.mxu0 0.0
    %525 = vmatpush1.msra.mxu0 0.0
    %526 = vmatprep.subr.mxu0 0.0
    %527 = vmatpush1.msra.mxu0 0.0
    %528 = vmatprep.subr.mxu0 0.0
    %529 = vmatpush1.msra.mxu0 0.0
    %530 = vmatprep.subr.mxu0 0.0
    %531 = vmatpush1.msra.mxu0 0.0
    %532 = vmatprep.subr.mxu0 0.0
    %533 = vmatpush1.msra.mxu0 0.0
    %534 = vmatprep.subr.mxu0 0.0
    %535 = vmatpush1.msra.mxu0 0.0
    %536 = vmatprep.mubr.f32.mxu0 0.0
    %537 = vmatmul.mubr.f32.gmra.mrb[0].mxu0 %v470
    %v538 = vpop.f32.mrb[0].mxu0
    %v539 = vadd.f32 %v316, %v538
    %v540 = vpop.f32.mrb[0].mxu0
    %541 = vdwg.mxu0
    %v543 = vsel %vm318, %v300, 0
    %545 = vmatprep.subr.mxu0 0.0
    %546 = vmatpush1.msra.mxu0 %v324
    %547 = vmatprep.subr.mxu0 0.0
    %548 = vmatpush1.msra.mxu0 0.0
    %549 = vmatprep.subr.mxu0 0.0
    %550 = vmatpush1.msra.mxu0 0.0
    %551 = vmatprep.subr.mxu0 0.0
    %552 = vmatpush1.msra.mxu0 0.0
    %553 = vmatprep.subr.mxu0 0.0
    %554 = vmatpush1.msra.mxu0 0.0
    %555 = vmatprep.subr.mxu0 0.0
    %556 = vmatpush1.msra.mxu0 0.0
    %557 = vmatprep.subr.mxu0 0.0
    %558 = vmatpush1.msra.mxu0 0.0
    %559 = vmatprep.subr.mxu0 0.0
    %560 = vmatpush1.msra.mxu0 0.0
    %561 = vmatprep.subr.mxu0 0.0
    %562 = vmatpush1.msra.mxu0 0.0
    %563 = vmatprep.subr.mxu0 0.0
    %564 = vmatpush1.msra.mxu0 0.0
    %565 = vmatprep.subr.mxu0 0.0
    %566 = vmatpush1.msra.mxu0 0.0
    %567 = vmatprep.subr.mxu0 0.0
    %568 = vmatpush1.msra.mxu0 0.0
    %569 = vmatprep.subr.mxu0 0.0
    %570 = vmatpush1.msra.mxu0 0.0
    %571 = vmatprep.subr.mxu0 0.0
    %572 = vmatpush1.msra.mxu0 0.0
    %573 = vmatprep.subr.mxu0 0.0
    %574 = vmatpush1.msra.mxu0 0.0
    %575 = vmatprep.subr.mxu0 0.0
    %576 = vmatpush1.msra.mxu0 0.0
    %577 = vmatprep.subr.mxu0 0.0
    %578 = vmatpush1.msra.mxu0 0.0
    %579 = vmatprep.subr.mxu0 0.0
    %580 = vmatpush1.msra.mxu0 0.0
    %581 = vmatprep.subr.mxu0 0.0
    %582 = vmatpush1.msra.mxu0 0.0
    %583 = vmatprep.subr.mxu0 0.0
    %584 = vmatpush1.msra.mxu0 0.0
    %585 = vmatprep.subr.mxu0 0.0
    %586 = vmatpush1.msra.mxu0 0.0
    %587 = vmatprep.subr.mxu0 0.0
    %588 = vmatpush1.msra.mxu0 0.0
    %589 = vmatprep.subr.mxu0 0.0
    %590 = vmatpush1.msra.mxu0 0.0
    %591 = vmatprep.subr.mxu0 0.0
    %592 = vmatpush1.msra.mxu0 0.0
    %593 = vmatprep.subr.mxu0 0.0
    %594 = vmatpush1.msra.mxu0 0.0
    %595 = vmatprep.subr.mxu0 0.0
    %596 = vmatpush1.msra.mxu0 0.0
    %597 = vmatprep.subr.mxu0 0.0
    %598 = vmatpush1.msra.mxu0 0.0
    %599 = vmatprep.subr.mxu0 0.0
    %600 = vmatpush1.msra.mxu0 0.0
    %601 = vmatprep.subr.mxu0 0.0
    %602 = vmatpush1.msra.mxu0 0.0
    %603 = vmatprep.subr.mxu0 0.0
    %604 = vmatpush1.msra.mxu0 0.0
    %605 = vmatprep.subr.mxu0 0.0
    %606 = vmatpush1.msra.mxu0 0.0
    %607 = vmatprep.subr.mxu0 0.0
    %608 = vmatpush1.msra.mxu0 0.0
    %609 = vmatprep.mubr.f32.mxu0 0.0
    %610 = vmatmul.mubr.f32.gmra.mrb[0].mxu0 %v543
    %v611 = vpop.f32.mrb[0].mxu0
    %v612 = vadd.f32 %v316, %v611
    %v613 = vpop.f32.mrb[0].mxu0
    %614 = vdwg.mxu0
    %v616 = vsel %vm318, %v301, 0
    %618 = vmatprep.subr.mxu0 0.0
    %619 = vmatpush1.msra.mxu0 %v324
    %620 = vmatprep.subr.mxu0 0.0
    %621 = vmatpush1.msra.mxu0 0.0
    %622 = vmatprep.subr.mxu0 0.0
    %623 = vmatpush1.msra.mxu0 0.0
    %624 = vmatprep.subr.mxu0 0.0
    %625 = vmatpush1.msra.mxu0 0.0
    %626 = vmatprep.subr.mxu0 0.0
    %627 = vmatpush1.msra.mxu0 0.0
    %628 = vmatprep.subr.mxu0 0.0
    %629 = vmatpush1.msra.mxu0 0.0
    %630 = vmatprep.subr.mxu0 0.0
    %631 = vmatpush1.msra.mxu0 0.0
    %632 = vmatprep.subr.mxu0 0.0
    %633 = vmatpush1.msra.mxu0 0.0
    %634 = vmatprep.subr.mxu0 0.0
    %635 = vmatpush1.msra.mxu0 0.0
    %636 = vmatprep.subr.mxu0 0.0
    %637 = vmatpush1.msra.mxu0 0.0
    %638 = vmatprep.subr.mxu0 0.0
    %639 = vmatpush1.msra.mxu0 0.0
    %640 = vmatprep.subr.mxu0 0.0
    %641 = vmatpush1.msra.mxu0 0.0
    %642 = vmatprep.subr.mxu0 0.0
    %643 = vmatpush1.msra.mxu0 0.0
    %644 = vmatprep.subr.mxu0 0.0
    %645 = vmatpush1.msra.mxu0 0.0
    %646 = vmatprep.subr.mxu0 0.0
    %647 = vmatpush1.msra.mxu0 0.0
    %648 = vmatprep.subr.mxu0 0.0
    %649 = vmatpush1.msra.mxu0 0.0
    %650 = vmatprep.subr.mxu0 0.0
    %651 = vmatpush1.msra.mxu0 0.0
    %652 = vmatprep.subr.mxu0 0.0
    %653 = vmatpush1.msra.mxu0 0.0
    %654 = vmatprep.subr.mxu0 0.0
    %655 = vmatpush1.msra.mxu0 0.0
    %656 = vmatprep.subr.mxu0 0.0
    %657 = vmatpush1.msra.mxu0 0.0
    %658 = vmatprep.subr.mxu0 0.0
    %659 = vmatpush1.msra.mxu0 0.0
    %660 = vmatprep.subr.mxu0 0.0
    %661 = vmatpush1.msra.mxu0 0.0
    %662 = vmatprep.subr.mxu0 0.0
    %663 = vmatpush1.msra.mxu0 0.0
    %664 = vmatprep.subr.mxu0 0.0
    %665 = vmatpush1.msra.mxu0 0.0
    %666 = vmatprep.subr.mxu0 0.0
    %667 = vmatpush1.msra.mxu0 0.0
    %668 = vmatprep.subr.mxu0 0.0
    %669 = vmatpush1.msra.mxu0 0.0
    %670 = vmatprep.subr.mxu0 0.0
    %671 = vmatpush1.msra.mxu0 0.0
    %672 = vmatprep.subr.mxu0 0.0
    %673 = vmatpush1.msra.mxu0 0.0
    %674 = vmatprep.subr.mxu0 0.0
    %675 = vmatpush1.msra.mxu0 0.0
    %676 = vmatprep.subr.mxu0 0.0
    %677 = vmatpush1.msra.mxu0 0.0
    %678 = vmatprep.subr.mxu0 0.0
    %679 = vmatpush1.msra.mxu0 0.0
    %680 = vmatprep.subr.mxu0 0.0
    %681 = vmatpush1.msra.mxu0 0.0
    %682 = vmatprep.mubr.f32.mxu0 0.0
    %683 = vmatmul.mubr.f32.gmra.mrb[0].mxu0 %v616
    %v684 = vpop.f32.mrb[0].mxu0
    %v685 = vadd.f32 %v316, %v684
    %v686 = vpop.f32.mrb[0].mxu0
    %687 = vdwg.mxu0
    %v689 = vsel %vm318, %v302, 0
    %691 = vmatprep.subr.mxu0 0.0
    %692 = vmatpush1.msra.mxu0 %v324
    %693 = vmatprep.subr.mxu0 0.0
    %694 = vmatpush1.msra.mxu0 0.0
    %695 = vmatprep.subr.mxu0 0.0
    %696 = vmatpush1.msra.mxu0 0.0
    %697 = vmatprep.subr.mxu0 0.0
    %698 = vmatpush1.msra.mxu0 0.0
    %699 = vmatprep.subr.mxu0 0.0
    %700 = vmatpush1.msra.mxu0 0.0
    %701 = vmatprep.subr.mxu0 0.0
    %702 = vmatpush1.msra.mxu0 0.0
    %703 = vmatprep.subr.mxu0 0.0
    %704 = vmatpush1.msra.mxu0 0.0
    %705 = vmatprep.subr.mxu0 0.0
    %706 = vmatpush1.msra.mxu0 0.0
    %707 = vmatprep.subr.mxu0 0.0
    %708 = vmatpush1.msra.mxu0 0.0
    %709 = vmatprep.subr.mxu0 0.0
    %710 = vmatpush1.msra.mxu0 0.0
    %711 = vmatprep.subr.mxu0 0.0
    %712 = vmatpush1.msra.mxu0 0.0
    %713 = vmatprep.subr.mxu0 0.0
    %714 = vmatpush1.msra.mxu0 0.0
    %715 = vmatprep.subr.mxu0 0.0
    %716 = vmatpush1.msra.mxu0 0.0
    %717 = vmatprep.subr.mxu0 0.0
    %718 = vmatpush1.msra.mxu0 0.0
    %719 = vmatprep.subr.mxu0 0.0
    %720 = vmatpush1.msra.mxu0 0.0
    %721 = vmatprep.subr.mxu0 0.0
    %722 = vmatpush1.msra.mxu0 0.0
    %723 = vmatprep.subr.mxu0 0.0
    %724 = vmatpush1.msra.mxu0 0.0
    %725 = vmatprep.subr.mxu0 0.0
    %726 = vmatpush1.msra.mxu0 0.0
    %727 = vmatprep.subr.mxu0 0.0
    %728 = vmatpush1.msra.mxu0 0.0
    %729 = vmatprep.subr.mxu0 0.0
    %730 = vmatpush1.msra.mxu0 0.0
    %731 = vmatprep.subr.mxu0 0.0
    %732 = vmatpush1.msra.mxu0 0.0
    %733 = vmatprep.subr.mxu0 0.0
    %734 = vmatpush1.msra.mxu0 0.0
    %735 = vmatprep.subr.mxu0 0.0
    %736 = vmatpush1.msra.mxu0 0.0
    %737 = vmatprep.subr.mxu0 0.0
    %738 = vmatpush1.msra.mxu0 0.0
    %739 = vmatprep.subr.mxu0 0.0
    %740 = vmatpush1.msra.mxu0 0.0
    %741 = vmatprep.subr.mxu0 0.0
    %742 = vmatpush1.msra.mxu0 0.0
    %743 = vmatprep.subr.mxu0 0.0
    %744 = vmatpush1.msra.mxu0 0.0
    %745 = vmatprep.subr.mxu0 0.0
    %746 = vmatpush1.msra.mxu0 0.0
    %747 = vmatprep.subr.mxu0 0.0
    %748 = vmatpush1.msra.mxu0 0.0
    %749 = vmatprep.subr.mxu0 0.0
    %750 = vmatpush1.msra.mxu0 0.0
    %751 = vmatprep.subr.mxu0 0.0
    %752 = vmatpush1.msra.mxu0 0.0
    %753 = vmatprep.subr.mxu0 0.0
    %754 = vmatpush1.msra.mxu0 0.0
    %755 = vmatprep.mubr.f32.mxu0 0.0
    %756 = vmatmul.mubr.f32.gmra.mrb[0].mxu0 %v689
    %v757 = vpop.f32.mrb[0].mxu0
    %v758 = vadd.f32 %v316, %v757
    %v759 = vpop.f32.mrb[0].mxu0
    %760 = vdwg.mxu0
    %v762 = vsel %vm318, %v303, 0
    %764 = vmatprep.subr.mxu0 0.0
    %765 = vmatpush1.msra.mxu0 %v324
    %766 = vmatprep.subr.mxu0 0.0
    %767 = vmatpush1.msra.mxu0 0.0
    %768 = vmatprep.subr.mxu0 0.0
    %769 = vmatpush1.msra.mxu0 0.0
    %770 = vmatprep.subr.mxu0 0.0
    %771 = vmatpush1.msra.mxu0 0.0
    %772 = vmatprep.subr.mxu0 0.0
    %773 = vmatpush1.msra.mxu0 0.0
    %774 = vmatprep.subr.mxu0 0.0
    %775 = vmatpush1.msra.mxu0 0.0
    %776 = vmatprep.subr.mxu0 0.0
    %777 = vmatpush1.msra.mxu0 0.0
    %778 = vmatprep.subr.mxu0 0.0
    %779 = vmatpush1.msra.mxu0 0.0
    %780 = vmatprep.subr.mxu0 0.0
    %781 = vmatpush1.msra.mxu0 0.0
    %782 = vmatprep.subr.mxu0 0.0
    %783 = vmatpush1.msra.mxu0 0.0
    %784 = vmatprep.subr.mxu0 0.0
    %785 = vmatpush1.msra.mxu0 0.0
    %786 = vmatprep.subr.mxu0 0.0
    %787 = vmatpush1.msra.mxu0 0.0
    %788 = vmatprep.subr.mxu0 0.0
    %789 = vmatpush1.msra.mxu0 0.0
    %790 = vmatprep.subr.mxu0 0.0
    %791 = vmatpush1.msra.mxu0 0.0
    %792 = vmatprep.subr.mxu0 0.0
    %793 = vmatpush1.msra.mxu0 0.0
    %794 = vmatprep.subr.mxu0 0.0
    %795 = vmatpush1.msra.mxu0 0.0
    %796 = vmatprep.subr.mxu0 0.0
    %797 = vmatpush1.msra.mxu0 0.0
    %798 = vmatprep.subr.mxu0 0.0
    %799 = vmatpush1.msra.mxu0 0.0
    %800 = vmatprep.subr.mxu0 0.0
    %801 = vmatpush1.msra.mxu0 0.0
    %802 = vmatprep.subr.mxu0 0.0
    %803 = vmatpush1.msra.mxu0 0.0
    %804 = vmatprep.subr.mxu0 0.0
    %805 = vmatpush1.msra.mxu0 0.0
    %806 = vmatprep.subr.mxu0 0.0
    %807 = vmatpush1.msra.mxu0 0.0
    %808 = vmatprep.subr.mxu0 0.0
    %809 = vmatpush1.msra.mxu0 0.0
    %810 = vmatprep.subr.mxu0 0.0
    %811 = vmatpush1.msra.mxu0 0.0
    %812 = vmatprep.subr.mxu0 0.0
    %813 = vmatpush1.msra.mxu0 0.0
    %814 = vmatprep.subr.mxu0 0.0
    %815 = vmatpush1.msra.mxu0 0.0
    %816 = vmatprep.subr.mxu0 0.0
    %817 = vmatpush1.msra.mxu0 0.0
    %818 = vmatprep.subr.mxu0 0.0
    %819 = vmatpush1.msra.mxu0 0.0
    %820 = vmatprep.subr.mxu0 0.0
    %821 = vmatpush1.msra.mxu0 0.0
    %822 = vmatprep.subr.mxu0 0.0
    %823 = vmatpush1.msra.mxu0 0.0
    %824 = vmatprep.subr.mxu0 0.0
    %825 = vmatpush1.msra.mxu0 0.0
    %826 = vmatprep.subr.mxu0 0.0
    %827 = vmatpush1.msra.mxu0 0.0
    %828 = vmatprep.mubr.f32.mxu0 0.0
    %829 = vmatmul.mubr.f32.gmra.mrb[0].mxu0 %v762
    %v830 = vpop.f32.mrb[0].mxu0
    %v831 = vadd.f32 %v316, %v830
    %v832 = vpop.f32.mrb[0].mxu0
    %833 = vdwg.mxu0
    %v835 = vsel %vm318, %v304, 0
    %837 = vmatprep.subr.mxu0 0.0
    %838 = vmatpush1.msra.mxu0 %v324
    %839 = vmatprep.subr.mxu0 0.0
    %840 = vmatpush1.msra.mxu0 0.0
    %841 = vmatprep.subr.mxu0 0.0
    %842 = vmatpush1.msra.mxu0 0.0
    %843 = vmatprep.subr.mxu0 0.0
    %844 = vmatpush1.msra.mxu0 0.0
    %845 = vmatprep.subr.mxu0 0.0
    %846 = vmatpush1.msra.mxu0 0.0
    %847 = vmatprep.subr.mxu0 0.0
    %848 = vmatpush1.msra.mxu0 0.0
    %849 = vmatprep.subr.mxu0 0.0
    %850 = vmatpush1.msra.mxu0 0.0
    %851 = vmatprep.subr.mxu0 0.0
    %852 = vmatpush1.msra.mxu0 0.0
    %853 = vmatprep.subr.mxu0 0.0
    %854 = vmatpush1.msra.mxu0 0.0
    %855 = vmatprep.subr.mxu0 0.0
    %856 = vmatpush1.msra.mxu0 0.0
    %857 = vmatprep.subr.mxu0 0.0
    %858 = vmatpush1.msra.mxu0 0.0
    %859 = vmatprep.subr.mxu0 0.0
    %860 = vmatpush1.msra.mxu0 0.0
    %861 = vmatprep.subr.mxu0 0.0
    %862 = vmatpush1.msra.mxu0 0.0
    %863 = vmatprep.subr.mxu0 0.0
    %864 = vmatpush1.msra.mxu0 0.0
    %865 = vmatprep.subr.mxu0 0.0
    %866 = vmatpush1.msra.mxu0 0.0
    %867 = vmatprep.subr.mxu0 0.0
    %868 = vmatpush1.msra.mxu0 0.0
    %869 = vmatprep.subr.mxu0 0.0
    %870 = vmatpush1.msra.mxu0 0.0
    %871 = vmatprep.subr.mxu0 0.0
    %872 = vmatpush1.msra.mxu0 0.0
    %873 = vmatprep.subr.mxu0 0.0
    %874 = vmatpush1.msra.mxu0 0.0
    %875 = vmatprep.subr.mxu0 0.0
    %876 = vmatpush1.msra.mxu0 0.0
    %877 = vmatprep.subr.mxu0 0.0
    %878 = vmatpush1.msra.mxu0 0.0
    %879 = vmatprep.subr.mxu0 0.0
    %880 = vmatpush1.msra.mxu0 0.0
    %881 = vmatprep.subr.mxu0 0.0
    %882 = vmatpush1.msra.mxu0 0.0
    %883 = vmatprep.subr.mxu0 0.0
    %884 = vmatpush1.msra.mxu0 0.0
    %885 = vmatprep.subr.mxu0 0.0
    %886 = vmatpush1.msra.mxu0 0.0
    %887 = vmatprep.subr.mxu0 0.0
    %888 = vmatpush1.msra.mxu0 0.0
    %889 = vmatprep.subr.mxu0 0.0
    %890 = vmatpush1.msra.mxu0 0.0
    %891 = vmatprep.subr.mxu0 0.0
    %892 = vmatpush1.msra.mxu0 0.0
    %893 = vmatprep.subr.mxu0 0.0
    %894 = vmatpush1.msra.mxu0 0.0
    %895 = vmatprep.subr.mxu0 0.0
    %896 = vmatpush1.msra.mxu0 0.0
    %897 = vmatprep.subr.mxu0 0.0
    %898 = vmatpush1.msra.mxu0 0.0
    %899 = vmatprep.subr.mxu0 0.0
    %900 = vmatpush1.msra.mxu0 0.0
    %901 = vmatprep.mubr.f32.mxu0 0.0
    %902 = vmatmul.mubr.f32.gmra.mrb[0].mxu0 %v835
    %v903 = vpop.f32.mrb[0].mxu0
    %v904 = vadd.f32 %v316, %v903
    %v905 = vpop.f32.mrb[0].mxu0
    %906 = vdwg.mxu0
    %v908 = vlaneseq
    %v909 = vshrl.u32 %v908, 7
    %v910 = vsub.s32 0, %v909
    %v911 = vrot.slane %v311, %v910
    %vm913 = vcmask 261120
    %v915 = vsel %vm913, 0.0, 0
    %917 = vmatprep.subr.mxu0 0.0
    %918 = vmatpush1.msra.mxu0 %v306
    %919 = vmatprep.subr.mxu0 0.0
    %920 = vmatpush1.msra.mxu0 %v307
    %921 = vmatprep.subr.mxu0 0.0
    %922 = vmatpush1.msra.mxu0 %v308
    %923 = vmatprep.subr.mxu0 0.0
    %924 = vmatpush1.msra.mxu0 %v309
    %925 = vmatprep.subr.mxu0 0.0
    %926 = vmatpush1.msra.mxu0 0.0
    %927 = vmatprep.subr.mxu0 0.0
    %928 = vmatpush1.msra.mxu0 0.0
    %929 = vmatprep.subr.mxu0 0.0
    %930 = vmatpush1.msra.mxu0 0.0
    %931 = vmatprep.subr.mxu0 0.0
    %932 = vmatpush1.msra.mxu0 0.0
    %933 = vmatprep.subr.mxu0 0.0
    %934 = vmatpush1.msra.mxu0 0.0
    %935 = vmatprep.subr.mxu0 0.0
    %936 = vmatpush1.msra.mxu0 0.0
    %937 = vmatprep.subr.mxu0 0.0
    %938 = vmatpush1.msra.mxu0 0.0
    %939 = vmatprep.subr.mxu0 0.0
    %940 = vmatpush1.msra.mxu0 0.0
    %941 = vmatprep.subr.mxu0 0.0
    %942 = vmatpush1.msra.mxu0 0.0
    %943 = vmatprep.subr.mxu0 0.0
    %944 = vmatpush1.msra.mxu0 0.0
    %945 = vmatprep.subr.mxu0 0.0
    %946 = vmatpush1.msra.mxu0 0.0
    %947 = vmatprep.subr.mxu0 0.0
    %948 = vmatpush1.msra.mxu0 0.0
    %949 = vmatprep.subr.mxu0 0.0
    %950 = vmatpush1.msra.mxu0 0.0
    %951 = vmatprep.subr.mxu0 0.0
    %952 = vmatpush1.msra.mxu0 0.0
    %953 = vmatprep.subr.mxu0 0.0
    %954 = vmatpush1.msra.mxu0 0.0
    %955 = vmatprep.subr.mxu0 0.0
    %956 = vmatpush1.msra.mxu0 0.0
    %957 = vmatprep.subr.mxu0 0.0
    %958 = vmatpush1.msra.mxu0 0.0
    %959 = vmatprep.subr.mxu0 0.0
    %960 = vmatpush1.msra.mxu0 0.0
    %961 = vmatprep.subr.mxu0 0.0
    %962 = vmatpush1.msra.mxu0 0.0
    %963 = vmatprep.subr.mxu0 0.0
    %964 = vmatpush1.msra.mxu0 0.0
    %965 = vmatprep.subr.mxu0 0.0
    %966 = vmatpush1.msra.mxu0 0.0
    %967 = vmatprep.subr.mxu0 0.0
    %968 = vmatpush1.msra.mxu0 0.0
    %969 = vmatprep.subr.mxu0 0.0
    %970 = vmatpush1.msra.mxu0 0.0
    %971 = vmatprep.subr.mxu0 0.0
    %972 = vmatpush1.msra.mxu0 0.0
    %973 = vmatprep.subr.mxu0 0.0
    %974 = vmatpush1.msra.mxu0 0.0
    %975 = vmatprep.subr.mxu0 0.0
    %976 = vmatpush1.msra.mxu0 0.0
    %977 = vmatprep.subr.mxu0 0.0
    %978 = vmatpush1.msra.mxu0 0.0
    %979 = vmatprep.subr.mxu0 0.0
    %980 = vmatpush1.msra.mxu0 0.0
    %981 = vmatprep.mubr.f32.mxu0 0.0
    %982 = vmatmul.mubr.f32.gmra.mrb[0].mxu0 %v915
    %v983 = vpop.f32.mrb[0].mxu0
    %v984 = vadd.f32 %v911, %v983
    %v985 = vpop.f32.mrb[0].mxu0
    %986 = vdwg.mxu0
    %v987 = vadd.f32 %v393, %v984
    %v988 = vxor.u32 %v987, 2147483648
    %v989 = vmul.f32 %v988, 1.442695
    %v990 = vpow.pop %v989
    %v991 = vadd.f32 %v990, 1.0
    %v992 = vrcp.pop %v991
    %v993 = vmul.f32 1.0, %v992
    %995 = vrot.lane.b32.xlu0 %v984, 64
    %v996 = vpop.permute.xlu0 %995
    %v998 = vmul.f32 %v993, %v996
    %1000 = vrot.lane.b32.xlu0 %v998, 64
    %v1001 = vpop.permute.xlu0 %1000
    %v1003 = vadd.f32 %v393, %v1001
    %v1004 = vtanh.pop %v1003
    %v1005 = vsub.f32 1.0, %v993
    %1007 = vrot.lane.b32.xlu0 %v1004, 96
    %v1008 = vpop.permute.xlu0 %1007
    %v1010 = vmul.f32 %v1005, %v1008
    %v1011 = vmul.f32 %v993, 0.0
    %v1012 = vadd.f32 %v1010, %v1011
    %1014 = vrot.lane.b32.xlu0 %v1012, 96
    %v1015 = vpop.permute.xlu0 %1014
    %v1016 = vsel %vm913, %v1015, 0
    %1018 = vmatprep.subr.mxu0 0.0
    %1019 = vmatpush1.msra.mxu0 %v306
    %1020 = vmatprep.subr.mxu0 0.0
    %1021 = vmatpush1.msra.mxu0 %v307
    %1022 = vmatprep.subr.mxu0 0.0
    %1023 = vmatpush1.msra.mxu0 %v308
    %1024 = vmatprep.subr.mxu0 0.0
    %1025 = vmatpush1.msra.mxu0 %v309
    %1026 = vmatprep.subr.mxu0 0.0
    %1027 = vmatpush1.msra.mxu0 0.0
    %1028 = vmatprep.subr.mxu0 0.0
    %1029 = vmatpush1.msra.mxu0 0.0
    %1030 = vmatprep.subr.mxu0 0.0
    %1031 = vmatpush1.msra.mxu0 0.0
    %1032 = vmatprep.subr.mxu0 0.0
    %1033 = vmatpush1.msra.mxu0 0.0
    %1034 = vmatprep.subr.mxu0 0.0
    %1035 = vmatpush1.msra.mxu0 0.0
    %1036 = vmatprep.subr.mxu0 0.0
    %1037 = vmatpush1.msra.mxu0 0.0
    %1038 = vmatprep.subr.mxu0 0.0
    %1039 = vmatpush1.msra.mxu0 0.0
    %1040 = vmatprep.subr.mxu0 0.0
    %1041 = vmatpush1.msra.mxu0 0.0
    %1042 = vmatprep.subr.mxu0 0.0
    %1043 = vmatpush1.msra.mxu0 0.0
    %1044 = vmatprep.subr.mxu0 0.0
    %1045 = vmatpush1.msra.mxu0 0.0
    %1046 = vmatprep.subr.mxu0 0.0
    %1047 = vmatpush1.msra.mxu0 0.0
    %1048 = vmatprep.subr.mxu0 0.0
    %1049 = vmatpush1.msra.mxu0 0.0
    %1050 = vmatprep.subr.mxu0 0.0
    %1051 = vmatpush1.msra.mxu0 0.0
    %1052 = vmatprep.subr.mxu0 0.0
    %1053 = vmatpush1.msra.mxu0 0.0
    %1054 = vmatprep.subr.mxu0 0.0
    %1055 = vmatpush1.msra.mxu0 0.0
    %1056 = vmatprep.subr.mxu0 0.0
    %1057 = vmatpush1.msra.mxu0 0.0
    %1058 = vmatprep.subr.mxu0 0.0
    %1059 = vmatpush1.msra.mxu0 0.0
    %1060 = vmatprep.subr.mxu0 0.0
    %1061 = vmatpush1.msra.mxu0 0.0
    %1062 = vmatprep.subr.mxu0 0.0
    %1063 = vmatpush1.msra.mxu0 0.0
    %1064 = vmatprep.subr.mxu0 0.0
    %1065 = vmatpush1.msra.mxu0 0.0
    %1066 = vmatprep.subr.mxu0 0.0
    %1067 = vmatpush1.msra.mxu0 0.0
    %1068 = vmatprep.subr.mxu0 0.0
    %1069 = vmatpush1.msra.mxu0 0.0
    %1070 = vmatprep.subr.mxu0 0.0
    %1071 = vmatpush1.msra.mxu0 0.0
    %1072 = vmatprep.subr.mxu0 0.0
    %1073 = vmatpush1.msra.mxu0 0.0
    %1074 = vmatprep.subr.mxu0 0.0
    %1075 = vmatpush1.msra.mxu0 0.0
    %1076 = vmatprep.subr.mxu0 0.0
    %1077 = vmatpush1.msra.mxu0 0.0
    %1078 = vmatprep.subr.mxu0 0.0
    %1079 = vmatpush1.msra.mxu0 0.0
    %1080 = vmatprep.subr.mxu0 0.0
    %1081 = vmatpush1.msra.mxu0 0.0
    %1082 = vmatprep.mubr.f32.mxu0 0.0
    %1083 = vmatmul.mubr.f32.gmra.mrb[0].mxu0 %v1016
    %v1084 = vpop.f32.mrb[0].mxu0
    %v1085 = vadd.f32 %v911, %v1084
    %v1086 = vpop.f32.mrb[0].mxu0
    %1087 = vdwg.mxu0
    %v1088 = vadd.f32 %v466, %v1085
    %v1089 = vxor.u32 %v1088, 2147483648
    %v1090 = vmul.f32 %v1089, 1.442695
    %v1091 = vpow.pop %v1090
    %v1092 = vadd.f32 %v1091, 1.0
    %v1093 = vrcp.pop %v1092
    %v1094 = vmul.f32 1.0, %v1093
    %1096 = vrot.lane.b32.xlu0 %v1085, 64
    %v1097 = vpop.permute.xlu0 %1096
    %v1099 = vmul.f32 %v1094, %v1097
    %1101 = vrot.lane.b32.xlu0 %v1099, 64
    %v1102 = vpop.permute.xlu0 %1101
    %v1104 = vadd.f32 %v466, %v1102
    %v1105 = vtanh.pop %v1104
    %v1106 = vsub.f32 1.0, %v1094
    %1108 = vrot.lane.b32.xlu0 %v1105, 96
    %v1109 = vpop.permute.xlu0 %1108
    %v1111 = vmul.f32 %v1106, %v1109
    %v1112 = vmul.f32 %v1094, %v1012
    %v1113 = vadd.f32 %v1111, %v1112
    %1115 = vrot.lane.b32.xlu0 %v1113, 96
    %v1116 = vpop.permute.xlu0 %1115
    %v1117 = vsel %vm913, %v1116, 0
    %1119 = vmatprep.subr.mxu0 0.0
    %1120 = vmatpush1.msra.mxu0 %v306
    %1121 = vmatprep.subr.mxu0 0.0
    %1122 = vmatpush1.msra.mxu0 %v307
    %1123 = vmatprep.subr.mxu0 0.0
    %1124 = vmatpush1.msra.mxu0 %v308
    %1125 = vmatprep.subr.mxu0 0.0
    %1126 = vmatpush1.msra.mxu0 %v309
    %1127 = vmatprep.subr.mxu0 0.0
    %1128 = vmatpush1.msra.mxu0 0.0
    %1129 = vmatprep.subr.mxu0 0.0
    %1130 = vmatpush1.msra.mxu0 0.0
    %1131 = vmatprep.subr.mxu0 0.0
    %1132 = vmatpush1.msra.mxu0 0.0
    %1133 = vmatprep.subr.mxu0 0.0
    %1134 = vmatpush1.msra.mxu0 0.0
    %1135 = vmatprep.subr.mxu0 0.0
    %1136 = vmatpush1.msra.mxu0 0.0
    %1137 = vmatprep.subr.mxu0 0.0
    %1138 = vmatpush1.msra.mxu0 0.0
    %1139 = vmatprep.subr.mxu0 0.0
    %1140 = vmatpush1.msra.mxu0 0.0
    %1141 = vmatprep.subr.mxu0 0.0
    %1142 = vmatpush1.msra.mxu0 0.0
    %1143 = vmatprep.subr.mxu0 0.0
    %1144 = vmatpush1.msra.mxu0 0.0
    %1145 = vmatprep.subr.mxu0 0.0
    %1146 = vmatpush1.msra.mxu0 0.0
    %1147 = vmatprep.subr.mxu0 0.0
    %1148 = vmatpush1.msra.mxu0 0.0
    %1149 = vmatprep.subr.mxu0 0.0
    %1150 = vmatpush1.msra.mxu0 0.0
    %1151 = vmatprep.subr.mxu0 0.0
    %1152 = vmatpush1.msra.mxu0 0.0
    %1153 = vmatprep.subr.mxu0 0.0
    %1154 = vmatpush1.msra.mxu0 0.0
    %1155 = vmatprep.subr.mxu0 0.0
    %1156 = vmatpush1.msra.mxu0 0.0
    %1157 = vmatprep.subr.mxu0 0.0
    %1158 = vmatpush1.msra.mxu0 0.0
    %1159 = vmatprep.subr.mxu0 0.0
    %1160 = vmatpush1.msra.mxu0 0.0
    %1161 = vmatprep.subr.mxu0 0.0
    %1162 = vmatpush1.msra.mxu0 0.0
    %1163 = vmatprep.subr.mxu0 0.0
    %1164 = vmatpush1.msra.mxu0 0.0
    %1165 = vmatprep.subr.mxu0 0.0
    %1166 = vmatpush1.msra.mxu0 0.0
    %1167 = vmatprep.subr.mxu0 0.0
    %1168 = vmatpush1.msra.mxu0 0.0
    %1169 = vmatprep.subr.mxu0 0.0
    %1170 = vmatpush1.msra.mxu0 0.0
    %1171 = vmatprep.subr.mxu0 0.0
    %1172 = vmatpush1.msra.mxu0 0.0
    %1173 = vmatprep.subr.mxu0 0.0
    %1174 = vmatpush1.msra.mxu0 0.0
    %1175 = vmatprep.subr.mxu0 0.0
    %1176 = vmatpush1.msra.mxu0 0.0
    %1177 = vmatprep.subr.mxu0 0.0
    %1178 = vmatpush1.msra.mxu0 0.0
    %1179 = vmatprep.subr.mxu0 0.0
    %1180 = vmatpush1.msra.mxu0 0.0
    %1181 = vmatprep.subr.mxu0 0.0
    %1182 = vmatpush1.msra.mxu0 0.0
    %1183 = vmatprep.mubr.f32.mxu0 0.0
    %1184 = vmatmul.mubr.f32.gmra.mrb[0].mxu0 %v1117
    %v1185 = vpop.f32.mrb[0].mxu0
    %v1186 = vadd.f32 %v911, %v1185
    %v1187 = vpop.f32.mrb[0].mxu0
    %1188 = vdwg.mxu0
    %v1189 = vadd.f32 %v539, %v1186
    %v1190 = vxor.u32 %v1189, 2147483648
    %v1191 = vmul.f32 %v1190, 1.442695
    %v1192 = vpow.pop %v1191
    %v1193 = vadd.f32 %v1192, 1.0
    %v1194 = vrcp.pop %v1193
    %v1195 = vmul.f32 1.0, %v1194
    %1197 = vrot.lane.b32.xlu0 %v1186, 64
    %v1198 = vpop.permute.xlu0 %1197
    %v1200 = vmul.f32 %v1195, %v1198
    %1202 = vrot.lane.b32.xlu0 %v1200, 64
    %v1203 = vpop.permute.xlu0 %1202
    %v1205 = vadd.f32 %v539, %v1203
    %v1206 = vtanh.pop %v1205
    %v1207 = vsub.f32 1.0, %v1195
    %1209 = vrot.lane.b32.xlu0 %v1206, 96
    %v1210 = vpop.permute.xlu0 %1209
    %v1212 = vmul.f32 %v1207, %v1210
    %v1213 = vmul.f32 %v1195, %v1113
    %v1214 = vadd.f32 %v1212, %v1213
    %1216 = vrot.lane.b32.xlu0 %v1214, 96
    %v1217 = vpop.permute.xlu0 %1216
    %v1218 = vsel %vm913, %v1217, 0
    %1220 = vmatprep.subr.mxu0 0.0
    %1221 = vmatpush1.msra.mxu0 %v306
    %1222 = vmatprep.subr.mxu0 0.0
    %1223 = vmatpush1.msra.mxu0 %v307
    %1224 = vmatprep.subr.mxu0 0.0
    %1225 = vmatpush1.msra.mxu0 %v308
    %1226 = vmatprep.subr.mxu0 0.0
    %1227 = vmatpush1.msra.mxu0 %v309
    %1228 = vmatprep.subr.mxu0 0.0
    %1229 = vmatpush1.msra.mxu0 0.0
    %1230 = vmatprep.subr.mxu0 0.0
    %1231 = vmatpush1.msra.mxu0 0.0
    %1232 = vmatprep.subr.mxu0 0.0
    %1233 = vmatpush1.msra.mxu0 0.0
    %1234 = vmatprep.subr.mxu0 0.0
    %1235 = vmatpush1.msra.mxu0 0.0
    %1236 = vmatprep.subr.mxu0 0.0
    %1237 = vmatpush1.msra.mxu0 0.0
    %1238 = vmatprep.subr.mxu0 0.0
    %1239 = vmatpush1.msra.mxu0 0.0
    %1240 = vmatprep.subr.mxu0 0.0
    %1241 = vmatpush1.msra.mxu0 0.0
    %1242 = vmatprep.subr.mxu0 0.0
    %1243 = vmatpush1.msra.mxu0 0.0
    %1244 = vmatprep.subr.mxu0 0.0
    %1245 = vmatpush1.msra.mxu0 0.0
    %1246 = vmatprep.subr.mxu0 0.0
    %1247 = vmatpush1.msra.mxu0 0.0
    %1248 = vmatprep.subr.mxu0 0.0
    %1249 = vmatpush1.msra.mxu0 0.0
    %1250 = vmatprep.subr.mxu0 0.0
    %1251 = vmatpush1.msra.mxu0 0.0
    %1252 = vmatprep.subr.mxu0 0.0
    %1253 = vmatpush1.msra.mxu0 0.0
    %1254 = vmatprep.subr.mxu0 0.0
    %1255 = vmatpush1.msra.mxu0 0.0
    %1256 = vmatprep.subr.mxu0 0.0
    %1257 = vmatpush1.msra.mxu0 0.0
    %1258 = vmatprep.subr.mxu0 0.0
    %1259 = vmatpush1.msra.mxu0 0.0
    %1260 = vmatprep.subr.mxu0 0.0
    %1261 = vmatpush1.msra.mxu0 0.0
    %1262 = vmatprep.subr.mxu0 0.0
    %1263 = vmatpush1.msra.mxu0 0.0
    %1264 = vmatprep.subr.mxu0 0.0
    %1265 = vmatpush1.msra.mxu0 0.0
    %1266 = vmatprep.subr.mxu0 0.0
    %1267 = vmatpush1.msra.mxu0 0.0
    %1268 = vmatprep.subr.mxu0 0.0
    %1269 = vmatpush1.msra.mxu0 0.0
    %1270 = vmatprep.subr.mxu0 0.0
    %1271 = vmatpush1.msra.mxu0 0.0
    %1272 = vmatprep.subr.mxu0 0.0
    %1273 = vmatpush1.msra.mxu0 0.0
    %1274 = vmatprep.subr.mxu0 0.0
    %1275 = vmatpush1.msra.mxu0 0.0
    %1276 = vmatprep.subr.mxu0 0.0
    %1277 = vmatpush1.msra.mxu0 0.0
    %1278 = vmatprep.subr.mxu0 0.0
    %1279 = vmatpush1.msra.mxu0 0.0
    %1280 = vmatprep.subr.mxu0 0.0
    %1281 = vmatpush1.msra.mxu0 0.0
    %1282 = vmatprep.subr.mxu0 0.0
    %1283 = vmatpush1.msra.mxu0 0.0
    %1284 = vmatprep.mubr.f32.mxu0 0.0
    %1285 = vmatmul.mubr.f32.gmra.mrb[0].mxu0 %v1218
    %v1286 = vpop.f32.mrb[0].mxu0
    %v1287 = vadd.f32 %v911, %v1286
    %v1288 = vpop.f32.mrb[0].mxu0
    %1289 = vdwg.mxu0
    %v1290 = vadd.f32 %v612, %v1287
    %v1291 = vxor.u32 %v1290, 2147483648
    %v1292 = vmul.f32 %v1291, 1.442695
    %v1293 = vpow.pop %v1292
    %v1294 = vadd.f32 %v1293, 1.0
    %v1295 = vrcp.pop %v1294
    %v1296 = vmul.f32 1.0, %v1295
    %1298 = vrot.lane.b32.xlu0 %v1287, 64
    %v1299 = vpop.permute.xlu0 %1298
    %v1301 = vmul.f32 %v1296, %v1299
    %1303 = vrot.lane.b32.xlu0 %v1301, 64
    %v1304 = vpop.permute.xlu0 %1303
    %v1306 = vadd.f32 %v612, %v1304
    %v1307 = vtanh.pop %v1306
    %v1308 = vsub.f32 1.0, %v1296
    %1310 = vrot.lane.b32.xlu0 %v1307, 96
    %v1311 = vpop.permute.xlu0 %1310
    %v1313 = vmul.f32 %v1308, %v1311
    %v1314 = vmul.f32 %v1296, %v1214
    %v1315 = vadd.f32 %v1313, %v1314
    %1317 = vrot.lane.b32.xlu0 %v1315, 96
    %v1318 = vpop.permute.xlu0 %1317
    %v1319 = vsel %vm913, %v1318, 0
    %1321 = vmatprep.subr.mxu0 0.0
    %1322 = vmatpush1.msra.mxu0 %v306
    %1323 = vmatprep.subr.mxu0 0.0
    %1324 = vmatpush1.msra.mxu0 %v307
    %1325 = vmatprep.subr.mxu0 0.0
    %1326 = vmatpush1.msra.mxu0 %v308
    %1327 = vmatprep.subr.mxu0 0.0
    %1328 = vmatpush1.msra.mxu0 %v309
    %1329 = vmatprep.subr.mxu0 0.0
    %1330 = vmatpush1.msra.mxu0 0.0
    %1331 = vmatprep.subr.mxu0 0.0
    %1332 = vmatpush1.msra.mxu0 0.0
    %1333 = vmatprep.subr.mxu0 0.0
    %1334 = vmatpush1.msra.mxu0 0.0
    %1335 = vmatprep.subr.mxu0 0.0
    %1336 = vmatpush1.msra.mxu0 0.0
    %1337 = vmatprep.subr.mxu0 0.0
    %1338 = vmatpush1.msra.mxu0 0.0
    %1339 = vmatprep.subr.mxu0 0.0
    %1340 = vmatpush1.msra.mxu0 0.0
    %1341 = vmatprep.subr.mxu0 0.0
    %1342 = vmatpush1.msra.mxu0 0.0
    %1343 = vmatprep.subr.mxu0 0.0
    %1344 = vmatpush1.msra.mxu0 0.0
    %1345 = vmatprep.subr.mxu0 0.0
    %1346 = vmatpush1.msra.mxu0 0.0
    %1347 = vmatprep.subr.mxu0 0.0
    %1348 = vmatpush1.msra.mxu0 0.0
    %1349 = vmatprep.subr.mxu0 0.0
    %1350 = vmatpush1.msra.mxu0 0.0
    %1351 = vmatprep.subr.mxu0 0.0
    %1352 = vmatpush1.msra.mxu0 0.0
    %1353 = vmatprep.subr.mxu0 0.0
    %1354 = vmatpush1.msra.mxu0 0.0
    %1355 = vmatprep.subr.mxu0 0.0
    %1356 = vmatpush1.msra.mxu0 0.0
    %1357 = vmatprep.subr.mxu0 0.0
    %1358 = vmatpush1.msra.mxu0 0.0
    %1359 = vmatprep.subr.mxu0 0.0
    %1360 = vmatpush1.msra.mxu0 0.0
    %1361 = vmatprep.subr.mxu0 0.0
    %1362 = vmatpush1.msra.mxu0 0.0
    %1363 = vmatprep.subr.mxu0 0.0
    %1364 = vmatpush1.msra.mxu0 0.0
    %1365 = vmatprep.subr.mxu0 0.0
    %1366 = vmatpush1.msra.mxu0 0.0
    %1367 = vmatprep.subr.mxu0 0.0
    %1368 = vmatpush1.msra.mxu0 0.0
    %1369 = vmatprep.subr.mxu0 0.0
    %1370 = vmatpush1.msra.mxu0 0.0
    %1371 = vmatprep.subr.mxu0 0.0
    %1372 = vmatpush1.msra.mxu0 0.0
    %1373 = vmatprep.subr.mxu0 0.0
    %1374 = vmatpush1.msra.mxu0 0.0
    %1375 = vmatprep.subr.mxu0 0.0
    %1376 = vmatpush1.msra.mxu0 0.0
    %1377 = vmatprep.subr.mxu0 0.0
    %1378 = vmatpush1.msra.mxu0 0.0
    %1379 = vmatprep.subr.mxu0 0.0
    %1380 = vmatpush1.msra.mxu0 0.0
    %1381 = vmatprep.subr.mxu0 0.0
    %1382 = vmatpush1.msra.mxu0 0.0
    %1383 = vmatprep.subr.mxu0 0.0
    %1384 = vmatpush1.msra.mxu0 0.0
    %1385 = vmatprep.mubr.f32.mxu0 0.0
    %1386 = vmatmul.mubr.f32.gmra.mrb[0].mxu0 %v1319
    %v1387 = vpop.f32.mrb[0].mxu0
    %v1388 = vadd.f32 %v911, %v1387
    %v1389 = vpop.f32.mrb[0].mxu0
    %1390 = vdwg.mxu0
    %v1391 = vadd.f32 %v685, %v1388
    %v1392 = vxor.u32 %v1391, 2147483648
    %v1393 = vmul.f32 %v1392, 1.442695
    %v1394 = vpow.pop %v1393
    %v1395 = vadd.f32 %v1394, 1.0
    %v1396 = vrcp.pop %v1395
    %v1397 = vmul.f32 1.0, %v1396
    %1399 = vrot.lane.b32.xlu0 %v1388, 64
    %v1400 = vpop.permute.xlu0 %1399
    %v1402 = vmul.f32 %v1397, %v1400
    %1404 = vrot.lane.b32.xlu0 %v1402, 64
    %v1405 = vpop.permute.xlu0 %1404
    %v1407 = vadd.f32 %v685, %v1405
    %v1408 = vtanh.pop %v1407
    %v1409 = vsub.f32 1.0, %v1397
    %1411 = vrot.lane.b32.xlu0 %v1408, 96
    %v1412 = vpop.permute.xlu0 %1411
    %v1414 = vmul.f32 %v1409, %v1412
    %v1415 = vmul.f32 %v1397, %v1315
    %v1416 = vadd.f32 %v1414, %v1415
    %1418 = vrot.lane.b32.xlu0 %v1416, 96
    %v1419 = vpop.permute.xlu0 %1418
    %v1420 = vsel %vm913, %v1419, 0
    %1422 = vmatprep.subr.mxu0 0.0
    %1423 = vmatpush1.msra.mxu0 %v306
    %1424 = vmatprep.subr.mxu0 0.0
    %1425 = vmatpush1.msra.mxu0 %v307
    %1426 = vmatprep.subr.mxu0 0.0
    %1427 = vmatpush1.msra.mxu0 %v308
    %1428 = vmatprep.subr.mxu0 0.0
    %1429 = vmatpush1.msra.mxu0 %v309
    %1430 = vmatprep.subr.mxu0 0.0
    %1431 = vmatpush1.msra.mxu0 0.0
    %1432 = vmatprep.subr.mxu0 0.0
    %1433 = vmatpush1.msra.mxu0 0.0
    %1434 = vmatprep.subr.mxu0 0.0
    %1435 = vmatpush1.msra.mxu0 0.0
    %1436 = vmatprep.subr.mxu0 0.0
    %1437 = vmatpush1.msra.mxu0 0.0
    %1438 = vmatprep.subr.mxu0 0.0
    %1439 = vmatpush1.msra.mxu0 0.0
    %1440 = vmatprep.subr.mxu0 0.0
    %1441 = vmatpush1.msra.mxu0 0.0
    %1442 = vmatprep.subr.mxu0 0.0
    %1443 = vmatpush1.msra.mxu0 0.0
    %1444 = vmatprep.subr.mxu0 0.0
    %1445 = vmatpush1.msra.mxu0 0.0
    %1446 = vmatprep.subr.mxu0 0.0
    %1447 = vmatpush1.msra.mxu0 0.0
    %1448 = vmatprep.subr.mxu0 0.0
    %1449 = vmatpush1.msra.mxu0 0.0
    %1450 = vmatprep.subr.mxu0 0.0
    %1451 = vmatpush1.msra.mxu0 0.0
    %1452 = vmatprep.subr.mxu0 0.0
    %1453 = vmatpush1.msra.mxu0 0.0
    %1454 = vmatprep.subr.mxu0 0.0
    %1455 = vmatpush1.msra.mxu0 0.0
    %1456 = vmatprep.subr.mxu0 0.0
    %1457 = vmatpush1.msra.mxu0 0.0
    %1458 = vmatprep.subr.mxu0 0.0
    %1459 = vmatpush1.msra.mxu0 0.0
    %1460 = vmatprep.subr.mxu0 0.0
    %1461 = vmatpush1.msra.mxu0 0.0
    %1462 = vmatprep.subr.mxu0 0.0
    %1463 = vmatpush1.msra.mxu0 0.0
    %1464 = vmatprep.subr.mxu0 0.0
    %1465 = vmatpush1.msra.mxu0 0.0
    %1466 = vmatprep.subr.mxu0 0.0
    %1467 = vmatpush1.msra.mxu0 0.0
    %1468 = vmatprep.subr.mxu0 0.0
    %1469 = vmatpush1.msra.mxu0 0.0
    %1470 = vmatprep.subr.mxu0 0.0
    %1471 = vmatpush1.msra.mxu0 0.0
    %1472 = vmatprep.subr.mxu0 0.0
    %1473 = vmatpush1.msra.mxu0 0.0
    %1474 = vmatprep.subr.mxu0 0.0
    %1475 = vmatpush1.msra.mxu0 0.0
    %1476 = vmatprep.subr.mxu0 0.0
    %1477 = vmatpush1.msra.mxu0 0.0
    %1478 = vmatprep.subr.mxu0 0.0
    %1479 = vmatpush1.msra.mxu0 0.0
    %1480 = vmatprep.subr.mxu0 0.0
    %1481 = vmatpush1.msra.mxu0 0.0
    %1482 = vmatprep.subr.mxu0 0.0
    %1483 = vmatpush1.msra.mxu0 0.0
    %1484 = vmatprep.subr.mxu0 0.0
    %1485 = vmatpush1.msra.mxu0 0.0
    %1486 = vmatprep.mubr.f32.mxu0 0.0
    %1487 = vmatmul.mubr.f32.gmra.mrb[0].mxu0 %v1420
    %v1488 = vpop.f32.mrb[0].mxu0
    %v1489 = vadd.f32 %v911, %v1488
    %v1490 = vpop.f32.mrb[0].mxu0
    %1491 = vdwg.mxu0
    %v1492 = vadd.f32 %v758, %v1489
    %v1493 = vxor.u32 %v1492, 2147483648
    %v1494 = vmul.f32 %v1493, 1.442695
    %v1495 = vpow.pop %v1494
    %v1496 = vadd.f32 %v1495, 1.0
    %v1497 = vrcp.pop %v1496
    %v1498 = vmul.f32 1.0, %v1497
    %1500 = vrot.lane.b32.xlu0 %v1489, 64
    %v1501 = vpop.permute.xlu0 %1500
    %v1503 = vmul.f32 %v1498, %v1501
    %1505 = vrot.lane.b32.xlu0 %v1503, 64
    %v1506 = vpop.permute.xlu0 %1505
    %v1508 = vadd.f32 %v758, %v1506
    %v1509 = vtanh.pop %v1508
    %v1510 = vsub.f32 1.0, %v1498
    %1512 = vrot.lane.b32.xlu0 %v1509, 96
    %v1513 = vpop.permute.xlu0 %1512
    %v1515 = vmul.f32 %v1510, %v1513
    %v1516 = vmul.f32 %v1498, %v1416
    %v1517 = vadd.f32 %v1515, %v1516
    %1519 = vrot.lane.b32.xlu0 %v1517, 96
    %v1520 = vpop.permute.xlu0 %1519
    %v1521 = vsel %vm913, %v1520, 0
    %1523 = vmatprep.subr.mxu0 0.0
    %1524 = vmatpush1.msra.mxu0 %v306
    %1525 = vmatprep.subr.mxu0 0.0
    %1526 = vmatpush1.msra.mxu0 %v307
    %1527 = vmatprep.subr.mxu0 0.0
    %1528 = vmatpush1.msra.mxu0 %v308
    %1529 = vmatprep.subr.mxu0 0.0
    %1530 = vmatpush1.msra.mxu0 %v309
    %1531 = vmatprep.subr.mxu0 0.0
    %1532 = vmatpush1.msra.mxu0 0.0
    %1533 = vmatprep.subr.mxu0 0.0
    %1534 = vmatpush1.msra.mxu0 0.0
    %1535 = vmatprep.subr.mxu0 0.0
    %1536 = vmatpush1.msra.mxu0 0.0
    %1537 = vmatprep.subr.mxu0 0.0
    %1538 = vmatpush1.msra.mxu0 0.0
    %1539 = vmatprep.subr.mxu0 0.0
    %1540 = vmatpush1.msra.mxu0 0.0
    %1541 = vmatprep.subr.mxu0 0.0
    %1542 = vmatpush1.msra.mxu0 0.0
    %1543 = vmatprep.subr.mxu0 0.0
    %1544 = vmatpush1.msra.mxu0 0.0
    %1545 = vmatprep.subr.mxu0 0.0
    %1546 = vmatpush1.msra.mxu0 0.0
    %1547 = vmatprep.subr.mxu0 0.0
    %1548 = vmatpush1.msra.mxu0 0.0
    %1549 = vmatprep.subr.mxu0 0.0
    %1550 = vmatpush1.msra.mxu0 0.0
    %1551 = vmatprep.subr.mxu0 0.0
    %1552 = vmatpush1.msra.mxu0 0.0
    %1553 = vmatprep.subr.mxu0 0.0
    %1554 = vmatpush1.msra.mxu0 0.0
    %1555 = vmatprep.subr.mxu0 0.0
    %1556 = vmatpush1.msra.mxu0 0.0
    %1557 = vmatprep.subr.mxu0 0.0
    %1558 = vmatpush1.msra.mxu0 0.0
    %1559 = vmatprep.subr.mxu0 0.0
    %1560 = vmatpush1.msra.mxu0 0.0
    %1561 = vmatprep.subr.mxu0 0.0
    %1562 = vmatpush1.msra.mxu0 0.0
    %1563 = vmatprep.subr.mxu0 0.0
    %1564 = vmatpush1.msra.mxu0 0.0
    %1565 = vmatprep.subr.mxu0 0.0
    %1566 = vmatpush1.msra.mxu0 0.0
    %1567 = vmatprep.subr.mxu0 0.0
    %1568 = vmatpush1.msra.mxu0 0.0
    %1569 = vmatprep.subr.mxu0 0.0
    %1570 = vmatpush1.msra.mxu0 0.0
    %1571 = vmatprep.subr.mxu0 0.0
    %1572 = vmatpush1.msra.mxu0 0.0
    %1573 = vmatprep.subr.mxu0 0.0
    %1574 = vmatpush1.msra.mxu0 0.0
    %1575 = vmatprep.subr.mxu0 0.0
    %1576 = vmatpush1.msra.mxu0 0.0
    %1577 = vmatprep.subr.mxu0 0.0
    %1578 = vmatpush1.msra.mxu0 0.0
    %1579 = vmatprep.subr.mxu0 0.0
    %1580 = vmatpush1.msra.mxu0 0.0
    %1581 = vmatprep.subr.mxu0 0.0
    %1582 = vmatpush1.msra.mxu0 0.0
    %1583 = vmatprep.subr.mxu0 0.0
    %1584 = vmatpush1.msra.mxu0 0.0
    %1585 = vmatprep.subr.mxu0 0.0
    %1586 = vmatpush1.msra.mxu0 0.0
    %1587 = vmatprep.mubr.f32.mxu0 0.0
    %1588 = vmatmul.mubr.f32.gmra.mrb[0].mxu0 %v1521
    %v1589 = vpop.f32.mrb[0].mxu0
    %v1590 = vadd.f32 %v911, %v1589
    %v1591 = vpop.f32.mrb[0].mxu0
    %1592 = vdwg.mxu0
    %v1593 = vadd.f32 %v831, %v1590
    %v1594 = vxor.u32 %v1593, 2147483648
    %v1595 = vmul.f32 %v1594, 1.442695
    %v1596 = vpow.pop %v1595
    %v1597 = vadd.f32 %v1596, 1.0
    %v1598 = vrcp.pop %v1597
    %v1599 = vmul.f32 1.0, %v1598
    %1601 = vrot.lane.b32.xlu0 %v1590, 64
    %v1602 = vpop.permute.xlu0 %1601
    %v1604 = vmul.f32 %v1599, %v1602
    %1606 = vrot.lane.b32.xlu0 %v1604, 64
    %v1607 = vpop.permute.xlu0 %1606
    %v1609 = vadd.f32 %v831, %v1607
    %v1610 = vtanh.pop %v1609
    %v1611 = vsub.f32 1.0, %v1599
    %1613 = vrot.lane.b32.xlu0 %v1610, 96
    %v1614 = vpop.permute.xlu0 %1613
    %v1616 = vmul.f32 %v1611, %v1614
    %v1617 = vmul.f32 %v1599, %v1517
    %v1618 = vadd.f32 %v1616, %v1617
    %1620 = vrot.lane.b32.xlu0 %v1618, 96
    %v1621 = vpop.permute.xlu0 %1620
    %v1622 = vsel %vm913, %v1621, 0
    %1624 = vmatprep.subr.mxu0 0.0
    %1625 = vmatpush1.msra.mxu0 %v306
    %1626 = vmatprep.subr.mxu0 0.0
    %1627 = vmatpush1.msra.mxu0 %v307
    %1628 = vmatprep.subr.mxu0 0.0
    %1629 = vmatpush1.msra.mxu0 %v308
    %1630 = vmatprep.subr.mxu0 0.0
    %1631 = vmatpush1.msra.mxu0 %v309
    %1632 = vmatprep.subr.mxu0 0.0
    %1633 = vmatpush1.msra.mxu0 0.0
    %1634 = vmatprep.subr.mxu0 0.0
    %1635 = vmatpush1.msra.mxu0 0.0
    %1636 = vmatprep.subr.mxu0 0.0
    %1637 = vmatpush1.msra.mxu0 0.0
    %1638 = vmatprep.subr.mxu0 0.0
    %1639 = vmatpush1.msra.mxu0 0.0
    %1640 = vmatprep.subr.mxu0 0.0
    %1641 = vmatpush1.msra.mxu0 0.0
    %1642 = vmatprep.subr.mxu0 0.0
    %1643 = vmatpush1.msra.mxu0 0.0
    %1644 = vmatprep.subr.mxu0 0.0
    %1645 = vmatpush1.msra.mxu0 0.0
    %1646 = vmatprep.subr.mxu0 0.0
    %1647 = vmatpush1.msra.mxu0 0.0
    %1648 = vmatprep.subr.mxu0 0.0
    %1649 = vmatpush1.msra.mxu0 0.0
    %1650 = vmatprep.subr.mxu0 0.0
    %1651 = vmatpush1.msra.mxu0 0.0
    %1652 = vmatprep.subr.mxu0 0.0
    %1653 = vmatpush1.msra.mxu0 0.0
    %1654 = vmatprep.subr.mxu0 0.0
    %1655 = vmatpush1.msra.mxu0 0.0
    %1656 = vmatprep.subr.mxu0 0.0
    %1657 = vmatpush1.msra.mxu0 0.0
    %1658 = vmatprep.subr.mxu0 0.0
    %1659 = vmatpush1.msra.mxu0 0.0
    %1660 = vmatprep.subr.mxu0 0.0
    %1661 = vmatpush1.msra.mxu0 0.0
    %1662 = vmatprep.subr.mxu0 0.0
    %1663 = vmatpush1.msra.mxu0 0.0
    %1664 = vmatprep.subr.mxu0 0.0
    %1665 = vmatpush1.msra.mxu0 0.0
    %1666 = vmatprep.subr.mxu0 0.0
    %1667 = vmatpush1.msra.mxu0 0.0
    %1668 = vmatprep.subr.mxu0 0.0
    %1669 = vmatpush1.msra.mxu0 0.0
    %1670 = vmatprep.subr.mxu0 0.0
    %1671 = vmatpush1.msra.mxu0 0.0
    %1672 = vmatprep.subr.mxu0 0.0
    %1673 = vmatpush1.msra.mxu0 0.0
    %1674 = vmatprep.subr.mxu0 0.0
    %1675 = vmatpush1.msra.mxu0 0.0
    %1676 = vmatprep.subr.mxu0 0.0
    %1677 = vmatpush1.msra.mxu0 0.0
    %1678 = vmatprep.subr.mxu0 0.0
    %1679 = vmatpush1.msra.mxu0 0.0
    %1680 = vmatprep.subr.mxu0 0.0
    %1681 = vmatpush1.msra.mxu0 0.0
    %1682 = vmatprep.subr.mxu0 0.0
    %1683 = vmatpush1.msra.mxu0 0.0
    %1684 = vmatprep.subr.mxu0 0.0
    %1685 = vmatpush1.msra.mxu0 0.0
    %1686 = vmatprep.subr.mxu0 0.0
    %1687 = vmatpush1.msra.mxu0 0.0
    %1688 = vmatprep.mubr.f32.mxu0 0.0
    %1689 = vmatmul.mubr.f32.gmra.mrb[0].mxu0 %v1622
    %v1690 = vpop.f32.mrb[0].mxu0
    %v1691 = vadd.f32 %v911, %v1690
    %v1692 = vpop.f32.mrb[0].mxu0
    %1693 = vdwg.mxu0
    %v1694 = vadd.f32 %v904, %v1691
    %v1695 = vxor.u32 %v1694, 2147483648
    %v1696 = vmul.f32 %v1695, 1.442695
    %v1697 = vpow.pop %v1696
    %v1698 = vadd.f32 %v1697, 1.0
    %v1699 = vrcp.pop %v1698
    %v1700 = vmul.f32 1.0, %v1699
    %1702 = vrot.lane.b32.xlu0 %v1691, 64
    %v1703 = vpop.permute.xlu0 %1702
    %v1705 = vmul.f32 %v1700, %v1703
    %1707 = vrot.lane.b32.xlu0 %v1705, 64
    %v1708 = vpop.permute.xlu0 %1707
    %v1710 = vadd.f32 %v904, %v1708
    %v1711 = vtanh.pop %v1710
    %v1712 = vsub.f32 1.0, %v1700
    %1714 = vrot.lane.b32.xlu0 %v1711, 96
    %v1715 = vpop.permute.xlu0 %1714
    %v1717 = vmul.f32 %v1712, %v1715
    %v1718 = vmul.f32 %v1700, %v1618
    %v1719 = vadd.f32 %v1717, %v1718
    %v1720 = vld [vmem:[#allocation10] sm:$0xf]
    %v1721 = vld [vmem:[#allocation11] sm:$0xff]
    %v1722 = vld [vmem:[#allocation11 + $0x8] sm:$0xff]
    %v1723 = vld [vmem:[#allocation11 + $0x10] sm:$0xff]
    %v1724 = vld [vmem:[#allocation11 + $0x18] sm:$0xff]
    %v1725 = vld [vmem:[#allocation13] sm:$0x1]
    %v1726 = vld [vmem:[#allocation14] sm:$0x1]
    %v1728 = vlaneseq
    %v1729 = vshrl.u32 %v1728, 7
    %v1730 = vsub.s32 0, %v1729
    %v1731 = vrot.slane %v1725, %v1730
    %v1734 = vsel %vm322, %v1720, 0
    %1736 = vmatprep.subr.mxu0 0.0
    %1737 = vmatpush1.msra.mxu0 %v1734
    %1738 = vmatprep.subr.mxu0 0.0
    %1739 = vmatpush1.msra.mxu0 0.0
    %1740 = vmatprep.subr.mxu0 0.0
    %1741 = vmatpush1.msra.mxu0 0.0
    %1742 = vmatprep.subr.mxu0 0.0
    %1743 = vmatpush1.msra.mxu0 0.0
    %1744 = vmatprep.subr.mxu0 0.0
    %1745 = vmatpush1.msra.mxu0 0.0
    %1746 = vmatprep.subr.mxu0 0.0
    %1747 = vmatpush1.msra.mxu0 0.0
    %1748 = vmatprep.subr.mxu0 0.0
    %1749 = vmatpush1.msra.mxu0 0.0
    %1750 = vmatprep.subr.mxu0 0.0
    %1751 = vmatpush1.msra.mxu0 0.0
    %1752 = vmatprep.subr.mxu0 0.0
    %1753 = vmatpush1.msra.mxu0 0.0
    %1754 = vmatprep.subr.mxu0 0.0
    %1755 = vmatpush1.msra.mxu0 0.0
    %1756 = vmatprep.subr.mxu0 0.0
    %1757 = vmatpush1.msra.mxu0 0.0
    %1758 = vmatprep.subr.mxu0 0.0
    %1759 = vmatpush1.msra.mxu0 0.0
    %1760 = vmatprep.subr.mxu0 0.0
    %1761 = vmatpush1.msra.mxu0 0.0
    %1762 = vmatprep.subr.mxu0 0.0
    %1763 = vmatpush1.msra.mxu0 0.0
    %1764 = vmatprep.subr.mxu0 0.0
    %1765 = vmatpush1.msra.mxu0 0.0
    %1766 = vmatprep.subr.mxu0 0.0
    %1767 = vmatpush1.msra.mxu0 0.0
    %1768 = vmatprep.subr.mxu0 0.0
    %1769 = vmatpush1.msra.mxu0 0.0
    %1770 = vmatprep.subr.mxu0 0.0
    %1771 = vmatpush1.msra.mxu0 0.0
    %1772 = vmatprep.subr.mxu0 0.0
    %1773 = vmatpush1.msra.mxu0 0.0
    %1774 = vmatprep.subr.mxu0 0.0
    %1775 = vmatpush1.msra.mxu0 0.0
    %1776 = vmatprep.subr.mxu0 0.0
    %1777 = vmatpush1.msra.mxu0 0.0
    %1778 = vmatprep.subr.mxu0 0.0
    %1779 = vmatpush1.msra.mxu0 0.0
    %1780 = vmatprep.subr.mxu0 0.0
    %1781 = vmatpush1.msra.mxu0 0.0
    %1782 = vmatprep.subr.mxu0 0.0
    %1783 = vmatpush1.msra.mxu0 0.0
    %1784 = vmatprep.subr.mxu0 0.0
    %1785 = vmatpush1.msra.mxu0 0.0
    %1786 = vmatprep.subr.mxu0 0.0
    %1787 = vmatpush1.msra.mxu0 0.0
    %1788 = vmatprep.subr.mxu0 0.0
    %1789 = vmatpush1.msra.mxu0 0.0
    %1790 = vmatprep.subr.mxu0 0.0
    %1791 = vmatpush1.msra.mxu0 0.0
    %1792 = vmatprep.subr.mxu0 0.0
    %1793 = vmatpush1.msra.mxu0 0.0
    %1794 = vmatprep.subr.mxu0 0.0
    %1795 = vmatpush1.msra.mxu0 0.0
    %1796 = vmatprep.subr.mxu0 0.0
    %1797 = vmatpush1.msra.mxu0 0.0
    %1798 = vmatprep.subr.mxu0 0.0
    %1799 = vmatpush1.msra.mxu0 0.0
    %1800 = vmatprep.mubr.f32.mxu0 0.0
    %1801 = vmatmul.mubr.f32.gmra.mrb[0].mxu0 %v320
    %v1802 = vpop.f32.mrb[0].mxu0
    %v1803 = vadd.f32 %v1731, %v1802
    %v1804 = vpop.f32.mrb[0].mxu0
    %1805 = vdwg.mxu0
    %1806 = vmatprep.subr.mxu0 0.0
    %1807 = vmatpush1.msra.mxu0 %v1734
    %1808 = vmatprep.subr.mxu0 0.0
    %1809 = vmatpush1.msra.mxu0 0.0
    %1810 = vmatprep.subr.mxu0 0.0
    %1811 = vmatpush1.msra.mxu0 0.0
    %1812 = vmatprep.subr.mxu0 0.0
    %1813 = vmatpush1.msra.mxu0 0.0
    %1814 = vmatprep.subr.mxu0 0.0
    %1815 = vmatpush1.msra.mxu0 0.0
    %1816 = vmatprep.subr.mxu0 0.0
    %1817 = vmatpush1.msra.mxu0 0.0
    %1818 = vmatprep.subr.mxu0 0.0
    %1819 = vmatpush1.msra.mxu0 0.0
    %1820 = vmatprep.subr.mxu0 0.0
    %1821 = vmatpush1.msra.mxu0 0.0
    %1822 = vmatprep.subr.mxu0 0.0
    %1823 = vmatpush1.msra.mxu0 0.0
    %1824 = vmatprep.subr.mxu0 0.0
    %1825 = vmatpush1.msra.mxu0 0.0
    %1826 = vmatprep.subr.mxu0 0.0
    %1827 = vmatpush1.msra.mxu0 0.0
    %1828 = vmatprep.subr.mxu0 0.0
    %1829 = vmatpush1.msra.mxu0 0.0
    %1830 = vmatprep.subr.mxu0 0.0
    %1831 = vmatpush1.msra.mxu0 0.0
    %1832 = vmatprep.subr.mxu0 0.0
    %1833 = vmatpush1.msra.mxu0 0.0
    %1834 = vmatprep.subr.mxu0 0.0
    %1835 = vmatpush1.msra.mxu0 0.0
    %1836 = vmatprep.subr.mxu0 0.0
    %1837 = vmatpush1.msra.mxu0 0.0
    %1838 = vmatprep.subr.mxu0 0.0
    %1839 = vmatpush1.msra.mxu0 0.0
    %1840 = vmatprep.subr.mxu0 0.0
    %1841 = vmatpush1.msra.mxu0 0.0
    %1842 = vmatprep.subr.mxu0 0.0
    %1843 = vmatpush1.msra.mxu0 0.0
    %1844 = vmatprep.subr.mxu0 0.0
    %1845 = vmatpush1.msra.mxu0 0.0
    %1846 = vmatprep.subr.mxu0 0.0
    %1847 = vmatpush1.msra.mxu0 0.0
    %1848 = vmatprep.subr.mxu0 0.0
    %1849 = vmatpush1.msra.mxu0 0.0
    %1850 = vmatprep.subr.mxu0 0.0
    %1851 = vmatpush1.msra.mxu0 0.0
    %1852 = vmatprep.subr.mxu0 0.0
    %1853 = vmatpush1.msra.mxu0 0.0
    %1854 = vmatprep.subr.mxu0 0.0
    %1855 = vmatpush1.msra.mxu0 0.0
    %1856 = vmatprep.subr.mxu0 0.0
    %1857 = vmatpush1.msra.mxu0 0.0
    %1858 = vmatprep.subr.mxu0 0.0
    %1859 = vmatpush1.msra.mxu0 0.0
    %1860 = vmatprep.subr.mxu0 0.0
    %1861 = vmatpush1.msra.mxu0 0.0
    %1862 = vmatprep.subr.mxu0 0.0
    %1863 = vmatpush1.msra.mxu0 0.0
    %1864 = vmatprep.subr.mxu0 0.0
    %1865 = vmatpush1.msra.mxu0 0.0
    %1866 = vmatprep.subr.mxu0 0.0
    %1867 = vmatpush1.msra.mxu0 0.0
    %1868 = vmatprep.subr.mxu0 0.0
    %1869 = vmatpush1.msra.mxu0 0.0
    %1870 = vmatprep.mubr.f32.mxu0 0.0
    %1871 = vmatmul.mubr.f32.gmra.mrb[0].mxu0 %v397
    %v1872 = vpop.f32.mrb[0].mxu0
    %v1873 = vadd.f32 %v1731, %v1872
    %v1874 = vpop.f32.mrb[0].mxu0
    %1875 = vdwg.mxu0
    %1876 = vmatprep.subr.mxu0 0.0
    %1877 = vmatpush1.msra.mxu0 %v1734
    %1878 = vmatprep.subr.mxu0 0.0
    %1879 = vmatpush1.msra.mxu0 0.0
    %1880 = vmatprep.subr.mxu0 0.0
    %1881 = vmatpush1.msra.mxu0 0.0
    %1882 = vmatprep.subr.mxu0 0.0
    %1883 = vmatpush1.msra.mxu0 0.0
    %1884 = vmatprep.subr.mxu0 0.0
    %1885 = vmatpush1.msra.mxu0 0.0
    %1886 = vmatprep.subr.mxu0 0.0
    %1887 = vmatpush1.msra.mxu0 0.0
    %1888 = vmatprep.subr.mxu0 0.0
    %1889 = vmatpush1.msra.mxu0 0.0
    %1890 = vmatprep.subr.mxu0 0.0
    %1891 = vmatpush1.msra.mxu0 0.0
    %1892 = vmatprep.subr.mxu0 0.0
    %1893 = vmatpush1.msra.mxu0 0.0
    %1894 = vmatprep.subr.mxu0 0.0
    %1895 = vmatpush1.msra.mxu0 0.0
    %1896 = vmatprep.subr.mxu0 0.0
    %1897 = vmatpush1.msra.mxu0 0.0
    %1898 = vmatprep.subr.mxu0 0.0
    %1899 = vmatpush1.msra.mxu0 0.0
    %1900 = vmatprep.subr.mxu0 0.0
    %1901 = vmatpush1.msra.mxu0 0.0
    %1902 = vmatprep.subr.mxu0 0.0
    %1903 = vmatpush1.msra.mxu0 0.0
    %1904 = vmatprep.subr.mxu0 0.0
    %1905 = vmatpush1.msra.mxu0 0.0
    %1906 = vmatprep.subr.mxu0 0.0
    %1907 = vmatpush1.msra.mxu0 0.0
    %1908 = vmatprep.subr.mxu0 0.0
    %1909 = vmatpush1.msra.mxu0 0.0
    %1910 = vmatprep.subr.mxu0 0.0
    %1911 = vmatpush1.msra.mxu0 0.0
    %1912 = vmatprep.subr.mxu0 0.0
    %1913 = vmatpush1.msra.mxu0 0.0
    %1914 = vmatprep.subr.mxu0 0.0
    %1915 = vmatpush1.msra.mxu0 0.0
    %1916 = vmatprep.subr.mxu0 0.0
    %1917 = vmatpush1.msra.mxu0 0.0
    %1918 = vmatprep.subr.mxu0 0.0
    %1919 = vmatpush1.msra.mxu0 0.0
    %1920 = vmatprep.subr.mxu0 0.0
    %1921 = vmatpush1.msra.mxu0 0.0
    %1922 = vmatprep.subr.mxu0 0.0
    %1923 = vmatpush1.msra.mxu0 0.0
    %1924 = vmatprep.subr.mxu0 0.0
    %1925 = vmatpush1.msra.mxu0 0.0
    %1926 = vmatprep.subr.mxu0 0.0
    %1927 = vmatpush1.msra.mxu0 0.0
    %1928 = vmatprep.subr.mxu0 0.0
    %1929 = vmatpush1.msra.mxu0 0.0
    %1930 = vmatprep.subr.mxu0 0.0
    %1931 = vmatpush1.msra.mxu0 0.0
    %1932 = vmatprep.subr.mxu0 0.0
    %1933 = vmatpush1.msra.mxu0 0.0
    %1934 = vmatprep.subr.mxu0 0.0
    %1935 = vmatpush1.msra.mxu0 0.0
    %1936 = vmatprep.subr.mxu0 0.0
    %1937 = vmatpush1.msra.mxu0 0.0
    %1938 = vmatprep.subr.mxu0 0.0
    %1939 = vmatpush1.msra.mxu0 0.0
    %1940 = vmatprep.mubr.f32.mxu0 0.0
    %1941 = vmatmul.mubr.f32.gmra.mrb[0].mxu0 %v470
    %v1942 = vpop.f32.mrb[0].mxu0
    %v1943 = vadd.f32 %v1731, %v1942
    %v1944 = vpop.f32.mrb[0].mxu0
    %1945 = vdwg.mxu0
    %1946 = vmatprep.subr.mxu0 0.0
    %1947 = vmatpush1.msra.mxu0 %v1734
    %1948 = vmatprep.subr.mxu0 0.0
    %1949 = vmatpush1.msra.mxu0 0.0
    %1950 = vmatprep.subr.mxu0 0.0
    %1951 = vmatpush1.msra.mxu0 0.0
    %1952 = vmatprep.subr.mxu0 0.0
    %1953 = vmatpush1.msra.mxu0 0.0
    %1954 = vmatprep.subr.mxu0 0.0
    %1955 = vmatpush1.msra.mxu0 0.0
    %1956 = vmatprep.subr.mxu0 0.0
    %1957 = vmatpush1.msra.mxu0 0.0
    %1958 = vmatprep.subr.mxu0 0.0
    %1959 = vmatpush1.msra.mxu0 0.0
    %1960 = vmatprep.subr.mxu0 0.0
    %1961 = vmatpush1.msra.mxu0 0.0
    %1962 = vmatprep.subr.mxu0 0.0
    %1963 = vmatpush1.msra.mxu0 0.0
    %1964 = vmatprep.subr.mxu0 0.0
    %1965 = vmatpush1.msra.mxu0 0.0
    %1966 = vmatprep.subr.mxu0 0.0
    %1967 = vmatpush1.msra.mxu0 0.0
    %1968 = vmatprep.subr.mxu0 0.0
    %1969 = vmatpush1.msra.mxu0 0.0
    %1970 = vmatprep.subr.mxu0 0.0
    %1971 = vmatpush1.msra.mxu0 0.0
    %1972 = vmatprep.subr.mxu0 0.0
    %1973 = vmatpush1.msra.mxu0 0.0
    %1974 = vmatprep.subr.mxu0 0.0
    %1975 = vmatpush1.msra.mxu0 0.0
    %1976 = vmatprep.subr.mxu0 0.0
    %1977 = vmatpush1.msra.mxu0 0.0
    %1978 = vmatprep.subr.mxu0 0.0
    %1979 = vmatpush1.msra.mxu0 0.0
    %1980 = vmatprep.subr.mxu0 0.0
    %1981 = vmatpush1.msra.mxu0 0.0
    %1982 = vmatprep.subr.mxu0 0.0
    %1983 = vmatpush1.msra.mxu0 0.0
    %1984 = vmatprep.subr.mxu0 0.0
    %1985 = vmatpush1.msra.mxu0 0.0
    %1986 = vmatprep.subr.mxu0 0.0
    %1987 = vmatpush1.msra.mxu0 0.0
    %1988 = vmatprep.subr.mxu0 0.0
    %1989 = vmatpush1.msra.mxu0 0.0
    %1990 = vmatprep.subr.mxu0 0.0
    %1991 = vmatpush1.msra.mxu0 0.0
    %1992 = vmatprep.subr.mxu0 0.0
    %1993 = vmatpush1.msra.mxu0 0.0
    %1994 = vmatprep.subr.mxu0 0.0
    %1995 = vmatpush1.msra.mxu0 0.0
    %1996 = vmatprep.subr.mxu0 0.0
    %1997 = vmatpush1.msra.mxu0 0.0
    %1998 = vmatprep.subr.mxu0 0.0
    %1999 = vmatpush1.msra.mxu0 0.0
    %2000 = vmatprep.subr.mxu0 0.0
    %2001 = vmatpush1.msra.mxu0 0.0
    %2002 = vmatprep.subr.mxu0 0.0
    %2003 = vmatpush1.msra.mxu0 0.0
    %2004 = vmatprep.subr.mxu0 0.0
    %2005 = vmatpush1.msra.mxu0 0.0
    %2006 = vmatprep.subr.mxu0 0.0
    %2007 = vmatpush1.msra.mxu0 0.0
    %2008 = vmatprep.subr.mxu0 0.0
    %2009 = vmatpush1.msra.mxu0 0.0
    %2010 = vmatprep.mubr.f32.mxu0 0.0
    %2011 = vmatmul.mubr.f32.gmra.mrb[0].mxu0 %v543
    %v2012 = vpop.f32.mrb[0].mxu0
    %v2013 = vadd.f32 %v1731, %v2012
    %v2014 = vpop.f32.mrb[0].mxu0
    %2015 = vdwg.mxu0
    %2016 = vmatprep.subr.mxu0 0.0
    %2017 = vmatpush1.msra.mxu0 %v1734
    %2018 = vmatprep.subr.mxu0 0.0
    %2019 = vmatpush1.msra.mxu0 0.0
    %2020 = vmatprep.subr.mxu0 0.0
    %2021 = vmatpush1.msra.mxu0 0.0
    %2022 = vmatprep.subr.mxu0 0.0
    %2023 = vmatpush1.msra.mxu0 0.0
    %2024 = vmatprep.subr.mxu0 0.0
    %2025 = vmatpush1.msra.mxu0 0.0
    %2026 = vmatprep.subr.mxu0 0.0
    %2027 = vmatpush1.msra.mxu0 0.0
    %2028 = vmatprep.subr.mxu0 0.0
    %2029 = vmatpush1.msra.mxu0 0.0
    %2030 = vmatprep.subr.mxu0 0.0
    %2031 = vmatpush1.msra.mxu0 0.0
    %2032 = vmatprep.subr.mxu0 0.0
    %2033 = vmatpush1.msra.mxu0 0.0
    %2034 = vmatprep.subr.mxu0 0.0
    %2035 = vmatpush1.msra.mxu0 0.0
    %2036 = vmatprep.subr.mxu0 0.0
    %2037 = vmatpush1.msra.mxu0 0.0
    %2038 = vmatprep.subr.mxu0 0.0
    %2039 = vmatpush1.msra.mxu0 0.0
    %2040 = vmatprep.subr.mxu0 0.0
    %2041 = vmatpush1.msra.mxu0 0.0
    %2042 = vmatprep.subr.mxu0 0.0
    %2043 = vmatpush1.msra.mxu0 0.0
    %2044 = vmatprep.subr.mxu0 0.0
    %2045 = vmatpush1.msra.mxu0 0.0
    %2046 = vmatprep.subr.mxu0 0.0
    %2047 = vmatpush1.msra.mxu0 0.0
    %2048 = vmatprep.subr.mxu0 0.0
    %2049 = vmatpush1.msra.mxu0 0.0
    %2050 = vmatprep.subr.mxu0 0.0
    %2051 = vmatpush1.msra.mxu0 0.0
    %2052 = vmatprep.subr.mxu0 0.0
    %2053 = vmatpush1.msra.mxu0 0.0
    %2054 = vmatprep.subr.mxu0 0.0
    %2055 = vmatpush1.msra.mxu0 0.0
    %2056 = vmatprep.subr.mxu0 0.0
    %2057 = vmatpush1.msra.mxu0 0.0
    %2058 = vmatprep.subr.mxu0 0.0
    %2059 = vmatpush1.msra.mxu0 0.0
    %2060 = vmatprep.subr.mxu0 0.0
    %2061 = vmatpush1.msra.mxu0 0.0
    %2062 = vmatprep.subr.mxu0 0.0
    %2063 = vmatpush1.msra.mxu0 0.0
    %2064 = vmatprep.subr.mxu0 0.0
    %2065 = vmatpush1.msra.mxu0 0.0
    %2066 = vmatprep.subr.mxu0 0.0
    %2067 = vmatpush1.msra.mxu0 0.0
    %2068 = vmatprep.subr.mxu0 0.0
    %2069 = vmatpush1.msra.mxu0 0.0
    %2070 = vmatprep.subr.mxu0 0.0
    %2071 = vmatpush1.msra.mxu0 0.0
    %2072 = vmatprep.subr.mxu0 0.0
    %2073 = vmatpush1.msra.mxu0 0.0
    %2074 = vmatprep.subr.mxu0 0.0
    %2075 = vmatpush1.msra.mxu0 0.0
    %2076 = vmatprep.subr.mxu0 0.0
    %2077 = vmatpush1.msra.mxu0 0.0
    %2078 = vmatprep.subr.mxu0 0.0
    %2079 = vmatpush1.msra.mxu0 0.0
    %2080 = vmatprep.mubr.f32.mxu0 0.0
    %2081 = vmatmul.mubr.f32.gmra.mrb[0].mxu0 %v616
    %v2082 = vpop.f32.mrb[0].mxu0
    %v2083 = vadd.f32 %v1731, %v2082
    %v2084 = vpop.f32.mrb[0].mxu0
    %2085 = vdwg.mxu0
    %2086 = vmatprep.subr.mxu0 0.0
    %2087 = vmatpush1.msra.mxu0 %v1734
    %2088 = vmatprep.subr.mxu0 0.0
    %2089 = vmatpush1.msra.mxu0 0.0
    %2090 = vmatprep.subr.mxu0 0.0
    %2091 = vmatpush1.msra.mxu0 0.0
    %2092 = vmatprep.subr.mxu0 0.0
    %2093 = vmatpush1.msra.mxu0 0.0
    %2094 = vmatprep.subr.mxu0 0.0
    %2095 = vmatpush1.msra.mxu0 0.0
    %2096 = vmatprep.subr.mxu0 0.0
    %2097 = vmatpush1.msra.mxu0 0.0
    %2098 = vmatprep.subr.mxu0 0.0
    %2099 = vmatpush1.msra.mxu0 0.0
    %2100 = vmatprep.subr.mxu0 0.0
    %2101 = vmatpush1.msra.mxu0 0.0
    %2102 = vmatprep.subr.mxu0 0.0
    %2103 = vmatpush1.msra.mxu0 0.0
    %2104 = vmatprep.subr.mxu0 0.0
    %2105 = vmatpush1.msra.mxu0 0.0
    %2106 = vmatprep.subr.mxu0 0.0
    %2107 = vmatpush1.msra.mxu0 0.0
    %2108 = vmatprep.subr.mxu0 0.0
    %2109 = vmatpush1.msra.mxu0 0.0
    %2110 = vmatprep.subr.mxu0 0.0
    %2111 = vmatpush1.msra.mxu0 0.0
    %2112 = vmatprep.subr.mxu0 0.0
    %2113 = vmatpush1.msra.mxu0 0.0
    %2114 = vmatprep.subr.mxu0 0.0
    %2115 = vmatpush1.msra.mxu0 0.0
    %2116 = vmatprep.subr.mxu0 0.0
    %2117 = vmatpush1.msra.mxu0 0.0
    %2118 = vmatprep.subr.mxu0 0.0
    %2119 = vmatpush1.msra.mxu0 0.0
    %2120 = vmatprep.subr.mxu0 0.0
    %2121 = vmatpush1.msra.mxu0 0.0
    %2122 = vmatprep.subr.mxu0 0.0
    %2123 = vmatpush1.msra.mxu0 0.0
    %2124 = vmatprep.subr.mxu0 0.0
    %2125 = vmatpush1.msra.mxu0 0.0
    %2126 = vmatprep.subr.mxu0 0.0
    %2127 = vmatpush1.msra.mxu0 0.0
    %2128 = vmatprep.subr.mxu0 0.0
    %2129 = vmatpush1.msra.mxu0 0.0
    %2130 = vmatprep.subr.mxu0 0.0
    %2131 = vmatpush1.msra.mxu0 0.0
    %2132 = vmatprep.subr.mxu0 0.0
    %2133 = vmatpush1.msra.mxu0 0.0
    %2134 = vmatprep.subr.mxu0 0.0
    %2135 = vmatpush1.msra.mxu0 0.0
    %2136 = vmatprep.subr.mxu0 0.0
    %2137 = vmatpush1.msra.mxu0 0.0
    %2138 = vmatprep.subr.mxu0 0.0
    %2139 = vmatpush1.msra.mxu0 0.0
    %2140 = vmatprep.subr.mxu0 0.0
    %2141 = vmatpush1.msra.mxu0 0.0
    %2142 = vmatprep.subr.mxu0 0.0
    %2143 = vmatpush1.msra.mxu0 0.0
    %2144 = vmatprep.subr.mxu0 0.0
    %2145 = vmatpush1.msra.mxu0 0.0
    %2146 = vmatprep.subr.mxu0 0.0
    %2147 = vmatpush1.msra.mxu0 0.0
    %2148 = vmatprep.subr.mxu0 0.0
    %2149 = vmatpush1.msra.mxu0 0.0
    %2150 = vmatprep.mubr.f32.mxu0 0.0
    %2151 = vmatmul.mubr.f32.gmra.mrb[0].mxu0 %v689
    %v2152 = vpop.f32.mrb[0].mxu0
    %v2153 = vadd.f32 %v1731, %v2152
    %v2154 = vpop.f32.mrb[0].mxu0
    %2155 = vdwg.mxu0
    %2156 = vmatprep.subr.mxu0 0.0
    %2157 = vmatpush1.msra.mxu0 %v1734
    %2158 = vmatprep.subr.mxu0 0.0
    %2159 = vmatpush1.msra.mxu0 0.0
    %2160 = vmatprep.subr.mxu0 0.0
    %2161 = vmatpush1.msra.mxu0 0.0
    %2162 = vmatprep.subr.mxu0 0.0
    %2163 = vmatpush1.msra.mxu0 0.0
    %2164 = vmatprep.subr.mxu0 0.0
    %2165 = vmatpush1.msra.mxu0 0.0
    %2166 = vmatprep.subr.mxu0 0.0
    %2167 = vmatpush1.msra.mxu0 0.0
    %2168 = vmatprep.subr.mxu0 0.0
    %2169 = vmatpush1.msra.mxu0 0.0
    %2170 = vmatprep.subr.mxu0 0.0
    %2171 = vmatpush1.msra.mxu0 0.0
    %2172 = vmatprep.subr.mxu0 0.0
    %2173 = vmatpush1.msra.mxu0 0.0
    %2174 = vmatprep.subr.mxu0 0.0
    %2175 = vmatpush1.msra.mxu0 0.0
    %2176 = vmatprep.subr.mxu0 0.0
    %2177 = vmatpush1.msra.mxu0 0.0
    %2178 = vmatprep.subr.mxu0 0.0
    %2179 = vmatpush1.msra.mxu0 0.0
    %2180 = vmatprep.subr.mxu0 0.0
    %2181 = vmatpush1.msra.mxu0 0.0
    %2182 = vmatprep.subr.mxu0 0.0
    %2183 = vmatpush1.msra.mxu0 0.0
    %2184 = vmatprep.subr.mxu0 0.0
    %2185 = vmatpush1.msra.mxu0 0.0
    %2186 = vmatprep.subr.mxu0 0.0
    %2187 = vmatpush1.msra.mxu0 0.0
    %2188 = vmatprep.subr.mxu0 0.0
    %2189 = vmatpush1.msra.mxu0 0.0
    %2190 = vmatprep.subr.mxu0 0.0
    %2191 = vmatpush1.msra.mxu0 0.0
    %2192 = vmatprep.subr.mxu0 0.0
    %2193 = vmatpush1.msra.mxu0 0.0
    %2194 = vmatprep.subr.mxu0 0.0
    %2195 = vmatpush1.msra.mxu0 0.0
    %2196 = vmatprep.subr.mxu0 0.0
    %2197 = vmatpush1.msra.mxu0 0.0
    %2198 = vmatprep.subr.mxu0 0.0
    %2199 = vmatpush1.msra.mxu0 0.0
    %2200 = vmatprep.subr.mxu0 0.0
    %2201 = vmatpush1.msra.mxu0 0.0
    %2202 = vmatprep.subr.mxu0 0.0
    %2203 = vmatpush1.msra.mxu0 0.0
    %2204 = vmatprep.subr.mxu0 0.0
    %2205 = vmatpush1.msra.mxu0 0.0
    %2206 = vmatprep.subr.mxu0 0.0
    %2207 = vmatpush1.msra.mxu0 0.0
    %2208 = vmatprep.subr.mxu0 0.0
    %2209 = vmatpush1.msra.mxu0 0.0
    %2210 = vmatprep.subr.mxu0 0.0
    %2211 = vmatpush1.msra.mxu0 0.0
    %2212 = vmatprep.subr.mxu0 0.0
    %2213 = vmatpush1.msra.mxu0 0.0
    %2214 = vmatprep.subr.mxu0 0.0
    %2215 = vmatpush1.msra.mxu0 0.0
    %2216 = vmatprep.subr.mxu0 0.0
    %2217 = vmatpush1.msra.mxu0 0.0
    %2218 = vmatprep.subr.mxu0 0.0
    %2219 = vmatpush1.msra.mxu0 0.0
    %2220 = vmatprep.mubr.f32.mxu0 0.0
    %2221 = vmatmul.mubr.f32.gmra.mrb[0].mxu0 %v762
    %v2222 = vpop.f32.mrb[0].mxu0
    %v2223 = vadd.f32 %v1731, %v2222
    %v2224 = vpop.f32.mrb[0].mxu0
    %2225 = vdwg.mxu0
    %2226 = vmatprep.subr.mxu0 0.0
    %2227 = vmatpush1.msra.mxu0 %v1734
    %2228 = vmatprep.subr.mxu0 0.0
    %2229 = vmatpush1.msra.mxu0 0.0
    %2230 = vmatprep.subr.mxu0 0.0
    %2231 = vmatpush1.msra.mxu0 0.0
    %2232 = vmatprep.subr.mxu0 0.0
    %2233 = vmatpush1.msra.mxu0 0.0
    %2234 = vmatprep.subr.mxu0 0.0
    %2235 = vmatpush1.msra.mxu0 0.0
    %2236 = vmatprep.subr.mxu0 0.0
    %2237 = vmatpush1.msra.mxu0 0.0
    %2238 = vmatprep.subr.mxu0 0.0
    %2239 = vmatpush1.msra.mxu0 0.0
    %2240 = vmatprep.subr.mxu0 0.0
    %2241 = vmatpush1.msra.mxu0 0.0
    %2242 = vmatprep.subr.mxu0 0.0
    %2243 = vmatpush1.msra.mxu0 0.0
    %2244 = vmatprep.subr.mxu0 0.0
    %2245 = vmatpush1.msra.mxu0 0.0
    %2246 = vmatprep.subr.mxu0 0.0
    %2247 = vmatpush1.msra.mxu0 0.0
    %2248 = vmatprep.subr.mxu0 0.0
    %2249 = vmatpush1.msra.mxu0 0.0
    %2250 = vmatprep.subr.mxu0 0.0
    %2251 = vmatpush1.msra.mxu0 0.0
    %2252 = vmatprep.subr.mxu0 0.0
    %2253 = vmatpush1.msra.mxu0 0.0
    %2254 = vmatprep.subr.mxu0 0.0
    %2255 = vmatpush1.msra.mxu0 0.0
    %2256 = vmatprep.subr.mxu0 0.0
    %2257 = vmatpush1.msra.mxu0 0.0
    %2258 = vmatprep.subr.mxu0 0.0
    %2259 = vmatpush1.msra.mxu0 0.0
    %2260 = vmatprep.subr.mxu0 0.0
    %2261 = vmatpush1.msra.mxu0 0.0
    %2262 = vmatprep.subr.mxu0 0.0
    %2263 = vmatpush1.msra.mxu0 0.0
    %2264 = vmatprep.subr.mxu0 0.0
    %2265 = vmatpush1.msra.mxu0 0.0
    %2266 = vmatprep.subr.mxu0 0.0
    %2267 = vmatpush1.msra.mxu0 0.0
    %2268 = vmatprep.subr.mxu0 0.0
    %2269 = vmatpush1.msra.mxu0 0.0
    %2270 = vmatprep.subr.mxu0 0.0
    %2271 = vmatpush1.msra.mxu0 0.0
    %2272 = vmatprep.subr.mxu0 0.0
    %2273 = vmatpush1.msra.mxu0 0.0
    %2274 = vmatprep.subr.mxu0 0.0
    %2275 = vmatpush1.msra.mxu0 0.0
    %2276 = vmatprep.subr.mxu0 0.0
    %2277 = vmatpush1.msra.mxu0 0.0
    %2278 = vmatprep.subr.mxu0 0.0
    %2279 = vmatpush1.msra.mxu0 0.0
    %2280 = vmatprep.subr.mxu0 0.0
    %2281 = vmatpush1.msra.mxu0 0.0
    %2282 = vmatprep.subr.mxu0 0.0
    %2283 = vmatpush1.msra.mxu0 0.0
    %2284 = vmatprep.subr.mxu0 0.0
    %2285 = vmatpush1.msra.mxu0 0.0
    %2286 = vmatprep.subr.mxu0 0.0
    %2287 = vmatpush1.msra.mxu0 0.0
    %2288 = vmatprep.subr.mxu0 0.0
    %2289 = vmatpush1.msra.mxu0 0.0
    %2290 = vmatprep.mubr.f32.mxu0 0.0
    %2291 = vmatmul.mubr.f32.gmra.mrb[0].mxu0 %v835
    %v2292 = vpop.f32.mrb[0].mxu0
    %v2293 = vadd.f32 %v1731, %v2292
    %v2294 = vpop.f32.mrb[0].mxu0
    %2295 = vdwg.mxu0
    %v2297 = vlaneseq
    %v2298 = vshrl.u32 %v2297, 7
    %v2299 = vsub.s32 0, %v2298
    %v2300 = vrot.slane %v1726, %v2299
    %2302 = vmatprep.subr.mxu0 0.0
    %2303 = vmatpush1.msra.mxu0 %v1721
    %2304 = vmatprep.subr.mxu0 0.0
    %2305 = vmatpush1.msra.mxu0 %v1722
    %2306 = vmatprep.subr.mxu0 0.0
    %2307 = vmatpush1.msra.mxu0 %v1723
    %2308 = vmatprep.subr.mxu0 0.0
    %2309 = vmatpush1.msra.mxu0 %v1724
    %2310 = vmatprep.subr.mxu0 0.0
    %2311 = vmatpush1.msra.mxu0 0.0
    %2312 = vmatprep.subr.mxu0 0.0
    %2313 = vmatpush1.msra.mxu0 0.0
    %2314 = vmatprep.subr.mxu0 0.0
    %2315 = vmatpush1.msra.mxu0 0.0
    %2316 = vmatprep.subr.mxu0 0.0
    %2317 = vmatpush1.msra.mxu0 0.0
    %2318 = vmatprep.subr.mxu0 0.0
    %2319 = vmatpush1.msra.mxu0 0.0
    %2320 = vmatprep.subr.mxu0 0.0
    %2321 = vmatpush1.msra.mxu0 0.0
    %2322 = vmatprep.subr.mxu0 0.0
    %2323 = vmatpush1.msra.mxu0 0.0
    %2324 = vmatprep.subr.mxu0 0.0
    %2325 = vmatpush1.msra.mxu0 0.0
    %2326 = vmatprep.subr.mxu0 0.0
    %2327 = vmatpush1.msra.mxu0 0.0
    %2328 = vmatprep.subr.mxu0 0.0
    %2329 = vmatpush1.msra.mxu0 0.0
    %2330 = vmatprep.subr.mxu0 0.0
    %2331 = vmatpush1.msra.mxu0 0.0
    %2332 = vmatprep.subr.mxu0 0.0
    %2333 = vmatpush1.msra.mxu0 0.0
    %2334 = vmatprep.subr.mxu0 0.0
    %2335 = vmatpush1.msra.mxu0 0.0
    %2336 = vmatprep.subr.mxu0 0.0
    %2337 = vmatpush1.msra.mxu0 0.0
    %2338 = vmatprep.subr.mxu0 0.0
    %2339 = vmatpush1.msra.mxu0 0.0
    %2340 = vmatprep.subr.mxu0 0.0
    %2341 = vmatpush1.msra.mxu0 0.0
    %2342 = vmatprep.subr.mxu0 0.0
    %2343 = vmatpush1.msra.mxu0 0.0
    %2344 = vmatprep.subr.mxu0 0.0
    %2345 = vmatpush1.msra.mxu0 0.0
    %2346 = vmatprep.subr.mxu0 0.0
    %2347 = vmatpush1.msra.mxu0 0.0
    %2348 = vmatprep.subr.mxu0 0.0
    %2349 = vmatpush1.msra.mxu0 0.0
    %2350 = vmatprep.subr.mxu0 0.0
    %2351 = vmatpush1.msra.mxu0 0.0
    %2352 = vmatprep.subr.mxu0 0.0
    %2353 = vmatpush1.msra.mxu0 0.0
    %2354 = vmatprep.subr.mxu0 0.0
    %2355 = vmatpush1.msra.mxu0 0.0
    %2356 = vmatprep.subr.mxu0 0.0
    %2357 = vmatpush1.msra.mxu0 0.0
    %2358 = vmatprep.subr.mxu0 0.0
    %2359 = vmatpush1.msra.mxu0 0.0
    %2360 = vmatprep.subr.mxu0 0.0
    %2361 = vmatpush1.msra.mxu0 0.0
    %2362 = vmatprep.subr.mxu0 0.0
    %2363 = vmatpush1.msra.mxu0 0.0
    %2364 = vmatprep.subr.mxu0 0.0
    %2365 = vmatpush1.msra.mxu0 0.0
    %2366 = vmatprep.mubr.f32.mxu0 0.0
    %2367 = vmatmul.mubr.f32.gmra.mrb[0].mxu0 %v915
    %v2368 = vpop.f32.mrb[0].mxu0
    %v2369 = vadd.f32 %v2300, %v2368
    %v2370 = vpop.f32.mrb[0].mxu0
    %2371 = vdwg.mxu0
    %v2372 = vadd.f32 %v2293, %v2369
    %v2373 = vxor.u32 %v2372, 2147483648
    %v2374 = vmul.f32 %v2373, 1.442695
    %v2375 = vpow.pop %v2374
    %v2376 = vadd.f32 %v2375, 1.0
    %v2377 = vrcp.pop %v2376
    %v2378 = vmul.f32 1.0, %v2377
    %2380 = vrot.lane.b32.xlu0 %v2369, 64
    %v2381 = vpop.permute.xlu0 %2380
    %v2383 = vmul.f32 %v2378, %v2381
    %2385 = vrot.lane.b32.xlu0 %v2383, 64
    %v2386 = vpop.permute.xlu0 %2385
    %v2388 = vadd.f32 %v2293, %v2386
    %v2389 = vtanh.pop %v2388
    %v2390 = vsub.f32 1.0, %v2378
    %2392 = vrot.lane.b32.xlu0 %v2389, 96
    %v2393 = vpop.permute.xlu0 %2392
    %v2395 = vmul.f32 %v2390, %v2393
    %v2396 = vmul.f32 %v2378, 0.0
    %v2397 = vadd.f32 %v2395, %v2396
    %2399 = vrot.lane.b32.xlu0 %v2397, 96
    %v2400 = vpop.permute.xlu0 %2399
    %v2401 = vsel %vm913, %v2400, 0
    %2403 = vmatprep.subr.mxu0 0.0
    %2404 = vmatpush1.msra.mxu0 %v1721
    %2405 = vmatprep.subr.mxu0 0.0
    %2406 = vmatpush1.msra.mxu0 %v1722
    %2407 = vmatprep.subr.mxu0 0.0
    %2408 = vmatpush1.msra.mxu0 %v1723
    %2409 = vmatprep.subr.mxu0 0.0
    %2410 = vmatpush1.msra.mxu0 %v1724
    %2411 = vmatprep.subr.mxu0 0.0
    %2412 = vmatpush1.msra.mxu0 0.0
    %2413 = vmatprep.subr.mxu0 0.0
    %2414 = vmatpush1.msra.mxu0 0.0
    %2415 = vmatprep.subr.mxu0 0.0
    %2416 = vmatpush1.msra.mxu0 0.0
    %2417 = vmatprep.subr.mxu0 0.0
    %2418 = vmatpush1.msra.mxu0 0.0
    %2419 = vmatprep.subr.mxu0 0.0
    %2420 = vmatpush1.msra.mxu0 0.0
    %2421 = vmatprep.subr.mxu0 0.0
    %2422 = vmatpush1.msra.mxu0 0.0
    %2423 = vmatprep.subr.mxu0 0.0
    %2424 = vmatpush1.msra.mxu0 0.0
    %2425 = vmatprep.subr.mxu0 0.0
    %2426 = vmatpush1.msra.mxu0 0.0
    %2427 = vmatprep.subr.mxu0 0.0
    %2428 = vmatpush1.msra.mxu0 0.0
    %2429 = vmatprep.subr.mxu0 0.0
    %2430 = vmatpush1.msra.mxu0 0.0
    %2431 = vmatprep.subr.mxu0 0.0
    %2432 = vmatpush1.msra.mxu0 0.0
    %2433 = vmatprep.subr.mxu0 0.0
    %2434 = vmatpush1.msra.mxu0 0.0
    %2435 = vmatprep.subr.mxu0 0.0
    %2436 = vmatpush1.msra.mxu0 0.0
    %2437 = vmatprep.subr.mxu0 0.0
    %2438 = vmatpush1.msra.mxu0 0.0
    %2439 = vmatprep.subr.mxu0 0.0
    %2440 = vmatpush1.msra.mxu0 0.0
    %2441 = vmatprep.subr.mxu0 0.0
    %2442 = vmatpush1.msra.mxu0 0.0
    %2443 = vmatprep.subr.mxu0 0.0
    %2444 = vmatpush1.msra.mxu0 0.0
    %2445 = vmatprep.subr.mxu0 0.0
    %2446 = vmatpush1.msra.mxu0 0.0
    %2447 = vmatprep.subr.mxu0 0.0
    %2448 = vmatpush1.msra.mxu0 0.0
    %2449 = vmatprep.subr.mxu0 0.0
    %2450 = vmatpush1.msra.mxu0 0.0
    %2451 = vmatprep.subr.mxu0 0.0
    %2452 = vmatpush1.msra.mxu0 0.0
    %2453 = vmatprep.subr.mxu0 0.0
    %2454 = vmatpush1.msra.mxu0 0.0
    %2455 = vmatprep.subr.mxu0 0.0
    %2456 = vmatpush1.msra.mxu0 0.0
    %2457 = vmatprep.subr.mxu0 0.0
    %2458 = vmatpush1.msra.mxu0 0.0
    %2459 = vmatprep.subr.mxu0 0.0
    %2460 = vmatpush1.msra.mxu0 0.0
    %2461 = vmatprep.subr.mxu0 0.0
    %2462 = vmatpush1.msra.mxu0 0.0
    %2463 = vmatprep.subr.mxu0 0.0
    %2464 = vmatpush1.msra.mxu0 0.0
    %2465 = vmatprep.subr.mxu0 0.0
    %2466 = vmatpush1.msra.mxu0 0.0
    %2467 = vmatprep.mubr.f32.mxu0 0.0
    %2468 = vmatmul.mubr.f32.gmra.mrb[0].mxu0 %v2401
    %v2469 = vpop.f32.mrb[0].mxu0
    %v2470 = vadd.f32 %v2300, %v2469
    %v2471 = vpop.f32.mrb[0].mxu0
    %2472 = vdwg.mxu0
    %v2473 = vadd.f32 %v2223, %v2470
    %v2474 = vxor.u32 %v2473, 2147483648
    %v2475 = vmul.f32 %v2474, 1.442695
    %v2476 = vpow.pop %v2475
    %v2477 = vadd.f32 %v2476, 1.0
    %v2478 = vrcp.pop %v2477
    %v2479 = vmul.f32 1.0, %v2478
    %2481 = vrot.lane.b32.xlu0 %v2470, 64
    %v2482 = vpop.permute.xlu0 %2481
    %v2484 = vmul.f32 %v2479, %v2482
    %2486 = vrot.lane.b32.xlu0 %v2484, 64
    %v2487 = vpop.permute.xlu0 %2486
    %v2489 = vadd.f32 %v2223, %v2487
    %v2490 = vtanh.pop %v2489
    %v2491 = vsub.f32 1.0, %v2479
    %2493 = vrot.lane.b32.xlu0 %v2490, 96
    %v2494 = vpop.permute.xlu0 %2493
    %v2496 = vmul.f32 %v2491, %v2494
    %v2497 = vmul.f32 %v2479, %v2397
    %v2498 = vadd.f32 %v2496, %v2497
    %2500 = vrot.lane.b32.xlu0 %v2498, 96
    %v2501 = vpop.permute.xlu0 %2500
    %v2502 = vsel %vm913, %v2501, 0
    %2504 = vmatprep.subr.mxu0 0.0
    %2505 = vmatpush1.msra.mxu0 %v1721
    %2506 = vmatprep.subr.mxu0 0.0
    %2507 = vmatpush1.msra.mxu0 %v1722
    %2508 = vmatprep.subr.mxu0 0.0
    %2509 = vmatpush1.msra.mxu0 %v1723
    %2510 = vmatprep.subr.mxu0 0.0
    %2511 = vmatpush1.msra.mxu0 %v1724
    %2512 = vmatprep.subr.mxu0 0.0
    %2513 = vmatpush1.msra.mxu0 0.0
    %2514 = vmatprep.subr.mxu0 0.0
    %2515 = vmatpush1.msra.mxu0 0.0
    %2516 = vmatprep.subr.mxu0 0.0
    %2517 = vmatpush1.msra.mxu0 0.0
    %2518 = vmatprep.subr.mxu0 0.0
    %2519 = vmatpush1.msra.mxu0 0.0
    %2520 = vmatprep.subr.mxu0 0.0
    %2521 = vmatpush1.msra.mxu0 0.0
    %2522 = vmatprep.subr.mxu0 0.0
    %2523 = vmatpush1.msra.mxu0 0.0
    %2524 = vmatprep.subr.mxu0 0.0
    %2525 = vmatpush1.msra.mxu0 0.0
    %2526 = vmatprep.subr.mxu0 0.0
    %2527 = vmatpush1.msra.mxu0 0.0
    %2528 = vmatprep.subr.mxu0 0.0
    %2529 = vmatpush1.msra.mxu0 0.0
    %2530 = vmatprep.subr.mxu0 0.0
    %2531 = vmatpush1.msra.mxu0 0.0
    %2532 = vmatprep.subr.mxu0 0.0
    %2533 = vmatpush1.msra.mxu0 0.0
    %2534 = vmatprep.subr.mxu0 0.0
    %2535 = vmatpush1.msra.mxu0 0.0
    %2536 = vmatprep.subr.mxu0 0.0
    %2537 = vmatpush1.msra.mxu0 0.0
    %2538 = vmatprep.subr.mxu0 0.0
    %2539 = vmatpush1.msra.mxu0 0.0
    %2540 = vmatprep.subr.mxu0 0.0
    %2541 = vmatpush1.msra.mxu0 0.0
    %2542 = vmatprep.subr.mxu0 0.0
    %2543 = vmatpush1.msra.mxu0 0.0
    %2544 = vmatprep.subr.mxu0 0.0
    %2545 = vmatpush1.msra.mxu0 0.0
    %2546 = vmatprep.subr.mxu0 0.0
    %2547 = vmatpush1.msra.mxu0 0.0
    %2548 = vmatprep.subr.mxu0 0.0
    %2549 = vmatpush1.msra.mxu0 0.0
    %2550 = vmatprep.subr.mxu0 0.0
    %2551 = vmatpush1.msra.mxu0 0.0
    %2552 = vmatprep.subr.mxu0 0.0
    %2553 = vmatpush1.msra.mxu0 0.0
    %2554 = vmatprep.subr.mxu0 0.0
    %2555 = vmatpush1.msra.mxu0 0.0
    %2556 = vmatprep.subr.mxu0 0.0
    %2557 = vmatpush1.msra.mxu0 0.0
    %2558 = vmatprep.subr.mxu0 0.0
    %2559 = vmatpush1.msra.mxu0 0.0
    %2560 = vmatprep.subr.mxu0 0.0
    %2561 = vmatpush1.msra.mxu0 0.0
    %2562 = vmatprep.subr.mxu0 0.0
    %2563 = vmatpush1.msra.mxu0 0.0
    %2564 = vmatprep.subr.mxu0 0.0
    %2565 = vmatpush1.msra.mxu0 0.0
    %2566 = vmatprep.subr.mxu0 0.0
    %2567 = vmatpush1.msra.mxu0 0.0
    %2568 = vmatprep.mubr.f32.mxu0 0.0
    %2569 = vmatmul.mubr.f32.gmra.mrb[0].mxu0 %v2502
    %v2570 = vpop.f32.mrb[0].mxu0
    %v2571 = vadd.f32 %v2300, %v2570
    %v2572 = vpop.f32.mrb[0].mxu0
    %2573 = vdwg.mxu0
    %v2574 = vadd.f32 %v2153, %v2571
    %v2575 = vxor.u32 %v2574, 2147483648
    %v2576 = vmul.f32 %v2575, 1.442695
    %v2577 = vpow.pop %v2576
    %v2578 = vadd.f32 %v2577, 1.0
    %v2579 = vrcp.pop %v2578
    %v2580 = vmul.f32 1.0, %v2579
    %2582 = vrot.lane.b32.xlu0 %v2571, 64
    %v2583 = vpop.permute.xlu0 %2582
    %v2585 = vmul.f32 %v2580, %v2583
    %2587 = vrot.lane.b32.xlu0 %v2585, 64
    %v2588 = vpop.permute.xlu0 %2587
    %v2590 = vadd.f32 %v2153, %v2588
    %v2591 = vtanh.pop %v2590
    %v2592 = vsub.f32 1.0, %v2580
    %2594 = vrot.lane.b32.xlu0 %v2591, 96
    %v2595 = vpop.permute.xlu0 %2594
    %v2597 = vmul.f32 %v2592, %v2595
    %v2598 = vmul.f32 %v2580, %v2498
    %v2599 = vadd.f32 %v2597, %v2598
    %2601 = vrot.lane.b32.xlu0 %v2599, 96
    %v2602 = vpop.permute.xlu0 %2601
    %v2603 = vsel %vm913, %v2602, 0
    %2605 = vmatprep.subr.mxu0 0.0
    %2606 = vmatpush1.msra.mxu0 %v1721
    %2607 = vmatprep.subr.mxu0 0.0
    %2608 = vmatpush1.msra.mxu0 %v1722
    %2609 = vmatprep.subr.mxu0 0.0
    %2610 = vmatpush1.msra.mxu0 %v1723
    %2611 = vmatprep.subr.mxu0 0.0
    %2612 = vmatpush1.msra.mxu0 %v1724
    %2613 = vmatprep.subr.mxu0 0.0
    %2614 = vmatpush1.msra.mxu0 0.0
    %2615 = vmatprep.subr.mxu0 0.0
    %2616 = vmatpush1.msra.mxu0 0.0
    %2617 = vmatprep.subr.mxu0 0.0
    %2618 = vmatpush1.msra.mxu0 0.0
    %2619 = vmatprep.subr.mxu0 0.0
    %2620 = vmatpush1.msra.mxu0 0.0
    %2621 = vmatprep.subr.mxu0 0.0
    %2622 = vmatpush1.msra.mxu0 0.0
    %2623 = vmatprep.subr.mxu0 0.0
    %2624 = vmatpush1.msra.mxu0 0.0
    %2625 = vmatprep.subr.mxu0 0.0
    %2626 = vmatpush1.msra.mxu0 0.0
    %2627 = vmatprep.subr.mxu0 0.0
    %2628 = vmatpush1.msra.mxu0 0.0
    %2629 = vmatprep.subr.mxu0 0.0
    %2630 = vmatpush1.msra.mxu0 0.0
    %2631 = vmatprep.subr.mxu0 0.0
    %2632 = vmatpush1.msra.mxu0 0.0
    %2633 = vmatprep.subr.mxu0 0.0
    %2634 = vmatpush1.msra.mxu0 0.0
    %2635 = vmatprep.subr.mxu0 0.0
    %2636 = vmatpush1.msra.mxu0 0.0
    %2637 = vmatprep.subr.mxu0 0.0
    %2638 = vmatpush1.msra.mxu0 0.0
    %2639 = vmatprep.subr.mxu0 0.0
    %2640 = vmatpush1.msra.mxu0 0.0
    %2641 = vmatprep.subr.mxu0 0.0
    %2642 = vmatpush1.msra.mxu0 0.0
    %2643 = vmatprep.subr.mxu0 0.0
    %2644 = vmatpush1.msra.mxu0 0.0
    %2645 = vmatprep.subr.mxu0 0.0
    %2646 = vmatpush1.msra.mxu0 0.0
    %2647 = vmatprep.subr.mxu0 0.0
    %2648 = vmatpush1.msra.mxu0 0.0
    %2649 = vmatprep.subr.mxu0 0.0
    %2650 = vmatpush1.msra.mxu0 0.0
    %2651 = vmatprep.subr.mxu0 0.0
    %2652 = vmatpush1.msra.mxu0 0.0
    %2653 = vmatprep.subr.mxu0 0.0
    %2654 = vmatpush1.msra.mxu0 0.0
    %2655 = vmatprep.subr.mxu0 0.0
    %2656 = vmatpush1.msra.mxu0 0.0
    %2657 = vmatprep.subr.mxu0 0.0
    %2658 = vmatpush1.msra.mxu0 0.0
    %2659 = vmatprep.subr.mxu0 0.0
    %2660 = vmatpush1.msra.mxu0 0.0
    %2661 = vmatprep.subr.mxu0 0.0
    %2662 = vmatpush1.msra.mxu0 0.0
    %2663 = vmatprep.subr.mxu0 0.0
    %2664 = vmatpush1.msra.mxu0 0.0
    %2665 = vmatprep.subr.mxu0 0.0
    %2666 = vmatpush1.msra.mxu0 0.0
    %2667 = vmatprep.subr.mxu0 0.0
    %2668 = vmatpush1.msra.mxu0 0.0
    %2669 = vmatprep.mubr.f32.mxu0 0.0
    %2670 = vmatmul.mubr.f32.gmra.mrb[0].mxu0 %v2603
    %v2671 = vpop.f32.mrb[0].mxu0
    %v2672 = vadd.f32 %v2300, %v2671
    %v2673 = vpop.f32.mrb[0].mxu0
    %2674 = vdwg.mxu0
    %v2675 = vadd.f32 %v2083, %v2672
    %v2676 = vxor.u32 %v2675, 2147483648
    %v2677 = vmul.f32 %v2676, 1.442695
    %v2678 = vpow.pop %v2677
    %v2679 = vadd.f32 %v2678, 1.0
    %v2680 = vrcp.pop %v2679
    %v2681 = vmul.f32 1.0, %v2680
    %2683 = vrot.lane.b32.xlu0 %v2672, 64
    %v2684 = vpop.permute.xlu0 %2683
    %v2686 = vmul.f32 %v2681, %v2684
    %2688 = vrot.lane.b32.xlu0 %v2686, 64
    %v2689 = vpop.permute.xlu0 %2688
    %v2691 = vadd.f32 %v2083, %v2689
    %v2692 = vtanh.pop %v2691
    %v2693 = vsub.f32 1.0, %v2681
    %2695 = vrot.lane.b32.xlu0 %v2692, 96
    %v2696 = vpop.permute.xlu0 %2695
    %v2698 = vmul.f32 %v2693, %v2696
    %v2699 = vmul.f32 %v2681, %v2599
    %v2700 = vadd.f32 %v2698, %v2699
    %2702 = vrot.lane.b32.xlu0 %v2700, 96
    %v2703 = vpop.permute.xlu0 %2702
    %v2704 = vsel %vm913, %v2703, 0
    %2706 = vmatprep.subr.mxu0 0.0
    %2707 = vmatpush1.msra.mxu0 %v1721
    %2708 = vmatprep.subr.mxu0 0.0
    %2709 = vmatpush1.msra.mxu0 %v1722
    %2710 = vmatprep.subr.mxu0 0.0
    %2711 = vmatpush1.msra.mxu0 %v1723
    %2712 = vmatprep.subr.mxu0 0.0
    %2713 = vmatpush1.msra.mxu0 %v1724
    %2714 = vmatprep.subr.mxu0 0.0
    %2715 = vmatpush1.msra.mxu0 0.0
    %2716 = vmatprep.subr.mxu0 0.0
    %2717 = vmatpush1.msra.mxu0 0.0
    %2718 = vmatprep.subr.mxu0 0.0
    %2719 = vmatpush1.msra.mxu0 0.0
    %2720 = vmatprep.subr.mxu0 0.0
    %2721 = vmatpush1.msra.mxu0 0.0
    %2722 = vmatprep.subr.mxu0 0.0
    %2723 = vmatpush1.msra.mxu0 0.0
    %2724 = vmatprep.subr.mxu0 0.0
    %2725 = vmatpush1.msra.mxu0 0.0
    %2726 = vmatprep.subr.mxu0 0.0
    %2727 = vmatpush1.msra.mxu0 0.0
    %2728 = vmatprep.subr.mxu0 0.0
    %2729 = vmatpush1.msra.mxu0 0.0
    %2730 = vmatprep.subr.mxu0 0.0
    %2731 = vmatpush1.msra.mxu0 0.0
    %2732 = vmatprep.subr.mxu0 0.0
    %2733 = vmatpush1.msra.mxu0 0.0
    %2734 = vmatprep.subr.mxu0 0.0
    %2735 = vmatpush1.msra.mxu0 0.0
    %2736 = vmatprep.subr.mxu0 0.0
    %2737 = vmatpush1.msra.mxu0 0.0
    %2738 = vmatprep.subr.mxu0 0.0
    %2739 = vmatpush1.msra.mxu0 0.0
    %2740 = vmatprep.subr.mxu0 0.0
    %2741 = vmatpush1.msra.mxu0 0.0
    %2742 = vmatprep.subr.mxu0 0.0
    %2743 = vmatpush1.msra.mxu0 0.0
    %2744 = vmatprep.subr.mxu0 0.0
    %2745 = vmatpush1.msra.mxu0 0.0
    %2746 = vmatprep.subr.mxu0 0.0
    %2747 = vmatpush1.msra.mxu0 0.0
    %2748 = vmatprep.subr.mxu0 0.0
    %2749 = vmatpush1.msra.mxu0 0.0
    %2750 = vmatprep.subr.mxu0 0.0
    %2751 = vmatpush1.msra.mxu0 0.0
    %2752 = vmatprep.subr.mxu0 0.0
    %2753 = vmatpush1.msra.mxu0 0.0
    %2754 = vmatprep.subr.mxu0 0.0
    %2755 = vmatpush1.msra.mxu0 0.0
    %2756 = vmatprep.subr.mxu0 0.0
    %2757 = vmatpush1.msra.mxu0 0.0
    %2758 = vmatprep.subr.mxu0 0.0
    %2759 = vmatpush1.msra.mxu0 0.0
    %2760 = vmatprep.subr.mxu0 0.0
    %2761 = vmatpush1.msra.mxu0 0.0
    %2762 = vmatprep.subr.mxu0 0.0
    %2763 = vmatpush1.msra.mxu0 0.0
    %2764 = vmatprep.subr.mxu0 0.0
    %2765 = vmatpush1.msra.mxu0 0.0
    %2766 = vmatprep.subr.mxu0 0.0
    %2767 = vmatpush1.msra.mxu0 0.0
    %2768 = vmatprep.subr.mxu0 0.0
    %2769 = vmatpush1.msra.mxu0 0.0
    %2770 = vmatprep.mubr.f32.mxu0 0.0
    %2771 = vmatmul.mubr.f32.gmra.mrb[0].mxu0 %v2704
    %v2772 = vpop.f32.mrb[0].mxu0
    %v2773 = vadd.f32 %v2300, %v2772
    %v2774 = vpop.f32.mrb[0].mxu0
    %2775 = vdwg.mxu0
    %v2776 = vadd.f32 %v2013, %v2773
    %v2777 = vxor.u32 %v2776, 2147483648
    %v2778 = vmul.f32 %v2777, 1.442695
    %v2779 = vpow.pop %v2778
    %v2780 = vadd.f32 %v2779, 1.0
    %v2781 = vrcp.pop %v2780
    %v2782 = vmul.f32 1.0, %v2781
    %2784 = vrot.lane.b32.xlu0 %v2773, 64
    %v2785 = vpop.permute.xlu0 %2784
    %v2787 = vmul.f32 %v2782, %v2785
    %2789 = vrot.lane.b32.xlu0 %v2787, 64
    %v2790 = vpop.permute.xlu0 %2789
    %v2792 = vadd.f32 %v2013, %v2790
    %v2793 = vtanh.pop %v2792
    %v2794 = vsub.f32 1.0, %v2782
    %2796 = vrot.lane.b32.xlu0 %v2793, 96
    %v2797 = vpop.permute.xlu0 %2796
    %v2799 = vmul.f32 %v2794, %v2797
    %v2800 = vmul.f32 %v2782, %v2700
    %v2801 = vadd.f32 %v2799, %v2800
    %2803 = vrot.lane.b32.xlu0 %v2801, 96
    %v2804 = vpop.permute.xlu0 %2803
    %v2805 = vsel %vm913, %v2804, 0
    %2807 = vmatprep.subr.mxu0 0.0
    %2808 = vmatpush1.msra.mxu0 %v1721
    %2809 = vmatprep.subr.mxu0 0.0
    %2810 = vmatpush1.msra.mxu0 %v1722
    %2811 = vmatprep.subr.mxu0 0.0
    %2812 = vmatpush1.msra.mxu0 %v1723
    %2813 = vmatprep.subr.mxu0 0.0
    %2814 = vmatpush1.msra.mxu0 %v1724
    %2815 = vmatprep.subr.mxu0 0.0
    %2816 = vmatpush1.msra.mxu0 0.0
    %2817 = vmatprep.subr.mxu0 0.0
    %2818 = vmatpush1.msra.mxu0 0.0
    %2819 = vmatprep.subr.mxu0 0.0
    %2820 = vmatpush1.msra.mxu0 0.0
    %2821 = vmatprep.subr.mxu0 0.0
    %2822 = vmatpush1.msra.mxu0 0.0
    %2823 = vmatprep.subr.mxu0 0.0
    %2824 = vmatpush1.msra.mxu0 0.0
    %2825 = vmatprep.subr.mxu0 0.0
    %2826 = vmatpush1.msra.mxu0 0.0
    %2827 = vmatprep.subr.mxu0 0.0
    %2828 = vmatpush1.msra.mxu0 0.0
    %2829 = vmatprep.subr.mxu0 0.0
    %2830 = vmatpush1.msra.mxu0 0.0
    %2831 = vmatprep.subr.mxu0 0.0
    %2832 = vmatpush1.msra.mxu0 0.0
    %2833 = vmatprep.subr.mxu0 0.0
    %2834 = vmatpush1.msra.mxu0 0.0
    %2835 = vmatprep.subr.mxu0 0.0
    %2836 = vmatpush1.msra.mxu0 0.0
    %2837 = vmatprep.subr.mxu0 0.0
    %2838 = vmatpush1.msra.mxu0 0.0
    %2839 = vmatprep.subr.mxu0 0.0
    %2840 = vmatpush1.msra.mxu0 0.0
    %2841 = vmatprep.subr.mxu0 0.0
    %2842 = vmatpush1.msra.mxu0 0.0
    %2843 = vmatprep.subr.mxu0 0.0
    %2844 = vmatpush1.msra.mxu0 0.0
    %2845 = vmatprep.subr.mxu0 0.0
    %2846 = vmatpush1.msra.mxu0 0.0
    %2847 = vmatprep.subr.mxu0 0.0
    %2848 = vmatpush1.msra.mxu0 0.0
    %2849 = vmatprep.subr.mxu0 0.0
    %2850 = vmatpush1.msra.mxu0 0.0
    %2851 = vmatprep.subr.mxu0 0.0
    %2852 = vmatpush1.msra.mxu0 0.0
    %2853 = vmatprep.subr.mxu0 0.0
    %2854 = vmatpush1.msra.mxu0 0.0
    %2855 = vmatprep.subr.mxu0 0.0
    %2856 = vmatpush1.msra.mxu0 0.0
    %2857 = vmatprep.subr.mxu0 0.0
    %2858 = vmatpush1.msra.mxu0 0.0
    %2859 = vmatprep.subr.mxu0 0.0
    %2860 = vmatpush1.msra.mxu0 0.0
    %2861 = vmatprep.subr.mxu0 0.0
    %2862 = vmatpush1.msra.mxu0 0.0
    %2863 = vmatprep.subr.mxu0 0.0
    %2864 = vmatpush1.msra.mxu0 0.0
    %2865 = vmatprep.subr.mxu0 0.0
    %2866 = vmatpush1.msra.mxu0 0.0
    %2867 = vmatprep.subr.mxu0 0.0
    %2868 = vmatpush1.msra.mxu0 0.0
    %2869 = vmatprep.subr.mxu0 0.0
    %2870 = vmatpush1.msra.mxu0 0.0
    %2871 = vmatprep.mubr.f32.mxu0 0.0
    %2872 = vmatmul.mubr.f32.gmra.mrb[0].mxu0 %v2805
    %v2873 = vpop.f32.mrb[0].mxu0
    %v2874 = vadd.f32 %v2300, %v2873
    %v2875 = vpop.f32.mrb[0].mxu0
    %2876 = vdwg.mxu0
    %v2877 = vadd.f32 %v1943, %v2874
    %v2878 = vxor.u32 %v2877, 2147483648
    %v2879 = vmul.f32 %v2878, 1.442695
    %v2880 = vpow.pop %v2879
    %v2881 = vadd.f32 %v2880, 1.0
    %v2882 = vrcp.pop %v2881
    %v2883 = vmul.f32 1.0, %v2882
    %2885 = vrot.lane.b32.xlu0 %v2874, 64
    %v2886 = vpop.permute.xlu0 %2885
    %v2888 = vmul.f32 %v2883, %v2886
    %2890 = vrot.lane.b32.xlu0 %v2888, 64
    %v2891 = vpop.permute.xlu0 %2890
    %v2893 = vadd.f32 %v1943, %v2891
    %v2894 = vtanh.pop %v2893
    %v2895 = vsub.f32 1.0, %v2883
    %2897 = vrot.lane.b32.xlu0 %v2894, 96
    %v2898 = vpop.permute.xlu0 %2897
    %v2900 = vmul.f32 %v2895, %v2898
    %v2901 = vmul.f32 %v2883, %v2801
    %v2902 = vadd.f32 %v2900, %v2901
    %2904 = vrot.lane.b32.xlu0 %v2902, 96
    %v2905 = vpop.permute.xlu0 %2904
    %v2906 = vsel %vm913, %v2905, 0
    %2908 = vmatprep.subr.mxu0 0.0
    %2909 = vmatpush1.msra.mxu0 %v1721
    %2910 = vmatprep.subr.mxu0 0.0
    %2911 = vmatpush1.msra.mxu0 %v1722
    %2912 = vmatprep.subr.mxu0 0.0
    %2913 = vmatpush1.msra.mxu0 %v1723
    %2914 = vmatprep.subr.mxu0 0.0
    %2915 = vmatpush1.msra.mxu0 %v1724
    %2916 = vmatprep.subr.mxu0 0.0
    %2917 = vmatpush1.msra.mxu0 0.0
    %2918 = vmatprep.subr.mxu0 0.0
    %2919 = vmatpush1.msra.mxu0 0.0
    %2920 = vmatprep.subr.mxu0 0.0
    %2921 = vmatpush1.msra.mxu0 0.0
    %2922 = vmatprep.subr.mxu0 0.0
    %2923 = vmatpush1.msra.mxu0 0.0
    %2924 = vmatprep.subr.mxu0 0.0
    %2925 = vmatpush1.msra.mxu0 0.0
    %2926 = vmatprep.subr.mxu0 0.0
    %2927 = vmatpush1.msra.mxu0 0.0
    %2928 = vmatprep.subr.mxu0 0.0
    %2929 = vmatpush1.msra.mxu0 0.0
    %2930 = vmatprep.subr.mxu0 0.0
    %2931 = vmatpush1.msra.mxu0 0.0
    %2932 = vmatprep.subr.mxu0 0.0
    %2933 = vmatpush1.msra.mxu0 0.0
    %2934 = vmatprep.subr.mxu0 0.0
    %2935 = vmatpush1.msra.mxu0 0.0
    %2936 = vmatprep.subr.mxu0 0.0
    %2937 = vmatpush1.msra.mxu0 0.0
    %2938 = vmatprep.subr.mxu0 0.0
    %2939 = vmatpush1.msra.mxu0 0.0
    %2940 = vmatprep.subr.mxu0 0.0
    %2941 = vmatpush1.msra.mxu0 0.0
    %2942 = vmatprep.subr.mxu0 0.0
    %2943 = vmatpush1.msra.mxu0 0.0
    %2944 = vmatprep.subr.mxu0 0.0
    %2945 = vmatpush1.msra.mxu0 0.0
    %2946 = vmatprep.subr.mxu0 0.0
    %2947 = vmatpush1.msra.mxu0 0.0
    %2948 = vmatprep.subr.mxu0 0.0
    %2949 = vmatpush1.msra.mxu0 0.0
    %2950 = vmatprep.subr.mxu0 0.0
    %2951 = vmatpush1.msra.mxu0 0.0
    %2952 = vmatprep.subr.mxu0 0.0
    %2953 = vmatpush1.msra.mxu0 0.0
    %2954 = vmatprep.subr.mxu0 0.0
    %2955 = vmatpush1.msra.mxu0 0.0
    %2956 = vmatprep.subr.mxu0 0.0
    %2957 = vmatpush1.msra.mxu0 0.0
    %2958 = vmatprep.subr.mxu0 0.0
    %2959 = vmatpush1.msra.mxu0 0.0
    %2960 = vmatprep.subr.mxu0 0.0
    %2961 = vmatpush1.msra.mxu0 0.0
    %2962 = vmatprep.subr.mxu0 0.0
    %2963 = vmatpush1.msra.mxu0 0.0
    %2964 = vmatprep.subr.mxu0 0.0
    %2965 = vmatpush1.msra.mxu0 0.0
    %2966 = vmatprep.subr.mxu0 0.0
    %2967 = vmatpush1.msra.mxu0 0.0
    %2968 = vmatprep.subr.mxu0 0.0
    %2969 = vmatpush1.msra.mxu0 0.0
    %2970 = vmatprep.subr.mxu0 0.0
    %2971 = vmatpush1.msra.mxu0 0.0
    %2972 = vmatprep.mubr.f32.mxu0 0.0
    %2973 = vmatmul.mubr.f32.gmra.mrb[0].mxu0 %v2906
    %v2974 = vpop.f32.mrb[0].mxu0
    %v2975 = vadd.f32 %v2300, %v2974
    %v2976 = vpop.f32.mrb[0].mxu0
    %2977 = vdwg.mxu0
    %v2978 = vadd.f32 %v1873, %v2975
    %v2979 = vxor.u32 %v2978, 2147483648
    %v2980 = vmul.f32 %v2979, 1.442695
    %v2981 = vpow.pop %v2980
    %v2982 = vadd.f32 %v2981, 1.0
    %v2983 = vrcp.pop %v2982
    %v2984 = vmul.f32 1.0, %v2983
    %2986 = vrot.lane.b32.xlu0 %v2975, 64
    %v2987 = vpop.permute.xlu0 %2986
    %v2989 = vmul.f32 %v2984, %v2987
    %2991 = vrot.lane.b32.xlu0 %v2989, 64
    %v2992 = vpop.permute.xlu0 %2991
    %v2994 = vadd.f32 %v1873, %v2992
    %v2995 = vtanh.pop %v2994
    %v2996 = vsub.f32 1.0, %v2984
    %2998 = vrot.lane.b32.xlu0 %v2995, 96
    %v2999 = vpop.permute.xlu0 %2998
    %v3001 = vmul.f32 %v2996, %v2999
    %v3002 = vmul.f32 %v2984, %v2902
    %v3003 = vadd.f32 %v3001, %v3002
    %3005 = vrot.lane.b32.xlu0 %v3003, 96
    %v3006 = vpop.permute.xlu0 %3005
    %v3007 = vsel %vm913, %v3006, 0
    %3009 = vmatprep.subr.mxu0 0.0
    %3010 = vmatpush1.msra.mxu0 %v1721
    %3011 = vmatprep.subr.mxu0 0.0
    %3012 = vmatpush1.msra.mxu0 %v1722
    %3013 = vmatprep.subr.mxu0 0.0
    %3014 = vmatpush1.msra.mxu0 %v1723
    %3015 = vmatprep.subr.mxu0 0.0
    %3016 = vmatpush1.msra.mxu0 %v1724
    %3017 = vmatprep.subr.mxu0 0.0
    %3018 = vmatpush1.msra.mxu0 0.0
    %3019 = vmatprep.subr.mxu0 0.0
    %3020 = vmatpush1.msra.mxu0 0.0
    %3021 = vmatprep.subr.mxu0 0.0
    %3022 = vmatpush1.msra.mxu0 0.0
    %3023 = vmatprep.subr.mxu0 0.0
    %3024 = vmatpush1.msra.mxu0 0.0
    %3025 = vmatprep.subr.mxu0 0.0
    %3026 = vmatpush1.msra.mxu0 0.0
    %3027 = vmatprep.subr.mxu0 0.0
    %3028 = vmatpush1.msra.mxu0 0.0
    %3029 = vmatprep.subr.mxu0 0.0
    %3030 = vmatpush1.msra.mxu0 0.0
    %3031 = vmatprep.subr.mxu0 0.0
    %3032 = vmatpush1.msra.mxu0 0.0
    %3033 = vmatprep.subr.mxu0 0.0
    %3034 = vmatpush1.msra.mxu0 0.0
    %3035 = vmatprep.subr.mxu0 0.0
    %3036 = vmatpush1.msra.mxu0 0.0
    %3037 = vmatprep.subr.mxu0 0.0
    %3038 = vmatpush1.msra.mxu0 0.0
    %3039 = vmatprep.subr.mxu0 0.0
    %3040 = vmatpush1.msra.mxu0 0.0
    %3041 = vmatprep.subr.mxu0 0.0
    %3042 = vmatpush1.msra.mxu0 0.0
    %3043 = vmatprep.subr.mxu0 0.0
    %3044 = vmatpush1.msra.mxu0 0.0
    %3045 = vmatprep.subr.mxu0 0.0
    %3046 = vmatpush1.msra.mxu0 0.0
    %3047 = vmatprep.subr.mxu0 0.0
    %3048 = vmatpush1.msra.mxu0 0.0
    %3049 = vmatprep.subr.mxu0 0.0
    %3050 = vmatpush1.msra.mxu0 0.0
    %3051 = vmatprep.subr.mxu0 0.0
    %3052 = vmatpush1.msra.mxu0 0.0
    %3053 = vmatprep.subr.mxu0 0.0
    %3054 = vmatpush1.msra.mxu0 0.0
    %3055 = vmatprep.subr.mxu0 0.0
    %3056 = vmatpush1.msra.mxu0 0.0
    %3057 = vmatprep.subr.mxu0 0.0
    %3058 = vmatpush1.msra.mxu0 0.0
    %3059 = vmatprep.subr.mxu0 0.0
    %3060 = vmatpush1.msra.mxu0 0.0
    %3061 = vmatprep.subr.mxu0 0.0
    %3062 = vmatpush1.msra.mxu0 0.0
    %3063 = vmatprep.subr.mxu0 0.0
    %3064 = vmatpush1.msra.mxu0 0.0
    %3065 = vmatprep.subr.mxu0 0.0
    %3066 = vmatpush1.msra.mxu0 0.0
    %3067 = vmatprep.subr.mxu0 0.0
    %3068 = vmatpush1.msra.mxu0 0.0
    %3069 = vmatprep.subr.mxu0 0.0
    %3070 = vmatpush1.msra.mxu0 0.0
    %3071 = vmatprep.subr.mxu0 0.0
    %3072 = vmatpush1.msra.mxu0 0.0
    %3073 = vmatprep.mubr.f32.mxu0 0.0
    %3074 = vmatmul.mubr.f32.gmra.mrb[0].mxu0 %v3007
    %v3075 = vpop.f32.mrb[0].mxu0
    %v3076 = vadd.f32 %v2300, %v3075
    %v3077 = vpop.f32.mrb[0].mxu0
    %3078 = vdwg.mxu0
    %v3079 = vadd.f32 %v1803, %v3076
    %v3080 = vxor.u32 %v3079, 2147483648
    %v3081 = vmul.f32 %v3080, 1.442695
    %v3082 = vpow.pop %v3081
    %v3083 = vadd.f32 %v3082, 1.0
    %v3084 = vrcp.pop %v3083
    %v3085 = vmul.f32 1.0, %v3084
    %3087 = vrot.lane.b32.xlu0 %v3076, 64
    %v3088 = vpop.permute.xlu0 %3087
    %v3090 = vmul.f32 %v3085, %v3088
    %3092 = vrot.lane.b32.xlu0 %v3090, 64
    %v3093 = vpop.permute.xlu0 %3092
    %v3095 = vadd.f32 %v1803, %v3093
    %v3096 = vtanh.pop %v3095
    %v3097 = vsub.f32 1.0, %v3085
    %3099 = vrot.lane.b32.xlu0 %v3096, 96
    %v3100 = vpop.permute.xlu0 %3099
    %v3102 = vmul.f32 %v3097, %v3100
    %v3103 = vmul.f32 %v3085, %v3003
    %v3104 = vadd.f32 %v3102, %v3103
    %v3105 = vld [vmem:[%s9] sm:$0xff]
    %v3106 = vld [vmem:[%s9 + $0x8] sm:$0xff]
    %v3107 = vld [vmem:[%s9 + $0x10] sm:$0xff]
    %v3108 = vld [vmem:[%s9 + $0x18] sm:$0xff]
    %v3109 = vld [vmem:[%s9 + $0x20] sm:$0xff]
    %v3110 = vld [vmem:[%s9 + $0x28] sm:$0xff]
    %v3111 = vld [vmem:[%s9 + $0x30] sm:$0xff]
    %v3112 = vld [vmem:[%s9 + $0x38] sm:$0xff]
    %v3113 = vld [vmem:[#allocation16] sm:$0xff]
    %v3114 = vld [vmem:[#allocation16 + $0x8] sm:$0xff]
    %v3115 = vld [vmem:[#allocation16 + $0x10] sm:$0xff]
    %v3116 = vld [vmem:[#allocation16 + $0x18] sm:$0xff]
    %v3117 = vld [vmem:[#allocation17] sm:$0x1]
    %v3118 = vld [vmem:[#allocation19] sm:$0x1]
    %3120 = vrot.lane.b32.xlu0 %v3104, 96
    %v3121 = vpop.permute.xlu0 %3120
    %v3122 = vsel %vm913, %v3121, 0
    %3124 = vmatprep.subr.mxu0 0.0
    %3125 = vmatpush1.msra.mxu0 %v3109
    %3126 = vmatprep.subr.mxu0 0.0
    %3127 = vmatpush1.msra.mxu0 %v3110
    %3128 = vmatprep.subr.mxu0 0.0
    %3129 = vmatpush1.msra.mxu0 %v3111
    %3130 = vmatprep.subr.mxu0 0.0
    %3131 = vmatpush1.msra.mxu0 %v3112
    %3132 = vmatprep.subr.mxu0 0.0
    %3133 = vmatpush1.msra.mxu0 0.0
    %3134 = vmatprep.subr.mxu0 0.0
    %3135 = vmatpush1.msra.mxu0 0.0
    %3136 = vmatprep.subr.mxu0 0.0
    %3137 = vmatpush1.msra.mxu0 0.0
    %3138 = vmatprep.subr.mxu0 0.0
    %3139 = vmatpush1.msra.mxu0 0.0
    %3140 = vmatprep.subr.mxu0 0.0
    %3141 = vmatpush1.msra.mxu0 0.0
    %3142 = vmatprep.subr.mxu0 0.0
    %3143 = vmatpush1.msra.mxu0 0.0
    %3144 = vmatprep.subr.mxu0 0.0
    %3145 = vmatpush1.msra.mxu0 0.0
    %3146 = vmatprep.subr.mxu0 0.0
    %3147 = vmatpush1.msra.mxu0 0.0
    %3148 = vmatprep.subr.mxu0 0.0
    %3149 = vmatpush1.msra.mxu0 0.0
    %3150 = vmatprep.subr.mxu0 0.0
    %3151 = vmatpush1.msra.mxu0 0.0
    %3152 = vmatprep.subr.mxu0 0.0
    %3153 = vmatpush1.msra.mxu0 0.0
    %3154 = vmatprep.subr.mxu0 0.0
    %3155 = vmatpush1.msra.mxu0 0.0
    %3156 = vmatprep.subr.mxu0 0.0
    %3157 = vmatpush1.msra.mxu0 0.0
    %3158 = vmatprep.subr.mxu0 0.0
    %3159 = vmatpush1.msra.mxu0 0.0
    %3160 = vmatprep.subr.mxu0 0.0
    %3161 = vmatpush1.msra.mxu0 0.0
    %3162 = vmatprep.subr.mxu0 0.0
    %3163 = vmatpush1.msra.mxu0 0.0
    %3164 = vmatprep.subr.mxu0 0.0
    %3165 = vmatpush1.msra.mxu0 0.0
    %3166 = vmatprep.subr.mxu0 0.0
    %3167 = vmatpush1.msra.mxu0 0.0
    %3168 = vmatprep.subr.mxu0 0.0
    %3169 = vmatpush1.msra.mxu0 0.0
    %3170 = vmatprep.subr.mxu0 0.0
    %3171 = vmatpush1.msra.mxu0 0.0
    %3172 = vmatprep.subr.mxu0 0.0
    %3173 = vmatpush1.msra.mxu0 0.0
    %3174 = vmatprep.subr.mxu0 0.0
    %3175 = vmatpush1.msra.mxu0 0.0
    %3176 = vmatprep.subr.mxu0 0.0
    %3177 = vmatpush1.msra.mxu0 0.0
    %3178 = vmatprep.subr.mxu0 0.0
    %3179 = vmatpush1.msra.mxu0 0.0
    %3180 = vmatprep.subr.mxu0 0.0
    %3181 = vmatpush1.msra.mxu0 0.0
    %3182 = vmatprep.subr.mxu0 0.0
    %3183 = vmatpush1.msra.mxu0 0.0
    %3184 = vmatprep.subr.mxu0 0.0
    %3185 = vmatpush1.msra.mxu0 0.0
    %3186 = vmatprep.subr.mxu0 0.0
    %3187 = vmatpush1.msra.mxu0 0.0
    %3188 = vmatprep.mubr.f32.mxu0 0.0
    %3189 = vmatmul.mubr.f32.gmra.mrb[0].mxu0 %v3122
    %v3190 = vpop.f32.mrb[0].mxu0
    %v3191 = vadd.f32 0.0, %v3190
    %v3192 = vpop.f32.mrb[0].mxu0
    %3193 = vdwg.mxu0
    %3194 = vmatprep.subr.mxu0 0.0
    %3195 = vmatpush1.msra.mxu0 %v3105
    %3196 = vmatprep.subr.mxu0 0.0
    %3197 = vmatpush1.msra.mxu0 %v3106
    %3198 = vmatprep.subr.mxu0 0.0
    %3199 = vmatpush1.msra.mxu0 %v3107
    %3200 = vmatprep.subr.mxu0 0.0
    %3201 = vmatpush1.msra.mxu0 %v3108
    %3202 = vmatprep.subr.mxu0 0.0
    %3203 = vmatpush1.msra.mxu0 0.0
    %3204 = vmatprep.subr.mxu0 0.0
    %3205 = vmatpush1.msra.mxu0 0.0
    %3206 = vmatprep.subr.mxu0 0.0
    %3207 = vmatpush1.msra.mxu0 0.0
    %3208 = vmatprep.subr.mxu0 0.0
    %3209 = vmatpush1.msra.mxu0 0.0
    %3210 = vmatprep.subr.mxu0 0.0
    %3211 = vmatpush1.msra.mxu0 0.0
    %3212 = vmatprep.subr.mxu0 0.0
    %3213 = vmatpush1.msra.mxu0 0.0
    %3214 = vmatprep.subr.mxu0 0.0
    %3215 = vmatpush1.msra.mxu0 0.0
    %3216 = vmatprep.subr.mxu0 0.0
    %3217 = vmatpush1.msra.mxu0 0.0
    %3218 = vmatprep.subr.mxu0 0.0
    %3219 = vmatpush1.msra.mxu0 0.0
    %3220 = vmatprep.subr.mxu0 0.0
    %3221 = vmatpush1.msra.mxu0 0.0
    %3222 = vmatprep.subr.mxu0 0.0
    %3223 = vmatpush1.msra.mxu0 0.0
    %3224 = vmatprep.subr.mxu0 0.0
    %3225 = vmatpush1.msra.mxu0 0.0
    %3226 = vmatprep.subr.mxu0 0.0
    %3227 = vmatpush1.msra.mxu0 0.0
    %3228 = vmatprep.subr.mxu0 0.0
    %3229 = vmatpush1.msra.mxu0 0.0
    %3230 = vmatprep.subr.mxu0 0.0
    %3231 = vmatpush1.msra.mxu0 0.0
    %3232 = vmatprep.subr.mxu0 0.0
    %3233 = vmatpush1.msra.mxu0 0.0
    %3234 = vmatprep.subr.mxu0 0.0
    %3235 = vmatpush1.msra.mxu0 0.0
    %3236 = vmatprep.subr.mxu0 0.0
    %3237 = vmatpush1.msra.mxu0 0.0
    %3238 = vmatprep.subr.mxu0 0.0
    %3239 = vmatpush1.msra.mxu0 0.0
    %3240 = vmatprep.subr.mxu0 0.0
    %3241 = vmatpush1.msra.mxu0 0.0
    %3242 = vmatprep.subr.mxu0 0.0
    %3243 = vmatpush1.msra.mxu0 0.0
    %3244 = vmatprep.subr.mxu0 0.0
    %3245 = vmatpush1.msra.mxu0 0.0
    %3246 = vmatprep.subr.mxu0 0.0
    %3247 = vmatpush1.msra.mxu0 0.0
    %3248 = vmatprep.subr.mxu0 0.0
    %3249 = vmatpush1.msra.mxu0 0.0
    %3250 = vmatprep.subr.mxu0 0.0
    %3251 = vmatpush1.msra.mxu0 0.0
    %3252 = vmatprep.subr.mxu0 0.0
    %3253 = vmatpush1.msra.mxu0 0.0
    %3254 = vmatprep.subr.mxu0 0.0
    %3255 = vmatpush1.msra.mxu0 0.0
    %3256 = vmatprep.subr.mxu0 0.0
    %3257 = vmatpush1.msra.mxu0 0.0
    %3258 = vmatprep.mubr.f32.mxu0 0.0
    %3259 = vmatmul.mubr.f32.gmra.mrb[0].mxu0 %v1016
    %v3260 = vpop.f32.mrb[0].mxu0
    %v3261 = vadd.f32 %v3191, %v3260
    %v3262 = vpop.f32.mrb[0].mxu0
    %3263 = vdwg.mxu0
    %v3265 = vlaneseq
    %v3266 = vshrl.u32 %v3265, 7
    %v3267 = vsub.s32 0, %v3266
    %v3268 = vrot.slane %v3117, %v3267
    %v3270 = vadd.f32 %v3261, %v3268
    %3271 = vmatprep.subr.mxu0 0.0
    %3272 = vmatpush1.msra.mxu0 %v3109
    %3273 = vmatprep.subr.mxu0 0.0
    %3274 = vmatpush1.msra.mxu0 %v3110
    %3275 = vmatprep.subr.mxu0 0.0
    %3276 = vmatpush1.msra.mxu0 %v3111
    %3277 = vmatprep.subr.mxu0 0.0
    %3278 = vmatpush1.msra.mxu0 %v3112
    %3279 = vmatprep.subr.mxu0 0.0
    %3280 = vmatpush1.msra.mxu0 0.0
    %3281 = vmatprep.subr.mxu0 0.0
    %3282 = vmatpush1.msra.mxu0 0.0
    %3283 = vmatprep.subr.mxu0 0.0
    %3284 = vmatpush1.msra.mxu0 0.0
    %3285 = vmatprep.subr.mxu0 0.0
    %3286 = vmatpush1.msra.mxu0 0.0
    %3287 = vmatprep.subr.mxu0 0.0
    %3288 = vmatpush1.msra.mxu0 0.0
    %3289 = vmatprep.subr.mxu0 0.0
    %3290 = vmatpush1.msra.mxu0 0.0
    %3291 = vmatprep.subr.mxu0 0.0
    %3292 = vmatpush1.msra.mxu0 0.0
    %3293 = vmatprep.subr.mxu0 0.0
    %3294 = vmatpush1.msra.mxu0 0.0
    %3295 = vmatprep.subr.mxu0 0.0
    %3296 = vmatpush1.msra.mxu0 0.0
    %3297 = vmatprep.subr.mxu0 0.0
    %3298 = vmatpush1.msra.mxu0 0.0
    %3299 = vmatprep.subr.mxu0 0.0
    %3300 = vmatpush1.msra.mxu0 0.0
    %3301 = vmatprep.subr.mxu0 0.0
    %3302 = vmatpush1.msra.mxu0 0.0
    %3303 = vmatprep.subr.mxu0 0.0
    %3304 = vmatpush1.msra.mxu0 0.0
    %3305 = vmatprep.subr.mxu0 0.0
    %3306 = vmatpush1.msra.mxu0 0.0
    %3307 = vmatprep.subr.mxu0 0.0
    %3308 = vmatpush1.msra.mxu0 0.0
    %3309 = vmatprep.subr.mxu0 0.0
    %3310 = vmatpush1.msra.mxu0 0.0
    %3311 = vmatprep.subr.mxu0 0.0
    %3312 = vmatpush1.msra.mxu0 0.0
    %3313 = vmatprep.subr.mxu0 0.0
    %3314 = vmatpush1.msra.mxu0 0.0
    %3315 = vmatprep.subr.mxu0 0.0
    %3316 = vmatpush1.msra.mxu0 0.0
    %3317 = vmatprep.subr.mxu0 0.0
    %3318 = vmatpush1.msra.mxu0 0.0
    %3319 = vmatprep.subr.mxu0 0.0
    %3320 = vmatpush1.msra.mxu0 0.0
    %3321 = vmatprep.subr.mxu0 0.0
    %3322 = vmatpush1.msra.mxu0 0.0
    %3323 = vmatprep.subr.mxu0 0.0
    %3324 = vmatpush1.msra.mxu0 0.0
    %3325 = vmatprep.subr.mxu0 0.0
    %3326 = vmatpush1.msra.mxu0 0.0
    %3327 = vmatprep.subr.mxu0 0.0
    %3328 = vmatpush1.msra.mxu0 0.0
    %3329 = vmatprep.subr.mxu0 0.0
    %3330 = vmatpush1.msra.mxu0 0.0
    %3331 = vmatprep.subr.mxu0 0.0
    %3332 = vmatpush1.msra.mxu0 0.0
    %3333 = vmatprep.subr.mxu0 0.0
    %3334 = vmatpush1.msra.mxu0 0.0
    %3335 = vmatprep.mubr.f32.mxu0 0.0
    %3336 = vmatmul.mubr.f32.gmra.mrb[0].mxu0 %v3007
    %v3337 = vpop.f32.mrb[0].mxu0
    %v3338 = vadd.f32 0.0, %v3337
    %v3339 = vpop.f32.mrb[0].mxu0
    %3340 = vdwg.mxu0
    %3341 = vmatprep.subr.mxu0 0.0
    %3342 = vmatpush1.msra.mxu0 %v3105
    %3343 = vmatprep.subr.mxu0 0.0
    %3344 = vmatpush1.msra.mxu0 %v3106
    %3345 = vmatprep.subr.mxu0 0.0
    %3346 = vmatpush1.msra.mxu0 %v3107
    %3347 = vmatprep.subr.mxu0 0.0
    %3348 = vmatpush1.msra.mxu0 %v3108
    %3349 = vmatprep.subr.mxu0 0.0
    %3350 = vmatpush1.msra.mxu0 0.0
    %3351 = vmatprep.subr.mxu0 0.0
    %3352 = vmatpush1.msra.mxu0 0.0
    %3353 = vmatprep.subr.mxu0 0.0
    %3354 = vmatpush1.msra.mxu0 0.0
    %3355 = vmatprep.subr.mxu0 0.0
    %3356 = vmatpush1.msra.mxu0 0.0
    %3357 = vmatprep.subr.mxu0 0.0
    %3358 = vmatpush1.msra.mxu0 0.0
    %3359 = vmatprep.subr.mxu0 0.0
    %3360 = vmatpush1.msra.mxu0 0.0
    %3361 = vmatprep.subr.mxu0 0.0
    %3362 = vmatpush1.msra.mxu0 0.0
    %3363 = vmatprep.subr.mxu0 0.0
    %3364 = vmatpush1.msra.mxu0 0.0
    %3365 = vmatprep.subr.mxu0 0.0
    %3366 = vmatpush1.msra.mxu0 0.0
    %3367 = vmatprep.subr.mxu0 0.0
    %3368 = vmatpush1.msra.mxu0 0.0
    %3369 = vmatprep.subr.mxu0 0.0
    %3370 = vmatpush1.msra.mxu0 0.0
    %3371 = vmatprep.subr.mxu0 0.0
    %3372 = vmatpush1.msra.mxu0 0.0
    %3373 = vmatprep.subr.mxu0 0.0
    %3374 = vmatpush1.msra.mxu0 0.0
    %3375 = vmatprep.subr.mxu0 0.0
    %3376 = vmatpush1.msra.mxu0 0.0
    %3377 = vmatprep.subr.mxu0 0.0
    %3378 = vmatpush1.msra.mxu0 0.0
    %3379 = vmatprep.subr.mxu0 0.0
    %3380 = vmatpush1.msra.mxu0 0.0
    %3381 = vmatprep.subr.mxu0 0.0
    %3382 = vmatpush1.msra.mxu0 0.0
    %3383 = vmatprep.subr.mxu0 0.0
    %3384 = vmatpush1.msra.mxu0 0.0
    %3385 = vmatprep.subr.mxu0 0.0
    %3386 = vmatpush1.msra.mxu0 0.0
    %3387 = vmatprep.subr.mxu0 0.0
    %3388 = vmatpush1.msra.mxu0 0.0
    %3389 = vmatprep.subr.mxu0 0.0
    %3390 = vmatpush1.msra.mxu0 0.0
    %3391 = vmatprep.subr.mxu0 0.0
    %3392 = vmatpush1.msra.mxu0 0.0
    %3393 = vmatprep.subr.mxu0 0.0
    %3394 = vmatpush1.msra.mxu0 0.0
    %3395 = vmatprep.subr.mxu0 0.0
    %3396 = vmatpush1.msra.mxu0 0.0
    %3397 = vmatprep.subr.mxu0 0.0
    %3398 = vmatpush1.msra.mxu0 0.0
    %3399 = vmatprep.subr.mxu0 0.0
    %3400 = vmatpush1.msra.mxu0 0.0
    %3401 = vmatprep.subr.mxu0 0.0
    %3402 = vmatpush1.msra.mxu0 0.0
    %3403 = vmatprep.subr.mxu0 0.0
    %3404 = vmatpush1.msra.mxu0 0.0
    %3405 = vmatprep.mubr.f32.mxu0 0.0
    %3406 = vmatmul.mubr.f32.gmra.mrb[0].mxu0 %v1117
    %v3407 = vpop.f32.mrb[0].mxu0
    %v3408 = vadd.f32 %v3338, %v3407
    %v3409 = vpop.f32.mrb[0].mxu0
    %3410 = vdwg.mxu0
    %v3411 = vadd.f32 %v3408, %v3268
    %3412 = vmatprep.subr.mxu0 0.0
    %3413 = vmatpush1.msra.mxu0 %v3109
    %3414 = vmatprep.subr.mxu0 0.0
    %3415 = vmatpush1.msra.mxu0 %v3110
    %3416 = vmatprep.subr.mxu0 0.0
    %3417 = vmatpush1.msra.mxu0 %v3111
    %3418 = vmatprep.subr.mxu0 0.0
    %3419 = vmatpush1.msra.mxu0 %v3112
    %3420 = vmatprep.subr.mxu0 0.0
    %3421 = vmatpush1.msra.mxu0 0.0
    %3422 = vmatprep.subr.mxu0 0.0
    %3423 = vmatpush1.msra.mxu0 0.0
    %3424 = vmatprep.subr.mxu0 0.0
    %3425 = vmatpush1.msra.mxu0 0.0
    %3426 = vmatprep.subr.mxu0 0.0
    %3427 = vmatpush1.msra.mxu0 0.0
    %3428 = vmatprep.subr.mxu0 0.0
    %3429 = vmatpush1.msra.mxu0 0.0
    %3430 = vmatprep.subr.mxu0 0.0
    %3431 = vmatpush1.msra.mxu0 0.0
    %3432 = vmatprep.subr.mxu0 0.0
    %3433 = vmatpush1.msra.mxu0 0.0
    %3434 = vmatprep.subr.mxu0 0.0
    %3435 = vmatpush1.msra.mxu0 0.0
    %3436 = vmatprep.subr.mxu0 0.0
    %3437 = vmatpush1.msra.mxu0 0.0
    %3438 = vmatprep.subr.mxu0 0.0
    %3439 = vmatpush1.msra.mxu0 0.0
    %3440 = vmatprep.subr.mxu0 0.0
    %3441 = vmatpush1.msra.mxu0 0.0
    %3442 = vmatprep.subr.mxu0 0.0
    %3443 = vmatpush1.msra.mxu0 0.0
    %3444 = vmatprep.subr.mxu0 0.0
    %3445 = vmatpush1.msra.mxu0 0.0
    %3446 = vmatprep.subr.mxu0 0.0
    %3447 = vmatpush1.msra.mxu0 0.0
    %3448 = vmatprep.subr.mxu0 0.0
    %3449 = vmatpush1.msra.mxu0 0.0
    %3450 = vmatprep.subr.mxu0 0.0
    %3451 = vmatpush1.msra.mxu0 0.0
    %3452 = vmatprep.subr.mxu0 0.0
    %3453 = vmatpush1.msra.mxu0 0.0
    %3454 = vmatprep.subr.mxu0 0.0
    %3455 = vmatpush1.msra.mxu0 0.0
    %3456 = vmatprep.subr.mxu0 0.0
    %3457 = vmatpush1.msra.mxu0 0.0
    %3458 = vmatprep.subr.mxu0 0.0
    %3459 = vmatpush1.msra.mxu0 0.0
    %3460 = vmatprep.subr.mxu0 0.0
    %3461 = vmatpush1.msra.mxu0 0.0
    %3462 = vmatprep.subr.mxu0 0.0
    %3463 = vmatpush1.msra.mxu0 0.0
    %3464 = vmatprep.subr.mxu0 0.0
    %3465 = vmatpush1.msra.mxu0 0.0
    %3466 = vmatprep.subr.mxu0 0.0
    %3467 = vmatpush1.msra.mxu0 0.0
    %3468 = vmatprep.subr.mxu0 0.0
    %3469 = vmatpush1.msra.mxu0 0.0
    %3470 = vmatprep.subr.mxu0 0.0
    %3471 = vmatpush1.msra.mxu0 0.0
    %3472 = vmatprep.subr.mxu0 0.0
    %3473 = vmatpush1.msra.mxu0 0.0
    %3474 = vmatprep.subr.mxu0 0.0
    %3475 = vmatpush1.msra.mxu0 0.0
    %3476 = vmatprep.mubr.f32.mxu0 0.0
    %3477 = vmatmul.mubr.f32.gmra.mrb[0].mxu0 %v2906
    %v3478 = vpop.f32.mrb[0].mxu0
    %v3479 = vadd.f32 0.0, %v3478
    %v3480 = vpop.f32.mrb[0].mxu0
    %3481 = vdwg.mxu0
    %3482 = vmatprep.subr.mxu0 0.0
    %3483 = vmatpush1.msra.mxu0 %v3105
    %3484 = vmatprep.subr.mxu0 0.0
    %3485 = vmatpush1.msra.mxu0 %v3106
    %3486 = vmatprep.subr.mxu0 0.0
    %3487 = vmatpush1.msra.mxu0 %v3107
    %3488 = vmatprep.subr.mxu0 0.0
    %3489 = vmatpush1.msra.mxu0 %v3108
    %3490 = vmatprep.subr.mxu0 0.0
    %3491 = vmatpush1.msra.mxu0 0.0
    %3492 = vmatprep.subr.mxu0 0.0
    %3493 = vmatpush1.msra.mxu0 0.0
    %3494 = vmatprep.subr.mxu0 0.0
    %3495 = vmatpush1.msra.mxu0 0.0
    %3496 = vmatprep.subr.mxu0 0.0
    %3497 = vmatpush1.msra.mxu0 0.0
    %3498 = vmatprep.subr.mxu0 0.0
    %3499 = vmatpush1.msra.mxu0 0.0
    %3500 = vmatprep.subr.mxu0 0.0
    %3501 = vmatpush1.msra.mxu0 0.0
    %3502 = vmatprep.subr.mxu0 0.0
    %3503 = vmatpush1.msra.mxu0 0.0
    %3504 = vmatprep.subr.mxu0 0.0
    %3505 = vmatpush1.msra.mxu0 0.0
    %3506 = vmatprep.subr.mxu0 0.0
    %3507 = vmatpush1.msra.mxu0 0.0
    %3508 = vmatprep.subr.mxu0 0.0
    %3509 = vmatpush1.msra.mxu0 0.0
    %3510 = vmatprep.subr.mxu0 0.0
    %3511 = vmatpush1.msra.mxu0 0.0
    %3512 = vmatprep.subr.mxu0 0.0
    %3513 = vmatpush1.msra.mxu0 0.0
    %3514 = vmatprep.subr.mxu0 0.0
    %3515 = vmatpush1.msra.mxu0 0.0
    %3516 = vmatprep.subr.mxu0 0.0
    %3517 = vmatpush1.msra.mxu0 0.0
    %3518 = vmatprep.subr.mxu0 0.0
    %3519 = vmatpush1.msra.mxu0 0.0
    %3520 = vmatprep.subr.mxu0 0.0
    %3521 = vmatpush1.msra.mxu0 0.0
    %3522 = vmatprep.subr.mxu0 0.0
    %3523 = vmatpush1.msra.mxu0 0.0
    %3524 = vmatprep.subr.mxu0 0.0
    %3525 = vmatpush1.msra.mxu0 0.0
    %3526 = vmatprep.subr.mxu0 0.0
    %3527 = vmatpush1.msra.mxu0 0.0
    %3528 = vmatprep.subr.mxu0 0.0
    %3529 = vmatpush1.msra.mxu0 0.0
    %3530 = vmatprep.subr.mxu0 0.0
    %3531 = vmatpush1.msra.mxu0 0.0
    %3532 = vmatprep.subr.mxu0 0.0
    %3533 = vmatpush1.msra.mxu0 0.0
    %3534 = vmatprep.subr.mxu0 0.0
    %3535 = vmatpush1.msra.mxu0 0.0
    %3536 = vmatprep.subr.mxu0 0.0
    %3537 = vmatpush1.msra.mxu0 0.0
    %3538 = vmatprep.subr.mxu0 0.0
    %3539 = vmatpush1.msra.mxu0 0.0
    %3540 = vmatprep.subr.mxu0 0.0
    %3541 = vmatpush1.msra.mxu0 0.0
    %3542 = vmatprep.subr.mxu0 0.0
    %3543 = vmatpush1.msra.mxu0 0.0
    %3544 = vmatprep.subr.mxu0 0.0
    %3545 = vmatpush1.msra.mxu0 0.0
    %3546 = vmatprep.mubr.f32.mxu0 0.0
    %3547 = vmatmul.mubr.f32.gmra.mrb[0].mxu0 %v1218
    %v3548 = vpop.f32.mrb[0].mxu0
    %v3549 = vadd.f32 %v3479, %v3548
    %v3550 = vpop.f32.mrb[0].mxu0
    %3551 = vdwg.mxu0
    %v3552 = vadd.f32 %v3549, %v3268
    %3553 = vmatprep.subr.mxu0 0.0
    %3554 = vmatpush1.msra.mxu0 %v3109
    %3555 = vmatprep.subr.mxu0 0.0
    %3556 = vmatpush1.msra.mxu0 %v3110
    %3557 = vmatprep.subr.mxu0 0.0
    %3558 = vmatpush1.msra.mxu0 %v3111
    %3559 = vmatprep.subr.mxu0 0.0
    %3560 = vmatpush1.msra.mxu0 %v3112
    %3561 = vmatprep.subr.mxu0 0.0
    %3562 = vmatpush1.msra.mxu0 0.0
    %3563 = vmatprep.subr.mxu0 0.0
    %3564 = vmatpush1.msra.mxu0 0.0
    %3565 = vmatprep.subr.mxu0 0.0
    %3566 = vmatpush1.msra.mxu0 0.0
    %3567 = vmatprep.subr.mxu0 0.0
    %3568 = vmatpush1.msra.mxu0 0.0
    %3569 = vmatprep.subr.mxu0 0.0
    %3570 = vmatpush1.msra.mxu0 0.0
    %3571 = vmatprep.subr.mxu0 0.0
    %3572 = vmatpush1.msra.mxu0 0.0
    %3573 = vmatprep.subr.mxu0 0.0
    %3574 = vmatpush1.msra.mxu0 0.0
    %3575 = vmatprep.subr.mxu0 0.0
    %3576 = vmatpush1.msra.mxu0 0.0
    %3577 = vmatprep.subr.mxu0 0.0
    %3578 = vmatpush1.msra.mxu0 0.0
    %3579 = vmatprep.subr.mxu0 0.0
    %3580 = vmatpush1.msra.mxu0 0.0
    %3581 = vmatprep.subr.mxu0 0.0
    %3582 = vmatpush1.msra.mxu0 0.0
    %3583 = vmatprep.subr.mxu0 0.0
    %3584 = vmatpush1.msra.mxu0 0.0
    %3585 = vmatprep.subr.mxu0 0.0
    %3586 = vmatpush1.msra.mxu0 0.0
    %3587 = vmatprep.subr.mxu0 0.0
    %3588 = vmatpush1.msra.mxu0 0.0
    %3589 = vmatprep.subr.mxu0 0.0
    %3590 = vmatpush1.msra.mxu0 0.0
    %3591 = vmatprep.subr.mxu0 0.0
    %3592 = vmatpush1.msra.mxu0 0.0
    %3593 = vmatprep.subr.mxu0 0.0
    %3594 = vmatpush1.msra.mxu0 0.0
    %3595 = vmatprep.subr.mxu0 0.0
    %3596 = vmatpush1.msra.mxu0 0.0
    %3597 = vmatprep.subr.mxu0 0.0
    %3598 = vmatpush1.msra.mxu0 0.0
    %3599 = vmatprep.subr.mxu0 0.0
    %3600 = vmatpush1.msra.mxu0 0.0
    %3601 = vmatprep.subr.mxu0 0.0
    %3602 = vmatpush1.msra.mxu0 0.0
    %3603 = vmatprep.subr.mxu0 0.0
    %3604 = vmatpush1.msra.mxu0 0.0
    %3605 = vmatprep.subr.mxu0 0.0
    %3606 = vmatpush1.msra.mxu0 0.0
    %3607 = vmatprep.subr.mxu0 0.0
    %3608 = vmatpush1.msra.mxu0 0.0
    %3609 = vmatprep.subr.mxu0 0.0
    %3610 = vmatpush1.msra.mxu0 0.0
    %3611 = vmatprep.subr.mxu0 0.0
    %3612 = vmatpush1.msra.mxu0 0.0
    %3613 = vmatprep.subr.mxu0 0.0
    %3614 = vmatpush1.msra.mxu0 0.0
    %3615 = vmatprep.subr.mxu0 0.0
    %3616 = vmatpush1.msra.mxu0 0.0
    %3617 = vmatprep.mubr.f32.mxu0 0.0
    %3618 = vmatmul.mubr.f32.gmra.mrb[0].mxu0 %v2805
    %v3619 = vpop.f32.mrb[0].mxu0
    %v3620 = vadd.f32 0.0, %v3619
    %v3621 = vpop.f32.mrb[0].mxu0
    %3622 = vdwg.mxu0
    %3623 = vmatprep.subr.mxu0 0.0
    %3624 = vmatpush1.msra.mxu0 %v3105
    %3625 = vmatprep.subr.mxu0 0.0
    %3626 = vmatpush1.msra.mxu0 %v3106
    %3627 = vmatprep.subr.mxu0 0.0
    %3628 = vmatpush1.msra.mxu0 %v3107
    %3629 = vmatprep.subr.mxu0 0.0
    %3630 = vmatpush1.msra.mxu0 %v3108
    %3631 = vmatprep.subr.mxu0 0.0
    %3632 = vmatpush1.msra.mxu0 0.0
    %3633 = vmatprep.subr.mxu0 0.0
    %3634 = vmatpush1.msra.mxu0 0.0
    %3635 = vmatprep.subr.mxu0 0.0
    %3636 = vmatpush1.msra.mxu0 0.0
    %3637 = vmatprep.subr.mxu0 0.0
    %3638 = vmatpush1.msra.mxu0 0.0
    %3639 = vmatprep.subr.mxu0 0.0
    %3640 = vmatpush1.msra.mxu0 0.0
    %3641 = vmatprep.subr.mxu0 0.0
    %3642 = vmatpush1.msra.mxu0 0.0
    %3643 = vmatprep.subr.mxu0 0.0
    %3644 = vmatpush1.msra.mxu0 0.0
    %3645 = vmatprep.subr.mxu0 0.0
    %3646 = vmatpush1.msra.mxu0 0.0
    %3647 = vmatprep.subr.mxu0 0.0
    %3648 = vmatpush1.msra.mxu0 0.0
    %3649 = vmatprep.subr.mxu0 0.0
    %3650 = vmatpush1.msra.mxu0 0.0
    %3651 = vmatprep.subr.mxu0 0.0
    %3652 = vmatpush1.msra.mxu0 0.0
    %3653 = vmatprep.subr.mxu0 0.0
    %3654 = vmatpush1.msra.mxu0 0.0
    %3655 = vmatprep.subr.mxu0 0.0
    %3656 = vmatpush1.msra.mxu0 0.0
    %3657 = vmatprep.subr.mxu0 0.0
    %3658 = vmatpush1.msra.mxu0 0.0
    %3659 = vmatprep.subr.mxu0 0.0
    %3660 = vmatpush1.msra.mxu0 0.0
    %3661 = vmatprep.subr.mxu0 0.0
    %3662 = vmatpush1.msra.mxu0 0.0
    %3663 = vmatprep.subr.mxu0 0.0
    %3664 = vmatpush1.msra.mxu0 0.0
    %3665 = vmatprep.subr.mxu0 0.0
    %3666 = vmatpush1.msra.mxu0 0.0
    %3667 = vmatprep.subr.mxu0 0.0
    %3668 = vmatpush1.msra.mxu0 0.0
    %3669 = vmatprep.subr.mxu0 0.0
    %3670 = vmatpush1.msra.mxu0 0.0
    %3671 = vmatprep.subr.mxu0 0.0
    %3672 = vmatpush1.msra.mxu0 0.0
    %3673 = vmatprep.subr.mxu0 0.0
    %3674 = vmatpush1.msra.mxu0 0.0
    %3675 = vmatprep.subr.mxu0 0.0
    %3676 = vmatpush1.msra.mxu0 0.0
    %3677 = vmatprep.subr.mxu0 0.0
    %3678 = vmatpush1.msra.mxu0 0.0
    %3679 = vmatprep.subr.mxu0 0.0
    %3680 = vmatpush1.msra.mxu0 0.0
    %3681 = vmatprep.subr.mxu0 0.0
    %3682 = vmatpush1.msra.mxu0 0.0
    %3683 = vmatprep.subr.mxu0 0.0
    %3684 = vmatpush1.msra.mxu0 0.0
    %3685 = vmatprep.subr.mxu0 0.0
    %3686 = vmatpush1.msra.mxu0 0.0
    %3687 = vmatprep.mubr.f32.mxu0 0.0
    %3688 = vmatmul.mubr.f32.gmra.mrb[0].mxu0 %v1319
    %v3689 = vpop.f32.mrb[0].mxu0
    %v3690 = vadd.f32 %v3620, %v3689
    %v3691 = vpop.f32.mrb[0].mxu0
    %3692 = vdwg.mxu0
    %v3693 = vadd.f32 %v3690, %v3268
    %3694 = vmatprep.subr.mxu0 0.0
    %3695 = vmatpush1.msra.mxu0 %v3109
    %3696 = vmatprep.subr.mxu0 0.0
    %3697 = vmatpush1.msra.mxu0 %v3110
    %3698 = vmatprep.subr.mxu0 0.0
    %3699 = vmatpush1.msra.mxu0 %v3111
    %3700 = vmatprep.subr.mxu0 0.0
    %3701 = vmatpush1.msra.mxu0 %v3112
    %3702 = vmatprep.subr.mxu0 0.0
    %3703 = vmatpush1.msra.mxu0 0.0
    %3704 = vmatprep.subr.mxu0 0.0
    %3705 = vmatpush1.msra.mxu0 0.0
    %3706 = vmatprep.subr.mxu0 0.0
    %3707 = vmatpush1.msra.mxu0 0.0
    %3708 = vmatprep.subr.mxu0 0.0
    %3709 = vmatpush1.msra.mxu0 0.0
    %3710 = vmatprep.subr.mxu0 0.0
    %3711 = vmatpush1.msra.mxu0 0.0
    %3712 = vmatprep.subr.mxu0 0.0
    %3713 = vmatpush1.msra.mxu0 0.0
    %3714 = vmatprep.subr.mxu0 0.0
    %3715 = vmatpush1.msra.mxu0 0.0
    %3716 = vmatprep.subr.mxu0 0.0
    %3717 = vmatpush1.msra.mxu0 0.0
    %3718 = vmatprep.subr.mxu0 0.0
    %3719 = vmatpush1.msra.mxu0 0.0
    %3720 = vmatprep.subr.mxu0 0.0
    %3721 = vmatpush1.msra.mxu0 0.0
    %3722 = vmatprep.subr.mxu0 0.0
    %3723 = vmatpush1.msra.mxu0 0.0
    %3724 = vmatprep.subr.mxu0 0.0
    %3725 = vmatpush1.msra.mxu0 0.0
    %3726 = vmatprep.subr.mxu0 0.0
    %3727 = vmatpush1.msra.mxu0 0.0
    %3728 = vmatprep.subr.mxu0 0.0
    %3729 = vmatpush1.msra.mxu0 0.0
    %3730 = vmatprep.subr.mxu0 0.0
    %3731 = vmatpush1.msra.mxu0 0.0
    %3732 = vmatprep.subr.mxu0 0.0
    %3733 = vmatpush1.msra.mxu0 0.0
    %3734 = vmatprep.subr.mxu0 0.0
    %3735 = vmatpush1.msra.mxu0 0.0
    %3736 = vmatprep.subr.mxu0 0.0
    %3737 = vmatpush1.msra.mxu0 0.0
    %3738 = vmatprep.subr.mxu0 0.0
    %3739 = vmatpush1.msra.mxu0 0.0
    %3740 = vmatprep.subr.mxu0 0.0
    %3741 = vmatpush1.msra.mxu0 0.0
    %3742 = vmatprep.subr.mxu0 0.0
    %3743 = vmatpush1.msra.mxu0 0.0
    %3744 = vmatprep.subr.mxu0 0.0
    %3745 = vmatpush1.msra.mxu0 0.0
    %3746 = vmatprep.subr.mxu0 0.0
    %3747 = vmatpush1.msra.mxu0 0.0
    %3748 = vmatprep.subr.mxu0 0.0
    %3749 = vmatpush1.msra.mxu0 0.0
    %3750 = vmatprep.subr.mxu0 0.0
    %3751 = vmatpush1.msra.mxu0 0.0
    %3752 = vmatprep.subr.mxu0 0.0
    %3753 = vmatpush1.msra.mxu0 0.0
    %3754 = vmatprep.subr.mxu0 0.0
    %3755 = vmatpush1.msra.mxu0 0.0
    %3756 = vmatprep.subr.mxu0 0.0
    %3757 = vmatpush1.msra.mxu0 0.0
    %3758 = vmatprep.mubr.f32.mxu0 0.0
    %3759 = vmatmul.mubr.f32.gmra.mrb[0].mxu0 %v2704
    %v3760 = vpop.f32.mrb[0].mxu0
    %v3761 = vadd.f32 0.0, %v3760
    %v3762 = vpop.f32.mrb[0].mxu0
    %3763 = vdwg.mxu0
    %3764 = vmatprep.subr.mxu0 0.0
    %3765 = vmatpush1.msra.mxu0 %v3105
    %3766 = vmatprep.subr.mxu0 0.0
    %3767 = vmatpush1.msra.mxu0 %v3106
    %3768 = vmatprep.subr.mxu0 0.0
    %3769 = vmatpush1.msra.mxu0 %v3107
    %3770 = vmatprep.subr.mxu0 0.0
    %3771 = vmatpush1.msra.mxu0 %v3108
    %3772 = vmatprep.subr.mxu0 0.0
    %3773 = vmatpush1.msra.mxu0 0.0
    %3774 = vmatprep.subr.mxu0 0.0
    %3775 = vmatpush1.msra.mxu0 0.0
    %3776 = vmatprep.subr.mxu0 0.0
    %3777 = vmatpush1.msra.mxu0 0.0
    %3778 = vmatprep.subr.mxu0 0.0
    %3779 = vmatpush1.msra.mxu0 0.0
    %3780 = vmatprep.subr.mxu0 0.0
    %3781 = vmatpush1.msra.mxu0 0.0
    %3782 = vmatprep.subr.mxu0 0.0
    %3783 = vmatpush1.msra.mxu0 0.0
    %3784 = vmatprep.subr.mxu0 0.0
    %3785 = vmatpush1.msra.mxu0 0.0
    %3786 = vmatprep.subr.mxu0 0.0
    %3787 = vmatpush1.msra.mxu0 0.0
    %3788 = vmatprep.subr.mxu0 0.0
    %3789 = vmatpush1.msra.mxu0 0.0
    %3790 = vmatprep.subr.mxu0 0.0
    %3791 = vmatpush1.msra.mxu0 0.0
    %3792 = vmatprep.subr.mxu0 0.0
    %3793 = vmatpush1.msra.mxu0 0.0
    %3794 = vmatprep.subr.mxu0 0.0
    %3795 = vmatpush1.msra.mxu0 0.0
    %3796 = vmatprep.subr.mxu0 0.0
    %3797 = vmatpush1.msra.mxu0 0.0
    %3798 = vmatprep.subr.mxu0 0.0
    %3799 = vmatpush1.msra.mxu0 0.0
    %3800 = vmatprep.subr.mxu0 0.0
    %3801 = vmatpush1.msra.mxu0 0.0
    %3802 = vmatprep.subr.mxu0 0.0
    %3803 = vmatpush1.msra.mxu0 0.0
    %3804 = vmatprep.subr.mxu0 0.0
    %3805 = vmatpush1.msra.mxu0 0.0
    %3806 = vmatprep.subr.mxu0 0.0
    %3807 = vmatpush1.msra.mxu0 0.0
    %3808 = vmatprep.subr.mxu0 0.0
    %3809 = vmatpush1.msra.mxu0 0.0
    %3810 = vmatprep.subr.mxu0 0.0
    %3811 = vmatpush1.msra.mxu0 0.0
    %3812 = vmatprep.subr.mxu0 0.0
    %3813 = vmatpush1.msra.mxu0 0.0
    %3814 = vmatprep.subr.mxu0 0.0
    %3815 = vmatpush1.msra.mxu0 0.0
    %3816 = vmatprep.subr.mxu0 0.0
    %3817 = vmatpush1.msra.mxu0 0.0
    %3818 = vmatprep.subr.mxu0 0.0
    %3819 = vmatpush1.msra.mxu0 0.0
    %3820 = vmatprep.subr.mxu0 0.0
    %3821 = vmatpush1.msra.mxu0 0.0
    %3822 = vmatprep.subr.mxu0 0.0
    %3823 = vmatpush1.msra.mxu0 0.0
    %3824 = vmatprep.subr.mxu0 0.0
    %3825 = vmatpush1.msra.mxu0 0.0
    %3826 = vmatprep.subr.mxu0 0.0
    %3827 = vmatpush1.msra.mxu0 0.0
    %3828 = vmatprep.mubr.f32.mxu0 0.0
    %3829 = vmatmul.mubr.f32.gmra.mrb[0].mxu0 %v1420
    %v3830 = vpop.f32.mrb[0].mxu0
    %v3831 = vadd.f32 %v3761, %v3830
    %v3832 = vpop.f32.mrb[0].mxu0
    %3833 = vdwg.mxu0
    %v3834 = vadd.f32 %v3831, %v3268
    %3835 = vmatprep.subr.mxu0 0.0
    %3836 = vmatpush1.msra.mxu0 %v3109
    %3837 = vmatprep.subr.mxu0 0.0
    %3838 = vmatpush1.msra.mxu0 %v3110
    %3839 = vmatprep.subr.mxu0 0.0
    %3840 = vmatpush1.msra.mxu0 %v3111
    %3841 = vmatprep.subr.mxu0 0.0
    %3842 = vmatpush1.msra.mxu0 %v3112
    %3843 = vmatprep.subr.mxu0 0.0
    %3844 = vmatpush1.msra.mxu0 0.0
    %3845 = vmatprep.subr.mxu0 0.0
    %3846 = vmatpush1.msra.mxu0 0.0
    %3847 = vmatprep.subr.mxu0 0.0
    %3848 = vmatpush1.msra.mxu0 0.0
    %3849 = vmatprep.subr.mxu0 0.0
    %3850 = vmatpush1.msra.mxu0 0.0
    %3851 = vmatprep.subr.mxu0 0.0
    %3852 = vmatpush1.msra.mxu0 0.0
    %3853 = vmatprep.subr.mxu0 0.0
    %3854 = vmatpush1.msra.mxu0 0.0
    %3855 = vmatprep.subr.mxu0 0.0
    %3856 = vmatpush1.msra.mxu0 0.0
    %3857 = vmatprep.subr.mxu0 0.0
    %3858 = vmatpush1.msra.mxu0 0.0
    %3859 = vmatprep.subr.mxu0 0.0
    %3860 = vmatpush1.msra.mxu0 0.0
    %3861 = vmatprep.subr.mxu0 0.0
    %3862 = vmatpush1.msra.mxu0 0.0
    %3863 = vmatprep.subr.mxu0 0.0
    %3864 = vmatpush1.msra.mxu0 0.0
    %3865 = vmatprep.subr.mxu0 0.0
    %3866 = vmatpush1.msra.mxu0 0.0
    %3867 = vmatprep.subr.mxu0 0.0
    %3868 = vmatpush1.msra.mxu0 0.0
    %3869 = vmatprep.subr.mxu0 0.0
    %3870 = vmatpush1.msra.mxu0 0.0
    %3871 = vmatprep.subr.mxu0 0.0
    %3872 = vmatpush1.msra.mxu0 0.0
    %3873 = vmatprep.subr.mxu0 0.0
    %3874 = vmatpush1.msra.mxu0 0.0
    %3875 = vmatprep.subr.mxu0 0.0
    %3876 = vmatpush1.msra.mxu0 0.0
    %3877 = vmatprep.subr.mxu0 0.0
    %3878 = vmatpush1.msra.mxu0 0.0
    %3879 = vmatprep.subr.mxu0 0.0
    %3880 = vmatpush1.msra.mxu0 0.0
    %3881 = vmatprep.subr.mxu0 0.0
    %3882 = vmatpush1.msra.mxu0 0.0
    %3883 = vmatprep.subr.mxu0 0.0
    %3884 = vmatpush1.msra.mxu0 0.0
    %3885 = vmatprep.subr.mxu0 0.0
    %3886 = vmatpush1.msra.mxu0 0.0
    %3887 = vmatprep.subr.mxu0 0.0
    %3888 = vmatpush1.msra.mxu0 0.0
    %3889 = vmatprep.subr.mxu0 0.0
    %3890 = vmatpush1.msra.mxu0 0.0
    %3891 = vmatprep.subr.mxu0 0.0
    %3892 = vmatpush1.msra.mxu0 0.0
    %3893 = vmatprep.subr.mxu0 0.0
    %3894 = vmatpush1.msra.mxu0 0.0
    %3895 = vmatprep.subr.mxu0 0.0
    %3896 = vmatpush1.msra.mxu0 0.0
    %3897 = vmatprep.subr.mxu0 0.0
    %3898 = vmatpush1.msra.mxu0 0.0
    %3899 = vmatprep.mubr.f32.mxu0 0.0
    %3900 = vmatmul.mubr.f32.gmra.mrb[0].mxu0 %v2603
    %v3901 = vpop.f32.mrb[0].mxu0
    %v3902 = vadd.f32 0.0, %v3901
    %v3903 = vpop.f32.mrb[0].mxu0
    %3904 = vdwg.mxu0
    %3905 = vmatprep.subr.mxu0 0.0
    %3906 = vmatpush1.msra.mxu0 %v3105
    %3907 = vmatprep.subr.mxu0 0.0
    %3908 = vmatpush1.msra.mxu0 %v3106
    %3909 = vmatprep.subr.mxu0 0.0
    %3910 = vmatpush1.msra.mxu0 %v3107
    %3911 = vmatprep.subr.mxu0 0.0
    %3912 = vmatpush1.msra.mxu0 %v3108
    %3913 = vmatprep.subr.mxu0 0.0
    %3914 = vmatpush1.msra.mxu0 0.0
    %3915 = vmatprep.subr.mxu0 0.0
    %3916 = vmatpush1.msra.mxu0 0.0
    %3917 = vmatprep.subr.mxu0 0.0
    %3918 = vmatpush1.msra.mxu0 0.0
    %3919 = vmatprep.subr.mxu0 0.0
    %3920 = vmatpush1.msra.mxu0 0.0
    %3921 = vmatprep.subr.mxu0 0.0
    %3922 = vmatpush1.msra.mxu0 0.0
    %3923 = vmatprep.subr.mxu0 0.0
    %3924 = vmatpush1.msra.mxu0 0.0
    %3925 = vmatprep.subr.mxu0 0.0
    %3926 = vmatpush1.msra.mxu0 0.0
    %3927 = vmatprep.subr.mxu0 0.0
    %3928 = vmatpush1.msra.mxu0 0.0
    %3929 = vmatprep.subr.mxu0 0.0
    %3930 = vmatpush1.msra.mxu0 0.0
    %3931 = vmatprep.subr.mxu0 0.0
    %3932 = vmatpush1.msra.mxu0 0.0
    %3933 = vmatprep.subr.mxu0 0.0
    %3934 = vmatpush1.msra.mxu0 0.0
    %3935 = vmatprep.subr.mxu0 0.0
    %3936 = vmatpush1.msra.mxu0 0.0
    %3937 = vmatprep.subr.mxu0 0.0
    %3938 = vmatpush1.msra.mxu0 0.0
    %3939 = vmatprep.subr.mxu0 0.0
    %3940 = vmatpush1.msra.mxu0 0.0
    %3941 = vmatprep.subr.mxu0 0.0
    %3942 = vmatpush1.msra.mxu0 0.0
    %3943 = vmatprep.subr.mxu0 0.0
    %3944 = vmatpush1.msra.mxu0 0.0
    %3945 = vmatprep.subr.mxu0 0.0
    %3946 = vmatpush1.msra.mxu0 0.0
    %3947 = vmatprep.subr.mxu0 0.0
    %3948 = vmatpush1.msra.mxu0 0.0
    %3949 = vmatprep.subr.mxu0 0.0
    %3950 = vmatpush1.msra.mxu0 0.0
    %3951 = vmatprep.subr.mxu0 0.0
    %3952 = vmatpush1.msra.mxu0 0.0
    %3953 = vmatprep.subr.mxu0 0.0
    %3954 = vmatpush1.msra.mxu0 0.0
    %3955 = vmatprep.subr.mxu0 0.0
    %3956 = vmatpush1.msra.mxu0 0.0
    %3957 = vmatprep.subr.mxu0 0.0
    %3958 = vmatpush1.msra.mxu0 0.0
    %3959 = vmatprep.subr.mxu0 0.0
    %3960 = vmatpush1.msra.mxu0 0.0
    %3961 = vmatprep.subr.mxu0 0.0
    %3962 = vmatpush1.msra.mxu0 0.0
    %3963 = vmatprep.subr.mxu0 0.0
    %3964 = vmatpush1.msra.mxu0 0.0
    %3965 = vmatprep.subr.mxu0 0.0
    %3966 = vmatpush1.msra.mxu0 0.0
    %3967 = vmatprep.subr.mxu0 0.0
    %3968 = vmatpush1.msra.mxu0 0.0
    %3969 = vmatprep.mubr.f32.mxu0 0.0
    %3970 = vmatmul.mubr.f32.gmra.mrb[0].mxu0 %v1521
    %v3971 = vpop.f32.mrb[0].mxu0
    %v3972 = vadd.f32 %v3902, %v3971
    %v3973 = vpop.f32.mrb[0].mxu0
    %3974 = vdwg.mxu0
    %v3975 = vadd.f32 %v3972, %v3268
    %3976 = vmatprep.subr.mxu0 0.0
    %3977 = vmatpush1.msra.mxu0 %v3109
    %3978 = vmatprep.subr.mxu0 0.0
    %3979 = vmatpush1.msra.mxu0 %v3110
    %3980 = vmatprep.subr.mxu0 0.0
    %3981 = vmatpush1.msra.mxu0 %v3111
    %3982 = vmatprep.subr.mxu0 0.0
    %3983 = vmatpush1.msra.mxu0 %v3112
    %3984 = vmatprep.subr.mxu0 0.0
    %3985 = vmatpush1.msra.mxu0 0.0
    %3986 = vmatprep.subr.mxu0 0.0
    %3987 = vmatpush1.msra.mxu0 0.0
    %3988 = vmatprep.subr.mxu0 0.0
    %3989 = vmatpush1.msra.mxu0 0.0
    %3990 = vmatprep.subr.mxu0 0.0
    %3991 = vmatpush1.msra.mxu0 0.0
    %3992 = vmatprep.subr.mxu0 0.0
    %3993 = vmatpush1.msra.mxu0 0.0
    %3994 = vmatprep.subr.mxu0 0.0
    %3995 = vmatpush1.msra.mxu0 0.0
    %3996 = vmatprep.subr.mxu0 0.0
    %3997 = vmatpush1.msra.mxu0 0.0
    %3998 = vmatprep.subr.mxu0 0.0
    %3999 = vmatpush1.msra.mxu0 0.0
    %4000 = vmatprep.subr.mxu0 0.0
    %4001 = vmatpush1.msra.mxu0 0.0
    %4002 = vmatprep.subr.mxu0 0.0
    %4003 = vmatpush1.msra.mxu0 0.0
    %4004 = vmatprep.subr.mxu0 0.0
    %4005 = vmatpush1.msra.mxu0 0.0
    %4006 = vmatprep.subr.mxu0 0.0
    %4007 = vmatpush1.msra.mxu0 0.0
    %4008 = vmatprep.subr.mxu0 0.0
    %4009 = vmatpush1.msra.mxu0 0.0
    %4010 = vmatprep.subr.mxu0 0.0
    %4011 = vmatpush1.msra.mxu0 0.0
    %4012 = vmatprep.subr.mxu0 0.0
    %4013 = vmatpush1.msra.mxu0 0.0
    %4014 = vmatprep.subr.mxu0 0.0
    %4015 = vmatpush1.msra.mxu0 0.0
    %4016 = vmatprep.subr.mxu0 0.0
    %4017 = vmatpush1.msra.mxu0 0.0
    %4018 = vmatprep.subr.mxu0 0.0
    %4019 = vmatpush1.msra.mxu0 0.0
    %4020 = vmatprep.subr.mxu0 0.0
    %4021 = vmatpush1.msra.mxu0 0.0
    %4022 = vmatprep.subr.mxu0 0.0
    %4023 = vmatpush1.msra.mxu0 0.0
    %4024 = vmatprep.subr.mxu0 0.0
    %4025 = vmatpush1.msra.mxu0 0.0
    %4026 = vmatprep.subr.mxu0 0.0
    %4027 = vmatpush1.msra.mxu0 0.0
    %4028 = vmatprep.subr.mxu0 0.0
    %4029 = vmatpush1.msra.mxu0 0.0
    %4030 = vmatprep.subr.mxu0 0.0
    %4031 = vmatpush1.msra.mxu0 0.0
    %4032 = vmatprep.subr.mxu0 0.0
    %4033 = vmatpush1.msra.mxu0 0.0
    %4034 = vmatprep.subr.mxu0 0.0
    %4035 = vmatpush1.msra.mxu0 0.0
    %4036 = vmatprep.subr.mxu0 0.0
    %4037 = vmatpush1.msra.mxu0 0.0
    %4038 = vmatprep.subr.mxu0 0.0
    %4039 = vmatpush1.msra.mxu0 0.0
    %4040 = vmatprep.mubr.f32.mxu0 0.0
    %4041 = vmatmul.mubr.f32.gmra.mrb[0].mxu0 %v2502
    %v4042 = vpop.f32.mrb[0].mxu0
    %v4043 = vadd.f32 0.0, %v4042
    %v4044 = vpop.f32.mrb[0].mxu0
    %4045 = vdwg.mxu0
    %4046 = vmatprep.subr.mxu0 0.0
    %4047 = vmatpush1.msra.mxu0 %v3105
    %4048 = vmatprep.subr.mxu0 0.0
    %4049 = vmatpush1.msra.mxu0 %v3106
    %4050 = vmatprep.subr.mxu0 0.0
    %4051 = vmatpush1.msra.mxu0 %v3107
    %4052 = vmatprep.subr.mxu0 0.0
    %4053 = vmatpush1.msra.mxu0 %v3108
    %4054 = vmatprep.subr.mxu0 0.0
    %4055 = vmatpush1.msra.mxu0 0.0
    %4056 = vmatprep.subr.mxu0 0.0
    %4057 = vmatpush1.msra.mxu0 0.0
    %4058 = vmatprep.subr.mxu0 0.0
    %4059 = vmatpush1.msra.mxu0 0.0
    %4060 = vmatprep.subr.mxu0 0.0
    %4061 = vmatpush1.msra.mxu0 0.0
    %4062 = vmatprep.subr.mxu0 0.0
    %4063 = vmatpush1.msra.mxu0 0.0
    %4064 = vmatprep.subr.mxu0 0.0
    %4065 = vmatpush1.msra.mxu0 0.0
    %4066 = vmatprep.subr.mxu0 0.0
    %4067 = vmatpush1.msra.mxu0 0.0
    %4068 = vmatprep.subr.mxu0 0.0
    %4069 = vmatpush1.msra.mxu0 0.0
    %4070 = vmatprep.subr.mxu0 0.0
    %4071 = vmatpush1.msra.mxu0 0.0
    %4072 = vmatprep.subr.mxu0 0.0
    %4073 = vmatpush1.msra.mxu0 0.0
    %4074 = vmatprep.subr.mxu0 0.0
    %4075 = vmatpush1.msra.mxu0 0.0
    %4076 = vmatprep.subr.mxu0 0.0
    %4077 = vmatpush1.msra.mxu0 0.0
    %4078 = vmatprep.subr.mxu0 0.0
    %4079 = vmatpush1.msra.mxu0 0.0
    %4080 = vmatprep.subr.mxu0 0.0
    %4081 = vmatpush1.msra.mxu0 0.0
    %4082 = vmatprep.subr.mxu0 0.0
    %4083 = vmatpush1.msra.mxu0 0.0
    %4084 = vmatprep.subr.mxu0 0.0
    %4085 = vmatpush1.msra.mxu0 0.0
    %4086 = vmatprep.subr.mxu0 0.0
    %4087 = vmatpush1.msra.mxu0 0.0
    %4088 = vmatprep.subr.mxu0 0.0
    %4089 = vmatpush1.msra.mxu0 0.0
    %4090 = vmatprep.subr.mxu0 0.0
    %4091 = vmatpush1.msra.mxu0 0.0
    %4092 = vmatprep.subr.mxu0 0.0
    %4093 = vmatpush1.msra.mxu0 0.0
    %4094 = vmatprep.subr.mxu0 0.0
    %4095 = vmatpush1.msra.mxu0 0.0
    %4096 = vmatprep.subr.mxu0 0.0
    %4097 = vmatpush1.msra.mxu0 0.0
    %4098 = vmatprep.subr.mxu0 0.0
    %4099 = vmatpush1.msra.mxu0 0.0
    %4100 = vmatprep.subr.mxu0 0.0
    %4101 = vmatpush1.msra.mxu0 0.0
    %4102 = vmatprep.subr.mxu0 0.0
    %4103 = vmatpush1.msra.mxu0 0.0
    %4104 = vmatprep.subr.mxu0 0.0
    %4105 = vmatpush1.msra.mxu0 0.0
    %4106 = vmatprep.subr.mxu0 0.0
    %4107 = vmatpush1.msra.mxu0 0.0
    %4108 = vmatprep.subr.mxu0 0.0
    %4109 = vmatpush1.msra.mxu0 0.0
    %4110 = vmatprep.mubr.f32.mxu0 0.0
    %4111 = vmatmul.mubr.f32.gmra.mrb[0].mxu0 %v1622
    %v4112 = vpop.f32.mrb[0].mxu0
    %v4113 = vadd.f32 %v4043, %v4112
    %v4114 = vpop.f32.mrb[0].mxu0
    %4115 = vdwg.mxu0
    %v4116 = vadd.f32 %v4113, %v3268
    %4117 = vmatprep.subr.mxu0 0.0
    %4118 = vmatpush1.msra.mxu0 %v3109
    %4119 = vmatprep.subr.mxu0 0.0
    %4120 = vmatpush1.msra.mxu0 %v3110
    %4121 = vmatprep.subr.mxu0 0.0
    %4122 = vmatpush1.msra.mxu0 %v3111
    %4123 = vmatprep.subr.mxu0 0.0
    %4124 = vmatpush1.msra.mxu0 %v3112
    %4125 = vmatprep.subr.mxu0 0.0
    %4126 = vmatpush1.msra.mxu0 0.0
    %4127 = vmatprep.subr.mxu0 0.0
    %4128 = vmatpush1.msra.mxu0 0.0
    %4129 = vmatprep.subr.mxu0 0.0
    %4130 = vmatpush1.msra.mxu0 0.0
    %4131 = vmatprep.subr.mxu0 0.0
    %4132 = vmatpush1.msra.mxu0 0.0
    %4133 = vmatprep.subr.mxu0 0.0
    %4134 = vmatpush1.msra.mxu0 0.0
    %4135 = vmatprep.subr.mxu0 0.0
    %4136 = vmatpush1.msra.mxu0 0.0
    %4137 = vmatprep.subr.mxu0 0.0
    %4138 = vmatpush1.msra.mxu0 0.0
    %4139 = vmatprep.subr.mxu0 0.0
    %4140 = vmatpush1.msra.mxu0 0.0
    %4141 = vmatprep.subr.mxu0 0.0
    %4142 = vmatpush1.msra.mxu0 0.0
    %4143 = vmatprep.subr.mxu0 0.0
    %4144 = vmatpush1.msra.mxu0 0.0
    %4145 = vmatprep.subr.mxu0 0.0
    %4146 = vmatpush1.msra.mxu0 0.0
    %4147 = vmatprep.subr.mxu0 0.0
    %4148 = vmatpush1.msra.mxu0 0.0
    %4149 = vmatprep.subr.mxu0 0.0
    %4150 = vmatpush1.msra.mxu0 0.0
    %4151 = vmatprep.subr.mxu0 0.0
    %4152 = vmatpush1.msra.mxu0 0.0
    %4153 = vmatprep.subr.mxu0 0.0
    %4154 = vmatpush1.msra.mxu0 0.0
    %4155 = vmatprep.subr.mxu0 0.0
    %4156 = vmatpush1.msra.mxu0 0.0
    %4157 = vmatprep.subr.mxu0 0.0
    %4158 = vmatpush1.msra.mxu0 0.0
    %4159 = vmatprep.subr.mxu0 0.0
    %4160 = vmatpush1.msra.mxu0 0.0
    %4161 = vmatprep.subr.mxu0 0.0
    %4162 = vmatpush1.msra.mxu0 0.0
    %4163 = vmatprep.subr.mxu0 0.0
    %4164 = vmatpush1.msra.mxu0 0.0
    %4165 = vmatprep.subr.mxu0 0.0
    %4166 = vmatpush1.msra.mxu0 0.0
    %4167 = vmatprep.subr.mxu0 0.0
    %4168 = vmatpush1.msra.mxu0 0.0
    %4169 = vmatprep.subr.mxu0 0.0
    %4170 = vmatpush1.msra.mxu0 0.0
    %4171 = vmatprep.subr.mxu0 0.0
    %4172 = vmatpush1.msra.mxu0 0.0
    %4173 = vmatprep.subr.mxu0 0.0
    %4174 = vmatpush1.msra.mxu0 0.0
    %4175 = vmatprep.subr.mxu0 0.0
    %4176 = vmatpush1.msra.mxu0 0.0
    %4177 = vmatprep.subr.mxu0 0.0
    %4178 = vmatpush1.msra.mxu0 0.0
    %4179 = vmatprep.subr.mxu0 0.0
    %4180 = vmatpush1.msra.mxu0 0.0
    %4181 = vmatprep.mubr.f32.mxu0 0.0
    %4182 = vmatmul.mubr.f32.gmra.mrb[0].mxu0 %v2401
    %v4183 = vpop.f32.mrb[0].mxu0
    %v4184 = vadd.f32 0.0, %v4183
    %v4185 = vpop.f32.mrb[0].mxu0
    %4186 = vdwg.mxu0
    %4188 = vrot.lane.b32.xlu0 %v1719, 96
    %v4189 = vpop.permute.xlu0 %4188
    %v4190 = vsel %vm913, %v4189, 0
    %4192 = vmatprep.subr.mxu0 0.0
    %4193 = vmatpush1.msra.mxu0 %v3105
    %4194 = vmatprep.subr.mxu0 0.0
    %4195 = vmatpush1.msra.mxu0 %v3106
    %4196 = vmatprep.subr.mxu0 0.0
    %4197 = vmatpush1.msra.mxu0 %v3107
    %4198 = vmatprep.subr.mxu0 0.0
    %4199 = vmatpush1.msra.mxu0 %v3108
    %4200 = vmatprep.subr.mxu0 0.0
    %4201 = vmatpush1.msra.mxu0 0.0
    %4202 = vmatprep.subr.mxu0 0.0
    %4203 = vmatpush1.msra.mxu0 0.0
    %4204 = vmatprep.subr.mxu0 0.0
    %4205 = vmatpush1.msra.mxu0 0.0
    %4206 = vmatprep.subr.mxu0 0.0
    %4207 = vmatpush1.msra.mxu0 0.0
    %4208 = vmatprep.subr.mxu0 0.0
    %4209 = vmatpush1.msra.mxu0 0.0
    %4210 = vmatprep.subr.mxu0 0.0
    %4211 = vmatpush1.msra.mxu0 0.0
    %4212 = vmatprep.subr.mxu0 0.0
    %4213 = vmatpush1.msra.mxu0 0.0
    %4214 = vmatprep.subr.mxu0 0.0
    %4215 = vmatpush1.msra.mxu0 0.0
    %4216 = vmatprep.subr.mxu0 0.0
    %4217 = vmatpush1.msra.mxu0 0.0
    %4218 = vmatprep.subr.mxu0 0.0
    %4219 = vmatpush1.msra.mxu0 0.0
    %4220 = vmatprep.subr.mxu0 0.0
    %4221 = vmatpush1.msra.mxu0 0.0
    %4222 = vmatprep.subr.mxu0 0.0
    %4223 = vmatpush1.msra.mxu0 0.0
    %4224 = vmatprep.subr.mxu0 0.0
    %4225 = vmatpush1.msra.mxu0 0.0
    %4226 = vmatprep.subr.mxu0 0.0
    %4227 = vmatpush1.msra.mxu0 0.0
    %4228 = vmatprep.subr.mxu0 0.0
    %4229 = vmatpush1.msra.mxu0 0.0
    %4230 = vmatprep.subr.mxu0 0.0
    %4231 = vmatpush1.msra.mxu0 0.0
    %4232 = vmatprep.subr.mxu0 0.0
    %4233 = vmatpush1.msra.mxu0 0.0
    %4234 = vmatprep.subr.mxu0 0.0
    %4235 = vmatpush1.msra.mxu0 0.0
    %4236 = vmatprep.subr.mxu0 0.0
    %4237 = vmatpush1.msra.mxu0 0.0
    %4238 = vmatprep.subr.mxu0 0.0
    %4239 = vmatpush1.msra.mxu0 0.0
    %4240 = vmatprep.subr.mxu0 0.0
    %4241 = vmatpush1.msra.mxu0 0.0
    %4242 = vmatprep.subr.mxu0 0.0
    %4243 = vmatpush1.msra.mxu0 0.0
    %4244 = vmatprep.subr.mxu0 0.0
    %4245 = vmatpush1.msra.mxu0 0.0
    %4246 = vmatprep.subr.mxu0 0.0
    %4247 = vmatpush1.msra.mxu0 0.0
    %4248 = vmatprep.subr.mxu0 0.0
    %4249 = vmatpush1.msra.mxu0 0.0
    %4250 = vmatprep.subr.mxu0 0.0
    %4251 = vmatpush1.msra.mxu0 0.0
    %4252 = vmatprep.subr.mxu0 0.0
    %4253 = vmatpush1.msra.mxu0 0.0
    %4254 = vmatprep.subr.mxu0 0.0
    %4255 = vmatpush1.msra.mxu0 0.0
    %4256 = vmatprep.mubr.f32.mxu0 0.0
    %4257 = vmatmul.mubr.f32.gmra.mrb[0].mxu0 %v4190
    %v4258 = vpop.f32.mrb[0].mxu0
    %v4259 = vadd.f32 %v4184, %v4258
    %v4260 = vpop.f32.mrb[0].mxu0
    %4261 = vdwg.mxu0
    %v4262 = vadd.f32 %v4259, %v3268
    %v4264 = vlaneseq
    %v4265 = vshrl.u32 %v4264, 7
    %v4266 = vsub.s32 0, %v4265
    %v4267 = vrot.slane %v3118, %v4266
    %4269 = vmatprep.subr.mxu0 0.0
    %4270 = vmatpush1.msra.mxu0 %v3113
    %4271 = vmatprep.subr.mxu0 0.0
    %4272 = vmatpush1.msra.mxu0 %v3114
    %4273 = vmatprep.subr.mxu0 0.0
    %4274 = vmatpush1.msra.mxu0 %v3115
    %4275 = vmatprep.subr.mxu0 0.0
    %4276 = vmatpush1.msra.mxu0 %v3116
    %4277 = vmatprep.subr.mxu0 0.0
    %4278 = vmatpush1.msra.mxu0 0.0
    %4279 = vmatprep.subr.mxu0 0.0
    %4280 = vmatpush1.msra.mxu0 0.0
    %4281 = vmatprep.subr.mxu0 0.0
    %4282 = vmatpush1.msra.mxu0 0.0
    %4283 = vmatprep.subr.mxu0 0.0
    %4284 = vmatpush1.msra.mxu0 0.0
    %4285 = vmatprep.subr.mxu0 0.0
    %4286 = vmatpush1.msra.mxu0 0.0
    %4287 = vmatprep.subr.mxu0 0.0
    %4288 = vmatpush1.msra.mxu0 0.0
    %4289 = vmatprep.subr.mxu0 0.0
    %4290 = vmatpush1.msra.mxu0 0.0
    %4291 = vmatprep.subr.mxu0 0.0
    %4292 = vmatpush1.msra.mxu0 0.0
    %4293 = vmatprep.subr.mxu0 0.0
    %4294 = vmatpush1.msra.mxu0 0.0
    %4295 = vmatprep.subr.mxu0 0.0
    %4296 = vmatpush1.msra.mxu0 0.0
    %4297 = vmatprep.subr.mxu0 0.0
    %4298 = vmatpush1.msra.mxu0 0.0
    %4299 = vmatprep.subr.mxu0 0.0
    %4300 = vmatpush1.msra.mxu0 0.0
    %4301 = vmatprep.subr.mxu0 0.0
    %4302 = vmatpush1.msra.mxu0 0.0
    %4303 = vmatprep.subr.mxu0 0.0
    %4304 = vmatpush1.msra.mxu0 0.0
    %4305 = vmatprep.subr.mxu0 0.0
    %4306 = vmatpush1.msra.mxu0 0.0
    %4307 = vmatprep.subr.mxu0 0.0
    %4308 = vmatpush1.msra.mxu0 0.0
    %4309 = vmatprep.subr.mxu0 0.0
    %4310 = vmatpush1.msra.mxu0 0.0
    %4311 = vmatprep.subr.mxu0 0.0
    %4312 = vmatpush1.msra.mxu0 0.0
    %4313 = vmatprep.subr.mxu0 0.0
    %4314 = vmatpush1.msra.mxu0 0.0
    %4315 = vmatprep.subr.mxu0 0.0
    %4316 = vmatpush1.msra.mxu0 0.0
    %4317 = vmatprep.subr.mxu0 0.0
    %4318 = vmatpush1.msra.mxu0 0.0
    %4319 = vmatprep.subr.mxu0 0.0
    %4320 = vmatpush1.msra.mxu0 0.0
    %4321 = vmatprep.subr.mxu0 0.0
    %4322 = vmatpush1.msra.mxu0 0.0
    %4323 = vmatprep.subr.mxu0 0.0
    %4324 = vmatpush1.msra.mxu0 0.0
    %4325 = vmatprep.subr.mxu0 0.0
    %4326 = vmatpush1.msra.mxu0 0.0
    %4327 = vmatprep.subr.mxu0 0.0
    %4328 = vmatpush1.msra.mxu0 0.0
    %4329 = vmatprep.subr.mxu0 0.0
    %4330 = vmatpush1.msra.mxu0 0.0
    %4331 = vmatprep.subr.mxu0 0.0
    %4332 = vmatpush1.msra.mxu0 0.0
    %4333 = vmatprep.mubr.f32.mxu0 0.0
    %4334 = vmatmul.mubr.f32.gmra.mrb[0].mxu0 %v915
    %v4335 = vpop.f32.mrb[0].mxu0
    %v4336 = vadd.f32 %v4267, %v4335
    %v4337 = vpop.f32.mrb[0].mxu0
    %4338 = vdwg.mxu0
    %v4339 = vadd.f32 %v3270, %v4336
    %v4340 = vxor.u32 %v4339, 2147483648
    %v4341 = vmul.f32 %v4340, 1.442695
    %v4342 = vpow.pop %v4341
    %v4343 = vadd.f32 %v4342, 1.0
    %v4344 = vrcp.pop %v4343
    %v4345 = vmul.f32 1.0, %v4344
    %4347 = vrot.lane.b32.xlu0 %v4336, 64
    %v4348 = vpop.permute.xlu0 %4347
    %v4350 = vmul.f32 %v4345, %v4348
    %4352 = vrot.lane.b32.xlu0 %v4350, 64
    %v4353 = vpop.permute.xlu0 %4352
    %v4355 = vadd.f32 %v3270, %v4353
    %v4356 = vtanh.pop %v4355
    %v4357 = vsub.f32 1.0, %v4345
    %4359 = vrot.lane.b32.xlu0 %v4356, 96
    %v4360 = vpop.permute.xlu0 %4359
    %v4362 = vmul.f32 %v4357, %v4360
    %v4363 = vmul.f32 %v4345, 0.0
    %v4364 = vadd.f32 %v4362, %v4363
    %4366 = vrot.lane.b32.xlu0 %v4364, 96
    %v4367 = vpop.permute.xlu0 %4366
    %v4368 = vsel %vm913, %v4367, 0
    %4370 = vmatprep.subr.mxu0 0.0
    %4371 = vmatpush1.msra.mxu0 %v3113
    %4372 = vmatprep.subr.mxu0 0.0
    %4373 = vmatpush1.msra.mxu0 %v3114
    %4374 = vmatprep.subr.mxu0 0.0
    %4375 = vmatpush1.msra.mxu0 %v3115
    %4376 = vmatprep.subr.mxu0 0.0
    %4377 = vmatpush1.msra.mxu0 %v3116
    %4378 = vmatprep.subr.mxu0 0.0
    %4379 = vmatpush1.msra.mxu0 0.0
    %4380 = vmatprep.subr.mxu0 0.0
    %4381 = vmatpush1.msra.mxu0 0.0
    %4382 = vmatprep.subr.mxu0 0.0
    %4383 = vmatpush1.msra.mxu0 0.0
    %4384 = vmatprep.subr.mxu0 0.0
    %4385 = vmatpush1.msra.mxu0 0.0
    %4386 = vmatprep.subr.mxu0 0.0
    %4387 = vmatpush1.msra.mxu0 0.0
    %4388 = vmatprep.subr.mxu0 0.0
    %4389 = vmatpush1.msra.mxu0 0.0
    %4390 = vmatprep.subr.mxu0 0.0
    %4391 = vmatpush1.msra.mxu0 0.0
    %4392 = vmatprep.subr.mxu0 0.0
    %4393 = vmatpush1.msra.mxu0 0.0
    %4394 = vmatprep.subr.mxu0 0.0
    %4395 = vmatpush1.msra.mxu0 0.0
    %4396 = vmatprep.subr.mxu0 0.0
    %4397 = vmatpush1.msra.mxu0 0.0
    %4398 = vmatprep.subr.mxu0 0.0
    %4399 = vmatpush1.msra.mxu0 0.0
    %4400 = vmatprep.subr.mxu0 0.0
    %4401 = vmatpush1.msra.mxu0 0.0
    %4402 = vmatprep.subr.mxu0 0.0
    %4403 = vmatpush1.msra.mxu0 0.0
    %4404 = vmatprep.subr.mxu0 0.0
    %4405 = vmatpush1.msra.mxu0 0.0
    %4406 = vmatprep.subr.mxu0 0.0
    %4407 = vmatpush1.msra.mxu0 0.0
    %4408 = vmatprep.subr.mxu0 0.0
    %4409 = vmatpush1.msra.mxu0 0.0
    %4410 = vmatprep.subr.mxu0 0.0
    %4411 = vmatpush1.msra.mxu0 0.0
    %4412 = vmatprep.subr.mxu0 0.0
    %4413 = vmatpush1.msra.mxu0 0.0
    %4414 = vmatprep.subr.mxu0 0.0
    %4415 = vmatpush1.msra.mxu0 0.0
    %4416 = vmatprep.subr.mxu0 0.0
    %4417 = vmatpush1.msra.mxu0 0.0
    %4418 = vmatprep.subr.mxu0 0.0
    %4419 = vmatpush1.msra.mxu0 0.0
    %4420 = vmatprep.subr.mxu0 0.0
    %4421 = vmatpush1.msra.mxu0 0.0
    %4422 = vmatprep.subr.mxu0 0.0
    %4423 = vmatpush1.msra.mxu0 0.0
    %4424 = vmatprep.subr.mxu0 0.0
    %4425 = vmatpush1.msra.mxu0 0.0
    %4426 = vmatprep.subr.mxu0 0.0
    %4427 = vmatpush1.msra.mxu0 0.0
    %4428 = vmatprep.subr.mxu0 0.0
    %4429 = vmatpush1.msra.mxu0 0.0
    %4430 = vmatprep.subr.mxu0 0.0
    %4431 = vmatpush1.msra.mxu0 0.0
    %4432 = vmatprep.subr.mxu0 0.0
    %4433 = vmatpush1.msra.mxu0 0.0
    %4434 = vmatprep.mubr.f32.mxu0 0.0
    %4435 = vmatmul.mubr.f32.gmra.mrb[0].mxu0 %v4368
    %v4436 = vpop.f32.mrb[0].mxu0
    %v4437 = vadd.f32 %v4267, %v4436
    %v4438 = vpop.f32.mrb[0].mxu0
    %4439 = vdwg.mxu0
    %v4440 = vadd.f32 %v3411, %v4437
    %v4441 = vxor.u32 %v4440, 2147483648
    %v4442 = vmul.f32 %v4441, 1.442695
    %v4443 = vpow.pop %v4442
    %v4444 = vadd.f32 %v4443, 1.0
    %v4445 = vrcp.pop %v4444
    %v4446 = vmul.f32 1.0, %v4445
    %4448 = vrot.lane.b32.xlu0 %v4437, 64
    %v4449 = vpop.permute.xlu0 %4448
    %v4451 = vmul.f32 %v4446, %v4449
    %4453 = vrot.lane.b32.xlu0 %v4451, 64
    %v4454 = vpop.permute.xlu0 %4453
    %v4456 = vadd.f32 %v3411, %v4454
    %v4457 = vtanh.pop %v4456
    %v4458 = vsub.f32 1.0, %v4446
    %4460 = vrot.lane.b32.xlu0 %v4457, 96
    %v4461 = vpop.permute.xlu0 %4460
    %v4463 = vmul.f32 %v4458, %v4461
    %v4464 = vmul.f32 %v4446, %v4364
    %v4465 = vadd.f32 %v4463, %v4464
    %4467 = vrot.lane.b32.xlu0 %v4465, 96
    %v4468 = vpop.permute.xlu0 %4467
    %v4469 = vsel %vm913, %v4468, 0
    %4471 = vmatprep.subr.mxu0 0.0
    %4472 = vmatpush1.msra.mxu0 %v3113
    %4473 = vmatprep.subr.mxu0 0.0
    %4474 = vmatpush1.msra.mxu0 %v3114
    %4475 = vmatprep.subr.mxu0 0.0
    %4476 = vmatpush1.msra.mxu0 %v3115
    %4477 = vmatprep.subr.mxu0 0.0
    %4478 = vmatpush1.msra.mxu0 %v3116
    %4479 = vmatprep.subr.mxu0 0.0
    %4480 = vmatpush1.msra.mxu0 0.0
    %4481 = vmatprep.subr.mxu0 0.0
    %4482 = vmatpush1.msra.mxu0 0.0
    %4483 = vmatprep.subr.mxu0 0.0
    %4484 = vmatpush1.msra.mxu0 0.0
    %4485 = vmatprep.subr.mxu0 0.0
    %4486 = vmatpush1.msra.mxu0 0.0
    %4487 = vmatprep.subr.mxu0 0.0
    %4488 = vmatpush1.msra.mxu0 0.0
    %4489 = vmatprep.subr.mxu0 0.0
    %4490 = vmatpush1.msra.mxu0 0.0
    %4491 = vmatprep.subr.mxu0 0.0
    %4492 = vmatpush1.msra.mxu0 0.0
    %4493 = vmatprep.subr.mxu0 0.0
    %4494 = vmatpush1.msra.mxu0 0.0
    %4495 = vmatprep.subr.mxu0 0.0
    %4496 = vmatpush1.msra.mxu0 0.0
    %4497 = vmatprep.subr.mxu0 0.0
    %4498 = vmatpush1.msra.mxu0 0.0
    %4499 = vmatprep.subr.mxu0 0.0
    %4500 = vmatpush1.msra.mxu0 0.0
    %4501 = vmatprep.subr.mxu0 0.0
    %4502 = vmatpush1.msra.mxu0 0.0
    %4503 = vmatprep.subr.mxu0 0.0
    %4504 = vmatpush1.msra.mxu0 0.0
    %4505 = vmatprep.subr.mxu0 0.0
    %4506 = vmatpush1.msra.mxu0 0.0
    %4507 = vmatprep.subr.mxu0 0.0
    %4508 = vmatpush1.msra.mxu0 0.0
    %4509 = vmatprep.subr.mxu0 0.0
    %4510 = vmatpush1.msra.mxu0 0.0
    %4511 = vmatprep.subr.mxu0 0.0
    %4512 = vmatpush1.msra.mxu0 0.0
    %4513 = vmatprep.subr.mxu0 0.0
    %4514 = vmatpush1.msra.mxu0 0.0
    %4515 = vmatprep.subr.mxu0 0.0
    %4516 = vmatpush1.msra.mxu0 0.0
    %4517 = vmatprep.subr.mxu0 0.0
    %4518 = vmatpush1.msra.mxu0 0.0
    %4519 = vmatprep.subr.mxu0 0.0
    %4520 = vmatpush1.msra.mxu0 0.0
    %4521 = vmatprep.subr.mxu0 0.0
    %4522 = vmatpush1.msra.mxu0 0.0
    %4523 = vmatprep.subr.mxu0 0.0
    %4524 = vmatpush1.msra.mxu0 0.0
    %4525 = vmatprep.subr.mxu0 0.0
    %4526 = vmatpush1.msra.mxu0 0.0
    %4527 = vmatprep.subr.mxu0 0.0
    %4528 = vmatpush1.msra.mxu0 0.0
    %4529 = vmatprep.subr.mxu0 0.0
    %4530 = vmatpush1.msra.mxu0 0.0
    %4531 = vmatprep.subr.mxu0 0.0
    %4532 = vmatpush1.msra.mxu0 0.0
    %4533 = vmatprep.subr.mxu0 0.0
    %4534 = vmatpush1.msra.mxu0 0.0
    %4535 = vmatprep.mubr.f32.mxu0 0.0
    %4536 = vmatmul.mubr.f32.gmra.mrb[0].mxu0 %v4469
    %v4537 = vpop.f32.mrb[0].mxu0
    %v4538 = vadd.f32 %v4267, %v4537
    %v4539 = vpop.f32.mrb[0].mxu0
    %4540 = vdwg.mxu0
    %v4541 = vadd.f32 %v3552, %v4538
    %v4542 = vxor.u32 %v4541, 2147483648
    %v4543 = vmul.f32 %v4542, 1.442695
    %v4544 = vpow.pop %v4543
    %v4545 = vadd.f32 %v4544, 1.0
    %v4546 = vrcp.pop %v4545
    %v4547 = vmul.f32 1.0, %v4546
    %4549 = vrot.lane.b32.xlu0 %v4538, 64
    %v4550 = vpop.permute.xlu0 %4549
    %v4552 = vmul.f32 %v4547, %v4550
    %4554 = vrot.lane.b32.xlu0 %v4552, 64
    %v4555 = vpop.permute.xlu0 %4554
    %v4557 = vadd.f32 %v3552, %v4555
    %v4558 = vtanh.pop %v4557
    %v4559 = vsub.f32 1.0, %v4547
    %4561 = vrot.lane.b32.xlu0 %v4558, 96
    %v4562 = vpop.permute.xlu0 %4561
    %v4564 = vmul.f32 %v4559, %v4562
    %v4565 = vmul.f32 %v4547, %v4465
    %v4566 = vadd.f32 %v4564, %v4565
    %4568 = vrot.lane.b32.xlu0 %v4566, 96
    %v4569 = vpop.permute.xlu0 %4568
    %v4570 = vsel %vm913, %v4569, 0
    %4572 = vmatprep.subr.mxu0 0.0
    %4573 = vmatpush1.msra.mxu0 %v3113
    %4574 = vmatprep.subr.mxu0 0.0
    %4575 = vmatpush1.msra.mxu0 %v3114
    %4576 = vmatprep.subr.mxu0 0.0
    %4577 = vmatpush1.msra.mxu0 %v3115
    %4578 = vmatprep.subr.mxu0 0.0
    %4579 = vmatpush1.msra.mxu0 %v3116
    %4580 = vmatprep.subr.mxu0 0.0
    %4581 = vmatpush1.msra.mxu0 0.0
    %4582 = vmatprep.subr.mxu0 0.0
    %4583 = vmatpush1.msra.mxu0 0.0
    %4584 = vmatprep.subr.mxu0 0.0
    %4585 = vmatpush1.msra.mxu0 0.0
    %4586 = vmatprep.subr.mxu0 0.0
    %4587 = vmatpush1.msra.mxu0 0.0
    %4588 = vmatprep.subr.mxu0 0.0
    %4589 = vmatpush1.msra.mxu0 0.0
    %4590 = vmatprep.subr.mxu0 0.0
    %4591 = vmatpush1.msra.mxu0 0.0
    %4592 = vmatprep.subr.mxu0 0.0
    %4593 = vmatpush1.msra.mxu0 0.0
    %4594 = vmatprep.subr.mxu0 0.0
    %4595 = vmatpush1.msra.mxu0 0.0
    %4596 = vmatprep.subr.mxu0 0.0
    %4597 = vmatpush1.msra.mxu0 0.0
    %4598 = vmatprep.subr.mxu0 0.0
    %4599 = vmatpush1.msra.mxu0 0.0
    %4600 = vmatprep.subr.mxu0 0.0
    %4601 = vmatpush1.msra.mxu0 0.0
    %4602 = vmatprep.subr.mxu0 0.0
    %4603 = vmatpush1.msra.mxu0 0.0
    %4604 = vmatprep.subr.mxu0 0.0
    %4605 = vmatpush1.msra.mxu0 0.0
    %4606 = vmatprep.subr.mxu0 0.0
    %4607 = vmatpush1.msra.mxu0 0.0
    %4608 = vmatprep.subr.mxu0 0.0
    %4609 = vmatpush1.msra.mxu0 0.0
    %4610 = vmatprep.subr.mxu0 0.0
    %4611 = vmatpush1.msra.mxu0 0.0
    %4612 = vmatprep.subr.mxu0 0.0
    %4613 = vmatpush1.msra.mxu0 0.0
    %4614 = vmatprep.subr.mxu0 0.0
    %4615 = vmatpush1.msra.mxu0 0.0
    %4616 = vmatprep.subr.mxu0 0.0
    %4617 = vmatpush1.msra.mxu0 0.0
    %4618 = vmatprep.subr.mxu0 0.0
    %4619 = vmatpush1.msra.mxu0 0.0
    %4620 = vmatprep.subr.mxu0 0.0
    %4621 = vmatpush1.msra.mxu0 0.0
    %4622 = vmatprep.subr.mxu0 0.0
    %4623 = vmatpush1.msra.mxu0 0.0
    %4624 = vmatprep.subr.mxu0 0.0
    %4625 = vmatpush1.msra.mxu0 0.0
    %4626 = vmatprep.subr.mxu0 0.0
    %4627 = vmatpush1.msra.mxu0 0.0
    %4628 = vmatprep.subr.mxu0 0.0
    %4629 = vmatpush1.msra.mxu0 0.0
    %4630 = vmatprep.subr.mxu0 0.0
    %4631 = vmatpush1.msra.mxu0 0.0
    %4632 = vmatprep.subr.mxu0 0.0
    %4633 = vmatpush1.msra.mxu0 0.0
    %4634 = vmatprep.subr.mxu0 0.0
    %4635 = vmatpush1.msra.mxu0 0.0
    %4636 = vmatprep.mubr.f32.mxu0 0.0
    %4637 = vmatmul.mubr.f32.gmra.mrb[0].mxu0 %v4570
    %v4638 = vpop.f32.mrb[0].mxu0
    %v4639 = vadd.f32 %v4267, %v4638
    %v4640 = vpop.f32.mrb[0].mxu0
    %4641 = vdwg.mxu0
    %v4642 = vadd.f32 %v3693, %v4639
    %v4643 = vxor.u32 %v4642, 2147483648
    %v4644 = vmul.f32 %v4643, 1.442695
    %v4645 = vpow.pop %v4644
    %v4646 = vadd.f32 %v4645, 1.0
    %v4647 = vrcp.pop %v4646
    %v4648 = vmul.f32 1.0, %v4647
    %4650 = vrot.lane.b32.xlu0 %v4639, 64
    %v4651 = vpop.permute.xlu0 %4650
    %v4653 = vmul.f32 %v4648, %v4651
    %4655 = vrot.lane.b32.xlu0 %v4653, 64
    %v4656 = vpop.permute.xlu0 %4655
    %v4658 = vadd.f32 %v3693, %v4656
    %v4659 = vtanh.pop %v4658
    %v4660 = vsub.f32 1.0, %v4648
    %4662 = vrot.lane.b32.xlu0 %v4659, 96
    %v4663 = vpop.permute.xlu0 %4662
    %v4665 = vmul.f32 %v4660, %v4663
    %v4666 = vmul.f32 %v4648, %v4566
    %v4667 = vadd.f32 %v4665, %v4666
    %4669 = vrot.lane.b32.xlu0 %v4667, 96
    %v4670 = vpop.permute.xlu0 %4669
    %v4671 = vsel %vm913, %v4670, 0
    %4673 = vmatprep.subr.mxu0 0.0
    %4674 = vmatpush1.msra.mxu0 %v3113
    %4675 = vmatprep.subr.mxu0 0.0
    %4676 = vmatpush1.msra.mxu0 %v3114
    %4677 = vmatprep.subr.mxu0 0.0
    %4678 = vmatpush1.msra.mxu0 %v3115
    %4679 = vmatprep.subr.mxu0 0.0
    %4680 = vmatpush1.msra.mxu0 %v3116
    %4681 = vmatprep.subr.mxu0 0.0
    %4682 = vmatpush1.msra.mxu0 0.0
    %4683 = vmatprep.subr.mxu0 0.0
    %4684 = vmatpush1.msra.mxu0 0.0
    %4685 = vmatprep.subr.mxu0 0.0
    %4686 = vmatpush1.msra.mxu0 0.0
    %4687 = vmatprep.subr.mxu0 0.0
    %4688 = vmatpush1.msra.mxu0 0.0
    %4689 = vmatprep.subr.mxu0 0.0
    %4690 = vmatpush1.msra.mxu0 0.0
    %4691 = vmatprep.subr.mxu0 0.0
    %4692 = vmatpush1.msra.mxu0 0.0
    %4693 = vmatprep.subr.mxu0 0.0
    %4694 = vmatpush1.msra.mxu0 0.0
    %4695 = vmatprep.subr.mxu0 0.0
    %4696 = vmatpush1.msra.mxu0 0.0
    %4697 = vmatprep.subr.mxu0 0.0
    %4698 = vmatpush1.msra.mxu0 0.0
    %4699 = vmatprep.subr.mxu0 0.0
    %4700 = vmatpush1.msra.mxu0 0.0
    %4701 = vmatprep.subr.mxu0 0.0
    %4702 = vmatpush1.msra.mxu0 0.0
    %4703 = vmatprep.subr.mxu0 0.0
    %4704 = vmatpush1.msra.mxu0 0.0
    %4705 = vmatprep.subr.mxu0 0.0
    %4706 = vmatpush1.msra.mxu0 0.0
    %4707 = vmatprep.subr.mxu0 0.0
    %4708 = vmatpush1.msra.mxu0 0.0
    %4709 = vmatprep.subr.mxu0 0.0
    %4710 = vmatpush1.msra.mxu0 0.0
    %4711 = vmatprep.subr.mxu0 0.0
    %4712 = vmatpush1.msra.mxu0 0.0
    %4713 = vmatprep.subr.mxu0 0.0
    %4714 = vmatpush1.msra.mxu0 0.0
    %4715 = vmatprep.subr.mxu0 0.0
    %4716 = vmatpush1.msra.mxu0 0.0
    %4717 = vmatprep.subr.mxu0 0.0
    %4718 = vmatpush1.msra.mxu0 0.0
    %4719 = vmatprep.subr.mxu0 0.0
    %4720 = vmatpush1.msra.mxu0 0.0
    %4721 = vmatprep.subr.mxu0 0.0
    %4722 = vmatpush1.msra.mxu0 0.0
    %4723 = vmatprep.subr.mxu0 0.0
    %4724 = vmatpush1.msra.mxu0 0.0
    %4725 = vmatprep.subr.mxu0 0.0
    %4726 = vmatpush1.msra.mxu0 0.0
    %4727 = vmatprep.subr.mxu0 0.0
    %4728 = vmatpush1.msra.mxu0 0.0
    %4729 = vmatprep.subr.mxu0 0.0
    %4730 = vmatpush1.msra.mxu0 0.0
    %4731 = vmatprep.subr.mxu0 0.0
    %4732 = vmatpush1.msra.mxu0 0.0
    %4733 = vmatprep.subr.mxu0 0.0
    %4734 = vmatpush1.msra.mxu0 0.0
    %4735 = vmatprep.subr.mxu0 0.0
    %4736 = vmatpush1.msra.mxu0 0.0
    %4737 = vmatprep.mubr.f32.mxu0 0.0
    %4738 = vmatmul.mubr.f32.gmra.mrb[0].mxu0 %v4671
    %v4739 = vpop.f32.mrb[0].mxu0
    %v4740 = vadd.f32 %v4267, %v4739
    %v4741 = vpop.f32.mrb[0].mxu0
    %4742 = vdwg.mxu0
    %v4743 = vadd.f32 %v3834, %v4740
    %v4744 = vxor.u32 %v4743, 2147483648
    %v4745 = vmul.f32 %v4744, 1.442695
    %v4746 = vpow.pop %v4745
    %v4747 = vadd.f32 %v4746, 1.0
    %v4748 = vrcp.pop %v4747
    %v4749 = vmul.f32 1.0, %v4748
    %4751 = vrot.lane.b32.xlu0 %v4740, 64
    %v4752 = vpop.permute.xlu0 %4751
    %v4754 = vmul.f32 %v4749, %v4752
    %4756 = vrot.lane.b32.xlu0 %v4754, 64
    %v4757 = vpop.permute.xlu0 %4756
    %v4759 = vadd.f32 %v3834, %v4757
    %v4760 = vtanh.pop %v4759
    %v4761 = vsub.f32 1.0, %v4749
    %4763 = vrot.lane.b32.xlu0 %v4760, 96
    %v4764 = vpop.permute.xlu0 %4763
    %v4766 = vmul.f32 %v4761, %v4764
    %v4767 = vmul.f32 %v4749, %v4667
    %v4768 = vadd.f32 %v4766, %v4767
    %4770 = vrot.lane.b32.xlu0 %v4768, 96
    %v4771 = vpop.permute.xlu0 %4770
    %v4772 = vsel %vm913, %v4771, 0
    %4774 = vmatprep.subr.mxu0 0.0
    %4775 = vmatpush1.msra.mxu0 %v3113
    %4776 = vmatprep.subr.mxu0 0.0
    %4777 = vmatpush1.msra.mxu0 %v3114
    %4778 = vmatprep.subr.mxu0 0.0
    %4779 = vmatpush1.msra.mxu0 %v3115
    %4780 = vmatprep.subr.mxu0 0.0
    %4781 = vmatpush1.msra.mxu0 %v3116
    %4782 = vmatprep.subr.mxu0 0.0
    %4783 = vmatpush1.msra.mxu0 0.0
    %4784 = vmatprep.subr.mxu0 0.0
    %4785 = vmatpush1.msra.mxu0 0.0
    %4786 = vmatprep.subr.mxu0 0.0
    %4787 = vmatpush1.msra.mxu0 0.0
    %4788 = vmatprep.subr.mxu0 0.0
    %4789 = vmatpush1.msra.mxu0 0.0
    %4790 = vmatprep.subr.mxu0 0.0
    %4791 = vmatpush1.msra.mxu0 0.0
    %4792 = vmatprep.subr.mxu0 0.0
    %4793 = vmatpush1.msra.mxu0 0.0
    %4794 = vmatprep.subr.mxu0 0.0
    %4795 = vmatpush1.msra.mxu0 0.0
    %4796 = vmatprep.subr.mxu0 0.0
    %4797 = vmatpush1.msra.mxu0 0.0
    %4798 = vmatprep.subr.mxu0 0.0
    %4799 = vmatpush1.msra.mxu0 0.0
    %4800 = vmatprep.subr.mxu0 0.0
    %4801 = vmatpush1.msra.mxu0 0.0
    %4802 = vmatprep.subr.mxu0 0.0
    %4803 = vmatpush1.msra.mxu0 0.0
    %4804 = vmatprep.subr.mxu0 0.0
    %4805 = vmatpush1.msra.mxu0 0.0
    %4806 = vmatprep.subr.mxu0 0.0
    %4807 = vmatpush1.msra.mxu0 0.0
    %4808 = vmatprep.subr.mxu0 0.0
    %4809 = vmatpush1.msra.mxu0 0.0
    %4810 = vmatprep.subr.mxu0 0.0
    %4811 = vmatpush1.msra.mxu0 0.0
    %4812 = vmatprep.subr.mxu0 0.0
    %4813 = vmatpush1.msra.mxu0 0.0
    %4814 = vmatprep.subr.mxu0 0.0
    %4815 = vmatpush1.msra.mxu0 0.0
    %4816 = vmatprep.subr.mxu0 0.0
    %4817 = vmatpush1.msra.mxu0 0.0
    %4818 = vmatprep.subr.mxu0 0.0
    %4819 = vmatpush1.msra.mxu0 0.0
    %4820 = vmatprep.subr.mxu0 0.0
    %4821 = vmatpush1.msra.mxu0 0.0
    %4822 = vmatprep.subr.mxu0 0.0
    %4823 = vmatpush1.msra.mxu0 0.0
    %4824 = vmatprep.subr.mxu0 0.0
    %4825 = vmatpush1.msra.mxu0 0.0
    %4826 = vmatprep.subr.mxu0 0.0
    %4827 = vmatpush1.msra.mxu0 0.0
    %4828 = vmatprep.subr.mxu0 0.0
    %4829 = vmatpush1.msra.mxu0 0.0
    %4830 = vmatprep.subr.mxu0 0.0
    %4831 = vmatpush1.msra.mxu0 0.0
    %4832 = vmatprep.subr.mxu0 0.0
    %4833 = vmatpush1.msra.mxu0 0.0
    %4834 = vmatprep.subr.mxu0 0.0
    %4835 = vmatpush1.msra.mxu0 0.0
    %4836 = vmatprep.subr.mxu0 0.0
    %4837 = vmatpush1.msra.mxu0 0.0
    %4838 = vmatprep.mubr.f32.mxu0 0.0
    %4839 = vmatmul.mubr.f32.gmra.mrb[0].mxu0 %v4772
    %v4840 = vpop.f32.mrb[0].mxu0
    %v4841 = vadd.f32 %v4267, %v4840
    %v4842 = vpop.f32.mrb[0].mxu0
    %4843 = vdwg.mxu0
    %v4844 = vadd.f32 %v3975, %v4841
    %v4845 = vxor.u32 %v4844, 2147483648
    %v4846 = vmul.f32 %v4845, 1.442695
    %v4847 = vpow.pop %v4846
    %v4848 = vadd.f32 %v4847, 1.0
    %v4849 = vrcp.pop %v4848
    %v4850 = vmul.f32 1.0, %v4849
    %4852 = vrot.lane.b32.xlu0 %v4841, 64
    %v4853 = vpop.permute.xlu0 %4852
    %v4855 = vmul.f32 %v4850, %v4853
    %4857 = vrot.lane.b32.xlu0 %v4855, 64
    %v4858 = vpop.permute.xlu0 %4857
    %v4860 = vadd.f32 %v3975, %v4858
    %v4861 = vtanh.pop %v4860
    %v4862 = vsub.f32 1.0, %v4850
    %4864 = vrot.lane.b32.xlu0 %v4861, 96
    %v4865 = vpop.permute.xlu0 %4864
    %v4867 = vmul.f32 %v4862, %v4865
    %v4868 = vmul.f32 %v4850, %v4768
    %v4869 = vadd.f32 %v4867, %v4868
    %4871 = vrot.lane.b32.xlu0 %v4869, 96
    %v4872 = vpop.permute.xlu0 %4871
    %v4873 = vsel %vm913, %v4872, 0
    %4875 = vmatprep.subr.mxu0 0.0
    %4876 = vmatpush1.msra.mxu0 %v3113
    %4877 = vmatprep.subr.mxu0 0.0
    %4878 = vmatpush1.msra.mxu0 %v3114
    %4879 = vmatprep.subr.mxu0 0.0
    %4880 = vmatpush1.msra.mxu0 %v3115
    %4881 = vmatprep.subr.mxu0 0.0
    %4882 = vmatpush1.msra.mxu0 %v3116
    %4883 = vmatprep.subr.mxu0 0.0
    %4884 = vmatpush1.msra.mxu0 0.0
    %4885 = vmatprep.subr.mxu0 0.0
    %4886 = vmatpush1.msra.mxu0 0.0
    %4887 = vmatprep.subr.mxu0 0.0
    %4888 = vmatpush1.msra.mxu0 0.0
    %4889 = vmatprep.subr.mxu0 0.0
    %4890 = vmatpush1.msra.mxu0 0.0
    %4891 = vmatprep.subr.mxu0 0.0
    %4892 = vmatpush1.msra.mxu0 0.0
    %4893 = vmatprep.subr.mxu0 0.0
    %4894 = vmatpush1.msra.mxu0 0.0
    %4895 = vmatprep.subr.mxu0 0.0
    %4896 = vmatpush1.msra.mxu0 0.0
    %4897 = vmatprep.subr.mxu0 0.0
    %4898 = vmatpush1.msra.mxu0 0.0
    %4899 = vmatprep.subr.mxu0 0.0
    %4900 = vmatpush1.msra.mxu0 0.0
    %4901 = vmatprep.subr.mxu0 0.0
    %4902 = vmatpush1.msra.mxu0 0.0
    %4903 = vmatprep.subr.mxu0 0.0
    %4904 = vmatpush1.msra.mxu0 0.0
    %4905 = vmatprep.subr.mxu0 0.0
    %4906 = vmatpush1.msra.mxu0 0.0
    %4907 = vmatprep.subr.mxu0 0.0
    %4908 = vmatpush1.msra.mxu0 0.0
    %4909 = vmatprep.subr.mxu0 0.0
    %4910 = vmatpush1.msra.mxu0 0.0
    %4911 = vmatprep.subr.mxu0 0.0
    %4912 = vmatpush1.msra.mxu0 0.0
    %4913 = vmatprep.subr.mxu0 0.0
    %4914 = vmatpush1.msra.mxu0 0.0
    %4915 = vmatprep.subr.mxu0 0.0
    %4916 = vmatpush1.msra.mxu0 0.0
    %4917 = vmatprep.subr.mxu0 0.0
    %4918 = vmatpush1.msra.mxu0 0.0
    %4919 = vmatprep.subr.mxu0 0.0
    %4920 = vmatpush1.msra.mxu0 0.0
    %4921 = vmatprep.subr.mxu0 0.0
    %4922 = vmatpush1.msra.mxu0 0.0
    %4923 = vmatprep.subr.mxu0 0.0
    %4924 = vmatpush1.msra.mxu0 0.0
    %4925 = vmatprep.subr.mxu0 0.0
    %4926 = vmatpush1.msra.mxu0 0.0
    %4927 = vmatprep.subr.mxu0 0.0
    %4928 = vmatpush1.msra.mxu0 0.0
    %4929 = vmatprep.subr.mxu0 0.0
    %4930 = vmatpush1.msra.mxu0 0.0
    %4931 = vmatprep.subr.mxu0 0.0
    %4932 = vmatpush1.msra.mxu0 0.0
    %4933 = vmatprep.subr.mxu0 0.0
    %4934 = vmatpush1.msra.mxu0 0.0
    %4935 = vmatprep.subr.mxu0 0.0
    %4936 = vmatpush1.msra.mxu0 0.0
    %4937 = vmatprep.subr.mxu0 0.0
    %4938 = vmatpush1.msra.mxu0 0.0
    %4939 = vmatprep.mubr.f32.mxu0 0.0
    %4940 = vmatmul.mubr.f32.gmra.mrb[0].mxu0 %v4873
    %v4941 = vpop.f32.mrb[0].mxu0
    %v4942 = vadd.f32 %v4267, %v4941
    %v4943 = vpop.f32.mrb[0].mxu0
    %4944 = vdwg.mxu0
    %v4945 = vadd.f32 %v4116, %v4942
    %v4946 = vxor.u32 %v4945, 2147483648
    %v4947 = vmul.f32 %v4946, 1.442695
    %v4948 = vpow.pop %v4947
    %v4949 = vadd.f32 %v4948, 1.0
    %v4950 = vrcp.pop %v4949
    %v4951 = vmul.f32 1.0, %v4950
    %4953 = vrot.lane.b32.xlu0 %v4942, 64
    %v4954 = vpop.permute.xlu0 %4953
    %v4956 = vmul.f32 %v4951, %v4954
    %4958 = vrot.lane.b32.xlu0 %v4956, 64
    %v4959 = vpop.permute.xlu0 %4958
    %v4961 = vadd.f32 %v4116, %v4959
    %v4962 = vtanh.pop %v4961
    %v4963 = vsub.f32 1.0, %v4951
    %4965 = vrot.lane.b32.xlu0 %v4962, 96
    %v4966 = vpop.permute.xlu0 %4965
    %v4968 = vmul.f32 %v4963, %v4966
    %v4969 = vmul.f32 %v4951, %v4869
    %v4970 = vadd.f32 %v4968, %v4969
    %4972 = vrot.lane.b32.xlu0 %v4970, 96
    %v4973 = vpop.permute.xlu0 %4972
    %v4974 = vsel %vm913, %v4973, 0
    %4976 = vmatprep.subr.mxu0 0.0
    %4977 = vmatpush1.msra.mxu0 %v3113
    %4978 = vmatprep.subr.mxu0 0.0
    %4979 = vmatpush1.msra.mxu0 %v3114
    %4980 = vmatprep.subr.mxu0 0.0
    %4981 = vmatpush1.msra.mxu0 %v3115
    %4982 = vmatprep.subr.mxu0 0.0
    %4983 = vmatpush1.msra.mxu0 %v3116
    %4984 = vmatprep.subr.mxu0 0.0
    %4985 = vmatpush1.msra.mxu0 0.0
    %4986 = vmatprep.subr.mxu0 0.0
    %4987 = vmatpush1.msra.mxu0 0.0
    %4988 = vmatprep.subr.mxu0 0.0
    %4989 = vmatpush1.msra.mxu0 0.0
    %4990 = vmatprep.subr.mxu0 0.0
    %4991 = vmatpush1.msra.mxu0 0.0
    %4992 = vmatprep.subr.mxu0 0.0
    %4993 = vmatpush1.msra.mxu0 0.0
    %4994 = vmatprep.subr.mxu0 0.0
    %4995 = vmatpush1.msra.mxu0 0.0
    %4996 = vmatprep.subr.mxu0 0.0
    %4997 = vmatpush1.msra.mxu0 0.0
    %4998 = vmatprep.subr.mxu0 0.0
    %4999 = vmatpush1.msra.mxu0 0.0
    %5000 = vmatprep.subr.mxu0 0.0
    %5001 = vmatpush1.msra.mxu0 0.0
    %5002 = vmatprep.subr.mxu0 0.0
    %5003 = vmatpush1.msra.mxu0 0.0
    %5004 = vmatprep.subr.mxu0 0.0
    %5005 = vmatpush1.msra.mxu0 0.0
    %5006 = vmatprep.subr.mxu0 0.0
    %5007 = vmatpush1.msra.mxu0 0.0
    %5008 = vmatprep.subr.mxu0 0.0
    %5009 = vmatpush1.msra.mxu0 0.0
    %5010 = vmatprep.subr.mxu0 0.0
    %5011 = vmatpush1.msra.mxu0 0.0
    %5012 = vmatprep.subr.mxu0 0.0
    %5013 = vmatpush1.msra.mxu0 0.0
    %5014 = vmatprep.subr.mxu0 0.0
    %5015 = vmatpush1.msra.mxu0 0.0
    %5016 = vmatprep.subr.mxu0 0.0
    %5017 = vmatpush1.msra.mxu0 0.0
    %5018 = vmatprep.subr.mxu0 0.0
    %5019 = vmatpush1.msra.mxu0 0.0
    %5020 = vmatprep.subr.mxu0 0.0
    %5021 = vmatpush1.msra.mxu0 0.0
    %5022 = vmatprep.subr.mxu0 0.0
    %5023 = vmatpush1.msra.mxu0 0.0
    %5024 = vmatprep.subr.mxu0 0.0
    %5025 = vmatpush1.msra.mxu0 0.0
    %5026 = vmatprep.subr.mxu0 0.0
    %5027 = vmatpush1.msra.mxu0 0.0
    %5028 = vmatprep.subr.mxu0 0.0
    %5029 = vmatpush1.msra.mxu0 0.0
    %5030 = vmatprep.subr.mxu0 0.0
    %5031 = vmatpush1.msra.mxu0 0.0
    %5032 = vmatprep.subr.mxu0 0.0
    %5033 = vmatpush1.msra.mxu0 0.0
    %5034 = vmatprep.subr.mxu0 0.0
    %5035 = vmatpush1.msra.mxu0 0.0
    %5036 = vmatprep.subr.mxu0 0.0
    %5037 = vmatpush1.msra.mxu0 0.0
    %5038 = vmatprep.subr.mxu0 0.0
    %5039 = vmatpush1.msra.mxu0 0.0
    %5040 = vmatprep.mubr.f32.mxu0 0.0
    %5041 = vmatmul.mubr.f32.gmra.mrb[0].mxu0 %v4974
    %v5042 = vpop.f32.mrb[0].mxu0
    %v5043 = vadd.f32 %v4267, %v5042
    %v5044 = vpop.f32.mrb[0].mxu0
    %5045 = vdwg.mxu0
    %v5046 = vadd.f32 %v4262, %v5043
    %v5047 = vxor.u32 %v5046, 2147483648
    %v5048 = vmul.f32 %v5047, 1.442695
    %v5049 = vpow.pop %v5048
    %v5050 = vadd.f32 %v5049, 1.0
    %v5051 = vrcp.pop %v5050
    %v5052 = vmul.f32 1.0, %v5051
    %5054 = vrot.lane.b32.xlu0 %v5043, 64
    %v5055 = vpop.permute.xlu0 %5054
    %v5057 = vmul.f32 %v5052, %v5055
    %5059 = vrot.lane.b32.xlu0 %v5057, 64
    %v5060 = vpop.permute.xlu0 %5059
    %v5062 = vadd.f32 %v4262, %v5060
    %v5063 = vtanh.pop %v5062
    %v5064 = vsub.f32 1.0, %v5052
    %5066 = vrot.lane.b32.xlu0 %v5063, 96
    %v5067 = vpop.permute.xlu0 %5066
    %v5069 = vmul.f32 %v5064, %v5067
    %v5070 = vmul.f32 %v5052, %v4970
    %v5071 = vadd.f32 %v5069, %v5070
    %v5072 = vld [vmem:[%s13] sm:$0xff]
    %v5073 = vld [vmem:[%s13 + $0x8] sm:$0xff]
    %v5074 = vld [vmem:[%s13 + $0x10] sm:$0xff]
    %v5075 = vld [vmem:[%s13 + $0x18] sm:$0xff]
    %v5076 = vld [vmem:[%s13 + $0x20] sm:$0xff]
    %v5077 = vld [vmem:[%s13 + $0x28] sm:$0xff]
    %v5078 = vld [vmem:[%s13 + $0x30] sm:$0xff]
    %v5079 = vld [vmem:[%s13 + $0x38] sm:$0xff]
    %v5080 = vld [vmem:[#allocation20] sm:$0xff]
    %v5081 = vld [vmem:[#allocation20 + $0x8] sm:$0xff]
    %v5082 = vld [vmem:[#allocation20 + $0x10] sm:$0xff]
    %v5083 = vld [vmem:[#allocation20 + $0x18] sm:$0xff]
    %v5084 = vld [vmem:[#allocation22] sm:$0x1]
    %v5085 = vld [vmem:[%s16] sm:$0x1]
    %5086 = vmatprep.subr.mxu0 0.0
    %5087 = vmatpush1.msra.mxu0 %v5076
    %5088 = vmatprep.subr.mxu0 0.0
    %5089 = vmatpush1.msra.mxu0 %v5077
    %5090 = vmatprep.subr.mxu0 0.0
    %5091 = vmatpush1.msra.mxu0 %v5078
    %5092 = vmatprep.subr.mxu0 0.0
    %5093 = vmatpush1.msra.mxu0 %v5079
    %5094 = vmatprep.subr.mxu0 0.0
    %5095 = vmatpush1.msra.mxu0 0.0
    %5096 = vmatprep.subr.mxu0 0.0
    %5097 = vmatpush1.msra.mxu0 0.0
    %5098 = vmatprep.subr.mxu0 0.0
    %5099 = vmatpush1.msra.mxu0 0.0
    %5100 = vmatprep.subr.mxu0 0.0
    %5101 = vmatpush1.msra.mxu0 0.0
    %5102 = vmatprep.subr.mxu0 0.0
    %5103 = vmatpush1.msra.mxu0 0.0
    %5104 = vmatprep.subr.mxu0 0.0
    %5105 = vmatpush1.msra.mxu0 0.0
    %5106 = vmatprep.subr.mxu0 0.0
    %5107 = vmatpush1.msra.mxu0 0.0
    %5108 = vmatprep.subr.mxu0 0.0
    %5109 = vmatpush1.msra.mxu0 0.0
    %5110 = vmatprep.subr.mxu0 0.0
    %5111 = vmatpush1.msra.mxu0 0.0
    %5112 = vmatprep.subr.mxu0 0.0
    %5113 = vmatpush1.msra.mxu0 0.0
    %5114 = vmatprep.subr.mxu0 0.0
    %5115 = vmatpush1.msra.mxu0 0.0
    %5116 = vmatprep.subr.mxu0 0.0
    %5117 = vmatpush1.msra.mxu0 0.0
    %5118 = vmatprep.subr.mxu0 0.0
    %5119 = vmatpush1.msra.mxu0 0.0
    %5120 = vmatprep.subr.mxu0 0.0
    %5121 = vmatpush1.msra.mxu0 0.0
    %5122 = vmatprep.subr.mxu0 0.0
    %5123 = vmatpush1.msra.mxu0 0.0
    %5124 = vmatprep.subr.mxu0 0.0
    %5125 = vmatpush1.msra.mxu0 0.0
    %5126 = vmatprep.subr.mxu0 0.0
    %5127 = vmatpush1.msra.mxu0 0.0
    %5128 = vmatprep.subr.mxu0 0.0
    %5129 = vmatpush1.msra.mxu0 0.0
    %5130 = vmatprep.subr.mxu0 0.0
    %5131 = vmatpush1.msra.mxu0 0.0
    %5132 = vmatprep.subr.mxu0 0.0
    %5133 = vmatpush1.msra.mxu0 0.0
    %5134 = vmatprep.subr.mxu0 0.0
    %5135 = vmatpush1.msra.mxu0 0.0
    %5136 = vmatprep.subr.mxu0 0.0
    %5137 = vmatpush1.msra.mxu0 0.0
    %5138 = vmatprep.subr.mxu0 0.0
    %5139 = vmatpush1.msra.mxu0 0.0
    %5140 = vmatprep.subr.mxu0 0.0
    %5141 = vmatpush1.msra.mxu0 0.0
    %5142 = vmatprep.subr.mxu0 0.0
    %5143 = vmatpush1.msra.mxu0 0.0
    %5144 = vmatprep.subr.mxu0 0.0
    %5145 = vmatpush1.msra.mxu0 0.0
    %5146 = vmatprep.subr.mxu0 0.0
    %5147 = vmatpush1.msra.mxu0 0.0
    %5148 = vmatprep.subr.mxu0 0.0
    %5149 = vmatpush1.msra.mxu0 0.0
    %5150 = vmatprep.mubr.f32.mxu0 0.0
    %5151 = vmatmul.mubr.f32.gmra.mrb[0].mxu0 %v3122
    %v5152 = vpop.f32.mrb[0].mxu0
    %v5153 = vadd.f32 0.0, %v5152
    %v5154 = vpop.f32.mrb[0].mxu0
    %5155 = vdwg.mxu0
    %5156 = vmatprep.subr.mxu0 0.0
    %5157 = vmatpush1.msra.mxu0 %v5072
    %5158 = vmatprep.subr.mxu0 0.0
    %5159 = vmatpush1.msra.mxu0 %v5073
    %5160 = vmatprep.subr.mxu0 0.0
    %5161 = vmatpush1.msra.mxu0 %v5074
    %5162 = vmatprep.subr.mxu0 0.0
    %5163 = vmatpush1.msra.mxu0 %v5075
    %5164 = vmatprep.subr.mxu0 0.0
    %5165 = vmatpush1.msra.mxu0 0.0
    %5166 = vmatprep.subr.mxu0 0.0
    %5167 = vmatpush1.msra.mxu0 0.0
    %5168 = vmatprep.subr.mxu0 0.0
    %5169 = vmatpush1.msra.mxu0 0.0
    %5170 = vmatprep.subr.mxu0 0.0
    %5171 = vmatpush1.msra.mxu0 0.0
    %5172 = vmatprep.subr.mxu0 0.0
    %5173 = vmatpush1.msra.mxu0 0.0
    %5174 = vmatprep.subr.mxu0 0.0
    %5175 = vmatpush1.msra.mxu0 0.0
    %5176 = vmatprep.subr.mxu0 0.0
    %5177 = vmatpush1.msra.mxu0 0.0
    %5178 = vmatprep.subr.mxu0 0.0
    %5179 = vmatpush1.msra.mxu0 0.0
    %5180 = vmatprep.subr.mxu0 0.0
    %5181 = vmatpush1.msra.mxu0 0.0
    %5182 = vmatprep.subr.mxu0 0.0
    %5183 = vmatpush1.msra.mxu0 0.0
    %5184 = vmatprep.subr.mxu0 0.0
    %5185 = vmatpush1.msra.mxu0 0.0
    %5186 = vmatprep.subr.mxu0 0.0
    %5187 = vmatpush1.msra.mxu0 0.0
    %5188 = vmatprep.subr.mxu0 0.0
    %5189 = vmatpush1.msra.mxu0 0.0
    %5190 = vmatprep.subr.mxu0 0.0
    %5191 = vmatpush1.msra.mxu0 0.0
    %5192 = vmatprep.subr.mxu0 0.0
    %5193 = vmatpush1.msra.mxu0 0.0
    %5194 = vmatprep.subr.mxu0 0.0
    %5195 = vmatpush1.msra.mxu0 0.0
    %5196 = vmatprep.subr.mxu0 0.0
    %5197 = vmatpush1.msra.mxu0 0.0
    %5198 = vmatprep.subr.mxu0 0.0
    %5199 = vmatpush1.msra.mxu0 0.0
    %5200 = vmatprep.subr.mxu0 0.0
    %5201 = vmatpush1.msra.mxu0 0.0
    %5202 = vmatprep.subr.mxu0 0.0
    %5203 = vmatpush1.msra.mxu0 0.0
    %5204 = vmatprep.subr.mxu0 0.0
    %5205 = vmatpush1.msra.mxu0 0.0
    %5206 = vmatprep.subr.mxu0 0.0
    %5207 = vmatpush1.msra.mxu0 0.0
    %5208 = vmatprep.subr.mxu0 0.0
    %5209 = vmatpush1.msra.mxu0 0.0
    %5210 = vmatprep.subr.mxu0 0.0
    %5211 = vmatpush1.msra.mxu0 0.0
    %5212 = vmatprep.subr.mxu0 0.0
    %5213 = vmatpush1.msra.mxu0 0.0
    %5214 = vmatprep.subr.mxu0 0.0
    %5215 = vmatpush1.msra.mxu0 0.0
    %5216 = vmatprep.subr.mxu0 0.0
    %5217 = vmatpush1.msra.mxu0 0.0
    %5218 = vmatprep.subr.mxu0 0.0
    %5219 = vmatpush1.msra.mxu0 0.0
    %5220 = vmatprep.mubr.f32.mxu0 0.0
    %5221 = vmatmul.mubr.f32.gmra.mrb[0].mxu0 %v1016
    %v5222 = vpop.f32.mrb[0].mxu0
    %v5223 = vadd.f32 %v5153, %v5222
    %v5224 = vpop.f32.mrb[0].mxu0
    %5225 = vdwg.mxu0
    %v5227 = vlaneseq
    %v5228 = vshrl.u32 %v5227, 7
    %v5229 = vsub.s32 0, %v5228
    %v5230 = vrot.slane %v5084, %v5229
    %v5232 = vadd.f32 %v5223, %v5230
    %5233 = vmatprep.subr.mxu0 0.0
    %5234 = vmatpush1.msra.mxu0 %v5076
    %5235 = vmatprep.subr.mxu0 0.0
    %5236 = vmatpush1.msra.mxu0 %v5077
    %5237 = vmatprep.subr.mxu0 0.0
    %5238 = vmatpush1.msra.mxu0 %v5078
    %5239 = vmatprep.subr.mxu0 0.0
    %5240 = vmatpush1.msra.mxu0 %v5079
    %5241 = vmatprep.subr.mxu0 0.0
    %5242 = vmatpush1.msra.mxu0 0.0
    %5243 = vmatprep.subr.mxu0 0.0
    %5244 = vmatpush1.msra.mxu0 0.0
    %5245 = vmatprep.subr.mxu0 0.0
    %5246 = vmatpush1.msra.mxu0 0.0
    %5247 = vmatprep.subr.mxu0 0.0
    %5248 = vmatpush1.msra.mxu0 0.0
    %5249 = vmatprep.subr.mxu0 0.0
    %5250 = vmatpush1.msra.mxu0 0.0
    %5251 = vmatprep.subr.mxu0 0.0
    %5252 = vmatpush1.msra.mxu0 0.0
    %5253 = vmatprep.subr.mxu0 0.0
    %5254 = vmatpush1.msra.mxu0 0.0
    %5255 = vmatprep.subr.mxu0 0.0
    %5256 = vmatpush1.msra.mxu0 0.0
    %5257 = vmatprep.subr.mxu0 0.0
    %5258 = vmatpush1.msra.mxu0 0.0
    %5259 = vmatprep.subr.mxu0 0.0
    %5260 = vmatpush1.msra.mxu0 0.0
    %5261 = vmatprep.subr.mxu0 0.0
    %5262 = vmatpush1.msra.mxu0 0.0
    %5263 = vmatprep.subr.mxu0 0.0
    %5264 = vmatpush1.msra.mxu0 0.0
    %5265 = vmatprep.subr.mxu0 0.0
    %5266 = vmatpush1.msra.mxu0 0.0
    %5267 = vmatprep.subr.mxu0 0.0
    %5268 = vmatpush1.msra.mxu0 0.0
    %5269 = vmatprep.subr.mxu0 0.0
    %5270 = vmatpush1.msra.mxu0 0.0
    %5271 = vmatprep.subr.mxu0 0.0
    %5272 = vmatpush1.msra.mxu0 0.0
    %5273 = vmatprep.subr.mxu0 0.0
    %5274 = vmatpush1.msra.mxu0 0.0
    %5275 = vmatprep.subr.mxu0 0.0
    %5276 = vmatpush1.msra.mxu0 0.0
    %5277 = vmatprep.subr.mxu0 0.0
    %5278 = vmatpush1.msra.mxu0 0.0
    %5279 = vmatprep.subr.mxu0 0.0
    %5280 = vmatpush1.msra.mxu0 0.0
    %5281 = vmatprep.subr.mxu0 0.0
    %5282 = vmatpush1.msra.mxu0 0.0
    %5283 = vmatprep.subr.mxu0 0.0
    %5284 = vmatpush1.msra.mxu0 0.0
    %5285 = vmatprep.subr.mxu0 0.0
    %5286 = vmatpush1.msra.mxu0 0.0
    %5287 = vmatprep.subr.mxu0 0.0
    %5288 = vmatpush1.msra.mxu0 0.0
    %5289 = vmatprep.subr.mxu0 0.0
    %5290 = vmatpush1.msra.mxu0 0.0
    %5291 = vmatprep.subr.mxu0 0.0
    %5292 = vmatpush1.msra.mxu0 0.0
    %5293 = vmatprep.subr.mxu0 0.0
    %5294 = vmatpush1.msra.mxu0 0.0
    %5295 = vmatprep.subr.mxu0 0.0
    %5296 = vmatpush1.msra.mxu0 0.0
    %5297 = vmatprep.mubr.f32.mxu0 0.0
    %5298 = vmatmul.mubr.f32.gmra.mrb[0].mxu0 %v3007
    %v5299 = vpop.f32.mrb[0].mxu0
    %v5300 = vadd.f32 0.0, %v5299
    %v5301 = vpop.f32.mrb[0].mxu0
    %5302 = vdwg.mxu0
    %5303 = vmatprep.subr.mxu0 0.0
    %5304 = vmatpush1.msra.mxu0 %v5072
    %5305 = vmatprep.subr.mxu0 0.0
    %5306 = vmatpush1.msra.mxu0 %v5073
    %5307 = vmatprep.subr.mxu0 0.0
    %5308 = vmatpush1.msra.mxu0 %v5074
    %5309 = vmatprep.subr.mxu0 0.0
    %5310 = vmatpush1.msra.mxu0 %v5075
    %5311 = vmatprep.subr.mxu0 0.0
    %5312 = vmatpush1.msra.mxu0 0.0
    %5313 = vmatprep.subr.mxu0 0.0
    %5314 = vmatpush1.msra.mxu0 0.0
    %5315 = vmatprep.subr.mxu0 0.0
    %5316 = vmatpush1.msra.mxu0 0.0
    %5317 = vmatprep.subr.mxu0 0.0
    %5318 = vmatpush1.msra.mxu0 0.0
    %5319 = vmatprep.subr.mxu0 0.0
    %5320 = vmatpush1.msra.mxu0 0.0
    %5321 = vmatprep.subr.mxu0 0.0
    %5322 = vmatpush1.msra.mxu0 0.0
    %5323 = vmatprep.subr.mxu0 0.0
    %5324 = vmatpush1.msra.mxu0 0.0
    %5325 = vmatprep.subr.mxu0 0.0
    %5326 = vmatpush1.msra.mxu0 0.0
    %5327 = vmatprep.subr.mxu0 0.0
    %5328 = vmatpush1.msra.mxu0 0.0
    %5329 = vmatprep.subr.mxu0 0.0
    %5330 = vmatpush1.msra.mxu0 0.0
    %5331 = vmatprep.subr.mxu0 0.0
    %5332 = vmatpush1.msra.mxu0 0.0
    %5333 = vmatprep.subr.mxu0 0.0
    %5334 = vmatpush1.msra.mxu0 0.0
    %5335 = vmatprep.subr.mxu0 0.0
    %5336 = vmatpush1.msra.mxu0 0.0
    %5337 = vmatprep.subr.mxu0 0.0
    %5338 = vmatpush1.msra.mxu0 0.0
    %5339 = vmatprep.subr.mxu0 0.0
    %5340 = vmatpush1.msra.mxu0 0.0
    %5341 = vmatprep.subr.mxu0 0.0
    %5342 = vmatpush1.msra.mxu0 0.0
    %5343 = vmatprep.subr.mxu0 0.0
    %5344 = vmatpush1.msra.mxu0 0.0
    %5345 = vmatprep.subr.mxu0 0.0
    %5346 = vmatpush1.msra.mxu0 0.0
    %5347 = vmatprep.subr.mxu0 0.0
    %5348 = vmatpush1.msra.mxu0 0.0
    %5349 = vmatprep.subr.mxu0 0.0
    %5350 = vmatpush1.msra.mxu0 0.0
    %5351 = vmatprep.subr.mxu0 0.0
    %5352 = vmatpush1.msra.mxu0 0.0
    %5353 = vmatprep.subr.mxu0 0.0
    %5354 = vmatpush1.msra.mxu0 0.0
    %5355 = vmatprep.subr.mxu0 0.0
    %5356 = vmatpush1.msra.mxu0 0.0
    %5357 = vmatprep.subr.mxu0 0.0
    %5358 = vmatpush1.msra.mxu0 0.0
    %5359 = vmatprep.subr.mxu0 0.0
    %5360 = vmatpush1.msra.mxu0 0.0
    %5361 = vmatprep.subr.mxu0 0.0
    %5362 = vmatpush1.msra.mxu0 0.0
    %5363 = vmatprep.subr.mxu0 0.0
    %5364 = vmatpush1.msra.mxu0 0.0
    %5365 = vmatprep.subr.mxu0 0.0
    %5366 = vmatpush1.msra.mxu0 0.0
    %5367 = vmatprep.mubr.f32.mxu0 0.0
    %5368 = vmatmul.mubr.f32.gmra.mrb[0].mxu0 %v1117
    %v5369 = vpop.f32.mrb[0].mxu0
    %v5370 = vadd.f32 %v5300, %v5369
    %v5371 = vpop.f32.mrb[0].mxu0
    %5372 = vdwg.mxu0
    %v5373 = vadd.f32 %v5370, %v5230
    %5374 = vmatprep.subr.mxu0 0.0
    %5375 = vmatpush1.msra.mxu0 %v5076
    %5376 = vmatprep.subr.mxu0 0.0
    %5377 = vmatpush1.msra.mxu0 %v5077
    %5378 = vmatprep.subr.mxu0 0.0
    %5379 = vmatpush1.msra.mxu0 %v5078
    %5380 = vmatprep.subr.mxu0 0.0
    %5381 = vmatpush1.msra.mxu0 %v5079
    %5382 = vmatprep.subr.mxu0 0.0
    %5383 = vmatpush1.msra.mxu0 0.0
    %5384 = vmatprep.subr.mxu0 0.0
    %5385 = vmatpush1.msra.mxu0 0.0
    %5386 = vmatprep.subr.mxu0 0.0
    %5387 = vmatpush1.msra.mxu0 0.0
    %5388 = vmatprep.subr.mxu0 0.0
    %5389 = vmatpush1.msra.mxu0 0.0
    %5390 = vmatprep.subr.mxu0 0.0
    %5391 = vmatpush1.msra.mxu0 0.0
    %5392 = vmatprep.subr.mxu0 0.0
    %5393 = vmatpush1.msra.mxu0 0.0
    %5394 = vmatprep.subr.mxu0 0.0
    %5395 = vmatpush1.msra.mxu0 0.0
    %5396 = vmatprep.subr.mxu0 0.0
    %5397 = vmatpush1.msra.mxu0 0.0
    %5398 = vmatprep.subr.mxu0 0.0
    %5399 = vmatpush1.msra.mxu0 0.0
    %5400 = vmatprep.subr.mxu0 0.0
    %5401 = vmatpush1.msra.mxu0 0.0
    %5402 = vmatprep.subr.mxu0 0.0
    %5403 = vmatpush1.msra.mxu0 0.0
    %5404 = vmatprep.subr.mxu0 0.0
    %5405 = vmatpush1.msra.mxu0 0.0
    %5406 = vmatprep.subr.mxu0 0.0
    %5407 = vmatpush1.msra.mxu0 0.0
    %5408 = vmatprep.subr.mxu0 0.0
    %5409 = vmatpush1.msra.mxu0 0.0
    %5410 = vmatprep.subr.mxu0 0.0
    %5411 = vmatpush1.msra.mxu0 0.0
    %5412 = vmatprep.subr.mxu0 0.0
    %5413 = vmatpush1.msra.mxu0 0.0
    %5414 = vmatprep.subr.mxu0 0.0
    %5415 = vmatpush1.msra.mxu0 0.0
    %5416 = vmatprep.subr.mxu0 0.0
    %5417 = vmatpush1.msra.mxu0 0.0
    %5418 = vmatprep.subr.mxu0 0.0
    %5419 = vmatpush1.msra.mxu0 0.0
    %5420 = vmatprep.subr.mxu0 0.0
    %5421 = vmatpush1.msra.mxu0 0.0
    %5422 = vmatprep.subr.mxu0 0.0
    %5423 = vmatpush1.msra.mxu0 0.0
    %5424 = vmatprep.subr.mxu0 0.0
    %5425 = vmatpush1.msra.mxu0 0.0
    %5426 = vmatprep.subr.mxu0 0.0
    %5427 = vmatpush1.msra.mxu0 0.0
    %5428 = vmatprep.subr.mxu0 0.0
    %5429 = vmatpush1.msra.mxu0 0.0
    %5430 = vmatprep.subr.mxu0 0.0
    %5431 = vmatpush1.msra.mxu0 0.0
    %5432 = vmatprep.subr.mxu0 0.0
    %5433 = vmatpush1.msra.mxu0 0.0
    %5434 = vmatprep.subr.mxu0 0.0
    %5435 = vmatpush1.msra.mxu0 0.0
    %5436 = vmatprep.subr.mxu0 0.0
    %5437 = vmatpush1.msra.mxu0 0.0
    %5438 = vmatprep.mubr.f32.mxu0 0.0
    %5439 = vmatmul.mubr.f32.gmra.mrb[0].mxu0 %v2906
    %v5440 = vpop.f32.mrb[0].mxu0
    %v5441 = vadd.f32 0.0, %v5440
    %v5442 = vpop.f32.mrb[0].mxu0
    %5443 = vdwg.mxu0
    %5444 = vmatprep.subr.mxu0 0.0
    %5445 = vmatpush1.msra.mxu0 %v5072
    %5446 = vmatprep.subr.mxu0 0.0
    %5447 = vmatpush1.msra.mxu0 %v5073
    %5448 = vmatprep.subr.mxu0 0.0
    %5449 = vmatpush1.msra.mxu0 %v5074
    %5450 = vmatprep.subr.mxu0 0.0
    %5451 = vmatpush1.msra.mxu0 %v5075
    %5452 = vmatprep.subr.mxu0 0.0
    %5453 = vmatpush1.msra.mxu0 0.0
    %5454 = vmatprep.subr.mxu0 0.0
    %5455 = vmatpush1.msra.mxu0 0.0
    %5456 = vmatprep.subr.mxu0 0.0
    %5457 = vmatpush1.msra.mxu0 0.0
    %5458 = vmatprep.subr.mxu0 0.0
    %5459 = vmatpush1.msra.mxu0 0.0
    %5460 = vmatprep.subr.mxu0 0.0
    %5461 = vmatpush1.msra.mxu0 0.0
    %5462 = vmatprep.subr.mxu0 0.0
    %5463 = vmatpush1.msra.mxu0 0.0
    %5464 = vmatprep.subr.mxu0 0.0
    %5465 = vmatpush1.msra.mxu0 0.0
    %5466 = vmatprep.subr.mxu0 0.0
    %5467 = vmatpush1.msra.mxu0 0.0
    %5468 = vmatprep.subr.mxu0 0.0
    %5469 = vmatpush1.msra.mxu0 0.0
    %5470 = vmatprep.subr.mxu0 0.0
    %5471 = vmatpush1.msra.mxu0 0.0
    %5472 = vmatprep.subr.mxu0 0.0
    %5473 = vmatpush1.msra.mxu0 0.0
    %5474 = vmatprep.subr.mxu0 0.0
    %5475 = vmatpush1.msra.mxu0 0.0
    %5476 = vmatprep.subr.mxu0 0.0
    %5477 = vmatpush1.msra.mxu0 0.0
    %5478 = vmatprep.subr.mxu0 0.0
    %5479 = vmatpush1.msra.mxu0 0.0
    %5480 = vmatprep.subr.mxu0 0.0
    %5481 = vmatpush1.msra.mxu0 0.0
    %5482 = vmatprep.subr.mxu0 0.0
    %5483 = vmatpush1.msra.mxu0 0.0
    %5484 = vmatprep.subr.mxu0 0.0
    %5485 = vmatpush1.msra.mxu0 0.0
    %5486 = vmatprep.subr.mxu0 0.0
    %5487 = vmatpush1.msra.mxu0 0.0
    %5488 = vmatprep.subr.mxu0 0.0
    %5489 = vmatpush1.msra.mxu0 0.0
    %5490 = vmatprep.subr.mxu0 0.0
    %5491 = vmatpush1.msra.mxu0 0.0
    %5492 = vmatprep.subr.mxu0 0.0
    %5493 = vmatpush1.msra.mxu0 0.0
    %5494 = vmatprep.subr.mxu0 0.0
    %5495 = vmatpush1.msra.mxu0 0.0
    %5496 = vmatprep.subr.mxu0 0.0
    %5497 = vmatpush1.msra.mxu0 0.0
    %5498 = vmatprep.subr.mxu0 0.0
    %5499 = vmatpush1.msra.mxu0 0.0
    %5500 = vmatprep.subr.mxu0 0.0
    %5501 = vmatpush1.msra.mxu0 0.0
    %5502 = vmatprep.subr.mxu0 0.0
    %5503 = vmatpush1.msra.mxu0 0.0
    %5504 = vmatprep.subr.mxu0 0.0
    %5505 = vmatpush1.msra.mxu0 0.0
    %5506 = vmatprep.subr.mxu0 0.0
    %5507 = vmatpush1.msra.mxu0 0.0
    %5508 = vmatprep.mubr.f32.mxu0 0.0
    %5509 = vmatmul.mubr.f32.gmra.mrb[0].mxu0 %v1218
    %v5510 = vpop.f32.mrb[0].mxu0
    %v5511 = vadd.f32 %v5441, %v5510
    %v5512 = vpop.f32.mrb[0].mxu0
    %5513 = vdwg.mxu0
    %v5514 = vadd.f32 %v5511, %v5230
    %5515 = vmatprep.subr.mxu0 0.0
    %5516 = vmatpush1.msra.mxu0 %v5076
    %5517 = vmatprep.subr.mxu0 0.0
    %5518 = vmatpush1.msra.mxu0 %v5077
    %5519 = vmatprep.subr.mxu0 0.0
    %5520 = vmatpush1.msra.mxu0 %v5078
    %5521 = vmatprep.subr.mxu0 0.0
    %5522 = vmatpush1.msra.mxu0 %v5079
    %5523 = vmatprep.subr.mxu0 0.0
    %5524 = vmatpush1.msra.mxu0 0.0
    %5525 = vmatprep.subr.mxu0 0.0
    %5526 = vmatpush1.msra.mxu0 0.0
    %5527 = vmatprep.subr.mxu0 0.0
    %5528 = vmatpush1.msra.mxu0 0.0
    %5529 = vmatprep.subr.mxu0 0.0
    %5530 = vmatpush1.msra.mxu0 0.0
    %5531 = vmatprep.subr.mxu0 0.0
    %5532 = vmatpush1.msra.mxu0 0.0
    %5533 = vmatprep.subr.mxu0 0.0
    %5534 = vmatpush1.msra.mxu0 0.0
    %5535 = vmatprep.subr.mxu0 0.0
    %5536 = vmatpush1.msra.mxu0 0.0
    %5537 = vmatprep.subr.mxu0 0.0
    %5538 = vmatpush1.msra.mxu0 0.0
    %5539 = vmatprep.subr.mxu0 0.0
    %5540 = vmatpush1.msra.mxu0 0.0
    %5541 = vmatprep.subr.mxu0 0.0
    %5542 = vmatpush1.msra.mxu0 0.0
    %5543 = vmatprep.subr.mxu0 0.0
    %5544 = vmatpush1.msra.mxu0 0.0
    %5545 = vmatprep.subr.mxu0 0.0
    %5546 = vmatpush1.msra.mxu0 0.0
    %5547 = vmatprep.subr.mxu0 0.0
    %5548 = vmatpush1.msra.mxu0 0.0
    %5549 = vmatprep.subr.mxu0 0.0
    %5550 = vmatpush1.msra.mxu0 0.0
    %5551 = vmatprep.subr.mxu0 0.0
    %5552 = vmatpush1.msra.mxu0 0.0
    %5553 = vmatprep.subr.mxu0 0.0
    %5554 = vmatpush1.msra.mxu0 0.0
    %5555 = vmatprep.subr.mxu0 0.0
    %5556 = vmatpush1.msra.mxu0 0.0
    %5557 = vmatprep.subr.mxu0 0.0
    %5558 = vmatpush1.msra.mxu0 0.0
    %5559 = vmatprep.subr.mxu0 0.0
    %5560 = vmatpush1.msra.mxu0 0.0
    %5561 = vmatprep.subr.mxu0 0.0
    %5562 = vmatpush1.msra.mxu0 0.0
    %5563 = vmatprep.subr.mxu0 0.0
    %5564 = vmatpush1.msra.mxu0 0.0
    %5565 = vmatprep.subr.mxu0 0.0
    %5566 = vmatpush1.msra.mxu0 0.0
    %5567 = vmatprep.subr.mxu0 0.0
    %5568 = vmatpush1.msra.mxu0 0.0
    %5569 = vmatprep.subr.mxu0 0.0
    %5570 = vmatpush1.msra.mxu0 0.0
    %5571 = vmatprep.subr.mxu0 0.0
    %5572 = vmatpush1.msra.mxu0 0.0
    %5573 = vmatprep.subr.mxu0 0.0
    %5574 = vmatpush1.msra.mxu0 0.0
    %5575 = vmatprep.subr.mxu0 0.0
    %5576 = vmatpush1.msra.mxu0 0.0
    %5577 = vmatprep.subr.mxu0 0.0
    %5578 = vmatpush1.msra.mxu0 0.0
    %5579 = vmatprep.mubr.f32.mxu0 0.0
    %5580 = vmatmul.mubr.f32.gmra.mrb[0].mxu0 %v2805
    %v5581 = vpop.f32.mrb[0].mxu0
    %v5582 = vadd.f32 0.0, %v5581
    %v5583 = vpop.f32.mrb[0].mxu0
    %5584 = vdwg.mxu0
    %5585 = vmatprep.subr.mxu0 0.0
    %5586 = vmatpush1.msra.mxu0 %v5072
    %5587 = vmatprep.subr.mxu0 0.0
    %5588 = vmatpush1.msra.mxu0 %v5073
    %5589 = vmatprep.subr.mxu0 0.0
    %5590 = vmatpush1.msra.mxu0 %v5074
    %5591 = vmatprep.subr.mxu0 0.0
    %5592 = vmatpush1.msra.mxu0 %v5075
    %5593 = vmatprep.subr.mxu0 0.0
    %5594 = vmatpush1.msra.mxu0 0.0
    %5595 = vmatprep.subr.mxu0 0.0
    %5596 = vmatpush1.msra.mxu0 0.0
    %5597 = vmatprep.subr.mxu0 0.0
    %5598 = vmatpush1.msra.mxu0 0.0
    %5599 = vmatprep.subr.mxu0 0.0
    %5600 = vmatpush1.msra.mxu0 0.0
    %5601 = vmatprep.subr.mxu0 0.0
    %5602 = vmatpush1.msra.mxu0 0.0
    %5603 = vmatprep.subr.mxu0 0.0
    %5604 = vmatpush1.msra.mxu0 0.0
    %5605 = vmatprep.subr.mxu0 0.0
    %5606 = vmatpush1.msra.mxu0 0.0
    %5607 = vmatprep.subr.mxu0 0.0
    %5608 = vmatpush1.msra.mxu0 0.0
    %5609 = vmatprep.subr.mxu0 0.0
    %5610 = vmatpush1.msra.mxu0 0.0
    %5611 = vmatprep.subr.mxu0 0.0
    %5612 = vmatpush1.msra.mxu0 0.0
    %5613 = vmatprep.subr.mxu0 0.0
    %5614 = vmatpush1.msra.mxu0 0.0
    %5615 = vmatprep.subr.mxu0 0.0
    %5616 = vmatpush1.msra.mxu0 0.0
    %5617 = vmatprep.subr.mxu0 0.0
    %5618 = vmatpush1.msra.mxu0 0.0
    %5619 = vmatprep.subr.mxu0 0.0
    %5620 = vmatpush1.msra.mxu0 0.0
    %5621 = vmatprep.subr.mxu0 0.0
    %5622 = vmatpush1.msra.mxu0 0.0
    %5623 = vmatprep.subr.mxu0 0.0
    %5624 = vmatpush1.msra.mxu0 0.0
    %5625 = vmatprep.subr.mxu0 0.0
    %5626 = vmatpush1.msra.mxu0 0.0
    %5627 = vmatprep.subr.mxu0 0.0
    %5628 = vmatpush1.msra.mxu0 0.0
    %5629 = vmatprep.subr.mxu0 0.0
    %5630 = vmatpush1.msra.mxu0 0.0
    %5631 = vmatprep.subr.mxu0 0.0
    %5632 = vmatpush1.msra.mxu0 0.0
    %5633 = vmatprep.subr.mxu0 0.0
    %5634 = vmatpush1.msra.mxu0 0.0
    %5635 = vmatprep.subr.mxu0 0.0
    %5636 = vmatpush1.msra.mxu0 0.0
    %5637 = vmatprep.subr.mxu0 0.0
    %5638 = vmatpush1.msra.mxu0 0.0
    %5639 = vmatprep.subr.mxu0 0.0
    %5640 = vmatpush1.msra.mxu0 0.0
    %5641 = vmatprep.subr.mxu0 0.0
    %5642 = vmatpush1.msra.mxu0 0.0
    %5643 = vmatprep.subr.mxu0 0.0
    %5644 = vmatpush1.msra.mxu0 0.0
    %5645 = vmatprep.subr.mxu0 0.0
    %5646 = vmatpush1.msra.mxu0 0.0
    %5647 = vmatprep.subr.mxu0 0.0
    %5648 = vmatpush1.msra.mxu0 0.0
    %5649 = vmatprep.mubr.f32.mxu0 0.0
    %5650 = vmatmul.mubr.f32.gmra.mrb[0].mxu0 %v1319
    %v5651 = vpop.f32.mrb[0].mxu0
    %v5652 = vadd.f32 %v5582, %v5651
    %v5653 = vpop.f32.mrb[0].mxu0
    %5654 = vdwg.mxu0
    %v5655 = vadd.f32 %v5652, %v5230
    %5656 = vmatprep.subr.mxu0 0.0
    %5657 = vmatpush1.msra.mxu0 %v5076
    %5658 = vmatprep.subr.mxu0 0.0
    %5659 = vmatpush1.msra.mxu0 %v5077
    %5660 = vmatprep.subr.mxu0 0.0
    %5661 = vmatpush1.msra.mxu0 %v5078
    %5662 = vmatprep.subr.mxu0 0.0
    %5663 = vmatpush1.msra.mxu0 %v5079
    %5664 = vmatprep.subr.mxu0 0.0
    %5665 = vmatpush1.msra.mxu0 0.0
    %5666 = vmatprep.subr.mxu0 0.0
    %5667 = vmatpush1.msra.mxu0 0.0
    %5668 = vmatprep.subr.mxu0 0.0
    %5669 = vmatpush1.msra.mxu0 0.0
    %5670 = vmatprep.subr.mxu0 0.0
    %5671 = vmatpush1.msra.mxu0 0.0
    %5672 = vmatprep.subr.mxu0 0.0
    %5673 = vmatpush1.msra.mxu0 0.0
    %5674 = vmatprep.subr.mxu0 0.0
    %5675 = vmatpush1.msra.mxu0 0.0
    %5676 = vmatprep.subr.mxu0 0.0
    %5677 = vmatpush1.msra.mxu0 0.0
    %5678 = vmatprep.subr.mxu0 0.0
    %5679 = vmatpush1.msra.mxu0 0.0
    %5680 = vmatprep.subr.mxu0 0.0
    %5681 = vmatpush1.msra.mxu0 0.0
    %5682 = vmatprep.subr.mxu0 0.0
    %5683 = vmatpush1.msra.mxu0 0.0
    %5684 = vmatprep.subr.mxu0 0.0
    %5685 = vmatpush1.msra.mxu0 0.0
    %5686 = vmatprep.subr.mxu0 0.0
    %5687 = vmatpush1.msra.mxu0 0.0
    %5688 = vmatprep.subr.mxu0 0.0
    %5689 = vmatpush1.msra.mxu0 0.0
    %5690 = vmatprep.subr.mxu0 0.0
    %5691 = vmatpush1.msra.mxu0 0.0
    %5692 = vmatprep.subr.mxu0 0.0
    %5693 = vmatpush1.msra.mxu0 0.0
    %5694 = vmatprep.subr.mxu0 0.0
    %5695 = vmatpush1.msra.mxu0 0.0
    %5696 = vmatprep.subr.mxu0 0.0
    %5697 = vmatpush1.msra.mxu0 0.0
    %5698 = vmatprep.subr.mxu0 0.0
    %5699 = vmatpush1.msra.mxu0 0.0
    %5700 = vmatprep.subr.mxu0 0.0
    %5701 = vmatpush1.msra.mxu0 0.0
    %5702 = vmatprep.subr.mxu0 0.0
    %5703 = vmatpush1.msra.mxu0 0.0
    %5704 = vmatprep.subr.mxu0 0.0
    %5705 = vmatpush1.msra.mxu0 0.0
    %5706 = vmatprep.subr.mxu0 0.0
    %5707 = vmatpush1.msra.mxu0 0.0
    %5708 = vmatprep.subr.mxu0 0.0
    %5709 = vmatpush1.msra.mxu0 0.0
    %5710 = vmatprep.subr.mxu0 0.0
    %5711 = vmatpush1.msra.mxu0 0.0
    %5712 = vmatprep.subr.mxu0 0.0
    %5713 = vmatpush1.msra.mxu0 0.0
    %5714 = vmatprep.subr.mxu0 0.0
    %5715 = vmatpush1.msra.mxu0 0.0
    %5716 = vmatprep.subr.mxu0 0.0
    %5717 = vmatpush1.msra.mxu0 0.0
    %5718 = vmatprep.subr.mxu0 0.0
    %5719 = vmatpush1.msra.mxu0 0.0
    %5720 = vmatprep.mubr.f32.mxu0 0.0
    %5721 = vmatmul.mubr.f32.gmra.mrb[0].mxu0 %v2704
    %v5722 = vpop.f32.mrb[0].mxu0
    %v5723 = vadd.f32 0.0, %v5722
    %v5724 = vpop.f32.mrb[0].mxu0
    %5725 = vdwg.mxu0
    %5726 = vmatprep.subr.mxu0 0.0
    %5727 = vmatpush1.msra.mxu0 %v5072
    %5728 = vmatprep.subr.mxu0 0.0
    %5729 = vmatpush1.msra.mxu0 %v5073
    %5730 = vmatprep.subr.mxu0 0.0
    %5731 = vmatpush1.msra.mxu0 %v5074
    %5732 = vmatprep.subr.mxu0 0.0
    %5733 = vmatpush1.msra.mxu0 %v5075
    %5734 = vmatprep.subr.mxu0 0.0
    %5735 = vmatpush1.msra.mxu0 0.0
    %5736 = vmatprep.subr.mxu0 0.0
    %5737 = vmatpush1.msra.mxu0 0.0
    %5738 = vmatprep.subr.mxu0 0.0
    %5739 = vmatpush1.msra.mxu0 0.0
    %5740 = vmatprep.subr.mxu0 0.0
    %5741 = vmatpush1.msra.mxu0 0.0
    %5742 = vmatprep.subr.mxu0 0.0
    %5743 = vmatpush1.msra.mxu0 0.0
    %5744 = vmatprep.subr.mxu0 0.0
    %5745 = vmatpush1.msra.mxu0 0.0
    %5746 = vmatprep.subr.mxu0 0.0
    %5747 = vmatpush1.msra.mxu0 0.0
    %5748 = vmatprep.subr.mxu0 0.0
    %5749 = vmatpush1.msra.mxu0 0.0
    %5750 = vmatprep.subr.mxu0 0.0
    %5751 = vmatpush1.msra.mxu0 0.0
    %5752 = vmatprep.subr.mxu0 0.0
    %5753 = vmatpush1.msra.mxu0 0.0
    %5754 = vmatprep.subr.mxu0 0.0
    %5755 = vmatpush1.msra.mxu0 0.0
    %5756 = vmatprep.subr.mxu0 0.0
    %5757 = vmatpush1.msra.mxu0 0.0
    %5758 = vmatprep.subr.mxu0 0.0
    %5759 = vmatpush1.msra.mxu0 0.0
    %5760 = vmatprep.subr.mxu0 0.0
    %5761 = vmatpush1.msra.mxu0 0.0
    %5762 = vmatprep.subr.mxu0 0.0
    %5763 = vmatpush1.msra.mxu0 0.0
    %5764 = vmatprep.subr.mxu0 0.0
    %5765 = vmatpush1.msra.mxu0 0.0
    %5766 = vmatprep.subr.mxu0 0.0
    %5767 = vmatpush1.msra.mxu0 0.0
    %5768 = vmatprep.subr.mxu0 0.0
    %5769 = vmatpush1.msra.mxu0 0.0
    %5770 = vmatprep.subr.mxu0 0.0
    %5771 = vmatpush1.msra.mxu0 0.0
    %5772 = vmatprep.subr.mxu0 0.0
    %5773 = vmatpush1.msra.mxu0 0.0
    %5774 = vmatprep.subr.mxu0 0.0
    %5775 = vmatpush1.msra.mxu0 0.0
    %5776 = vmatprep.subr.mxu0 0.0
    %5777 = vmatpush1.msra.mxu0 0.0
    %5778 = vmatprep.subr.mxu0 0.0
    %5779 = vmatpush1.msra.mxu0 0.0
    %5780 = vmatprep.subr.mxu0 0.0
    %5781 = vmatpush1.msra.mxu0 0.0
    %5782 = vmatprep.subr.mxu0 0.0
    %5783 = vmatpush1.msra.mxu0 0.0
    %5784 = vmatprep.subr.mxu0 0.0
    %5785 = vmatpush1.msra.mxu0 0.0
    %5786 = vmatprep.subr.mxu0 0.0
    %5787 = vmatpush1.msra.mxu0 0.0
    %5788 = vmatprep.subr.mxu0 0.0
    %5789 = vmatpush1.msra.mxu0 0.0
    %5790 = vmatprep.mubr.f32.mxu0 0.0
    %5791 = vmatmul.mubr.f32.gmra.mrb[0].mxu0 %v1420
    %v5792 = vpop.f32.mrb[0].mxu0
    %v5793 = vadd.f32 %v5723, %v5792
    %v5794 = vpop.f32.mrb[0].mxu0
    %5795 = vdwg.mxu0
    %v5796 = vadd.f32 %v5793, %v5230
    %5797 = vmatprep.subr.mxu0 0.0
    %5798 = vmatpush1.msra.mxu0 %v5076
    %5799 = vmatprep.subr.mxu0 0.0
    %5800 = vmatpush1.msra.mxu0 %v5077
    %5801 = vmatprep.subr.mxu0 0.0
    %5802 = vmatpush1.msra.mxu0 %v5078
    %5803 = vmatprep.subr.mxu0 0.0
    %5804 = vmatpush1.msra.mxu0 %v5079
    %5805 = vmatprep.subr.mxu0 0.0
    %5806 = vmatpush1.msra.mxu0 0.0
    %5807 = vmatprep.subr.mxu0 0.0
    %5808 = vmatpush1.msra.mxu0 0.0
    %5809 = vmatprep.subr.mxu0 0.0
    %5810 = vmatpush1.msra.mxu0 0.0
    %5811 = vmatprep.subr.mxu0 0.0
    %5812 = vmatpush1.msra.mxu0 0.0
    %5813 = vmatprep.subr.mxu0 0.0
    %5814 = vmatpush1.msra.mxu0 0.0
    %5815 = vmatprep.subr.mxu0 0.0
    %5816 = vmatpush1.msra.mxu0 0.0
    %5817 = vmatprep.subr.mxu0 0.0
    %5818 = vmatpush1.msra.mxu0 0.0
    %5819 = vmatprep.subr.mxu0 0.0
    %5820 = vmatpush1.msra.mxu0 0.0
    %5821 = vmatprep.subr.mxu0 0.0
    %5822 = vmatpush1.msra.mxu0 0.0
    %5823 = vmatprep.subr.mxu0 0.0
    %5824 = vmatpush1.msra.mxu0 0.0
    %5825 = vmatprep.subr.mxu0 0.0
    %5826 = vmatpush1.msra.mxu0 0.0
    %5827 = vmatprep.subr.mxu0 0.0
    %5828 = vmatpush1.msra.mxu0 0.0
    %5829 = vmatprep.subr.mxu0 0.0
    %5830 = vmatpush1.msra.mxu0 0.0
    %5831 = vmatprep.subr.mxu0 0.0
    %5832 = vmatpush1.msra.mxu0 0.0
    %5833 = vmatprep.subr.mxu0 0.0
    %5834 = vmatpush1.msra.mxu0 0.0
    %5835 = vmatprep.subr.mxu0 0.0
    %5836 = vmatpush1.msra.mxu0 0.0
    %5837 = vmatprep.subr.mxu0 0.0
    %5838 = vmatpush1.msra.mxu0 0.0
    %5839 = vmatprep.subr.mxu0 0.0
    %5840 = vmatpush1.msra.mxu0 0.0
    %5841 = vmatprep.subr.mxu0 0.0
    %5842 = vmatpush1.msra.mxu0 0.0
    %5843 = vmatprep.subr.mxu0 0.0
    %5844 = vmatpush1.msra.mxu0 0.0
    %5845 = vmatprep.subr.mxu0 0.0
    %5846 = vmatpush1.msra.mxu0 0.0
    %5847 = vmatprep.subr.mxu0 0.0
    %5848 = vmatpush1.msra.mxu0 0.0
    %5849 = vmatprep.subr.mxu0 0.0
    %5850 = vmatpush1.msra.mxu0 0.0
    %5851 = vmatprep.subr.mxu0 0.0
    %5852 = vmatpush1.msra.mxu0 0.0
    %5853 = vmatprep.subr.mxu0 0.0
    %5854 = vmatpush1.msra.mxu0 0.0
    %5855 = vmatprep.subr.mxu0 0.0
    %5856 = vmatpush1.msra.mxu0 0.0
    %5857 = vmatprep.subr.mxu0 0.0
    %5858 = vmatpush1.msra.mxu0 0.0
    %5859 = vmatprep.subr.mxu0 0.0
    %5860 = vmatpush1.msra.mxu0 0.0
    %5861 = vmatprep.mubr.f32.mxu0 0.0
    %5862 = vmatmul.mubr.f32.gmra.mrb[0].mxu0 %v2603
    %v5863 = vpop.f32.mrb[0].mxu0
    %v5864 = vadd.f32 0.0, %v5863
    %v5865 = vpop.f32.mrb[0].mxu0
    %5866 = vdwg.mxu0
    %5867 = vmatprep.subr.mxu0 0.0
    %5868 = vmatpush1.msra.mxu0 %v5072
    %5869 = vmatprep.subr.mxu0 0.0
    %5870 = vmatpush1.msra.mxu0 %v5073
    %5871 = vmatprep.subr.mxu0 0.0
    %5872 = vmatpush1.msra.mxu0 %v5074
    %5873 = vmatprep.subr.mxu0 0.0
    %5874 = vmatpush1.msra.mxu0 %v5075
    %5875 = vmatprep.subr.mxu0 0.0
    %5876 = vmatpush1.msra.mxu0 0.0
    %5877 = vmatprep.subr.mxu0 0.0
    %5878 = vmatpush1.msra.mxu0 0.0
    %5879 = vmatprep.subr.mxu0 0.0
    %5880 = vmatpush1.msra.mxu0 0.0
    %5881 = vmatprep.subr.mxu0 0.0
    %5882 = vmatpush1.msra.mxu0 0.0
    %5883 = vmatprep.subr.mxu0 0.0
    %5884 = vmatpush1.msra.mxu0 0.0
    %5885 = vmatprep.subr.mxu0 0.0
    %5886 = vmatpush1.msra.mxu0 0.0
    %5887 = vmatprep.subr.mxu0 0.0
    %5888 = vmatpush1.msra.mxu0 0.0
    %5889 = vmatprep.subr.mxu0 0.0
    %5890 = vmatpush1.msra.mxu0 0.0
    %5891 = vmatprep.subr.mxu0 0.0
    %5892 = vmatpush1.msra.mxu0 0.0
    %5893 = vmatprep.subr.mxu0 0.0
    %5894 = vmatpush1.msra.mxu0 0.0
    %5895 = vmatprep.subr.mxu0 0.0
    %5896 = vmatpush1.msra.mxu0 0.0
    %5897 = vmatprep.subr.mxu0 0.0
    %5898 = vmatpush1.msra.mxu0 0.0
    %5899 = vmatprep.subr.mxu0 0.0
    %5900 = vmatpush1.msra.mxu0 0.0
    %5901 = vmatprep.subr.mxu0 0.0
    %5902 = vmatpush1.msra.mxu0 0.0
    %5903 = vmatprep.subr.mxu0 0.0
    %5904 = vmatpush1.msra.mxu0 0.0
    %5905 = vmatprep.subr.mxu0 0.0
    %5906 = vmatpush1.msra.mxu0 0.0
    %5907 = vmatprep.subr.mxu0 0.0
    %5908 = vmatpush1.msra.mxu0 0.0
    %5909 = vmatprep.subr.mxu0 0.0
    %5910 = vmatpush1.msra.mxu0 0.0
    %5911 = vmatprep.subr.mxu0 0.0
    %5912 = vmatpush1.msra.mxu0 0.0
    %5913 = vmatprep.subr.mxu0 0.0
    %5914 = vmatpush1.msra.mxu0 0.0
    %5915 = vmatprep.subr.mxu0 0.0
    %5916 = vmatpush1.msra.mxu0 0.0
    %5917 = vmatprep.subr.mxu0 0.0
    %5918 = vmatpush1.msra.mxu0 0.0
    %5919 = vmatprep.subr.mxu0 0.0
    %5920 = vmatpush1.msra.mxu0 0.0
    %5921 = vmatprep.subr.mxu0 0.0
    %5922 = vmatpush1.msra.mxu0 0.0
    %5923 = vmatprep.subr.mxu0 0.0
    %5924 = vmatpush1.msra.mxu0 0.0
    %5925 = vmatprep.subr.mxu0 0.0
    %5926 = vmatpush1.msra.mxu0 0.0
    %5927 = vmatprep.subr.mxu0 0.0
    %5928 = vmatpush1.msra.mxu0 0.0
    %5929 = vmatprep.subr.mxu0 0.0
    %5930 = vmatpush1.msra.mxu0 0.0
    %5931 = vmatprep.mubr.f32.mxu0 0.0
    %5932 = vmatmul.mubr.f32.gmra.mrb[0].mxu0 %v1521
    %v5933 = vpop.f32.mrb[0].mxu0
    %v5934 = vadd.f32 %v5864, %v5933
    %v5935 = vpop.f32.mrb[0].mxu0
    %5936 = vdwg.mxu0
    %v5937 = vadd.f32 %v5934, %v5230
    %5938 = vmatprep.subr.mxu0 0.0
    %5939 = vmatpush1.msra.mxu0 %v5076
    %5940 = vmatprep.subr.mxu0 0.0
    %5941 = vmatpush1.msra.mxu0 %v5077
    %5942 = vmatprep.subr.mxu0 0.0
    %5943 = vmatpush1.msra.mxu0 %v5078
    %5944 = vmatprep.subr.mxu0 0.0
    %5945 = vmatpush1.msra.mxu0 %v5079
    %5946 = vmatprep.subr.mxu0 0.0
    %5947 = vmatpush1.msra.mxu0 0.0
    %5948 = vmatprep.subr.mxu0 0.0
    %5949 = vmatpush1.msra.mxu0 0.0
    %5950 = vmatprep.subr.mxu0 0.0
    %5951 = vmatpush1.msra.mxu0 0.0
    %5952 = vmatprep.subr.mxu0 0.0
    %5953 = vmatpush1.msra.mxu0 0.0
    %5954 = vmatprep.subr.mxu0 0.0
    %5955 = vmatpush1.msra.mxu0 0.0
    %5956 = vmatprep.subr.mxu0 0.0
    %5957 = vmatpush1.msra.mxu0 0.0
    %5958 = vmatprep.subr.mxu0 0.0
    %5959 = vmatpush1.msra.mxu0 0.0
    %5960 = vmatprep.subr.mxu0 0.0
    %5961 = vmatpush1.msra.mxu0 0.0
    %5962 = vmatprep.subr.mxu0 0.0
    %5963 = vmatpush1.msra.mxu0 0.0
    %5964 = vmatprep.subr.mxu0 0.0
    %5965 = vmatpush1.msra.mxu0 0.0
    %5966 = vmatprep.subr.mxu0 0.0
    %5967 = vmatpush1.msra.mxu0 0.0
    %5968 = vmatprep.subr.mxu0 0.0
    %5969 = vmatpush1.msra.mxu0 0.0
    %5970 = vmatprep.subr.mxu0 0.0
    %5971 = vmatpush1.msra.mxu0 0.0
    %5972 = vmatprep.subr.mxu0 0.0
    %5973 = vmatpush1.msra.mxu0 0.0
    %5974 = vmatprep.subr.mxu0 0.0
    %5975 = vmatpush1.msra.mxu0 0.0
    %5976 = vmatprep.subr.mxu0 0.0
    %5977 = vmatpush1.msra.mxu0 0.0
    %5978 = vmatprep.subr.mxu0 0.0
    %5979 = vmatpush1.msra.mxu0 0.0
    %5980 = vmatprep.subr.mxu0 0.0
    %5981 = vmatpush1.msra.mxu0 0.0
    %5982 = vmatprep.subr.mxu0 0.0
    %5983 = vmatpush1.msra.mxu0 0.0
    %5984 = vmatprep.subr.mxu0 0.0
    %5985 = vmatpush1.msra.mxu0 0.0
    %5986 = vmatprep.subr.mxu0 0.0
    %5987 = vmatpush1.msra.mxu0 0.0
    %5988 = vmatprep.subr.mxu0 0.0
    %5989 = vmatpush1.msra.mxu0 0.0
    %5990 = vmatprep.subr.mxu0 0.0
    %5991 = vmatpush1.msra.mxu0 0.0
    %5992 = vmatprep.subr.mxu0 0.0
    %5993 = vmatpush1.msra.mxu0 0.0
    %5994 = vmatprep.subr.mxu0 0.0
    %5995 = vmatpush1.msra.mxu0 0.0
    %5996 = vmatprep.subr.mxu0 0.0
    %5997 = vmatpush1.msra.mxu0 0.0
    %5998 = vmatprep.subr.mxu0 0.0
    %5999 = vmatpush1.msra.mxu0 0.0
    %6000 = vmatprep.subr.mxu0 0.0
    %6001 = vmatpush1.msra.mxu0 0.0
    %6002 = vmatprep.mubr.f32.mxu0 0.0
    %6003 = vmatmul.mubr.f32.gmra.mrb[0].mxu0 %v2502
    %v6004 = vpop.f32.mrb[0].mxu0
    %v6005 = vadd.f32 0.0, %v6004
    %v6006 = vpop.f32.mrb[0].mxu0
    %6007 = vdwg.mxu0
    %6008 = vmatprep.subr.mxu0 0.0
    %6009 = vmatpush1.msra.mxu0 %v5072
    %6010 = vmatprep.subr.mxu0 0.0
    %6011 = vmatpush1.msra.mxu0 %v5073
    %6012 = vmatprep.subr.mxu0 0.0
    %6013 = vmatpush1.msra.mxu0 %v5074
    %6014 = vmatprep.subr.mxu0 0.0
    %6015 = vmatpush1.msra.mxu0 %v5075
    %6016 = vmatprep.subr.mxu0 0.0
    %6017 = vmatpush1.msra.mxu0 0.0
    %6018 = vmatprep.subr.mxu0 0.0
    %6019 = vmatpush1.msra.mxu0 0.0
    %6020 = vmatprep.subr.mxu0 0.0
    %6021 = vmatpush1.msra.mxu0 0.0
    %6022 = vmatprep.subr.mxu0 0.0
    %6023 = vmatpush1.msra.mxu0 0.0
    %6024 = vmatprep.subr.mxu0 0.0
    %6025 = vmatpush1.msra.mxu0 0.0
    %6026 = vmatprep.subr.mxu0 0.0
    %6027 = vmatpush1.msra.mxu0 0.0
    %6028 = vmatprep.subr.mxu0 0.0
    %6029 = vmatpush1.msra.mxu0 0.0
    %6030 = vmatprep.subr.mxu0 0.0
    %6031 = vmatpush1.msra.mxu0 0.0
    %6032 = vmatprep.subr.mxu0 0.0
    %6033 = vmatpush1.msra.mxu0 0.0
    %6034 = vmatprep.subr.mxu0 0.0
    %6035 = vmatpush1.msra.mxu0 0.0
    %6036 = vmatprep.subr.mxu0 0.0
    %6037 = vmatpush1.msra.mxu0 0.0
    %6038 = vmatprep.subr.mxu0 0.0
    %6039 = vmatpush1.msra.mxu0 0.0
    %6040 = vmatprep.subr.mxu0 0.0
    %6041 = vmatpush1.msra.mxu0 0.0
    %6042 = vmatprep.subr.mxu0 0.0
    %6043 = vmatpush1.msra.mxu0 0.0
    %6044 = vmatprep.subr.mxu0 0.0
    %6045 = vmatpush1.msra.mxu0 0.0
    %6046 = vmatprep.subr.mxu0 0.0
    %6047 = vmatpush1.msra.mxu0 0.0
    %6048 = vmatprep.subr.mxu0 0.0
    %6049 = vmatpush1.msra.mxu0 0.0
    %6050 = vmatprep.subr.mxu0 0.0
    %6051 = vmatpush1.msra.mxu0 0.0
    %6052 = vmatprep.subr.mxu0 0.0
    %6053 = vmatpush1.msra.mxu0 0.0
    %6054 = vmatprep.subr.mxu0 0.0
    %6055 = vmatpush1.msra.mxu0 0.0
    %6056 = vmatprep.subr.mxu0 0.0
    %6057 = vmatpush1.msra.mxu0 0.0
    %6058 = vmatprep.subr.mxu0 0.0
    %6059 = vmatpush1.msra.mxu0 0.0
    %6060 = vmatprep.subr.mxu0 0.0
    %6061 = vmatpush1.msra.mxu0 0.0
    %6062 = vmatprep.subr.mxu0 0.0
    %6063 = vmatpush1.msra.mxu0 0.0
    %6064 = vmatprep.subr.mxu0 0.0
    %6065 = vmatpush1.msra.mxu0 0.0
    %6066 = vmatprep.subr.mxu0 0.0
    %6067 = vmatpush1.msra.mxu0 0.0
    %6068 = vmatprep.subr.mxu0 0.0
    %6069 = vmatpush1.msra.mxu0 0.0
    %6070 = vmatprep.subr.mxu0 0.0
    %6071 = vmatpush1.msra.mxu0 0.0
    %6072 = vmatprep.mubr.f32.mxu0 0.0
    %6073 = vmatmul.mubr.f32.gmra.mrb[0].mxu0 %v1622
    %v6074 = vpop.f32.mrb[0].mxu0
    %v6075 = vadd.f32 %v6005, %v6074
    %v6076 = vpop.f32.mrb[0].mxu0
    %6077 = vdwg.mxu0
    %v6078 = vadd.f32 %v6075, %v5230
    %6079 = vmatprep.subr.mxu0 0.0
    %6080 = vmatpush1.msra.mxu0 %v5076
    %6081 = vmatprep.subr.mxu0 0.0
    %6082 = vmatpush1.msra.mxu0 %v5077
    %6083 = vmatprep.subr.mxu0 0.0
    %6084 = vmatpush1.msra.mxu0 %v5078
    %6085 = vmatprep.subr.mxu0 0.0
    %6086 = vmatpush1.msra.mxu0 %v5079
    %6087 = vmatprep.subr.mxu0 0.0
    %6088 = vmatpush1.msra.mxu0 0.0
    %6089 = vmatprep.subr.mxu0 0.0
    %6090 = vmatpush1.msra.mxu0 0.0
    %6091 = vmatprep.subr.mxu0 0.0
    %6092 = vmatpush1.msra.mxu0 0.0
    %6093 = vmatprep.subr.mxu0 0.0
    %6094 = vmatpush1.msra.mxu0 0.0
    %6095 = vmatprep.subr.mxu0 0.0
    %6096 = vmatpush1.msra.mxu0 0.0
    %6097 = vmatprep.subr.mxu0 0.0
    %6098 = vmatpush1.msra.mxu0 0.0
    %6099 = vmatprep.subr.mxu0 0.0
    %6100 = vmatpush1.msra.mxu0 0.0
    %6101 = vmatprep.subr.mxu0 0.0
    %6102 = vmatpush1.msra.mxu0 0.0
    %6103 = vmatprep.subr.mxu0 0.0
    %6104 = vmatpush1.msra.mxu0 0.0
    %6105 = vmatprep.subr.mxu0 0.0
    %6106 = vmatpush1.msra.mxu0 0.0
    %6107 = vmatprep.subr.mxu0 0.0
    %6108 = vmatpush1.msra.mxu0 0.0
    %6109 = vmatprep.subr.mxu0 0.0
    %6110 = vmatpush1.msra.mxu0 0.0
    %6111 = vmatprep.subr.mxu0 0.0
    %6112 = vmatpush1.msra.mxu0 0.0
    %6113 = vmatprep.subr.mxu0 0.0
    %6114 = vmatpush1.msra.mxu0 0.0
    %6115 = vmatprep.subr.mxu0 0.0
    %6116 = vmatpush1.msra.mxu0 0.0
    %6117 = vmatprep.subr.mxu0 0.0
    %6118 = vmatpush1.msra.mxu0 0.0
    %6119 = vmatprep.subr.mxu0 0.0
    %6120 = vmatpush1.msra.mxu0 0.0
    %6121 = vmatprep.subr.mxu0 0.0
    %6122 = vmatpush1.msra.mxu0 0.0
    %6123 = vmatprep.subr.mxu0 0.0
    %6124 = vmatpush1.msra.mxu0 0.0
    %6125 = vmatprep.subr.mxu0 0.0
    %6126 = vmatpush1.msra.mxu0 0.0
    %6127 = vmatprep.subr.mxu0 0.0
    %6128 = vmatpush1.msra.mxu0 0.0
    %6129 = vmatprep.subr.mxu0 0.0
    %6130 = vmatpush1.msra.mxu0 0.0
    %6131 = vmatprep.subr.mxu0 0.0
    %6132 = vmatpush1.msra.mxu0 0.0
    %6133 = vmatprep.subr.mxu0 0.0
    %6134 = vmatpush1.msra.mxu0 0.0
    %6135 = vmatprep.subr.mxu0 0.0
    %6136 = vmatpush1.msra.mxu0 0.0
    %6137 = vmatprep.subr.mxu0 0.0
    %6138 = vmatpush1.msra.mxu0 0.0
    %6139 = vmatprep.subr.mxu0 0.0
    %6140 = vmatpush1.msra.mxu0 0.0
    %6141 = vmatprep.subr.mxu0 0.0
    %6142 = vmatpush1.msra.mxu0 0.0
    %6143 = vmatprep.mubr.f32.mxu0 0.0
    %6144 = vmatmul.mubr.f32.gmra.mrb[0].mxu0 %v2401
    %v6145 = vpop.f32.mrb[0].mxu0
    %v6146 = vadd.f32 0.0, %v6145
    %v6147 = vpop.f32.mrb[0].mxu0
    %6148 = vdwg.mxu0
    %6149 = vmatprep.subr.mxu0 0.0
    %6150 = vmatpush1.msra.mxu0 %v5072
    %6151 = vmatprep.subr.mxu0 0.0
    %6152 = vmatpush1.msra.mxu0 %v5073
    %6153 = vmatprep.subr.mxu0 0.0
    %6154 = vmatpush1.msra.mxu0 %v5074
    %6155 = vmatprep.subr.mxu0 0.0
    %6156 = vmatpush1.msra.mxu0 %v5075
    %6157 = vmatprep.subr.mxu0 0.0
    %6158 = vmatpush1.msra.mxu0 0.0
    %6159 = vmatprep.subr.mxu0 0.0
    %6160 = vmatpush1.msra.mxu0 0.0
    %6161 = vmatprep.subr.mxu0 0.0
    %6162 = vmatpush1.msra.mxu0 0.0
    %6163 = vmatprep.subr.mxu0 0.0
    %6164 = vmatpush1.msra.mxu0 0.0
    %6165 = vmatprep.subr.mxu0 0.0
    %6166 = vmatpush1.msra.mxu0 0.0
    %6167 = vmatprep.subr.mxu0 0.0
    %6168 = vmatpush1.msra.mxu0 0.0
    %6169 = vmatprep.subr.mxu0 0.0
    %6170 = vmatpush1.msra.mxu0 0.0
    %6171 = vmatprep.subr.mxu0 0.0
    %6172 = vmatpush1.msra.mxu0 0.0
    %6173 = vmatprep.subr.mxu0 0.0
    %6174 = vmatpush1.msra.mxu0 0.0
    %6175 = vmatprep.subr.mxu0 0.0
    %6176 = vmatpush1.msra.mxu0 0.0
    %6177 = vmatprep.subr.mxu0 0.0
    %6178 = vmatpush1.msra.mxu0 0.0
    %6179 = vmatprep.subr.mxu0 0.0
    %6180 = vmatpush1.msra.mxu0 0.0
    %6181 = vmatprep.subr.mxu0 0.0
    %6182 = vmatpush1.msra.mxu0 0.0
    %6183 = vmatprep.subr.mxu0 0.0
    %6184 = vmatpush1.msra.mxu0 0.0
    %6185 = vmatprep.subr.mxu0 0.0
    %6186 = vmatpush1.msra.mxu0 0.0
    %6187 = vmatprep.subr.mxu0 0.0
    %6188 = vmatpush1.msra.mxu0 0.0
    %6189 = vmatprep.subr.mxu0 0.0
    %6190 = vmatpush1.msra.mxu0 0.0
    %6191 = vmatprep.subr.mxu0 0.0
    %6192 = vmatpush1.msra.mxu0 0.0
    %6193 = vmatprep.subr.mxu0 0.0
    %6194 = vmatpush1.msra.mxu0 0.0
    %6195 = vmatprep.subr.mxu0 0.0
    %6196 = vmatpush1.msra.mxu0 0.0
    %6197 = vmatprep.subr.mxu0 0.0
    %6198 = vmatpush1.msra.mxu0 0.0
    %6199 = vmatprep.subr.mxu0 0.0
    %6200 = vmatpush1.msra.mxu0 0.0
    %6201 = vmatprep.subr.mxu0 0.0
    %6202 = vmatpush1.msra.mxu0 0.0
    %6203 = vmatprep.subr.mxu0 0.0
    %6204 = vmatpush1.msra.mxu0 0.0
    %6205 = vmatprep.subr.mxu0 0.0
    %6206 = vmatpush1.msra.mxu0 0.0
    %6207 = vmatprep.subr.mxu0 0.0
    %6208 = vmatpush1.msra.mxu0 0.0
    %6209 = vmatprep.subr.mxu0 0.0
    %6210 = vmatpush1.msra.mxu0 0.0
    %6211 = vmatprep.subr.mxu0 0.0
    %6212 = vmatpush1.msra.mxu0 0.0
    %6213 = vmatprep.mubr.f32.mxu0 0.0
    %6214 = vmatmul.mubr.f32.gmra.mrb[0].mxu0 %v4190
    %v6215 = vpop.f32.mrb[0].mxu0
    %v6216 = vadd.f32 %v6146, %v6215
    %v6217 = vpop.f32.mrb[0].mxu0
    %6218 = vdwg.mxu0
    %v6219 = vadd.f32 %v6216, %v5230
    %v6221 = vlaneseq
    %v6222 = vshrl.u32 %v6221, 7
    %v6223 = vsub.s32 0, %v6222
    %v6224 = vrot.slane %v5085, %v6223
    %6226 = vmatprep.subr.mxu0 0.0
    %6227 = vmatpush1.msra.mxu0 %v5080
    %6228 = vmatprep.subr.mxu0 0.0
    %6229 = vmatpush1.msra.mxu0 %v5081
    %6230 = vmatprep.subr.mxu0 0.0
    %6231 = vmatpush1.msra.mxu0 %v5082
    %6232 = vmatprep.subr.mxu0 0.0
    %6233 = vmatpush1.msra.mxu0 %v5083
    %6234 = vmatprep.subr.mxu0 0.0
    %6235 = vmatpush1.msra.mxu0 0.0
    %6236 = vmatprep.subr.mxu0 0.0
    %6237 = vmatpush1.msra.mxu0 0.0
    %6238 = vmatprep.subr.mxu0 0.0
    %6239 = vmatpush1.msra.mxu0 0.0
    %6240 = vmatprep.subr.mxu0 0.0
    %6241 = vmatpush1.msra.mxu0 0.0
    %6242 = vmatprep.subr.mxu0 0.0
    %6243 = vmatpush1.msra.mxu0 0.0
    %6244 = vmatprep.subr.mxu0 0.0
    %6245 = vmatpush1.msra.mxu0 0.0
    %6246 = vmatprep.subr.mxu0 0.0
    %6247 = vmatpush1.msra.mxu0 0.0
    %6248 = vmatprep.subr.mxu0 0.0
    %6249 = vmatpush1.msra.mxu0 0.0
    %6250 = vmatprep.subr.mxu0 0.0
    %6251 = vmatpush1.msra.mxu0 0.0
    %6252 = vmatprep.subr.mxu0 0.0
    %6253 = vmatpush1.msra.mxu0 0.0
    %6254 = vmatprep.subr.mxu0 0.0
    %6255 = vmatpush1.msra.mxu0 0.0
    %6256 = vmatprep.subr.mxu0 0.0
    %6257 = vmatpush1.msra.mxu0 0.0
    %6258 = vmatprep.subr.mxu0 0.0
    %6259 = vmatpush1.msra.mxu0 0.0
    %6260 = vmatprep.subr.mxu0 0.0
    %6261 = vmatpush1.msra.mxu0 0.0
    %6262 = vmatprep.subr.mxu0 0.0
    %6263 = vmatpush1.msra.mxu0 0.0
    %6264 = vmatprep.subr.mxu0 0.0
    %6265 = vmatpush1.msra.mxu0 0.0
    %6266 = vmatprep.subr.mxu0 0.0
    %6267 = vmatpush1.msra.mxu0 0.0
    %6268 = vmatprep.subr.mxu0 0.0
    %6269 = vmatpush1.msra.mxu0 0.0
    %6270 = vmatprep.subr.mxu0 0.0
    %6271 = vmatpush1.msra.mxu0 0.0
    %6272 = vmatprep.subr.mxu0 0.0
    %6273 = vmatpush1.msra.mxu0 0.0
    %6274 = vmatprep.subr.mxu0 0.0
    %6275 = vmatpush1.msra.mxu0 0.0
    %6276 = vmatprep.subr.mxu0 0.0
    %6277 = vmatpush1.msra.mxu0 0.0
    %6278 = vmatprep.subr.mxu0 0.0
    %6279 = vmatpush1.msra.mxu0 0.0
    %6280 = vmatprep.subr.mxu0 0.0
    %6281 = vmatpush1.msra.mxu0 0.0
    %6282 = vmatprep.subr.mxu0 0.0
    %6283 = vmatpush1.msra.mxu0 0.0
    %6284 = vmatprep.subr.mxu0 0.0
    %6285 = vmatpush1.msra.mxu0 0.0
    %6286 = vmatprep.subr.mxu0 0.0
    %6287 = vmatpush1.msra.mxu0 0.0
    %6288 = vmatprep.subr.mxu0 0.0
    %6289 = vmatpush1.msra.mxu0 0.0
    %6290 = vmatprep.mubr.f32.mxu0 0.0
    %6291 = vmatmul.mubr.f32.gmra.mrb[0].mxu0 %v915
    %v6292 = vpop.f32.mrb[0].mxu0
    %v6293 = vadd.f32 %v6224, %v6292
    %v6294 = vpop.f32.mrb[0].mxu0
    %6295 = vdwg.mxu0
    %v6296 = vadd.f32 %v6219, %v6293
    %v6297 = vxor.u32 %v6296, 2147483648
    %v6298 = vmul.f32 %v6297, 1.442695
    %v6299 = vpow.pop %v6298
    %v6300 = vadd.f32 %v6299, 1.0
    %v6301 = vrcp.pop %v6300
    %v6302 = vmul.f32 1.0, %v6301
    %6304 = vrot.lane.b32.xlu0 %v6293, 64
    %v6305 = vpop.permute.xlu0 %6304
    %v6307 = vmul.f32 %v6302, %v6305
    %6309 = vrot.lane.b32.xlu0 %v6307, 64
    %v6310 = vpop.permute.xlu0 %6309
    %v6312 = vadd.f32 %v6219, %v6310
    %v6313 = vtanh.pop %v6312
    %v6314 = vsub.f32 1.0, %v6302
    %6316 = vrot.lane.b32.xlu0 %v6313, 96
    %v6317 = vpop.permute.xlu0 %6316
    %v6319 = vmul.f32 %v6314, %v6317
    %v6320 = vmul.f32 %v6302, 0.0
    %v6321 = vadd.f32 %v6319, %v6320
    %6323 = vrot.lane.b32.xlu0 %v6321, 96
    %v6324 = vpop.permute.xlu0 %6323
    %v6325 = vsel %vm913, %v6324, 0
    %6327 = vmatprep.subr.mxu0 0.0
    %6328 = vmatpush1.msra.mxu0 %v5080
    %6329 = vmatprep.subr.mxu0 0.0
    %6330 = vmatpush1.msra.mxu0 %v5081
    %6331 = vmatprep.subr.mxu0 0.0
    %6332 = vmatpush1.msra.mxu0 %v5082
    %6333 = vmatprep.subr.mxu0 0.0
    %6334 = vmatpush1.msra.mxu0 %v5083
    %6335 = vmatprep.subr.mxu0 0.0
    %6336 = vmatpush1.msra.mxu0 0.0
    %6337 = vmatprep.subr.mxu0 0.0
    %6338 = vmatpush1.msra.mxu0 0.0
    %6339 = vmatprep.subr.mxu0 0.0
    %6340 = vmatpush1.msra.mxu0 0.0
    %6341 = vmatprep.subr.mxu0 0.0
    %6342 = vmatpush1.msra.mxu0 0.0
    %6343 = vmatprep.subr.mxu0 0.0
    %6344 = vmatpush1.msra.mxu0 0.0
    %6345 = vmatprep.subr.mxu0 0.0
    %6346 = vmatpush1.msra.mxu0 0.0
    %6347 = vmatprep.subr.mxu0 0.0
    %6348 = vmatpush1.msra.mxu0 0.0
    %6349 = vmatprep.subr.mxu0 0.0
    %6350 = vmatpush1.msra.mxu0 0.0
    %6351 = vmatprep.subr.mxu0 0.0
    %6352 = vmatpush1.msra.mxu0 0.0
    %6353 = vmatprep.subr.mxu0 0.0
    %6354 = vmatpush1.msra.mxu0 0.0
    %6355 = vmatprep.subr.mxu0 0.0
    %6356 = vmatpush1.msra.mxu0 0.0
    %6357 = vmatprep.subr.mxu0 0.0
    %6358 = vmatpush1.msra.mxu0 0.0
    %6359 = vmatprep.subr.mxu0 0.0
    %6360 = vmatpush1.msra.mxu0 0.0
    %6361 = vmatprep.subr.mxu0 0.0
    %6362 = vmatpush1.msra.mxu0 0.0
    %6363 = vmatprep.subr.mxu0 0.0
    %6364 = vmatpush1.msra.mxu0 0.0
    %6365 = vmatprep.subr.mxu0 0.0
    %6366 = vmatpush1.msra.mxu0 0.0
    %6367 = vmatprep.subr.mxu0 0.0
    %6368 = vmatpush1.msra.mxu0 0.0
    %6369 = vmatprep.subr.mxu0 0.0
    %6370 = vmatpush1.msra.mxu0 0.0
    %6371 = vmatprep.subr.mxu0 0.0
    %6372 = vmatpush1.msra.mxu0 0.0
    %6373 = vmatprep.subr.mxu0 0.0
    %6374 = vmatpush1.msra.mxu0 0.0
    %6375 = vmatprep.subr.mxu0 0.0
    %6376 = vmatpush1.msra.mxu0 0.0
    %6377 = vmatprep.subr.mxu0 0.0
    %6378 = vmatpush1.msra.mxu0 0.0
    %6379 = vmatprep.subr.mxu0 0.0
    %6380 = vmatpush1.msra.mxu0 0.0
    %6381 = vmatprep.subr.mxu0 0.0
    %6382 = vmatpush1.msra.mxu0 0.0
    %6383 = vmatprep.subr.mxu0 0.0
    %6384 = vmatpush1.msra.mxu0 0.0
    %6385 = vmatprep.subr.mxu0 0.0
    %6386 = vmatpush1.msra.mxu0 0.0
    %6387 = vmatprep.subr.mxu0 0.0
    %6388 = vmatpush1.msra.mxu0 0.0
    %6389 = vmatprep.subr.mxu0 0.0
    %6390 = vmatpush1.msra.mxu0 0.0
    %6391 = vmatprep.mubr.f32.mxu0 0.0
    %6392 = vmatmul.mubr.f32.gmra.mrb[0].mxu0 %v6325
    %v6393 = vpop.f32.mrb[0].mxu0
    %v6394 = vadd.f32 %v6224, %v6393
    %v6395 = vpop.f32.mrb[0].mxu0
    %6396 = vdwg.mxu0
    %v6397 = vadd.f32 %v6078, %v6394
    %v6398 = vxor.u32 %v6397, 2147483648
    %v6399 = vmul.f32 %v6398, 1.442695
    %v6400 = vpow.pop %v6399
    %v6401 = vadd.f32 %v6400, 1.0
    %v6402 = vrcp.pop %v6401
    %v6403 = vmul.f32 1.0, %v6402
    %6405 = vrot.lane.b32.xlu0 %v6394, 64
    %v6406 = vpop.permute.xlu0 %6405
    %v6408 = vmul.f32 %v6403, %v6406
    %6410 = vrot.lane.b32.xlu0 %v6408, 64
    %v6411 = vpop.permute.xlu0 %6410
    %v6413 = vadd.f32 %v6078, %v6411
    %v6414 = vtanh.pop %v6413
    %v6415 = vsub.f32 1.0, %v6403
    %6417 = vrot.lane.b32.xlu0 %v6414, 96
    %v6418 = vpop.permute.xlu0 %6417
    %v6420 = vmul.f32 %v6415, %v6418
    %v6421 = vmul.f32 %v6403, %v6321
    %v6422 = vadd.f32 %v6420, %v6421
    %6424 = vrot.lane.b32.xlu0 %v6422, 96
    %v6425 = vpop.permute.xlu0 %6424
    %v6426 = vsel %vm913, %v6425, 0
    %6428 = vmatprep.subr.mxu0 0.0
    %6429 = vmatpush1.msra.mxu0 %v5080
    %6430 = vmatprep.subr.mxu0 0.0
    %6431 = vmatpush1.msra.mxu0 %v5081
    %6432 = vmatprep.subr.mxu0 0.0
    %6433 = vmatpush1.msra.mxu0 %v5082
    %6434 = vmatprep.subr.mxu0 0.0
    %6435 = vmatpush1.msra.mxu0 %v5083
    %6436 = vmatprep.subr.mxu0 0.0
    %6437 = vmatpush1.msra.mxu0 0.0
    %6438 = vmatprep.subr.mxu0 0.0
    %6439 = vmatpush1.msra.mxu0 0.0
    %6440 = vmatprep.subr.mxu0 0.0
    %6441 = vmatpush1.msra.mxu0 0.0
    %6442 = vmatprep.subr.mxu0 0.0
    %6443 = vmatpush1.msra.mxu0 0.0
    %6444 = vmatprep.subr.mxu0 0.0
    %6445 = vmatpush1.msra.mxu0 0.0
    %6446 = vmatprep.subr.mxu0 0.0
    %6447 = vmatpush1.msra.mxu0 0.0
    %6448 = vmatprep.subr.mxu0 0.0
    %6449 = vmatpush1.msra.mxu0 0.0
    %6450 = vmatprep.subr.mxu0 0.0
    %6451 = vmatpush1.msra.mxu0 0.0
    %6452 = vmatprep.subr.mxu0 0.0
    %6453 = vmatpush1.msra.mxu0 0.0
    %6454 = vmatprep.subr.mxu0 0.0
    %6455 = vmatpush1.msra.mxu0 0.0
    %6456 = vmatprep.subr.mxu0 0.0
    %6457 = vmatpush1.msra.mxu0 0.0
    %6458 = vmatprep.subr.mxu0 0.0
    %6459 = vmatpush1.msra.mxu0 0.0
    %6460 = vmatprep.subr.mxu0 0.0
    %6461 = vmatpush1.msra.mxu0 0.0
    %6462 = vmatprep.subr.mxu0 0.0
    %6463 = vmatpush1.msra.mxu0 0.0
    %6464 = vmatprep.subr.mxu0 0.0
    %6465 = vmatpush1.msra.mxu0 0.0
    %6466 = vmatprep.subr.mxu0 0.0
    %6467 = vmatpush1.msra.mxu0 0.0
    %6468 = vmatprep.subr.mxu0 0.0
    %6469 = vmatpush1.msra.mxu0 0.0
    %6470 = vmatprep.subr.mxu0 0.0
    %6471 = vmatpush1.msra.mxu0 0.0
    %6472 = vmatprep.subr.mxu0 0.0
    %6473 = vmatpush1.msra.mxu0 0.0
    %6474 = vmatprep.subr.mxu0 0.0
    %6475 = vmatpush1.msra.mxu0 0.0
    %6476 = vmatprep.subr.mxu0 0.0
    %6477 = vmatpush1.msra.mxu0 0.0
    %6478 = vmatprep.subr.mxu0 0.0
    %6479 = vmatpush1.msra.mxu0 0.0
    %6480 = vmatprep.subr.mxu0 0.0
    %6481 = vmatpush1.msra.mxu0 0.0
    %6482 = vmatprep.subr.mxu0 0.0
    %6483 = vmatpush1.msra.mxu0 0.0
    %6484 = vmatprep.subr.mxu0 0.0
    %6485 = vmatpush1.msra.mxu0 0.0
    %6486 = vmatprep.subr.mxu0 0.0
    %6487 = vmatpush1.msra.mxu0 0.0
    %6488 = vmatprep.subr.mxu0 0.0
    %6489 = vmatpush1.msra.mxu0 0.0
    %6490 = vmatprep.subr.mxu0 0.0
    %6491 = vmatpush1.msra.mxu0 0.0
    %6492 = vmatprep.mubr.f32.mxu0 0.0
    %6493 = vmatmul.mubr.f32.gmra.mrb[0].mxu0 %v6426
    %v6494 = vpop.f32.mrb[0].mxu0
    %v6495 = vadd.f32 %v6224, %v6494
    %v6496 = vpop.f32.mrb[0].mxu0
    %6497 = vdwg.mxu0
    %v6498 = vadd.f32 %v5937, %v6495
    %v6499 = vxor.u32 %v6498, 2147483648
    %v6500 = vmul.f32 %v6499, 1.442695
    %v6501 = vpow.pop %v6500
    %v6502 = vadd.f32 %v6501, 1.0
    %v6503 = vrcp.pop %v6502
    %v6504 = vmul.f32 1.0, %v6503
    %6506 = vrot.lane.b32.xlu0 %v6495, 64
    %v6507 = vpop.permute.xlu0 %6506
    %v6509 = vmul.f32 %v6504, %v6507
    %6511 = vrot.lane.b32.xlu0 %v6509, 64
    %v6512 = vpop.permute.xlu0 %6511
    %v6514 = vadd.f32 %v5937, %v6512
    %v6515 = vtanh.pop %v6514
    %v6516 = vsub.f32 1.0, %v6504
    %6518 = vrot.lane.b32.xlu0 %v6515, 96
    %v6519 = vpop.permute.xlu0 %6518
    %v6521 = vmul.f32 %v6516, %v6519
    %v6522 = vmul.f32 %v6504, %v6422
    %v6523 = vadd.f32 %v6521, %v6522
    %6525 = vrot.lane.b32.xlu0 %v6523, 96
    %v6526 = vpop.permute.xlu0 %6525
    %v6527 = vsel %vm913, %v6526, 0
    %6529 = vmatprep.subr.mxu0 0.0
    %6530 = vmatpush1.msra.mxu0 %v5080
    %6531 = vmatprep.subr.mxu0 0.0
    %6532 = vmatpush1.msra.mxu0 %v5081
    %6533 = vmatprep.subr.mxu0 0.0
    %6534 = vmatpush1.msra.mxu0 %v5082
    %6535 = vmatprep.subr.mxu0 0.0
    %6536 = vmatpush1.msra.mxu0 %v5083
    %6537 = vmatprep.subr.mxu0 0.0
    %6538 = vmatpush1.msra.mxu0 0.0
    %6539 = vmatprep.subr.mxu0 0.0
    %6540 = vmatpush1.msra.mxu0 0.0
    %6541 = vmatprep.subr.mxu0 0.0
    %6542 = vmatpush1.msra.mxu0 0.0
    %6543 = vmatprep.subr.mxu0 0.0
    %6544 = vmatpush1.msra.mxu0 0.0
    %6545 = vmatprep.subr.mxu0 0.0
    %6546 = vmatpush1.msra.mxu0 0.0
    %6547 = vmatprep.subr.mxu0 0.0
    %6548 = vmatpush1.msra.mxu0 0.0
    %6549 = vmatprep.subr.mxu0 0.0
    %6550 = vmatpush1.msra.mxu0 0.0
    %6551 = vmatprep.subr.mxu0 0.0
    %6552 = vmatpush1.msra.mxu0 0.0
    %6553 = vmatprep.subr.mxu0 0.0
    %6554 = vmatpush1.msra.mxu0 0.0
    %6555 = vmatprep.subr.mxu0 0.0
    %6556 = vmatpush1.msra.mxu0 0.0
    %6557 = vmatprep.subr.mxu0 0.0
    %6558 = vmatpush1.msra.mxu0 0.0
    %6559 = vmatprep.subr.mxu0 0.0
    %6560 = vmatpush1.msra.mxu0 0.0
    %6561 = vmatprep.subr.mxu0 0.0
    %6562 = vmatpush1.msra.mxu0 0.0
    %6563 = vmatprep.subr.mxu0 0.0
    %6564 = vmatpush1.msra.mxu0 0.0
    %6565 = vmatprep.subr.mxu0 0.0
    %6566 = vmatpush1.msra.mxu0 0.0
    %6567 = vmatprep.subr.mxu0 0.0
    %6568 = vmatpush1.msra.mxu0 0.0
    %6569 = vmatprep.subr.mxu0 0.0
    %6570 = vmatpush1.msra.mxu0 0.0
    %6571 = vmatprep.subr.mxu0 0.0
    %6572 = vmatpush1.msra.mxu0 0.0
    %6573 = vmatprep.subr.mxu0 0.0
    %6574 = vmatpush1.msra.mxu0 0.0
    %6575 = vmatprep.subr.mxu0 0.0
    %6576 = vmatpush1.msra.mxu0 0.0
    %6577 = vmatprep.subr.mxu0 0.0
    %6578 = vmatpush1.msra.mxu0 0.0
    %6579 = vmatprep.subr.mxu0 0.0
    %6580 = vmatpush1.msra.mxu0 0.0
    %6581 = vmatprep.subr.mxu0 0.0
    %6582 = vmatpush1.msra.mxu0 0.0
    %6583 = vmatprep.subr.mxu0 0.0
    %6584 = vmatpush1.msra.mxu0 0.0
    %6585 = vmatprep.subr.mxu0 0.0
    %6586 = vmatpush1.msra.mxu0 0.0
    %6587 = vmatprep.subr.mxu0 0.0
    %6588 = vmatpush1.msra.mxu0 0.0
    %6589 = vmatprep.subr.mxu0 0.0
    %6590 = vmatpush1.msra.mxu0 0.0
    %6591 = vmatprep.subr.mxu0 0.0
    %6592 = vmatpush1.msra.mxu0 0.0
    %6593 = vmatprep.mubr.f32.mxu0 0.0
    %6594 = vmatmul.mubr.f32.gmra.mrb[0].mxu0 %v6527
    %v6595 = vpop.f32.mrb[0].mxu0
    %v6596 = vadd.f32 %v6224, %v6595
    %v6597 = vpop.f32.mrb[0].mxu0
    %6598 = vdwg.mxu0
    %v6599 = vadd.f32 %v5796, %v6596
    %v6600 = vxor.u32 %v6599, 2147483648
    %v6601 = vmul.f32 %v6600, 1.442695
    %v6602 = vpow.pop %v6601
    %v6603 = vadd.f32 %v6602, 1.0
    %v6604 = vrcp.pop %v6603
    %v6605 = vmul.f32 1.0, %v6604
    %6607 = vrot.lane.b32.xlu0 %v6596, 64
    %v6608 = vpop.permute.xlu0 %6607
    %v6610 = vmul.f32 %v6605, %v6608
    %6612 = vrot.lane.b32.xlu0 %v6610, 64
    %v6613 = vpop.permute.xlu0 %6612
    %v6615 = vadd.f32 %v5796, %v6613
    %v6616 = vtanh.pop %v6615
    %v6617 = vsub.f32 1.0, %v6605
    %6619 = vrot.lane.b32.xlu0 %v6616, 96
    %v6620 = vpop.permute.xlu0 %6619
    %v6622 = vmul.f32 %v6617, %v6620
    %v6623 = vmul.f32 %v6605, %v6523
    %v6624 = vadd.f32 %v6622, %v6623
    %6626 = vrot.lane.b32.xlu0 %v6624, 96
    %v6627 = vpop.permute.xlu0 %6626
    %v6628 = vsel %vm913, %v6627, 0
    %6630 = vmatprep.subr.mxu0 0.0
    %6631 = vmatpush1.msra.mxu0 %v5080
    %6632 = vmatprep.subr.mxu0 0.0
    %6633 = vmatpush1.msra.mxu0 %v5081
    %6634 = vmatprep.subr.mxu0 0.0
    %6635 = vmatpush1.msra.mxu0 %v5082
    %6636 = vmatprep.subr.mxu0 0.0
    %6637 = vmatpush1.msra.mxu0 %v5083
    %6638 = vmatprep.subr.mxu0 0.0
    %6639 = vmatpush1.msra.mxu0 0.0
    %6640 = vmatprep.subr.mxu0 0.0
    %6641 = vmatpush1.msra.mxu0 0.0
    %6642 = vmatprep.subr.mxu0 0.0
    %6643 = vmatpush1.msra.mxu0 0.0
    %6644 = vmatprep.subr.mxu0 0.0
    %6645 = vmatpush1.msra.mxu0 0.0
    %6646 = vmatprep.subr.mxu0 0.0
    %6647 = vmatpush1.msra.mxu0 0.0
    %6648 = vmatprep.subr.mxu0 0.0
    %6649 = vmatpush1.msra.mxu0 0.0
    %6650 = vmatprep.subr.mxu0 0.0
    %6651 = vmatpush1.msra.mxu0 0.0
    %6652 = vmatprep.subr.mxu0 0.0
    %6653 = vmatpush1.msra.mxu0 0.0
    %6654 = vmatprep.subr.mxu0 0.0
    %6655 = vmatpush1.msra.mxu0 0.0
    %6656 = vmatprep.subr.mxu0 0.0
    %6657 = vmatpush1.msra.mxu0 0.0
    %6658 = vmatprep.subr.mxu0 0.0
    %6659 = vmatpush1.msra.mxu0 0.0
    %6660 = vmatprep.subr.mxu0 0.0
    %6661 = vmatpush1.msra.mxu0 0.0
    %6662 = vmatprep.subr.mxu0 0.0
    %6663 = vmatpush1.msra.mxu0 0.0
    %6664 = vmatprep.subr.mxu0 0.0
    %6665 = vmatpush1.msra.mxu0 0.0
    %6666 = vmatprep.subr.mxu0 0.0
    %6667 = vmatpush1.msra.mxu0 0.0
    %6668 = vmatprep.subr.mxu0 0.0
    %6669 = vmatpush1.msra.mxu0 0.0
    %6670 = vmatprep.subr.mxu0 0.0
    %6671 = vmatpush1.msra.mxu0 0.0
    %6672 = vmatprep.subr.mxu0 0.0
    %6673 = vmatpush1.msra.mxu0 0.0
    %6674 = vmatprep.subr.mxu0 0.0
    %6675 = vmatpush1.msra.mxu0 0.0
    %6676 = vmatprep.subr.mxu0 0.0
    %6677 = vmatpush1.msra.mxu0 0.0
    %6678 = vmatprep.subr.mxu0 0.0
    %6679 = vmatpush1.msra.mxu0 0.0
    %6680 = vmatprep.subr.mxu0 0.0
    %6681 = vmatpush1.msra.mxu0 0.0
    %6682 = vmatprep.subr.mxu0 0.0
    %6683 = vmatpush1.msra.mxu0 0.0
    %6684 = vmatprep.subr.mxu0 0.0
    %6685 = vmatpush1.msra.mxu0 0.0
    %6686 = vmatprep.subr.mxu0 0.0
    %6687 = vmatpush1.msra.mxu0 0.0
    %6688 = vmatprep.subr.mxu0 0.0
    %6689 = vmatpush1.msra.mxu0 0.0
    %6690 = vmatprep.subr.mxu0 0.0
    %6691 = vmatpush1.msra.mxu0 0.0
    %6692 = vmatprep.subr.mxu0 0.0
    %6693 = vmatpush1.msra.mxu0 0.0
    %6694 = vmatprep.mubr.f32.mxu0 0.0
    %6695 = vmatmul.mubr.f32.gmra.mrb[0].mxu0 %v6628
    %v6696 = vpop.f32.mrb[0].mxu0
    %v6697 = vadd.f32 %v6224, %v6696
    %v6698 = vpop.f32.mrb[0].mxu0
    %6699 = vdwg.mxu0
    %v6700 = vadd.f32 %v5655, %v6697
    %v6701 = vxor.u32 %v6700, 2147483648
    %v6702 = vmul.f32 %v6701, 1.442695
    %v6703 = vpow.pop %v6702
    %v6704 = vadd.f32 %v6703, 1.0
    %v6705 = vrcp.pop %v6704
    %v6706 = vmul.f32 1.0, %v6705
    %6708 = vrot.lane.b32.xlu0 %v6697, 64
    %v6709 = vpop.permute.xlu0 %6708
    %v6711 = vmul.f32 %v6706, %v6709
    %6713 = vrot.lane.b32.xlu0 %v6711, 64
    %v6714 = vpop.permute.xlu0 %6713
    %v6716 = vadd.f32 %v5655, %v6714
    %v6717 = vtanh.pop %v6716
    %v6718 = vsub.f32 1.0, %v6706
    %6720 = vrot.lane.b32.xlu0 %v6717, 96
    %v6721 = vpop.permute.xlu0 %6720
    %v6723 = vmul.f32 %v6718, %v6721
    %v6724 = vmul.f32 %v6706, %v6624
    %v6725 = vadd.f32 %v6723, %v6724
    %6727 = vrot.lane.b32.xlu0 %v6725, 96
    %v6728 = vpop.permute.xlu0 %6727
    %v6729 = vsel %vm913, %v6728, 0
    %6731 = vmatprep.subr.mxu0 0.0
    %6732 = vmatpush1.msra.mxu0 %v5080
    %6733 = vmatprep.subr.mxu0 0.0
    %6734 = vmatpush1.msra.mxu0 %v5081
    %6735 = vmatprep.subr.mxu0 0.0
    %6736 = vmatpush1.msra.mxu0 %v5082
    %6737 = vmatprep.subr.mxu0 0.0
    %6738 = vmatpush1.msra.mxu0 %v5083
    %6739 = vmatprep.subr.mxu0 0.0
    %6740 = vmatpush1.msra.mxu0 0.0
    %6741 = vmatprep.subr.mxu0 0.0
    %6742 = vmatpush1.msra.mxu0 0.0
    %6743 = vmatprep.subr.mxu0 0.0
    %6744 = vmatpush1.msra.mxu0 0.0
    %6745 = vmatprep.subr.mxu0 0.0
    %6746 = vmatpush1.msra.mxu0 0.0
    %6747 = vmatprep.subr.mxu0 0.0
    %6748 = vmatpush1.msra.mxu0 0.0
    %6749 = vmatprep.subr.mxu0 0.0
    %6750 = vmatpush1.msra.mxu0 0.0
    %6751 = vmatprep.subr.mxu0 0.0
    %6752 = vmatpush1.msra.mxu0 0.0
    %6753 = vmatprep.subr.mxu0 0.0
    %6754 = vmatpush1.msra.mxu0 0.0
    %6755 = vmatprep.subr.mxu0 0.0
    %6756 = vmatpush1.msra.mxu0 0.0
    %6757 = vmatprep.subr.mxu0 0.0
    %6758 = vmatpush1.msra.mxu0 0.0
    %6759 = vmatprep.subr.mxu0 0.0
    %6760 = vmatpush1.msra.mxu0 0.0
    %6761 = vmatprep.subr.mxu0 0.0
    %6762 = vmatpush1.msra.mxu0 0.0
    %6763 = vmatprep.subr.mxu0 0.0
    %6764 = vmatpush1.msra.mxu0 0.0
    %6765 = vmatprep.subr.mxu0 0.0
    %6766 = vmatpush1.msra.mxu0 0.0
    %6767 = vmatprep.subr.mxu0 0.0
    %6768 = vmatpush1.msra.mxu0 0.0
    %6769 = vmatprep.subr.mxu0 0.0
    %6770 = vmatpush1.msra.mxu0 0.0
    %6771 = vmatprep.subr.mxu0 0.0
    %6772 = vmatpush1.msra.mxu0 0.0
    %6773 = vmatprep.subr.mxu0 0.0
    %6774 = vmatpush1.msra.mxu0 0.0
    %6775 = vmatprep.subr.mxu0 0.0
    %6776 = vmatpush1.msra.mxu0 0.0
    %6777 = vmatprep.subr.mxu0 0.0
    %6778 = vmatpush1.msra.mxu0 0.0
    %6779 = vmatprep.subr.mxu0 0.0
    %6780 = vmatpush1.msra.mxu0 0.0
    %6781 = vmatprep.subr.mxu0 0.0
    %6782 = vmatpush1.msra.mxu0 0.0
    %6783 = vmatprep.subr.mxu0 0.0
    %6784 = vmatpush1.msra.mxu0 0.0
    %6785 = vmatprep.subr.mxu0 0.0
    %6786 = vmatpush1.msra.mxu0 0.0
    %6787 = vmatprep.subr.mxu0 0.0
    %6788 = vmatpush1.msra.mxu0 0.0
    %6789 = vmatprep.subr.mxu0 0.0
    %6790 = vmatpush1.msra.mxu0 0.0
    %6791 = vmatprep.subr.mxu0 0.0
    %6792 = vmatpush1.msra.mxu0 0.0
    %6793 = vmatprep.subr.mxu0 0.0
    %6794 = vmatpush1.msra.mxu0 0.0
    %6795 = vmatprep.mubr.f32.mxu0 0.0
    %6796 = vmatmul.mubr.f32.gmra.mrb[0].mxu0 %v6729
    %v6797 = vpop.f32.mrb[0].mxu0
    %v6798 = vadd.f32 %v6224, %v6797
    %v6799 = vpop.f32.mrb[0].mxu0
    %6800 = vdwg.mxu0
    %v6801 = vadd.f32 %v5514, %v6798
    %v6802 = vxor.u32 %v6801, 2147483648
    %v6803 = vmul.f32 %v6802, 1.442695
    %v6804 = vpow.pop %v6803
    %v6805 = vadd.f32 %v6804, 1.0
    %v6806 = vrcp.pop %v6805
    %v6807 = vmul.f32 1.0, %v6806
    %6809 = vrot.lane.b32.xlu0 %v6798, 64
    %v6810 = vpop.permute.xlu0 %6809
    %v6812 = vmul.f32 %v6807, %v6810
    %6814 = vrot.lane.b32.xlu0 %v6812, 64
    %v6815 = vpop.permute.xlu0 %6814
    %v6817 = vadd.f32 %v5514, %v6815
    %v6818 = vtanh.pop %v6817
    %v6819 = vsub.f32 1.0, %v6807
    %6821 = vrot.lane.b32.xlu0 %v6818, 96
    %v6822 = vpop.permute.xlu0 %6821
    %v6824 = vmul.f32 %v6819, %v6822
    %v6825 = vmul.f32 %v6807, %v6725
    %v6826 = vadd.f32 %v6824, %v6825
    %6828 = vrot.lane.b32.xlu0 %v6826, 96
    %v6829 = vpop.permute.xlu0 %6828
    %v6830 = vsel %vm913, %v6829, 0
    %6832 = vmatprep.subr.mxu0 0.0
    %6833 = vmatpush1.msra.mxu0 %v5080
    %6834 = vmatprep.subr.mxu0 0.0
    %6835 = vmatpush1.msra.mxu0 %v5081
    %6836 = vmatprep.subr.mxu0 0.0
    %6837 = vmatpush1.msra.mxu0 %v5082
    %6838 = vmatprep.subr.mxu0 0.0
    %6839 = vmatpush1.msra.mxu0 %v5083
    %6840 = vmatprep.subr.mxu0 0.0
    %6841 = vmatpush1.msra.mxu0 0.0
    %6842 = vmatprep.subr.mxu0 0.0
    %6843 = vmatpush1.msra.mxu0 0.0
    %6844 = vmatprep.subr.mxu0 0.0
    %6845 = vmatpush1.msra.mxu0 0.0
    %6846 = vmatprep.subr.mxu0 0.0
    %6847 = vmatpush1.msra.mxu0 0.0
    %6848 = vmatprep.subr.mxu0 0.0
    %6849 = vmatpush1.msra.mxu0 0.0
    %6850 = vmatprep.subr.mxu0 0.0
    %6851 = vmatpush1.msra.mxu0 0.0
    %6852 = vmatprep.subr.mxu0 0.0
    %6853 = vmatpush1.msra.mxu0 0.0
    %6854 = vmatprep.subr.mxu0 0.0
    %6855 = vmatpush1.msra.mxu0 0.0
    %6856 = vmatprep.subr.mxu0 0.0
    %6857 = vmatpush1.msra.mxu0 0.0
    %6858 = vmatprep.subr.mxu0 0.0
    %6859 = vmatpush1.msra.mxu0 0.0
    %6860 = vmatprep.subr.mxu0 0.0
    %6861 = vmatpush1.msra.mxu0 0.0
    %6862 = vmatprep.subr.mxu0 0.0
    %6863 = vmatpush1.msra.mxu0 0.0
    %6864 = vmatprep.subr.mxu0 0.0
    %6865 = vmatpush1.msra.mxu0 0.0
    %6866 = vmatprep.subr.mxu0 0.0
    %6867 = vmatpush1.msra.mxu0 0.0
    %6868 = vmatprep.subr.mxu0 0.0
    %6869 = vmatpush1.msra.mxu0 0.0
    %6870 = vmatprep.subr.mxu0 0.0
    %6871 = vmatpush1.msra.mxu0 0.0
    %6872 = vmatprep.subr.mxu0 0.0
    %6873 = vmatpush1.msra.mxu0 0.0
    %6874 = vmatprep.subr.mxu0 0.0
    %6875 = vmatpush1.msra.mxu0 0.0
    %6876 = vmatprep.subr.mxu0 0.0
    %6877 = vmatpush1.msra.mxu0 0.0
    %6878 = vmatprep.subr.mxu0 0.0
    %6879 = vmatpush1.msra.mxu0 0.0
    %6880 = vmatprep.subr.mxu0 0.0
    %6881 = vmatpush1.msra.mxu0 0.0
    %6882 = vmatprep.subr.mxu0 0.0
    %6883 = vmatpush1.msra.mxu0 0.0
    %6884 = vmatprep.subr.mxu0 0.0
    %6885 = vmatpush1.msra.mxu0 0.0
    %6886 = vmatprep.subr.mxu0 0.0
    %6887 = vmatpush1.msra.mxu0 0.0
    %6888 = vmatprep.subr.mxu0 0.0
    %6889 = vmatpush1.msra.mxu0 0.0
    %6890 = vmatprep.subr.mxu0 0.0
    %6891 = vmatpush1.msra.mxu0 0.0
    %6892 = vmatprep.subr.mxu0 0.0
    %6893 = vmatpush1.msra.mxu0 0.0
    %6894 = vmatprep.subr.mxu0 0.0
    %6895 = vmatpush1.msra.mxu0 0.0
    %6896 = vmatprep.mubr.f32.mxu0 0.0
    %6897 = vmatmul.mubr.f32.gmra.mrb[0].mxu0 %v6830
    %v6898 = vpop.f32.mrb[0].mxu0
    %v6899 = vadd.f32 %v6224, %v6898
    %v6900 = vpop.f32.mrb[0].mxu0
    %6901 = vdwg.mxu0
    %v6902 = vadd.f32 %v5373, %v6899
    %v6903 = vxor.u32 %v6902, 2147483648
    %v6904 = vmul.f32 %v6903, 1.442695
    %v6905 = vpow.pop %v6904
    %v6906 = vadd.f32 %v6905, 1.0
    %v6907 = vrcp.pop %v6906
    %v6908 = vmul.f32 1.0, %v6907
    %6910 = vrot.lane.b32.xlu0 %v6899, 64
    %v6911 = vpop.permute.xlu0 %6910
    %v6913 = vmul.f32 %v6908, %v6911
    %6915 = vrot.lane.b32.xlu0 %v6913, 64
    %v6916 = vpop.permute.xlu0 %6915
    %v6918 = vadd.f32 %v5373, %v6916
    %v6919 = vtanh.pop %v6918
    %v6920 = vsub.f32 1.0, %v6908
    %6922 = vrot.lane.b32.xlu0 %v6919, 96
    %v6923 = vpop.permute.xlu0 %6922
    %v6925 = vmul.f32 %v6920, %v6923
    %v6926 = vmul.f32 %v6908, %v6826
    %v6927 = vadd.f32 %v6925, %v6926
    %6929 = vrot.lane.b32.xlu0 %v6927, 96
    %v6930 = vpop.permute.xlu0 %6929
    %v6931 = vsel %vm913, %v6930, 0
    %6933 = vmatprep.subr.mxu0 0.0
    %6934 = vmatpush1.msra.mxu0 %v5080
    %6935 = vmatprep.subr.mxu0 0.0
    %6936 = vmatpush1.msra.mxu0 %v5081
    %6937 = vmatprep.subr.mxu0 0.0
    %6938 = vmatpush1.msra.mxu0 %v5082
    %6939 = vmatprep.subr.mxu0 0.0
    %6940 = vmatpush1.msra.mxu0 %v5083
    %6941 = vmatprep.subr.mxu0 0.0
    %6942 = vmatpush1.msra.mxu0 0.0
    %6943 = vmatprep.subr.mxu0 0.0
    %6944 = vmatpush1.msra.mxu0 0.0
    %6945 = vmatprep.subr.mxu0 0.0
    %6946 = vmatpush1.msra.mxu0 0.0
    %6947 = vmatprep.subr.mxu0 0.0
    %6948 = vmatpush1.msra.mxu0 0.0
    %6949 = vmatprep.subr.mxu0 0.0
    %6950 = vmatpush1.msra.mxu0 0.0
    %6951 = vmatprep.subr.mxu0 0.0
    %6952 = vmatpush1.msra.mxu0 0.0
    %6953 = vmatprep.subr.mxu0 0.0
    %6954 = vmatpush1.msra.mxu0 0.0
    %6955 = vmatprep.subr.mxu0 0.0
    %6956 = vmatpush1.msra.mxu0 0.0
    %6957 = vmatprep.subr.mxu0 0.0
    %6958 = vmatpush1.msra.mxu0 0.0
    %6959 = vmatprep.subr.mxu0 0.0
    %6960 = vmatpush1.msra.mxu0 0.0
    %6961 = vmatprep.subr.mxu0 0.0
    %6962 = vmatpush1.msra.mxu0 0.0
    %6963 = vmatprep.subr.mxu0 0.0
    %6964 = vmatpush1.msra.mxu0 0.0
    %6965 = vmatprep.subr.mxu0 0.0
    %6966 = vmatpush1.msra.mxu0 0.0
    %6967 = vmatprep.subr.mxu0 0.0
    %6968 = vmatpush1.msra.mxu0 0.0
    %6969 = vmatprep.subr.mxu0 0.0
    %6970 = vmatpush1.msra.mxu0 0.0
    %6971 = vmatprep.subr.mxu0 0.0
    %6972 = vmatpush1.msra.mxu0 0.0
    %6973 = vmatprep.subr.mxu0 0.0
    %6974 = vmatpush1.msra.mxu0 0.0
    %6975 = vmatprep.subr.mxu0 0.0
    %6976 = vmatpush1.msra.mxu0 0.0
    %6977 = vmatprep.subr.mxu0 0.0
    %6978 = vmatpush1.msra.mxu0 0.0
    %6979 = vmatprep.subr.mxu0 0.0
    %6980 = vmatpush1.msra.mxu0 0.0
    %6981 = vmatprep.subr.mxu0 0.0
    %6982 = vmatpush1.msra.mxu0 0.0
    %6983 = vmatprep.subr.mxu0 0.0
    %6984 = vmatpush1.msra.mxu0 0.0
    %6985 = vmatprep.subr.mxu0 0.0
    %6986 = vmatpush1.msra.mxu0 0.0
    %6987 = vmatprep.subr.mxu0 0.0
    %6988 = vmatpush1.msra.mxu0 0.0
    %6989 = vmatprep.subr.mxu0 0.0
    %6990 = vmatpush1.msra.mxu0 0.0
    %6991 = vmatprep.subr.mxu0 0.0
    %6992 = vmatpush1.msra.mxu0 0.0
    %6993 = vmatprep.subr.mxu0 0.0
    %6994 = vmatpush1.msra.mxu0 0.0
    %6995 = vmatprep.subr.mxu0 0.0
    %6996 = vmatpush1.msra.mxu0 0.0
    %6997 = vmatprep.mubr.f32.mxu0 0.0
    %6998 = vmatmul.mubr.f32.gmra.mrb[0].mxu0 %v6931
    %v6999 = vpop.f32.mrb[0].mxu0
    %v7000 = vadd.f32 %v6224, %v6999
    %v7001 = vpop.f32.mrb[0].mxu0
    %7002 = vdwg.mxu0
    %v7003 = vadd.f32 %v5232, %v7000
    %v7004 = vxor.u32 %v7003, 2147483648
    %v7005 = vmul.f32 %v7004, 1.442695
    %v7006 = vpow.pop %v7005
    %v7007 = vadd.f32 %v7006, 1.0
    %v7008 = vrcp.pop %v7007
    %v7009 = vmul.f32 1.0, %v7008
    %7011 = vrot.lane.b32.xlu0 %v7000, 64
    %v7012 = vpop.permute.xlu0 %7011
    %v7014 = vmul.f32 %v7009, %v7012
    %7016 = vrot.lane.b32.xlu0 %v7014, 64
    %v7017 = vpop.permute.xlu0 %7016
    %v7019 = vadd.f32 %v5232, %v7017
    %v7020 = vtanh.pop %v7019
    %v7021 = vsub.f32 1.0, %v7009
    %7023 = vrot.lane.b32.xlu0 %v7020, 96
    %v7024 = vpop.permute.xlu0 %7023
    %v7026 = vmul.f32 %v7021, %v7024
    %v7027 = vmul.f32 %v7009, %v6927
    %v7028 = vadd.f32 %v7026, %v7027
    %v7029 = vld [vmem:[#allocation23] sm:$0xff]
    %v7030 = vld [vmem:[#allocation23 + $0x8] sm:$0xff]
    %v7031 = vld [vmem:[#allocation23 + $0x10] sm:$0xff]
    %v7032 = vld [vmem:[#allocation23 + $0x18] sm:$0xff]
    %v7033 = vld [vmem:[#allocation23 + $0x20] sm:$0xff]
    %v7034 = vld [vmem:[#allocation23 + $0x28] sm:$0xff]
    %v7035 = vld [vmem:[#allocation23 + $0x30] sm:$0xff]
    %v7036 = vld [vmem:[#allocation23 + $0x38] sm:$0xff]
    %v7037 = vld [vmem:[%s18] sm:$0xff]
    %v7038 = vld [vmem:[%s18 + $0x8] sm:$0xff]
    %v7039 = vld [vmem:[%s18 + $0x10] sm:$0xff]
    %v7040 = vld [vmem:[%s18 + $0x18] sm:$0xff]
    %v7041 = vld [vmem:[%s19] sm:$0x1]
    %v7042 = vld [vmem:[%s20] sm:$0x1]
    %7044 = vrot.lane.b32.xlu0 %v7028, 96
    %v7045 = vpop.permute.xlu0 %7044
    %v7046 = vsel %vm913, %v7045, 0
    %7048 = vmatprep.subr.mxu0 0.0
    %7049 = vmatpush1.msra.mxu0 %v7033
    %7050 = vmatprep.subr.mxu0 0.0
    %7051 = vmatpush1.msra.mxu0 %v7034
    %7052 = vmatprep.subr.mxu0 0.0
    %7053 = vmatpush1.msra.mxu0 %v7035
    %7054 = vmatprep.subr.mxu0 0.0
    %7055 = vmatpush1.msra.mxu0 %v7036
    %7056 = vmatprep.subr.mxu0 0.0
    %7057 = vmatpush1.msra.mxu0 0.0
    %7058 = vmatprep.subr.mxu0 0.0
    %7059 = vmatpush1.msra.mxu0 0.0
    %7060 = vmatprep.subr.mxu0 0.0
    %7061 = vmatpush1.msra.mxu0 0.0
    %7062 = vmatprep.subr.mxu0 0.0
    %7063 = vmatpush1.msra.mxu0 0.0
    %7064 = vmatprep.subr.mxu0 0.0
    %7065 = vmatpush1.msra.mxu0 0.0
    %7066 = vmatprep.subr.mxu0 0.0
    %7067 = vmatpush1.msra.mxu0 0.0
    %7068 = vmatprep.subr.mxu0 0.0
    %7069 = vmatpush1.msra.mxu0 0.0
    %7070 = vmatprep.subr.mxu0 0.0
    %7071 = vmatpush1.msra.mxu0 0.0
    %7072 = vmatprep.subr.mxu0 0.0
    %7073 = vmatpush1.msra.mxu0 0.0
    %7074 = vmatprep.subr.mxu0 0.0
    %7075 = vmatpush1.msra.mxu0 0.0
    %7076 = vmatprep.subr.mxu0 0.0
    %7077 = vmatpush1.msra.mxu0 0.0
    %7078 = vmatprep.subr.mxu0 0.0
    %7079 = vmatpush1.msra.mxu0 0.0
    %7080 = vmatprep.subr.mxu0 0.0
    %7081 = vmatpush1.msra.mxu0 0.0
    %7082 = vmatprep.subr.mxu0 0.0
    %7083 = vmatpush1.msra.mxu0 0.0
    %7084 = vmatprep.subr.mxu0 0.0
    %7085 = vmatpush1.msra.mxu0 0.0
    %7086 = vmatprep.subr.mxu0 0.0
    %7087 = vmatpush1.msra.mxu0 0.0
    %7088 = vmatprep.subr.mxu0 0.0
    %7089 = vmatpush1.msra.mxu0 0.0
    %7090 = vmatprep.subr.mxu0 0.0
    %7091 = vmatpush1.msra.mxu0 0.0
    %7092 = vmatprep.subr.mxu0 0.0
    %7093 = vmatpush1.msra.mxu0 0.0
    %7094 = vmatprep.subr.mxu0 0.0
    %7095 = vmatpush1.msra.mxu0 0.0
    %7096 = vmatprep.subr.mxu0 0.0
    %7097 = vmatpush1.msra.mxu0 0.0
    %7098 = vmatprep.subr.mxu0 0.0
    %7099 = vmatpush1.msra.mxu0 0.0
    %7100 = vmatprep.subr.mxu0 0.0
    %7101 = vmatpush1.msra.mxu0 0.0
    %7102 = vmatprep.subr.mxu0 0.0
    %7103 = vmatpush1.msra.mxu0 0.0
    %7104 = vmatprep.subr.mxu0 0.0
    %7105 = vmatpush1.msra.mxu0 0.0
    %7106 = vmatprep.subr.mxu0 0.0
    %7107 = vmatpush1.msra.mxu0 0.0
    %7108 = vmatprep.subr.mxu0 0.0
    %7109 = vmatpush1.msra.mxu0 0.0
    %7110 = vmatprep.subr.mxu0 0.0
    %7111 = vmatpush1.msra.mxu0 0.0
    %7112 = vmatprep.mubr.f32.mxu0 0.0
    %7113 = vmatmul.mubr.f32.gmra.mrb[0].mxu0 %v7046
    %v7114 = vpop.f32.mrb[0].mxu0
    %v7115 = vadd.f32 0.0, %v7114
    %v7116 = vpop.f32.mrb[0].mxu0
    %7117 = vdwg.mxu0
    %7118 = vmatprep.subr.mxu0 0.0
    %7119 = vmatpush1.msra.mxu0 %v7029
    %7120 = vmatprep.subr.mxu0 0.0
    %7121 = vmatpush1.msra.mxu0 %v7030
    %7122 = vmatprep.subr.mxu0 0.0
    %7123 = vmatpush1.msra.mxu0 %v7031
    %7124 = vmatprep.subr.mxu0 0.0
    %7125 = vmatpush1.msra.mxu0 %v7032
    %7126 = vmatprep.subr.mxu0 0.0
    %7127 = vmatpush1.msra.mxu0 0.0
    %7128 = vmatprep.subr.mxu0 0.0
    %7129 = vmatpush1.msra.mxu0 0.0
    %7130 = vmatprep.subr.mxu0 0.0
    %7131 = vmatpush1.msra.mxu0 0.0
    %7132 = vmatprep.subr.mxu0 0.0
    %7133 = vmatpush1.msra.mxu0 0.0
    %7134 = vmatprep.subr.mxu0 0.0
    %7135 = vmatpush1.msra.mxu0 0.0
    %7136 = vmatprep.subr.mxu0 0.0
    %7137 = vmatpush1.msra.mxu0 0.0
    %7138 = vmatprep.subr.mxu0 0.0
    %7139 = vmatpush1.msra.mxu0 0.0
    %7140 = vmatprep.subr.mxu0 0.0
    %7141 = vmatpush1.msra.mxu0 0.0
    %7142 = vmatprep.subr.mxu0 0.0
    %7143 = vmatpush1.msra.mxu0 0.0
    %7144 = vmatprep.subr.mxu0 0.0
    %7145 = vmatpush1.msra.mxu0 0.0
    %7146 = vmatprep.subr.mxu0 0.0
    %7147 = vmatpush1.msra.mxu0 0.0
    %7148 = vmatprep.subr.mxu0 0.0
    %7149 = vmatpush1.msra.mxu0 0.0
    %7150 = vmatprep.subr.mxu0 0.0
    %7151 = vmatpush1.msra.mxu0 0.0
    %7152 = vmatprep.subr.mxu0 0.0
    %7153 = vmatpush1.msra.mxu0 0.0
    %7154 = vmatprep.subr.mxu0 0.0
    %7155 = vmatpush1.msra.mxu0 0.0
    %7156 = vmatprep.subr.mxu0 0.0
    %7157 = vmatpush1.msra.mxu0 0.0
    %7158 = vmatprep.subr.mxu0 0.0
    %7159 = vmatpush1.msra.mxu0 0.0
    %7160 = vmatprep.subr.mxu0 0.0
    %7161 = vmatpush1.msra.mxu0 0.0
    %7162 = vmatprep.subr.mxu0 0.0
    %7163 = vmatpush1.msra.mxu0 0.0
    %7164 = vmatprep.subr.mxu0 0.0
    %7165 = vmatpush1.msra.mxu0 0.0
    %7166 = vmatprep.subr.mxu0 0.0
    %7167 = vmatpush1.msra.mxu0 0.0
    %7168 = vmatprep.subr.mxu0 0.0
    %7169 = vmatpush1.msra.mxu0 0.0
    %7170 = vmatprep.subr.mxu0 0.0
    %7171 = vmatpush1.msra.mxu0 0.0
    %7172 = vmatprep.subr.mxu0 0.0
    %7173 = vmatpush1.msra.mxu0 0.0
    %7174 = vmatprep.subr.mxu0 0.0
    %7175 = vmatpush1.msra.mxu0 0.0
    %7176 = vmatprep.subr.mxu0 0.0
    %7177 = vmatpush1.msra.mxu0 0.0
    %7178 = vmatprep.subr.mxu0 0.0
    %7179 = vmatpush1.msra.mxu0 0.0
    %7180 = vmatprep.subr.mxu0 0.0
    %7181 = vmatpush1.msra.mxu0 0.0
    %7182 = vmatprep.mubr.f32.mxu0 0.0
    %7183 = vmatmul.mubr.f32.gmra.mrb[0].mxu0 %v4368
    %v7184 = vpop.f32.mrb[0].mxu0
    %v7185 = vadd.f32 %v7115, %v7184
    %v7186 = vpop.f32.mrb[0].mxu0
    %7187 = vdwg.mxu0
    %v7189 = vlaneseq
    %v7190 = vshrl.u32 %v7189, 7
    %v7191 = vsub.s32 0, %v7190
    %v7192 = vrot.slane %v7041, %v7191
    %v7194 = vadd.f32 %v7185, %v7192
    %7195 = vmatprep.subr.mxu0 0.0
    %7196 = vmatpush1.msra.mxu0 %v7033
    %7197 = vmatprep.subr.mxu0 0.0
    %7198 = vmatpush1.msra.mxu0 %v7034
    %7199 = vmatprep.subr.mxu0 0.0
    %7200 = vmatpush1.msra.mxu0 %v7035
    %7201 = vmatprep.subr.mxu0 0.0
    %7202 = vmatpush1.msra.mxu0 %v7036
    %7203 = vmatprep.subr.mxu0 0.0
    %7204 = vmatpush1.msra.mxu0 0.0
    %7205 = vmatprep.subr.mxu0 0.0
    %7206 = vmatpush1.msra.mxu0 0.0
    %7207 = vmatprep.subr.mxu0 0.0
    %7208 = vmatpush1.msra.mxu0 0.0
    %7209 = vmatprep.subr.mxu0 0.0
    %7210 = vmatpush1.msra.mxu0 0.0
    %7211 = vmatprep.subr.mxu0 0.0
    %7212 = vmatpush1.msra.mxu0 0.0
    %7213 = vmatprep.subr.mxu0 0.0
    %7214 = vmatpush1.msra.mxu0 0.0
    %7215 = vmatprep.subr.mxu0 0.0
    %7216 = vmatpush1.msra.mxu0 0.0
    %7217 = vmatprep.subr.mxu0 0.0
    %7218 = vmatpush1.msra.mxu0 0.0
    %7219 = vmatprep.subr.mxu0 0.0
    %7220 = vmatpush1.msra.mxu0 0.0
    %7221 = vmatprep.subr.mxu0 0.0
    %7222 = vmatpush1.msra.mxu0 0.0
    %7223 = vmatprep.subr.mxu0 0.0
    %7224 = vmatpush1.msra.mxu0 0.0
    %7225 = vmatprep.subr.mxu0 0.0
    %7226 = vmatpush1.msra.mxu0 0.0
    %7227 = vmatprep.subr.mxu0 0.0
    %7228 = vmatpush1.msra.mxu0 0.0
    %7229 = vmatprep.subr.mxu0 0.0
    %7230 = vmatpush1.msra.mxu0 0.0
    %7231 = vmatprep.subr.mxu0 0.0
    %7232 = vmatpush1.msra.mxu0 0.0
    %7233 = vmatprep.subr.mxu0 0.0
    %7234 = vmatpush1.msra.mxu0 0.0
    %7235 = vmatprep.subr.mxu0 0.0
    %7236 = vmatpush1.msra.mxu0 0.0
    %7237 = vmatprep.subr.mxu0 0.0
    %7238 = vmatpush1.msra.mxu0 0.0
    %7239 = vmatprep.subr.mxu0 0.0
    %7240 = vmatpush1.msra.mxu0 0.0
    %7241 = vmatprep.subr.mxu0 0.0
    %7242 = vmatpush1.msra.mxu0 0.0
    %7243 = vmatprep.subr.mxu0 0.0
    %7244 = vmatpush1.msra.mxu0 0.0
    %7245 = vmatprep.subr.mxu0 0.0
    %7246 = vmatpush1.msra.mxu0 0.0
    %7247 = vmatprep.subr.mxu0 0.0
    %7248 = vmatpush1.msra.mxu0 0.0
    %7249 = vmatprep.subr.mxu0 0.0
    %7250 = vmatpush1.msra.mxu0 0.0
    %7251 = vmatprep.subr.mxu0 0.0
    %7252 = vmatpush1.msra.mxu0 0.0
    %7253 = vmatprep.subr.mxu0 0.0
    %7254 = vmatpush1.msra.mxu0 0.0
    %7255 = vmatprep.subr.mxu0 0.0
    %7256 = vmatpush1.msra.mxu0 0.0
    %7257 = vmatprep.subr.mxu0 0.0
    %7258 = vmatpush1.msra.mxu0 0.0
    %7259 = vmatprep.mubr.f32.mxu0 0.0
    %7260 = vmatmul.mubr.f32.gmra.mrb[0].mxu0 %v6931
    %v7261 = vpop.f32.mrb[0].mxu0
    %v7262 = vadd.f32 0.0, %v7261
    %v7263 = vpop.f32.mrb[0].mxu0
    %7264 = vdwg.mxu0
    %7265 = vmatprep.subr.mxu0 0.0
    %7266 = vmatpush1.msra.mxu0 %v7029
    %7267 = vmatprep.subr.mxu0 0.0
    %7268 = vmatpush1.msra.mxu0 %v7030
    %7269 = vmatprep.subr.mxu0 0.0
    %7270 = vmatpush1.msra.mxu0 %v7031
    %7271 = vmatprep.subr.mxu0 0.0
    %7272 = vmatpush1.msra.mxu0 %v7032
    %7273 = vmatprep.subr.mxu0 0.0
    %7274 = vmatpush1.msra.mxu0 0.0
    %7275 = vmatprep.subr.mxu0 0.0
    %7276 = vmatpush1.msra.mxu0 0.0
    %7277 = vmatprep.subr.mxu0 0.0
    %7278 = vmatpush1.msra.mxu0 0.0
    %7279 = vmatprep.subr.mxu0 0.0
    %7280 = vmatpush1.msra.mxu0 0.0
    %7281 = vmatprep.subr.mxu0 0.0
    %7282 = vmatpush1.msra.mxu0 0.0
    %7283 = vmatprep.subr.mxu0 0.0
    %7284 = vmatpush1.msra.mxu0 0.0
    %7285 = vmatprep.subr.mxu0 0.0
    %7286 = vmatpush1.msra.mxu0 0.0
    %7287 = vmatprep.subr.mxu0 0.0
    %7288 = vmatpush1.msra.mxu0 0.0
    %7289 = vmatprep.subr.mxu0 0.0
    %7290 = vmatpush1.msra.mxu0 0.0
    %7291 = vmatprep.subr.mxu0 0.0
    %7292 = vmatpush1.msra.mxu0 0.0
    %7293 = vmatprep.subr.mxu0 0.0
    %7294 = vmatpush1.msra.mxu0 0.0
    %7295 = vmatprep.subr.mxu0 0.0
    %7296 = vmatpush1.msra.mxu0 0.0
    %7297 = vmatprep.subr.mxu0 0.0
    %7298 = vmatpush1.msra.mxu0 0.0
    %7299 = vmatprep.subr.mxu0 0.0
    %7300 = vmatpush1.msra.mxu0 0.0
    %7301 = vmatprep.subr.mxu0 0.0
    %7302 = vmatpush1.msra.mxu0 0.0
    %7303 = vmatprep.subr.mxu0 0.0
    %7304 = vmatpush1.msra.mxu0 0.0
    %7305 = vmatprep.subr.mxu0 0.0
    %7306 = vmatpush1.msra.mxu0 0.0
    %7307 = vmatprep.subr.mxu0 0.0
    %7308 = vmatpush1.msra.mxu0 0.0
    %7309 = vmatprep.subr.mxu0 0.0
    %7310 = vmatpush1.msra.mxu0 0.0
    %7311 = vmatprep.subr.mxu0 0.0
    %7312 = vmatpush1.msra.mxu0 0.0
    %7313 = vmatprep.subr.mxu0 0.0
    %7314 = vmatpush1.msra.mxu0 0.0
    %7315 = vmatprep.subr.mxu0 0.0
    %7316 = vmatpush1.msra.mxu0 0.0
    %7317 = vmatprep.subr.mxu0 0.0
    %7318 = vmatpush1.msra.mxu0 0.0
    %7319 = vmatprep.subr.mxu0 0.0
    %7320 = vmatpush1.msra.mxu0 0.0
    %7321 = vmatprep.subr.mxu0 0.0
    %7322 = vmatpush1.msra.mxu0 0.0
    %7323 = vmatprep.subr.mxu0 0.0
    %7324 = vmatpush1.msra.mxu0 0.0
    %7325 = vmatprep.subr.mxu0 0.0
    %7326 = vmatpush1.msra.mxu0 0.0
    %7327 = vmatprep.subr.mxu0 0.0
    %7328 = vmatpush1.msra.mxu0 0.0
    %7329 = vmatprep.mubr.f32.mxu0 0.0
    %7330 = vmatmul.mubr.f32.gmra.mrb[0].mxu0 %v4469
    %v7331 = vpop.f32.mrb[0].mxu0
    %v7332 = vadd.f32 %v7262, %v7331
    %v7333 = vpop.f32.mrb[0].mxu0
    %7334 = vdwg.mxu0
    %v7335 = vadd.f32 %v7332, %v7192
    %7336 = vmatprep.subr.mxu0 0.0
    %7337 = vmatpush1.msra.mxu0 %v7033
    %7338 = vmatprep.subr.mxu0 0.0
    %7339 = vmatpush1.msra.mxu0 %v7034
    %7340 = vmatprep.subr.mxu0 0.0
    %7341 = vmatpush1.msra.mxu0 %v7035
    %7342 = vmatprep.subr.mxu0 0.0
    %7343 = vmatpush1.msra.mxu0 %v7036
    %7344 = vmatprep.subr.mxu0 0.0
    %7345 = vmatpush1.msra.mxu0 0.0
    %7346 = vmatprep.subr.mxu0 0.0
    %7347 = vmatpush1.msra.mxu0 0.0
    %7348 = vmatprep.subr.mxu0 0.0
    %7349 = vmatpush1.msra.mxu0 0.0
    %7350 = vmatprep.subr.mxu0 0.0
    %7351 = vmatpush1.msra.mxu0 0.0
    %7352 = vmatprep.subr.mxu0 0.0
    %7353 = vmatpush1.msra.mxu0 0.0
    %7354 = vmatprep.subr.mxu0 0.0
    %7355 = vmatpush1.msra.mxu0 0.0
    %7356 = vmatprep.subr.mxu0 0.0
    %7357 = vmatpush1.msra.mxu0 0.0
    %7358 = vmatprep.subr.mxu0 0.0
    %7359 = vmatpush1.msra.mxu0 0.0
    %7360 = vmatprep.subr.mxu0 0.0
    %7361 = vmatpush1.msra.mxu0 0.0
    %7362 = vmatprep.subr.mxu0 0.0
    %7363 = vmatpush1.msra.mxu0 0.0
    %7364 = vmatprep.subr.mxu0 0.0
    %7365 = vmatpush1.msra.mxu0 0.0
    %7366 = vmatprep.subr.mxu0 0.0
    %7367 = vmatpush1.msra.mxu0 0.0
    %7368 = vmatprep.subr.mxu0 0.0
    %7369 = vmatpush1.msra.mxu0 0.0
    %7370 = vmatprep.subr.mxu0 0.0
    %7371 = vmatpush1.msra.mxu0 0.0
    %7372 = vmatprep.subr.mxu0 0.0
    %7373 = vmatpush1.msra.mxu0 0.0
    %7374 = vmatprep.subr.mxu0 0.0
    %7375 = vmatpush1.msra.mxu0 0.0
    %7376 = vmatprep.subr.mxu0 0.0
    %7377 = vmatpush1.msra.mxu0 0.0
    %7378 = vmatprep.subr.mxu0 0.0
    %7379 = vmatpush1.msra.mxu0 0.0
    %7380 = vmatprep.subr.mxu0 0.0
    %7381 = vmatpush1.msra.mxu0 0.0
    %7382 = vmatprep.subr.mxu0 0.0
    %7383 = vmatpush1.msra.mxu0 0.0
    %7384 = vmatprep.subr.mxu0 0.0
    %7385 = vmatpush1.msra.mxu0 0.0
    %7386 = vmatprep.subr.mxu0 0.0
    %7387 = vmatpush1.msra.mxu0 0.0
    %7388 = vmatprep.subr.mxu0 0.0
    %7389 = vmatpush1.msra.mxu0 0.0
    %7390 = vmatprep.subr.mxu0 0.0
    %7391 = vmatpush1.msra.mxu0 0.0
    %7392 = vmatprep.subr.mxu0 0.0
    %7393 = vmatpush1.msra.mxu0 0.0
    %7394 = vmatprep.subr.mxu0 0.0
    %7395 = vmatpush1.msra.mxu0 0.0
    %7396 = vmatprep.subr.mxu0 0.0
    %7397 = vmatpush1.msra.mxu0 0.0
    %7398 = vmatprep.subr.mxu0 0.0
    %7399 = vmatpush1.msra.mxu0 0.0
    %7400 = vmatprep.mubr.f32.mxu0 0.0
    %7401 = vmatmul.mubr.f32.gmra.mrb[0].mxu0 %v6830
    %v7402 = vpop.f32.mrb[0].mxu0
    %v7403 = vadd.f32 0.0, %v7402
    %v7404 = vpop.f32.mrb[0].mxu0
    %7405 = vdwg.mxu0
    %7406 = vmatprep.subr.mxu0 0.0
    %7407 = vmatpush1.msra.mxu0 %v7029
    %7408 = vmatprep.subr.mxu0 0.0
    %7409 = vmatpush1.msra.mxu0 %v7030
    %7410 = vmatprep.subr.mxu0 0.0
    %7411 = vmatpush1.msra.mxu0 %v7031
    %7412 = vmatprep.subr.mxu0 0.0
    %7413 = vmatpush1.msra.mxu0 %v7032
    %7414 = vmatprep.subr.mxu0 0.0
    %7415 = vmatpush1.msra.mxu0 0.0
    %7416 = vmatprep.subr.mxu0 0.0
    %7417 = vmatpush1.msra.mxu0 0.0
    %7418 = vmatprep.subr.mxu0 0.0
    %7419 = vmatpush1.msra.mxu0 0.0
    %7420 = vmatprep.subr.mxu0 0.0
    %7421 = vmatpush1.msra.mxu0 0.0
    %7422 = vmatprep.subr.mxu0 0.0
    %7423 = vmatpush1.msra.mxu0 0.0
    %7424 = vmatprep.subr.mxu0 0.0
    %7425 = vmatpush1.msra.mxu0 0.0
    %7426 = vmatprep.subr.mxu0 0.0
    %7427 = vmatpush1.msra.mxu0 0.0
    %7428 = vmatprep.subr.mxu0 0.0
    %7429 = vmatpush1.msra.mxu0 0.0
    %7430 = vmatprep.subr.mxu0 0.0
    %7431 = vmatpush1.msra.mxu0 0.0
    %7432 = vmatprep.subr.mxu0 0.0
    %7433 = vmatpush1.msra.mxu0 0.0
    %7434 = vmatprep.subr.mxu0 0.0
    %7435 = vmatpush1.msra.mxu0 0.0
    %7436 = vmatprep.subr.mxu0 0.0
    %7437 = vmatpush1.msra.mxu0 0.0
    %7438 = vmatprep.subr.mxu0 0.0
    %7439 = vmatpush1.msra.mxu0 0.0
    %7440 = vmatprep.subr.mxu0 0.0
    %7441 = vmatpush1.msra.mxu0 0.0
    %7442 = vmatprep.subr.mxu0 0.0
    %7443 = vmatpush1.msra.mxu0 0.0
    %7444 = vmatprep.subr.mxu0 0.0
    %7445 = vmatpush1.msra.mxu0 0.0
    %7446 = vmatprep.subr.mxu0 0.0
    %7447 = vmatpush1.msra.mxu0 0.0
    %7448 = vmatprep.subr.mxu0 0.0
    %7449 = vmatpush1.msra.mxu0 0.0
    %7450 = vmatprep.subr.mxu0 0.0
    %7451 = vmatpush1.msra.mxu0 0.0
    %7452 = vmatprep.subr.mxu0 0.0
    %7453 = vmatpush1.msra.mxu0 0.0
    %7454 = vmatprep.subr.mxu0 0.0
    %7455 = vmatpush1.msra.mxu0 0.0
    %7456 = vmatprep.subr.mxu0 0.0
    %7457 = vmatpush1.msra.mxu0 0.0
    %7458 = vmatprep.subr.mxu0 0.0
    %7459 = vmatpush1.msra.mxu0 0.0
    %7460 = vmatprep.subr.mxu0 0.0
    %7461 = vmatpush1.msra.mxu0 0.0
    %7462 = vmatprep.subr.mxu0 0.0
    %7463 = vmatpush1.msra.mxu0 0.0
    %7464 = vmatprep.subr.mxu0 0.0
    %7465 = vmatpush1.msra.mxu0 0.0
    %7466 = vmatprep.subr.mxu0 0.0
    %7467 = vmatpush1.msra.mxu0 0.0
    %7468 = vmatprep.subr.mxu0 0.0
    %7469 = vmatpush1.msra.mxu0 0.0
    %7470 = vmatprep.mubr.f32.mxu0 0.0
    %7471 = vmatmul.mubr.f32.gmra.mrb[0].mxu0 %v4570
    %v7472 = vpop.f32.mrb[0].mxu0
    %v7473 = vadd.f32 %v7403, %v7472
    %v7474 = vpop.f32.mrb[0].mxu0
    %7475 = vdwg.mxu0
    %v7476 = vadd.f32 %v7473, %v7192
    %7477 = vmatprep.subr.mxu0 0.0
    %7478 = vmatpush1.msra.mxu0 %v7033
    %7479 = vmatprep.subr.mxu0 0.0
    %7480 = vmatpush1.msra.mxu0 %v7034
    %7481 = vmatprep.subr.mxu0 0.0
    %7482 = vmatpush1.msra.mxu0 %v7035
    %7483 = vmatprep.subr.mxu0 0.0
    %7484 = vmatpush1.msra.mxu0 %v7036
    %7485 = vmatprep.subr.mxu0 0.0
    %7486 = vmatpush1.msra.mxu0 0.0
    %7487 = vmatprep.subr.mxu0 0.0
    %7488 = vmatpush1.msra.mxu0 0.0
    %7489 = vmatprep.subr.mxu0 0.0
    %7490 = vmatpush1.msra.mxu0 0.0
    %7491 = vmatprep.subr.mxu0 0.0
    %7492 = vmatpush1.msra.mxu0 0.0
    %7493 = vmatprep.subr.mxu0 0.0
    %7494 = vmatpush1.msra.mxu0 0.0
    %7495 = vmatprep.subr.mxu0 0.0
    %7496 = vmatpush1.msra.mxu0 0.0
    %7497 = vmatprep.subr.mxu0 0.0
    %7498 = vmatpush1.msra.mxu0 0.0
    %7499 = vmatprep.subr.mxu0 0.0
    %7500 = vmatpush1.msra.mxu0 0.0
    %7501 = vmatprep.subr.mxu0 0.0
    %7502 = vmatpush1.msra.mxu0 0.0
    %7503 = vmatprep.subr.mxu0 0.0
    %7504 = vmatpush1.msra.mxu0 0.0
    %7505 = vmatprep.subr.mxu0 0.0
    %7506 = vmatpush1.msra.mxu0 0.0
    %7507 = vmatprep.subr.mxu0 0.0
    %7508 = vmatpush1.msra.mxu0 0.0
    %7509 = vmatprep.subr.mxu0 0.0
    %7510 = vmatpush1.msra.mxu0 0.0
    %7511 = vmatprep.subr.mxu0 0.0
    %7512 = vmatpush1.msra.mxu0 0.0
    %7513 = vmatprep.subr.mxu0 0.0
    %7514 = vmatpush1.msra.mxu0 0.0
    %7515 = vmatprep.subr.mxu0 0.0
    %7516 = vmatpush1.msra.mxu0 0.0
    %7517 = vmatprep.subr.mxu0 0.0
    %7518 = vmatpush1.msra.mxu0 0.0
    %7519 = vmatprep.subr.mxu0 0.0
    %7520 = vmatpush1.msra.mxu0 0.0
    %7521 = vmatprep.subr.mxu0 0.0
    %7522 = vmatpush1.msra.mxu0 0.0
    %7523 = vmatprep.subr.mxu0 0.0
    %7524 = vmatpush1.msra.mxu0 0.0
    %7525 = vmatprep.subr.mxu0 0.0
    %7526 = vmatpush1.msra.mxu0 0.0
    %7527 = vmatprep.subr.mxu0 0.0
    %7528 = vmatpush1.msra.mxu0 0.0
    %7529 = vmatprep.subr.mxu0 0.0
    %7530 = vmatpush1.msra.mxu0 0.0
    %7531 = vmatprep.subr.mxu0 0.0
    %7532 = vmatpush1.msra.mxu0 0.0
    %7533 = vmatprep.subr.mxu0 0.0
    %7534 = vmatpush1.msra.mxu0 0.0
    %7535 = vmatprep.subr.mxu0 0.0
    %7536 = vmatpush1.msra.mxu0 0.0
    %7537 = vmatprep.subr.mxu0 0.0
    %7538 = vmatpush1.msra.mxu0 0.0
    %7539 = vmatprep.subr.mxu0 0.0
    %7540 = vmatpush1.msra.mxu0 0.0
    %7541 = vmatprep.mubr.f32.mxu0 0.0
    %7542 = vmatmul.mubr.f32.gmra.mrb[0].mxu0 %v6729
    %v7543 = vpop.f32.mrb[0].mxu0
    %v7544 = vadd.f32 0.0, %v7543
    %v7545 = vpop.f32.mrb[0].mxu0
    %7546 = vdwg.mxu0
    %7547 = vmatprep.subr.mxu0 0.0
    %7548 = vmatpush1.msra.mxu0 %v7029
    %7549 = vmatprep.subr.mxu0 0.0
    %7550 = vmatpush1.msra.mxu0 %v7030
    %7551 = vmatprep.subr.mxu0 0.0
    %7552 = vmatpush1.msra.mxu0 %v7031
    %7553 = vmatprep.subr.mxu0 0.0
    %7554 = vmatpush1.msra.mxu0 %v7032
    %7555 = vmatprep.subr.mxu0 0.0
    %7556 = vmatpush1.msra.mxu0 0.0
    %7557 = vmatprep.subr.mxu0 0.0
    %7558 = vmatpush1.msra.mxu0 0.0
    %7559 = vmatprep.subr.mxu0 0.0
    %7560 = vmatpush1.msra.mxu0 0.0
    %7561 = vmatprep.subr.mxu0 0.0
    %7562 = vmatpush1.msra.mxu0 0.0
    %7563 = vmatprep.subr.mxu0 0.0
    %7564 = vmatpush1.msra.mxu0 0.0
    %7565 = vmatprep.subr.mxu0 0.0
    %7566 = vmatpush1.msra.mxu0 0.0
    %7567 = vmatprep.subr.mxu0 0.0
    %7568 = vmatpush1.msra.mxu0 0.0
    %7569 = vmatprep.subr.mxu0 0.0
    %7570 = vmatpush1.msra.mxu0 0.0
    %7571 = vmatprep.subr.mxu0 0.0
    %7572 = vmatpush1.msra.mxu0 0.0
    %7573 = vmatprep.subr.mxu0 0.0
    %7574 = vmatpush1.msra.mxu0 0.0
    %7575 = vmatprep.subr.mxu0 0.0
    %7576 = vmatpush1.msra.mxu0 0.0
    %7577 = vmatprep.subr.mxu0 0.0
    %7578 = vmatpush1.msra.mxu0 0.0
    %7579 = vmatprep.subr.mxu0 0.0
    %7580 = vmatpush1.msra.mxu0 0.0
    %7581 = vmatprep.subr.mxu0 0.0
    %7582 = vmatpush1.msra.mxu0 0.0
    %7583 = vmatprep.subr.mxu0 0.0
    %7584 = vmatpush1.msra.mxu0 0.0
    %7585 = vmatprep.subr.mxu0 0.0
    %7586 = vmatpush1.msra.mxu0 0.0
    %7587 = vmatprep.subr.mxu0 0.0
    %7588 = vmatpush1.msra.mxu0 0.0
    %7589 = vmatprep.subr.mxu0 0.0
    %7590 = vmatpush1.msra.mxu0 0.0
    %7591 = vmatprep.subr.mxu0 0.0
    %7592 = vmatpush1.msra.mxu0 0.0
    %7593 = vmatprep.subr.mxu0 0.0
    %7594 = vmatpush1.msra.mxu0 0.0
    %7595 = vmatprep.subr.mxu0 0.0
    %7596 = vmatpush1.msra.mxu0 0.0
    %7597 = vmatprep.subr.mxu0 0.0
    %7598 = vmatpush1.msra.mxu0 0.0
    %7599 = vmatprep.subr.mxu0 0.0
    %7600 = vmatpush1.msra.mxu0 0.0
    %7601 = vmatprep.subr.mxu0 0.0
    %7602 = vmatpush1.msra.mxu0 0.0
    %7603 = vmatprep.subr.mxu0 0.0
    %7604 = vmatpush1.msra.mxu0 0.0
    %7605 = vmatprep.subr.mxu0 0.0
    %7606 = vmatpush1.msra.mxu0 0.0
    %7607 = vmatprep.subr.mxu0 0.0
    %7608 = vmatpush1.msra.mxu0 0.0
    %7609 = vmatprep.subr.mxu0 0.0
    %7610 = vmatpush1.msra.mxu0 0.0
    %7611 = vmatprep.mubr.f32.mxu0 0.0
    %7612 = vmatmul.mubr.f32.gmra.mrb[0].mxu0 %v4671
    %v7613 = vpop.f32.mrb[0].mxu0
    %v7614 = vadd.f32 %v7544, %v7613
    %v7615 = vpop.f32.mrb[0].mxu0
    %7616 = vdwg.mxu0
    %v7617 = vadd.f32 %v7614, %v7192
    %7618 = vmatprep.subr.mxu0 0.0
    %7619 = vmatpush1.msra.mxu0 %v7033
    %7620 = vmatprep.subr.mxu0 0.0
    %7621 = vmatpush1.msra.mxu0 %v7034
    %7622 = vmatprep.subr.mxu0 0.0
    %7623 = vmatpush1.msra.mxu0 %v7035
    %7624 = vmatprep.subr.mxu0 0.0
    %7625 = vmatpush1.msra.mxu0 %v7036
    %7626 = vmatprep.subr.mxu0 0.0
    %7627 = vmatpush1.msra.mxu0 0.0
    %7628 = vmatprep.subr.mxu0 0.0
    %7629 = vmatpush1.msra.mxu0 0.0
    %7630 = vmatprep.subr.mxu0 0.0
    %7631 = vmatpush1.msra.mxu0 0.0
    %7632 = vmatprep.subr.mxu0 0.0
    %7633 = vmatpush1.msra.mxu0 0.0
    %7634 = vmatprep.subr.mxu0 0.0
    %7635 = vmatpush1.msra.mxu0 0.0
    %7636 = vmatprep.subr.mxu0 0.0
    %7637 = vmatpush1.msra.mxu0 0.0
    %7638 = vmatprep.subr.mxu0 0.0
    %7639 = vmatpush1.msra.mxu0 0.0
    %7640 = vmatprep.subr.mxu0 0.0
    %7641 = vmatpush1.msra.mxu0 0.0
    %7642 = vmatprep.subr.mxu0 0.0
    %7643 = vmatpush1.msra.mxu0 0.0
    %7644 = vmatprep.subr.mxu0 0.0
    %7645 = vmatpush1.msra.mxu0 0.0
    %7646 = vmatprep.subr.mxu0 0.0
    %7647 = vmatpush1.msra.mxu0 0.0
    %7648 = vmatprep.subr.mxu0 0.0
    %7649 = vmatpush1.msra.mxu0 0.0
    %7650 = vmatprep.subr.mxu0 0.0
    %7651 = vmatpush1.msra.mxu0 0.0
    %7652 = vmatprep.subr.mxu0 0.0
    %7653 = vmatpush1.msra.mxu0 0.0
    %7654 = vmatprep.subr.mxu0 0.0
    %7655 = vmatpush1.msra.mxu0 0.0
    %7656 = vmatprep.subr.mxu0 0.0
    %7657 = vmatpush1.msra.mxu0 0.0
    %7658 = vmatprep.subr.mxu0 0.0
    %7659 = vmatpush1.msra.mxu0 0.0
    %7660 = vmatprep.subr.mxu0 0.0
    %7661 = vmatpush1.msra.mxu0 0.0
    %7662 = vmatprep.subr.mxu0 0.0
    %7663 = vmatpush1.msra.mxu0 0.0
    %7664 = vmatprep.subr.mxu0 0.0
    %7665 = vmatpush1.msra.mxu0 0.0
    %7666 = vmatprep.subr.mxu0 0.0
    %7667 = vmatpush1.msra.mxu0 0.0
    %7668 = vmatprep.subr.mxu0 0.0
    %7669 = vmatpush1.msra.mxu0 0.0
    %7670 = vmatprep.subr.mxu0 0.0
    %7671 = vmatpush1.msra.mxu0 0.0
    %7672 = vmatprep.subr.mxu0 0.0
    %7673 = vmatpush1.msra.mxu0 0.0
    %7674 = vmatprep.subr.mxu0 0.0
    %7675 = vmatpush1.msra.mxu0 0.0
    %7676 = vmatprep.subr.mxu0 0.0
    %7677 = vmatpush1.msra.mxu0 0.0
    %7678 = vmatprep.subr.mxu0 0.0
    %7679 = vmatpush1.msra.mxu0 0.0
    %7680 = vmatprep.subr.mxu0 0.0
    %7681 = vmatpush1.msra.mxu0 0.0
    %7682 = vmatprep.mubr.f32.mxu0 0.0
    %7683 = vmatmul.mubr.f32.gmra.mrb[0].mxu0 %v6628
    %v7684 = vpop.f32.mrb[0].mxu0
    %v7685 = vadd.f32 0.0, %v7684
    %v7686 = vpop.f32.mrb[0].mxu0
    %7687 = vdwg.mxu0
    %7688 = vmatprep.subr.mxu0 0.0
    %7689 = vmatpush1.msra.mxu0 %v7029
    %7690 = vmatprep.subr.mxu0 0.0
    %7691 = vmatpush1.msra.mxu0 %v7030
    %7692 = vmatprep.subr.mxu0 0.0
    %7693 = vmatpush1.msra.mxu0 %v7031
    %7694 = vmatprep.subr.mxu0 0.0
    %7695 = vmatpush1.msra.mxu0 %v7032
    %7696 = vmatprep.subr.mxu0 0.0
    %7697 = vmatpush1.msra.mxu0 0.0
    %7698 = vmatprep.subr.mxu0 0.0
    %7699 = vmatpush1.msra.mxu0 0.0
    %7700 = vmatprep.subr.mxu0 0.0
    %7701 = vmatpush1.msra.mxu0 0.0
    %7702 = vmatprep.subr.mxu0 0.0
    %7703 = vmatpush1.msra.mxu0 0.0
    %7704 = vmatprep.subr.mxu0 0.0
    %7705 = vmatpush1.msra.mxu0 0.0
    %7706 = vmatprep.subr.mxu0 0.0
    %7707 = vmatpush1.msra.mxu0 0.0
    %7708 = vmatprep.subr.mxu0 0.0
    %7709 = vmatpush1.msra.mxu0 0.0
    %7710 = vmatprep.subr.mxu0 0.0
    %7711 = vmatpush1.msra.mxu0 0.0
    %7712 = vmatprep.subr.mxu0 0.0
    %7713 = vmatpush1.msra.mxu0 0.0
    %7714 = vmatprep.subr.mxu0 0.0
    %7715 = vmatpush1.msra.mxu0 0.0
    %7716 = vmatprep.subr.mxu0 0.0
    %7717 = vmatpush1.msra.mxu0 0.0
    %7718 = vmatprep.subr.mxu0 0.0
    %7719 = vmatpush1.msra.mxu0 0.0
    %7720 = vmatprep.subr.mxu0 0.0
    %7721 = vmatpush1.msra.mxu0 0.0
    %7722 = vmatprep.subr.mxu0 0.0
    %7723 = vmatpush1.msra.mxu0 0.0
    %7724 = vmatprep.subr.mxu0 0.0
    %7725 = vmatpush1.msra.mxu0 0.0
    %7726 = vmatprep.subr.mxu0 0.0
    %7727 = vmatpush1.msra.mxu0 0.0
    %7728 = vmatprep.subr.mxu0 0.0
    %7729 = vmatpush1.msra.mxu0 0.0
    %7730 = vmatprep.subr.mxu0 0.0
    %7731 = vmatpush1.msra.mxu0 0.0
    %7732 = vmatprep.subr.mxu0 0.0
    %7733 = vmatpush1.msra.mxu0 0.0
    %7734 = vmatprep.subr.mxu0 0.0
    %7735 = vmatpush1.msra.mxu0 0.0
    %7736 = vmatprep.subr.mxu0 0.0
    %7737 = vmatpush1.msra.mxu0 0.0
    %7738 = vmatprep.subr.mxu0 0.0
    %7739 = vmatpush1.msra.mxu0 0.0
    %7740 = vmatprep.subr.mxu0 0.0
    %7741 = vmatpush1.msra.mxu0 0.0
    %7742 = vmatprep.subr.mxu0 0.0
    %7743 = vmatpush1.msra.mxu0 0.0
    %7744 = vmatprep.subr.mxu0 0.0
    %7745 = vmatpush1.msra.mxu0 0.0
    %7746 = vmatprep.subr.mxu0 0.0
    %7747 = vmatpush1.msra.mxu0 0.0
    %7748 = vmatprep.subr.mxu0 0.0
    %7749 = vmatpush1.msra.mxu0 0.0
    %7750 = vmatprep.subr.mxu0 0.0
    %7751 = vmatpush1.msra.mxu0 0.0
    %7752 = vmatprep.mubr.f32.mxu0 0.0
    %7753 = vmatmul.mubr.f32.gmra.mrb[0].mxu0 %v4772
    %v7754 = vpop.f32.mrb[0].mxu0
    %v7755 = vadd.f32 %v7685, %v7754
    %v7756 = vpop.f32.mrb[0].mxu0
    %7757 = vdwg.mxu0
    %v7758 = vadd.f32 %v7755, %v7192
    %7759 = vmatprep.subr.mxu0 0.0
    %7760 = vmatpush1.msra.mxu0 %v7033
    %7761 = vmatprep.subr.mxu0 0.0
    %7762 = vmatpush1.msra.mxu0 %v7034
    %7763 = vmatprep.subr.mxu0 0.0
    %7764 = vmatpush1.msra.mxu0 %v7035
    %7765 = vmatprep.subr.mxu0 0.0
    %7766 = vmatpush1.msra.mxu0 %v7036
    %7767 = vmatprep.subr.mxu0 0.0
    %7768 = vmatpush1.msra.mxu0 0.0
    %7769 = vmatprep.subr.mxu0 0.0
    %7770 = vmatpush1.msra.mxu0 0.0
    %7771 = vmatprep.subr.mxu0 0.0
    %7772 = vmatpush1.msra.mxu0 0.0
    %7773 = vmatprep.subr.mxu0 0.0
    %7774 = vmatpush1.msra.mxu0 0.0
    %7775 = vmatprep.subr.mxu0 0.0
    %7776 = vmatpush1.msra.mxu0 0.0
    %7777 = vmatprep.subr.mxu0 0.0
    %7778 = vmatpush1.msra.mxu0 0.0
    %7779 = vmatprep.subr.mxu0 0.0
    %7780 = vmatpush1.msra.mxu0 0.0
    %7781 = vmatprep.subr.mxu0 0.0
    %7782 = vmatpush1.msra.mxu0 0.0
    %7783 = vmatprep.subr.mxu0 0.0
    %7784 = vmatpush1.msra.mxu0 0.0
    %7785 = vmatprep.subr.mxu0 0.0
    %7786 = vmatpush1.msra.mxu0 0.0
    %7787 = vmatprep.subr.mxu0 0.0
    %7788 = vmatpush1.msra.mxu0 0.0
    %7789 = vmatprep.subr.mxu0 0.0
    %7790 = vmatpush1.msra.mxu0 0.0
    %7791 = vmatprep.subr.mxu0 0.0
    %7792 = vmatpush1.msra.mxu0 0.0
    %7793 = vmatprep.subr.mxu0 0.0
    %7794 = vmatpush1.msra.mxu0 0.0
    %7795 = vmatprep.subr.mxu0 0.0
    %7796 = vmatpush1.msra.mxu0 0.0
    %7797 = vmatprep.subr.mxu0 0.0
    %7798 = vmatpush1.msra.mxu0 0.0
    %7799 = vmatprep.subr.mxu0 0.0
    %7800 = vmatpush1.msra.mxu0 0.0
    %7801 = vmatprep.subr.mxu0 0.0
    %7802 = vmatpush1.msra.mxu0 0.0
    %7803 = vmatprep.subr.mxu0 0.0
    %7804 = vmatpush1.msra.mxu0 0.0
    %7805 = vmatprep.subr.mxu0 0.0
    %7806 = vmatpush1.msra.mxu0 0.0
    %7807 = vmatprep.subr.mxu0 0.0
    %7808 = vmatpush1.msra.mxu0 0.0
    %7809 = vmatprep.subr.mxu0 0.0
    %7810 = vmatpush1.msra.mxu0 0.0
    %7811 = vmatprep.subr.mxu0 0.0
    %7812 = vmatpush1.msra.mxu0 0.0
    %7813 = vmatprep.subr.mxu0 0.0
    %7814 = vmatpush1.msra.mxu0 0.0
    %7815 = vmatprep.subr.mxu0 0.0
    %7816 = vmatpush1.msra.mxu0 0.0
    %7817 = vmatprep.subr.mxu0 0.0
    %7818 = vmatpush1.msra.mxu0 0.0
    %7819 = vmatprep.subr.mxu0 0.0
    %7820 = vmatpush1.msra.mxu0 0.0
    %7821 = vmatprep.subr.mxu0 0.0
    %7822 = vmatpush1.msra.mxu0 0.0
    %7823 = vmatprep.mubr.f32.mxu0 0.0
    %7824 = vmatmul.mubr.f32.gmra.mrb[0].mxu0 %v6527
    %v7825 = vpop.f32.mrb[0].mxu0
    %v7826 = vadd.f32 0.0, %v7825
    %v7827 = vpop.f32.mrb[0].mxu0
    %7828 = vdwg.mxu0
    %7829 = vmatprep.subr.mxu0 0.0
    %7830 = vmatpush1.msra.mxu0 %v7029
    %7831 = vmatprep.subr.mxu0 0.0
    %7832 = vmatpush1.msra.mxu0 %v7030
    %7833 = vmatprep.subr.mxu0 0.0
    %7834 = vmatpush1.msra.mxu0 %v7031
    %7835 = vmatprep.subr.mxu0 0.0
    %7836 = vmatpush1.msra.mxu0 %v7032
    %7837 = vmatprep.subr.mxu0 0.0
    %7838 = vmatpush1.msra.mxu0 0.0
    %7839 = vmatprep.subr.mxu0 0.0
    %7840 = vmatpush1.msra.mxu0 0.0
    %7841 = vmatprep.subr.mxu0 0.0
    %7842 = vmatpush1.msra.mxu0 0.0
    %7843 = vmatprep.subr.mxu0 0.0
    %7844 = vmatpush1.msra.mxu0 0.0
    %7845 = vmatprep.subr.mxu0 0.0
    %7846 = vmatpush1.msra.mxu0 0.0
    %7847 = vmatprep.subr.mxu0 0.0
    %7848 = vmatpush1.msra.mxu0 0.0
    %7849 = vmatprep.subr.mxu0 0.0
    %7850 = vmatpush1.msra.mxu0 0.0
    %7851 = vmatprep.subr.mxu0 0.0
    %7852 = vmatpush1.msra.mxu0 0.0
    %7853 = vmatprep.subr.mxu0 0.0
    %7854 = vmatpush1.msra.mxu0 0.0
    %7855 = vmatprep.subr.mxu0 0.0
    %7856 = vmatpush1.msra.mxu0 0.0
    %7857 = vmatprep.subr.mxu0 0.0
    %7858 = vmatpush1.msra.mxu0 0.0
    %7859 = vmatprep.subr.mxu0 0.0
    %7860 = vmatpush1.msra.mxu0 0.0
    %7861 = vmatprep.subr.mxu0 0.0
    %7862 = vmatpush1.msra.mxu0 0.0
    %7863 = vmatprep.subr.mxu0 0.0
    %7864 = vmatpush1.msra.mxu0 0.0
    %7865 = vmatprep.subr.mxu0 0.0
    %7866 = vmatpush1.msra.mxu0 0.0
    %7867 = vmatprep.subr.mxu0 0.0
    %7868 = vmatpush1.msra.mxu0 0.0
    %7869 = vmatprep.subr.mxu0 0.0
    %7870 = vmatpush1.msra.mxu0 0.0
    %7871 = vmatprep.subr.mxu0 0.0
    %7872 = vmatpush1.msra.mxu0 0.0
    %7873 = vmatprep.subr.mxu0 0.0
    %7874 = vmatpush1.msra.mxu0 0.0
    %7875 = vmatprep.subr.mxu0 0.0
    %7876 = vmatpush1.msra.mxu0 0.0
    %7877 = vmatprep.subr.mxu0 0.0
    %7878 = vmatpush1.msra.mxu0 0.0
    %7879 = vmatprep.subr.mxu0 0.0
    %7880 = vmatpush1.msra.mxu0 0.0
    %7881 = vmatprep.subr.mxu0 0.0
    %7882 = vmatpush1.msra.mxu0 0.0
    %7883 = vmatprep.subr.mxu0 0.0
    %7884 = vmatpush1.msra.mxu0 0.0
    %7885 = vmatprep.subr.mxu0 0.0
    %7886 = vmatpush1.msra.mxu0 0.0
    %7887 = vmatprep.subr.mxu0 0.0
    %7888 = vmatpush1.msra.mxu0 0.0
    %7889 = vmatprep.subr.mxu0 0.0
    %7890 = vmatpush1.msra.mxu0 0.0
    %7891 = vmatprep.subr.mxu0 0.0
    %7892 = vmatpush1.msra.mxu0 0.0
    %7893 = vmatprep.mubr.f32.mxu0 0.0
    %7894 = vmatmul.mubr.f32.gmra.mrb[0].mxu0 %v4873
    %v7895 = vpop.f32.mrb[0].mxu0
    %v7896 = vadd.f32 %v7826, %v7895
    %v7897 = vpop.f32.mrb[0].mxu0
    %7898 = vdwg.mxu0
    %v7899 = vadd.f32 %v7896, %v7192
    %7900 = vmatprep.subr.mxu0 0.0
    %7901 = vmatpush1.msra.mxu0 %v7033
    %7902 = vmatprep.subr.mxu0 0.0
    %7903 = vmatpush1.msra.mxu0 %v7034
    %7904 = vmatprep.subr.mxu0 0.0
    %7905 = vmatpush1.msra.mxu0 %v7035
    %7906 = vmatprep.subr.mxu0 0.0
    %7907 = vmatpush1.msra.mxu0 %v7036
    %7908 = vmatprep.subr.mxu0 0.0
    %7909 = vmatpush1.msra.mxu0 0.0
    %7910 = vmatprep.subr.mxu0 0.0
    %7911 = vmatpush1.msra.mxu0 0.0
    %7912 = vmatprep.subr.mxu0 0.0
    %7913 = vmatpush1.msra.mxu0 0.0
    %7914 = vmatprep.subr.mxu0 0.0
    %7915 = vmatpush1.msra.mxu0 0.0
    %7916 = vmatprep.subr.mxu0 0.0
    %7917 = vmatpush1.msra.mxu0 0.0
    %7918 = vmatprep.subr.mxu0 0.0
    %7919 = vmatpush1.msra.mxu0 0.0
    %7920 = vmatprep.subr.mxu0 0.0
    %7921 = vmatpush1.msra.mxu0 0.0
    %7922 = vmatprep.subr.mxu0 0.0
    %7923 = vmatpush1.msra.mxu0 0.0
    %7924 = vmatprep.subr.mxu0 0.0
    %7925 = vmatpush1.msra.mxu0 0.0
    %7926 = vmatprep.subr.mxu0 0.0
    %7927 = vmatpush1.msra.mxu0 0.0
    %7928 = vmatprep.subr.mxu0 0.0
    %7929 = vmatpush1.msra.mxu0 0.0
    %7930 = vmatprep.subr.mxu0 0.0
    %7931 = vmatpush1.msra.mxu0 0.0
    %7932 = vmatprep.subr.mxu0 0.0
    %7933 = vmatpush1.msra.mxu0 0.0
    %7934 = vmatprep.subr.mxu0 0.0
    %7935 = vmatpush1.msra.mxu0 0.0
    %7936 = vmatprep.subr.mxu0 0.0
    %7937 = vmatpush1.msra.mxu0 0.0
    %7938 = vmatprep.subr.mxu0 0.0
    %7939 = vmatpush1.msra.mxu0 0.0
    %7940 = vmatprep.subr.mxu0 0.0
    %7941 = vmatpush1.msra.mxu0 0.0
    %7942 = vmatprep.subr.mxu0 0.0
    %7943 = vmatpush1.msra.mxu0 0.0
    %7944 = vmatprep.subr.mxu0 0.0
    %7945 = vmatpush1.msra.mxu0 0.0
    %7946 = vmatprep.subr.mxu0 0.0
    %7947 = vmatpush1.msra.mxu0 0.0
    %7948 = vmatprep.subr.mxu0 0.0
    %7949 = vmatpush1.msra.mxu0 0.0
    %7950 = vmatprep.subr.mxu0 0.0
    %7951 = vmatpush1.msra.mxu0 0.0
    %7952 = vmatprep.subr.mxu0 0.0
    %7953 = vmatpush1.msra.mxu0 0.0
    %7954 = vmatprep.subr.mxu0 0.0
    %7955 = vmatpush1.msra.mxu0 0.0
    %7956 = vmatprep.subr.mxu0 0.0
    %7957 = vmatpush1.msra.mxu0 0.0
    %7958 = vmatprep.subr.mxu0 0.0
    %7959 = vmatpush1.msra.mxu0 0.0
    %7960 = vmatprep.subr.mxu0 0.0
    %7961 = vmatpush1.msra.mxu0 0.0
    %7962 = vmatprep.subr.mxu0 0.0
    %7963 = vmatpush1.msra.mxu0 0.0
    %7964 = vmatprep.mubr.f32.mxu0 0.0
    %7965 = vmatmul.mubr.f32.gmra.mrb[0].mxu0 %v6426
    %v7966 = vpop.f32.mrb[0].mxu0
    %v7967 = vadd.f32 0.0, %v7966
    %v7968 = vpop.f32.mrb[0].mxu0
    %7969 = vdwg.mxu0
    %7970 = vmatprep.subr.mxu0 0.0
    %7971 = vmatpush1.msra.mxu0 %v7029
    %7972 = vmatprep.subr.mxu0 0.0
    %7973 = vmatpush1.msra.mxu0 %v7030
    %7974 = vmatprep.subr.mxu0 0.0
    %7975 = vmatpush1.msra.mxu0 %v7031
    %7976 = vmatprep.subr.mxu0 0.0
    %7977 = vmatpush1.msra.mxu0 %v7032
    %7978 = vmatprep.subr.mxu0 0.0
    %7979 = vmatpush1.msra.mxu0 0.0
    %7980 = vmatprep.subr.mxu0 0.0
    %7981 = vmatpush1.msra.mxu0 0.0
    %7982 = vmatprep.subr.mxu0 0.0
    %7983 = vmatpush1.msra.mxu0 0.0
    %7984 = vmatprep.subr.mxu0 0.0
    %7985 = vmatpush1.msra.mxu0 0.0
    %7986 = vmatprep.subr.mxu0 0.0
    %7987 = vmatpush1.msra.mxu0 0.0
    %7988 = vmatprep.subr.mxu0 0.0
    %7989 = vmatpush1.msra.mxu0 0.0
    %7990 = vmatprep.subr.mxu0 0.0
    %7991 = vmatpush1.msra.mxu0 0.0
    %7992 = vmatprep.subr.mxu0 0.0
    %7993 = vmatpush1.msra.mxu0 0.0
    %7994 = vmatprep.subr.mxu0 0.0
    %7995 = vmatpush1.msra.mxu0 0.0
    %7996 = vmatprep.subr.mxu0 0.0
    %7997 = vmatpush1.msra.mxu0 0.0
    %7998 = vmatprep.subr.mxu0 0.0
    %7999 = vmatpush1.msra.mxu0 0.0
    %8000 = vmatprep.subr.mxu0 0.0
    %8001 = vmatpush1.msra.mxu0 0.0
    %8002 = vmatprep.subr.mxu0 0.0
    %8003 = vmatpush1.msra.mxu0 0.0
    %8004 = vmatprep.subr.mxu0 0.0
    %8005 = vmatpush1.msra.mxu0 0.0
    %8006 = vmatprep.subr.mxu0 0.0
    %8007 = vmatpush1.msra.mxu0 0.0
    %8008 = vmatprep.subr.mxu0 0.0
    %8009 = vmatpush1.msra.mxu0 0.0
    %8010 = vmatprep.subr.mxu0 0.0
    %8011 = vmatpush1.msra.mxu0 0.0
    %8012 = vmatprep.subr.mxu0 0.0
    %8013 = vmatpush1.msra.mxu0 0.0
    %8014 = vmatprep.subr.mxu0 0.0
    %8015 = vmatpush1.msra.mxu0 0.0
    %8016 = vmatprep.subr.mxu0 0.0
    %8017 = vmatpush1.msra.mxu0 0.0
    %8018 = vmatprep.subr.mxu0 0.0
    %8019 = vmatpush1.msra.mxu0 0.0
    %8020 = vmatprep.subr.mxu0 0.0
    %8021 = vmatpush1.msra.mxu0 0.0
    %8022 = vmatprep.subr.mxu0 0.0
    %8023 = vmatpush1.msra.mxu0 0.0
    %8024 = vmatprep.subr.mxu0 0.0
    %8025 = vmatpush1.msra.mxu0 0.0
    %8026 = vmatprep.subr.mxu0 0.0
    %8027 = vmatpush1.msra.mxu0 0.0
    %8028 = vmatprep.subr.mxu0 0.0
    %8029 = vmatpush1.msra.mxu0 0.0
    %8030 = vmatprep.subr.mxu0 0.0
    %8031 = vmatpush1.msra.mxu0 0.0
    %8032 = vmatprep.subr.mxu0 0.0
    %8033 = vmatpush1.msra.mxu0 0.0
    %8034 = vmatprep.mubr.f32.mxu0 0.0
    %8035 = vmatmul.mubr.f32.gmra.mrb[0].mxu0 %v4974
    %v8036 = vpop.f32.mrb[0].mxu0
    %v8037 = vadd.f32 %v7967, %v8036
    %v8038 = vpop.f32.mrb[0].mxu0
    %8039 = vdwg.mxu0
    %v8040 = vadd.f32 %v8037, %v7192
    %8041 = vmatprep.subr.mxu0 0.0
    %8042 = vmatpush1.msra.mxu0 %v7033
    %8043 = vmatprep.subr.mxu0 0.0
    %8044 = vmatpush1.msra.mxu0 %v7034
    %8045 = vmatprep.subr.mxu0 0.0
    %8046 = vmatpush1.msra.mxu0 %v7035
    %8047 = vmatprep.subr.mxu0 0.0
    %8048 = vmatpush1.msra.mxu0 %v7036
    %8049 = vmatprep.subr.mxu0 0.0
    %8050 = vmatpush1.msra.mxu0 0.0
    %8051 = vmatprep.subr.mxu0 0.0
    %8052 = vmatpush1.msra.mxu0 0.0
    %8053 = vmatprep.subr.mxu0 0.0
    %8054 = vmatpush1.msra.mxu0 0.0
    %8055 = vmatprep.subr.mxu0 0.0
    %8056 = vmatpush1.msra.mxu0 0.0
    %8057 = vmatprep.subr.mxu0 0.0
    %8058 = vmatpush1.msra.mxu0 0.0
    %8059 = vmatprep.subr.mxu0 0.0
    %8060 = vmatpush1.msra.mxu0 0.0
    %8061 = vmatprep.subr.mxu0 0.0
    %8062 = vmatpush1.msra.mxu0 0.0
    %8063 = vmatprep.subr.mxu0 0.0
    %8064 = vmatpush1.msra.mxu0 0.0
    %8065 = vmatprep.subr.mxu0 0.0
    %8066 = vmatpush1.msra.mxu0 0.0
    %8067 = vmatprep.subr.mxu0 0.0
    %8068 = vmatpush1.msra.mxu0 0.0
    %8069 = vmatprep.subr.mxu0 0.0
    %8070 = vmatpush1.msra.mxu0 0.0
    %8071 = vmatprep.subr.mxu0 0.0
    %8072 = vmatpush1.msra.mxu0 0.0
    %8073 = vmatprep.subr.mxu0 0.0
    %8074 = vmatpush1.msra.mxu0 0.0
    %8075 = vmatprep.subr.mxu0 0.0
    %8076 = vmatpush1.msra.mxu0 0.0
    %8077 = vmatprep.subr.mxu0 0.0
    %8078 = vmatpush1.msra.mxu0 0.0
    %8079 = vmatprep.subr.mxu0 0.0
    %8080 = vmatpush1.msra.mxu0 0.0
    %8081 = vmatprep.subr.mxu0 0.0
    %8082 = vmatpush1.msra.mxu0 0.0
    %8083 = vmatprep.subr.mxu0 0.0
    %8084 = vmatpush1.msra.mxu0 0.0
    %8085 = vmatprep.subr.mxu0 0.0
    %8086 = vmatpush1.msra.mxu0 0.0
    %8087 = vmatprep.subr.mxu0 0.0
    %8088 = vmatpush1.msra.mxu0 0.0
    %8089 = vmatprep.subr.mxu0 0.0
    %8090 = vmatpush1.msra.mxu0 0.0
    %8091 = vmatprep.subr.mxu0 0.0
    %8092 = vmatpush1.msra.mxu0 0.0
    %8093 = vmatprep.subr.mxu0 0.0
    %8094 = vmatpush1.msra.mxu0 0.0
    %8095 = vmatprep.subr.mxu0 0.0
    %8096 = vmatpush1.msra.mxu0 0.0
    %8097 = vmatprep.subr.mxu0 0.0
    %8098 = vmatpush1.msra.mxu0 0.0
    %8099 = vmatprep.subr.mxu0 0.0
    %8100 = vmatpush1.msra.mxu0 0.0
    %8101 = vmatprep.subr.mxu0 0.0
    %8102 = vmatpush1.msra.mxu0 0.0
    %8103 = vmatprep.subr.mxu0 0.0
    %8104 = vmatpush1.msra.mxu0 0.0
    %8105 = vmatprep.mubr.f32.mxu0 0.0
    %8106 = vmatmul.mubr.f32.gmra.mrb[0].mxu0 %v6325
    %v8107 = vpop.f32.mrb[0].mxu0
    %v8108 = vadd.f32 0.0, %v8107
    %v8109 = vpop.f32.mrb[0].mxu0
    %8110 = vdwg.mxu0
    %8112 = vrot.lane.b32.xlu0 %v5071, 96
    %v8113 = vpop.permute.xlu0 %8112
    %v8114 = vsel %vm913, %v8113, 0
    %8116 = vmatprep.subr.mxu0 0.0
    %8117 = vmatpush1.msra.mxu0 %v7029
    %8118 = vmatprep.subr.mxu0 0.0
    %8119 = vmatpush1.msra.mxu0 %v7030
    %8120 = vmatprep.subr.mxu0 0.0
    %8121 = vmatpush1.msra.mxu0 %v7031
    %8122 = vmatprep.subr.mxu0 0.0
    %8123 = vmatpush1.msra.mxu0 %v7032
    %8124 = vmatprep.subr.mxu0 0.0
    %8125 = vmatpush1.msra.mxu0 0.0
    %8126 = vmatprep.subr.mxu0 0.0
    %8127 = vmatpush1.msra.mxu0 0.0
    %8128 = vmatprep.subr.mxu0 0.0
    %8129 = vmatpush1.msra.mxu0 0.0
    %8130 = vmatprep.subr.mxu0 0.0
    %8131 = vmatpush1.msra.mxu0 0.0
    %8132 = vmatprep.subr.mxu0 0.0
    %8133 = vmatpush1.msra.mxu0 0.0
    %8134 = vmatprep.subr.mxu0 0.0
    %8135 = vmatpush1.msra.mxu0 0.0
    %8136 = vmatprep.subr.mxu0 0.0
    %8137 = vmatpush1.msra.mxu0 0.0
    %8138 = vmatprep.subr.mxu0 0.0
    %8139 = vmatpush1.msra.mxu0 0.0
    %8140 = vmatprep.subr.mxu0 0.0
    %8141 = vmatpush1.msra.mxu0 0.0
    %8142 = vmatprep.subr.mxu0 0.0
    %8143 = vmatpush1.msra.mxu0 0.0
    %8144 = vmatprep.subr.mxu0 0.0
    %8145 = vmatpush1.msra.mxu0 0.0
    %8146 = vmatprep.subr.mxu0 0.0
    %8147 = vmatpush1.msra.mxu0 0.0
    %8148 = vmatprep.subr.mxu0 0.0
    %8149 = vmatpush1.msra.mxu0 0.0
    %8150 = vmatprep.subr.mxu0 0.0
    %8151 = vmatpush1.msra.mxu0 0.0
    %8152 = vmatprep.subr.mxu0 0.0
    %8153 = vmatpush1.msra.mxu0 0.0
    %8154 = vmatprep.subr.mxu0 0.0
    %8155 = vmatpush1.msra.mxu0 0.0
    %8156 = vmatprep.subr.mxu0 0.0
    %8157 = vmatpush1.msra.mxu0 0.0
    %8158 = vmatprep.subr.mxu0 0.0
    %8159 = vmatpush1.msra.mxu0 0.0
    %8160 = vmatprep.subr.mxu0 0.0
    %8161 = vmatpush1.msra.mxu0 0.0
    %8162 = vmatprep.subr.mxu0 0.0
    %8163 = vmatpush1.msra.mxu0 0.0
    %8164 = vmatprep.subr.mxu0 0.0
    %8165 = vmatpush1.msra.mxu0 0.0
    %8166 = vmatprep.subr.mxu0 0.0
    %8167 = vmatpush1.msra.mxu0 0.0
    %8168 = vmatprep.subr.mxu0 0.0
    %8169 = vmatpush1.msra.mxu0 0.0
    %8170 = vmatprep.subr.mxu0 0.0
    %8171 = vmatpush1.msra.mxu0 0.0
    %8172 = vmatprep.subr.mxu0 0.0
    %8173 = vmatpush1.msra.mxu0 0.0
    %8174 = vmatprep.subr.mxu0 0.0
    %8175 = vmatpush1.msra.mxu0 0.0
    %8176 = vmatprep.subr.mxu0 0.0
    %8177 = vmatpush1.msra.mxu0 0.0
    %8178 = vmatprep.subr.mxu0 0.0
    %8179 = vmatpush1.msra.mxu0 0.0
    %8180 = vmatprep.mubr.f32.mxu0 0.0
    %8181 = vmatmul.mubr.f32.gmra.mrb[0].mxu0 %v8114
    %v8182 = vpop.f32.mrb[0].mxu0
    %v8183 = vadd.f32 %v8108, %v8182
    %v8184 = vpop.f32.mrb[0].mxu0
    %8185 = vdwg.mxu0
    %v8186 = vadd.f32 %v8183, %v7192
    %v8188 = vlaneseq
    %v8189 = vshrl.u32 %v8188, 7
    %v8190 = vsub.s32 0, %v8189
    %v8191 = vrot.slane %v7042, %v8190
    %8193 = vmatprep.subr.mxu0 0.0
    %8194 = vmatpush1.msra.mxu0 %v7037
    %8195 = vmatprep.subr.mxu0 0.0
    %8196 = vmatpush1.msra.mxu0 %v7038
    %8197 = vmatprep.subr.mxu0 0.0
    %8198 = vmatpush1.msra.mxu0 %v7039
    %8199 = vmatprep.subr.mxu0 0.0
    %8200 = vmatpush1.msra.mxu0 %v7040
    %8201 = vmatprep.subr.mxu0 0.0
    %8202 = vmatpush1.msra.mxu0 0.0
    %8203 = vmatprep.subr.mxu0 0.0
    %8204 = vmatpush1.msra.mxu0 0.0
    %8205 = vmatprep.subr.mxu0 0.0
    %8206 = vmatpush1.msra.mxu0 0.0
    %8207 = vmatprep.subr.mxu0 0.0
    %8208 = vmatpush1.msra.mxu0 0.0
    %8209 = vmatprep.subr.mxu0 0.0
    %8210 = vmatpush1.msra.mxu0 0.0
    %8211 = vmatprep.subr.mxu0 0.0
    %8212 = vmatpush1.msra.mxu0 0.0
    %8213 = vmatprep.subr.mxu0 0.0
    %8214 = vmatpush1.msra.mxu0 0.0
    %8215 = vmatprep.subr.mxu0 0.0
    %8216 = vmatpush1.msra.mxu0 0.0
    %8217 = vmatprep.subr.mxu0 0.0
    %8218 = vmatpush1.msra.mxu0 0.0
    %8219 = vmatprep.subr.mxu0 0.0
    %8220 = vmatpush1.msra.mxu0 0.0
    %8221 = vmatprep.subr.mxu0 0.0
    %8222 = vmatpush1.msra.mxu0 0.0
    %8223 = vmatprep.subr.mxu0 0.0
    %8224 = vmatpush1.msra.mxu0 0.0
    %8225 = vmatprep.subr.mxu0 0.0
    %8226 = vmatpush1.msra.mxu0 0.0
    %8227 = vmatprep.subr.mxu0 0.0
    %8228 = vmatpush1.msra.mxu0 0.0
    %8229 = vmatprep.subr.mxu0 0.0
    %8230 = vmatpush1.msra.mxu0 0.0
    %8231 = vmatprep.subr.mxu0 0.0
    %8232 = vmatpush1.msra.mxu0 0.0
    %8233 = vmatprep.subr.mxu0 0.0
    %8234 = vmatpush1.msra.mxu0 0.0
    %8235 = vmatprep.subr.mxu0 0.0
    %8236 = vmatpush1.msra.mxu0 0.0
    %8237 = vmatprep.subr.mxu0 0.0
    %8238 = vmatpush1.msra.mxu0 0.0
    %8239 = vmatprep.subr.mxu0 0.0
    %8240 = vmatpush1.msra.mxu0 0.0
    %8241 = vmatprep.subr.mxu0 0.0
    %8242 = vmatpush1.msra.mxu0 0.0
    %8243 = vmatprep.subr.mxu0 0.0
    %8244 = vmatpush1.msra.mxu0 0.0
    %8245 = vmatprep.subr.mxu0 0.0
    %8246 = vmatpush1.msra.mxu0 0.0
    %8247 = vmatprep.subr.mxu0 0.0
    %8248 = vmatpush1.msra.mxu0 0.0
    %8249 = vmatprep.subr.mxu0 0.0
    %8250 = vmatpush1.msra.mxu0 0.0
    %8251 = vmatprep.subr.mxu0 0.0
    %8252 = vmatpush1.msra.mxu0 0.0
    %8253 = vmatprep.subr.mxu0 0.0
    %8254 = vmatpush1.msra.mxu0 0.0
    %8255 = vmatprep.subr.mxu0 0.0
    %8256 = vmatpush1.msra.mxu0 0.0
    %8257 = vmatprep.mubr.f32.mxu0 0.0
    %8258 = vmatmul.mubr.f32.gmra.mrb[0].mxu0 %v915
    %v8259 = vpop.f32.mrb[0].mxu0
    %v8260 = vadd.f32 %v8191, %v8259
    %v8261 = vpop.f32.mrb[0].mxu0
    %8262 = vdwg.mxu0
    %v8263 = vadd.f32 %v7194, %v8260
    %v8264 = vxor.u32 %v8263, 2147483648
    %v8265 = vmul.f32 %v8264, 1.442695
    %v8266 = vpow.pop %v8265
    %v8267 = vadd.f32 %v8266, 1.0
    %v8268 = vrcp.pop %v8267
    %v8269 = vmul.f32 1.0, %v8268
    %8271 = vrot.lane.b32.xlu0 %v8260, 64
    %v8272 = vpop.permute.xlu0 %8271
    %v8274 = vmul.f32 %v8269, %v8272
    %8276 = vrot.lane.b32.xlu0 %v8274, 64
    %v8277 = vpop.permute.xlu0 %8276
    %v8279 = vadd.f32 %v7194, %v8277
    %v8280 = vtanh.pop %v8279
    %v8281 = vsub.f32 1.0, %v8269
    %8283 = vrot.lane.b32.xlu0 %v8280, 96
    %v8284 = vpop.permute.xlu0 %8283
    %v8286 = vmul.f32 %v8281, %v8284
    %v8287 = vmul.f32 %v8269, 0.0
    %v8288 = vadd.f32 %v8286, %v8287
    %8290 = vrot.lane.b32.xlu0 %v8288, 96
    %v8291 = vpop.permute.xlu0 %8290
    %v8292 = vsel %vm913, %v8291, 0
    %8294 = vmatprep.subr.mxu0 0.0
    %8295 = vmatpush1.msra.mxu0 %v7037
    %8296 = vmatprep.subr.mxu0 0.0
    %8297 = vmatpush1.msra.mxu0 %v7038
    %8298 = vmatprep.subr.mxu0 0.0
    %8299 = vmatpush1.msra.mxu0 %v7039
    %8300 = vmatprep.subr.mxu0 0.0
    %8301 = vmatpush1.msra.mxu0 %v7040
    %8302 = vmatprep.subr.mxu0 0.0
    %8303 = vmatpush1.msra.mxu0 0.0
    %8304 = vmatprep.subr.mxu0 0.0
    %8305 = vmatpush1.msra.mxu0 0.0
    %8306 = vmatprep.subr.mxu0 0.0
    %8307 = vmatpush1.msra.mxu0 0.0
    %8308 = vmatprep.subr.mxu0 0.0
    %8309 = vmatpush1.msra.mxu0 0.0
    %8310 = vmatprep.subr.mxu0 0.0
    %8311 = vmatpush1.msra.mxu0 0.0
    %8312 = vmatprep.subr.mxu0 0.0
    %8313 = vmatpush1.msra.mxu0 0.0
    %8314 = vmatprep.subr.mxu0 0.0
    %8315 = vmatpush1.msra.mxu0 0.0
    %8316 = vmatprep.subr.mxu0 0.0
    %8317 = vmatpush1.msra.mxu0 0.0
    %8318 = vmatprep.subr.mxu0 0.0
    %8319 = vmatpush1.msra.mxu0 0.0
    %8320 = vmatprep.subr.mxu0 0.0
    %8321 = vmatpush1.msra.mxu0 0.0
    %8322 = vmatprep.subr.mxu0 0.0
    %8323 = vmatpush1.msra.mxu0 0.0
    %8324 = vmatprep.subr.mxu0 0.0
    %8325 = vmatpush1.msra.mxu0 0.0
    %8326 = vmatprep.subr.mxu0 0.0
    %8327 = vmatpush1.msra.mxu0 0.0
    %8328 = vmatprep.subr.mxu0 0.0
    %8329 = vmatpush1.msra.mxu0 0.0
    %8330 = vmatprep.subr.mxu0 0.0
    %8331 = vmatpush1.msra.mxu0 0.0
    %8332 = vmatprep.subr.mxu0 0.0
    %8333 = vmatpush1.msra.mxu0 0.0
    %8334 = vmatprep.subr.mxu0 0.0
    %8335 = vmatpush1.msra.mxu0 0.0
    %8336 = vmatprep.subr.mxu0 0.0
    %8337 = vmatpush1.msra.mxu0 0.0
    %8338 = vmatprep.subr.mxu0 0.0
    %8339 = vmatpush1.msra.mxu0 0.0
    %8340 = vmatprep.subr.mxu0 0.0
    %8341 = vmatpush1.msra.mxu0 0.0
    %8342 = vmatprep.subr.mxu0 0.0
    %8343 = vmatpush1.msra.mxu0 0.0
    %8344 = vmatprep.subr.mxu0 0.0
    %8345 = vmatpush1.msra.mxu0 0.0
    %8346 = vmatprep.subr.mxu0 0.0
    %8347 = vmatpush1.msra.mxu0 0.0
    %8348 = vmatprep.subr.mxu0 0.0
    %8349 = vmatpush1.msra.mxu0 0.0
    %8350 = vmatprep.subr.mxu0 0.0
    %8351 = vmatpush1.msra.mxu0 0.0
    %8352 = vmatprep.subr.mxu0 0.0
    %8353 = vmatpush1.msra.mxu0 0.0
    %8354 = vmatprep.subr.mxu0 0.0
    %8355 = vmatpush1.msra.mxu0 0.0
    %8356 = vmatprep.subr.mxu0 0.0
    %8357 = vmatpush1.msra.mxu0 0.0
    %8358 = vmatprep.mubr.f32.mxu0 0.0
    %8359 = vmatmul.mubr.f32.gmra.mrb[0].mxu0 %v8292
    %v8360 = vpop.f32.mrb[0].mxu0
    %v8361 = vadd.f32 %v8191, %v8360
    %v8362 = vpop.f32.mrb[0].mxu0
    %8363 = vdwg.mxu0
    %v8364 = vadd.f32 %v7335, %v8361
    %v8365 = vxor.u32 %v8364, 2147483648
    %v8366 = vmul.f32 %v8365, 1.442695
    %v8367 = vpow.pop %v8366
    %v8368 = vadd.f32 %v8367, 1.0
    %v8369 = vrcp.pop %v8368
    %v8370 = vmul.f32 1.0, %v8369
    %8372 = vrot.lane.b32.xlu0 %v8361, 64
    %v8373 = vpop.permute.xlu0 %8372
    %v8375 = vmul.f32 %v8370, %v8373
    %8377 = vrot.lane.b32.xlu0 %v8375, 64
    %v8378 = vpop.permute.xlu0 %8377
    %v8380 = vadd.f32 %v7335, %v8378
    %v8381 = vtanh.pop %v8380
    %v8382 = vsub.f32 1.0, %v8370
    %8384 = vrot.lane.b32.xlu0 %v8381, 96
    %v8385 = vpop.permute.xlu0 %8384
    %v8387 = vmul.f32 %v8382, %v8385
    %v8388 = vmul.f32 %v8370, %v8288
    %v8389 = vadd.f32 %v8387, %v8388
    %8391 = vrot.lane.b32.xlu0 %v8389, 96
    %v8392 = vpop.permute.xlu0 %8391
    %v8393 = vsel %vm913, %v8392, 0
    %8395 = vmatprep.subr.mxu0 0.0
    %8396 = vmatpush1.msra.mxu0 %v7037
    %8397 = vmatprep.subr.mxu0 0.0
    %8398 = vmatpush1.msra.mxu0 %v7038
    %8399 = vmatprep.subr.mxu0 0.0
    %8400 = vmatpush1.msra.mxu0 %v7039
    %8401 = vmatprep.subr.mxu0 0.0
    %8402 = vmatpush1.msra.mxu0 %v7040
    %8403 = vmatprep.subr.mxu0 0.0
    %8404 = vmatpush1.msra.mxu0 0.0
    %8405 = vmatprep.subr.mxu0 0.0
    %8406 = vmatpush1.msra.mxu0 0.0
    %8407 = vmatprep.subr.mxu0 0.0
    %8408 = vmatpush1.msra.mxu0 0.0
    %8409 = vmatprep.subr.mxu0 0.0
    %8410 = vmatpush1.msra.mxu0 0.0
    %8411 = vmatprep.subr.mxu0 0.0
    %8412 = vmatpush1.msra.mxu0 0.0
    %8413 = vmatprep.subr.mxu0 0.0
    %8414 = vmatpush1.msra.mxu0 0.0
    %8415 = vmatprep.subr.mxu0 0.0
    %8416 = vmatpush1.msra.mxu0 0.0
    %8417 = vmatprep.subr.mxu0 0.0
    %8418 = vmatpush1.msra.mxu0 0.0
    %8419 = vmatprep.subr.mxu0 0.0
    %8420 = vmatpush1.msra.mxu0 0.0
    %8421 = vmatprep.subr.mxu0 0.0
    %8422 = vmatpush1.msra.mxu0 0.0
    %8423 = vmatprep.subr.mxu0 0.0
    %8424 = vmatpush1.msra.mxu0 0.0
    %8425 = vmatprep.subr.mxu0 0.0
    %8426 = vmatpush1.msra.mxu0 0.0
    %8427 = vmatprep.subr.mxu0 0.0
    %8428 = vmatpush1.msra.mxu0 0.0
    %8429 = vmatprep.subr.mxu0 0.0
    %8430 = vmatpush1.msra.mxu0 0.0
    %8431 = vmatprep.subr.mxu0 0.0
    %8432 = vmatpush1.msra.mxu0 0.0
    %8433 = vmatprep.subr.mxu0 0.0
    %8434 = vmatpush1.msra.mxu0 0.0
    %8435 = vmatprep.subr.mxu0 0.0
    %8436 = vmatpush1.msra.mxu0 0.0
    %8437 = vmatprep.subr.mxu0 0.0
    %8438 = vmatpush1.msra.mxu0 0.0
    %8439 = vmatprep.subr.mxu0 0.0
    %8440 = vmatpush1.msra.mxu0 0.0
    %8441 = vmatprep.subr.mxu0 0.0
    %8442 = vmatpush1.msra.mxu0 0.0
    %8443 = vmatprep.subr.mxu0 0.0
    %8444 = vmatpush1.msra.mxu0 0.0
    %8445 = vmatprep.subr.mxu0 0.0
    %8446 = vmatpush1.msra.mxu0 0.0
    %8447 = vmatprep.subr.mxu0 0.0
    %8448 = vmatpush1.msra.mxu0 0.0
    %8449 = vmatprep.subr.mxu0 0.0
    %8450 = vmatpush1.msra.mxu0 0.0
    %8451 = vmatprep.subr.mxu0 0.0
    %8452 = vmatpush1.msra.mxu0 0.0
    %8453 = vmatprep.subr.mxu0 0.0
    %8454 = vmatpush1.msra.mxu0 0.0
    %8455 = vmatprep.subr.mxu0 0.0
    %8456 = vmatpush1.msra.mxu0 0.0
    %8457 = vmatprep.subr.mxu0 0.0
    %8458 = vmatpush1.msra.mxu0 0.0
    %8459 = vmatprep.mubr.f32.mxu0 0.0
    %8460 = vmatmul.mubr.f32.gmra.mrb[0].mxu0 %v8393
    %v8461 = vpop.f32.mrb[0].mxu0
    %v8462 = vadd.f32 %v8191, %v8461
    %v8463 = vpop.f32.mrb[0].mxu0
    %8464 = vdwg.mxu0
    %v8465 = vadd.f32 %v7476, %v8462
    %v8466 = vxor.u32 %v8465, 2147483648
    %v8467 = vmul.f32 %v8466, 1.442695
    %v8468 = vpow.pop %v8467
    %v8469 = vadd.f32 %v8468, 1.0
    %v8470 = vrcp.pop %v8469
    %v8471 = vmul.f32 1.0, %v8470
    %8473 = vrot.lane.b32.xlu0 %v8462, 64
    %v8474 = vpop.permute.xlu0 %8473
    %v8476 = vmul.f32 %v8471, %v8474
    %8478 = vrot.lane.b32.xlu0 %v8476, 64
    %v8479 = vpop.permute.xlu0 %8478
    %v8481 = vadd.f32 %v7476, %v8479
    %v8482 = vtanh.pop %v8481
    %v8483 = vsub.f32 1.0, %v8471
    %8485 = vrot.lane.b32.xlu0 %v8482, 96
    %v8486 = vpop.permute.xlu0 %8485
    %v8488 = vmul.f32 %v8483, %v8486
    %v8489 = vmul.f32 %v8471, %v8389
    %v8490 = vadd.f32 %v8488, %v8489
    %8492 = vrot.lane.b32.xlu0 %v8490, 96
    %v8493 = vpop.permute.xlu0 %8492
    %v8494 = vsel %vm913, %v8493, 0
    %8496 = vmatprep.subr.mxu0 0.0
    %8497 = vmatpush1.msra.mxu0 %v7037
    %8498 = vmatprep.subr.mxu0 0.0
    %8499 = vmatpush1.msra.mxu0 %v7038
    %8500 = vmatprep.subr.mxu0 0.0
    %8501 = vmatpush1.msra.mxu0 %v7039
    %8502 = vmatprep.subr.mxu0 0.0
    %8503 = vmatpush1.msra.mxu0 %v7040
    %8504 = vmatprep.subr.mxu0 0.0
    %8505 = vmatpush1.msra.mxu0 0.0
    %8506 = vmatprep.subr.mxu0 0.0
    %8507 = vmatpush1.msra.mxu0 0.0
    %8508 = vmatprep.subr.mxu0 0.0
    %8509 = vmatpush1.msra.mxu0 0.0
    %8510 = vmatprep.subr.mxu0 0.0
    %8511 = vmatpush1.msra.mxu0 0.0
    %8512 = vmatprep.subr.mxu0 0.0
    %8513 = vmatpush1.msra.mxu0 0.0
    %8514 = vmatprep.subr.mxu0 0.0
    %8515 = vmatpush1.msra.mxu0 0.0
    %8516 = vmatprep.subr.mxu0 0.0
    %8517 = vmatpush1.msra.mxu0 0.0
    %8518 = vmatprep.subr.mxu0 0.0
    %8519 = vmatpush1.msra.mxu0 0.0
    %8520 = vmatprep.subr.mxu0 0.0
    %8521 = vmatpush1.msra.mxu0 0.0
    %8522 = vmatprep.subr.mxu0 0.0
    %8523 = vmatpush1.msra.mxu0 0.0
    %8524 = vmatprep.subr.mxu0 0.0
    %8525 = vmatpush1.msra.mxu0 0.0
    %8526 = vmatprep.subr.mxu0 0.0
    %8527 = vmatpush1.msra.mxu0 0.0
    %8528 = vmatprep.subr.mxu0 0.0
    %8529 = vmatpush1.msra.mxu0 0.0
    %8530 = vmatprep.subr.mxu0 0.0
    %8531 = vmatpush1.msra.mxu0 0.0
    %8532 = vmatprep.subr.mxu0 0.0
    %8533 = vmatpush1.msra.mxu0 0.0
    %8534 = vmatprep.subr.mxu0 0.0
    %8535 = vmatpush1.msra.mxu0 0.0
    %8536 = vmatprep.subr.mxu0 0.0
    %8537 = vmatpush1.msra.mxu0 0.0
    %8538 = vmatprep.subr.mxu0 0.0
    %8539 = vmatpush1.msra.mxu0 0.0
    %8540 = vmatprep.subr.mxu0 0.0
    %8541 = vmatpush1.msra.mxu0 0.0
    %8542 = vmatprep.subr.mxu0 0.0
    %8543 = vmatpush1.msra.mxu0 0.0
    %8544 = vmatprep.subr.mxu0 0.0
    %8545 = vmatpush1.msra.mxu0 0.0
    %8546 = vmatprep.subr.mxu0 0.0
    %8547 = vmatpush1.msra.mxu0 0.0
    %8548 = vmatprep.subr.mxu0 0.0
    %8549 = vmatpush1.msra.mxu0 0.0
    %8550 = vmatprep.subr.mxu0 0.0
    %8551 = vmatpush1.msra.mxu0 0.0
    %8552 = vmatprep.subr.mxu0 0.0
    %8553 = vmatpush1.msra.mxu0 0.0
    %8554 = vmatprep.subr.mxu0 0.0
    %8555 = vmatpush1.msra.mxu0 0.0
    %8556 = vmatprep.subr.mxu0 0.0
    %8557 = vmatpush1.msra.mxu0 0.0
    %8558 = vmatprep.subr.mxu0 0.0
    %8559 = vmatpush1.msra.mxu0 0.0
    %8560 = vmatprep.mubr.f32.mxu0 0.0
    %8561 = vmatmul.mubr.f32.gmra.mrb[0].mxu0 %v8494
    %v8562 = vpop.f32.mrb[0].mxu0
    %v8563 = vadd.f32 %v8191, %v8562
    %v8564 = vpop.f32.mrb[0].mxu0
    %8565 = vdwg.mxu0
    %v8566 = vadd.f32 %v7617, %v8563
    %v8567 = vxor.u32 %v8566, 2147483648
    %v8568 = vmul.f32 %v8567, 1.442695
    %v8569 = vpow.pop %v8568
    %v8570 = vadd.f32 %v8569, 1.0
    %v8571 = vrcp.pop %v8570
    %v8572 = vmul.f32 1.0, %v8571
    %8574 = vrot.lane.b32.xlu0 %v8563, 64
    %v8575 = vpop.permute.xlu0 %8574
    %v8577 = vmul.f32 %v8572, %v8575
    %8579 = vrot.lane.b32.xlu0 %v8577, 64
    %v8580 = vpop.permute.xlu0 %8579
    %v8582 = vadd.f32 %v7617, %v8580
    %v8583 = vtanh.pop %v8582
    %v8584 = vsub.f32 1.0, %v8572
    %8586 = vrot.lane.b32.xlu0 %v8583, 96
    %v8587 = vpop.permute.xlu0 %8586
    %v8589 = vmul.f32 %v8584, %v8587
    %v8590 = vmul.f32 %v8572, %v8490
    %v8591 = vadd.f32 %v8589, %v8590
    %8593 = vrot.lane.b32.xlu0 %v8591, 96
    %v8594 = vpop.permute.xlu0 %8593
    %v8595 = vsel %vm913, %v8594, 0
    %8597 = vmatprep.subr.mxu0 0.0
    %8598 = vmatpush1.msra.mxu0 %v7037
    %8599 = vmatprep.subr.mxu0 0.0
    %8600 = vmatpush1.msra.mxu0 %v7038
    %8601 = vmatprep.subr.mxu0 0.0
    %8602 = vmatpush1.msra.mxu0 %v7039
    %8603 = vmatprep.subr.mxu0 0.0
    %8604 = vmatpush1.msra.mxu0 %v7040
    %8605 = vmatprep.subr.mxu0 0.0
    %8606 = vmatpush1.msra.mxu0 0.0
    %8607 = vmatprep.subr.mxu0 0.0
    %8608 = vmatpush1.msra.mxu0 0.0
    %8609 = vmatprep.subr.mxu0 0.0
    %8610 = vmatpush1.msra.mxu0 0.0
    %8611 = vmatprep.subr.mxu0 0.0
    %8612 = vmatpush1.msra.mxu0 0.0
    %8613 = vmatprep.subr.mxu0 0.0
    %8614 = vmatpush1.msra.mxu0 0.0
    %8615 = vmatprep.subr.mxu0 0.0
    %8616 = vmatpush1.msra.mxu0 0.0
    %8617 = vmatprep.subr.mxu0 0.0
    %8618 = vmatpush1.msra.mxu0 0.0
    %8619 = vmatprep.subr.mxu0 0.0
    %8620 = vmatpush1.msra.mxu0 0.0
    %8621 = vmatprep.subr.mxu0 0.0
    %8622 = vmatpush1.msra.mxu0 0.0
    %8623 = vmatprep.subr.mxu0 0.0
    %8624 = vmatpush1.msra.mxu0 0.0
    %8625 = vmatprep.subr.mxu0 0.0
    %8626 = vmatpush1.msra.mxu0 0.0
    %8627 = vmatprep.subr.mxu0 0.0
    %8628 = vmatpush1.msra.mxu0 0.0
    %8629 = vmatprep.subr.mxu0 0.0
    %8630 = vmatpush1.msra.mxu0 0.0
    %8631 = vmatprep.subr.mxu0 0.0
    %8632 = vmatpush1.msra.mxu0 0.0
    %8633 = vmatprep.subr.mxu0 0.0
    %8634 = vmatpush1.msra.mxu0 0.0
    %8635 = vmatprep.subr.mxu0 0.0
    %8636 = vmatpush1.msra.mxu0 0.0
    %8637 = vmatprep.subr.mxu0 0.0
    %8638 = vmatpush1.msra.mxu0 0.0
    %8639 = vmatprep.subr.mxu0 0.0
    %8640 = vmatpush1.msra.mxu0 0.0
    %8641 = vmatprep.subr.mxu0 0.0
    %8642 = vmatpush1.msra.mxu0 0.0
    %8643 = vmatprep.subr.mxu0 0.0
    %8644 = vmatpush1.msra.mxu0 0.0
    %8645 = vmatprep.subr.mxu0 0.0
    %8646 = vmatpush1.msra.mxu0 0.0
    %8647 = vmatprep.subr.mxu0 0.0
    %8648 = vmatpush1.msra.mxu0 0.0
    %8649 = vmatprep.subr.mxu0 0.0
    %8650 = vmatpush1.msra.mxu0 0.0
    %8651 = vmatprep.subr.mxu0 0.0
    %8652 = vmatpush1.msra.mxu0 0.0
    %8653 = vmatprep.subr.mxu0 0.0
    %8654 = vmatpush1.msra.mxu0 0.0
    %8655 = vmatprep.subr.mxu0 0.0
    %8656 = vmatpush1.msra.mxu0 0.0
    %8657 = vmatprep.subr.mxu0 0.0
    %8658 = vmatpush1.msra.mxu0 0.0
    %8659 = vmatprep.subr.mxu0 0.0
    %8660 = vmatpush1.msra.mxu0 0.0
    %8661 = vmatprep.mubr.f32.mxu0 0.0
    %8662 = vmatmul.mubr.f32.gmra.mrb[0].mxu0 %v8595
    %v8663 = vpop.f32.mrb[0].mxu0
    %v8664 = vadd.f32 %v8191, %v8663
    %v8665 = vpop.f32.mrb[0].mxu0
    %8666 = vdwg.mxu0
    %v8667 = vadd.f32 %v7758, %v8664
    %v8668 = vxor.u32 %v8667, 2147483648
    %v8669 = vmul.f32 %v8668, 1.442695
    %v8670 = vpow.pop %v8669
    %v8671 = vadd.f32 %v8670, 1.0
    %v8672 = vrcp.pop %v8671
    %v8673 = vmul.f32 1.0, %v8672
    %8675 = vrot.lane.b32.xlu0 %v8664, 64
    %v8676 = vpop.permute.xlu0 %8675
    %v8678 = vmul.f32 %v8673, %v8676
    %8680 = vrot.lane.b32.xlu0 %v8678, 64
    %v8681 = vpop.permute.xlu0 %8680
    %v8683 = vadd.f32 %v7758, %v8681
    %v8684 = vtanh.pop %v8683
    %v8685 = vsub.f32 1.0, %v8673
    %8687 = vrot.lane.b32.xlu0 %v8684, 96
    %v8688 = vpop.permute.xlu0 %8687
    %v8690 = vmul.f32 %v8685, %v8688
    %v8691 = vmul.f32 %v8673, %v8591
    %v8692 = vadd.f32 %v8690, %v8691
    %8694 = vrot.lane.b32.xlu0 %v8692, 96
    %v8695 = vpop.permute.xlu0 %8694
    %v8696 = vsel %vm913, %v8695, 0
    %8698 = vmatprep.subr.mxu0 0.0
    %8699 = vmatpush1.msra.mxu0 %v7037
    %8700 = vmatprep.subr.mxu0 0.0
    %8701 = vmatpush1.msra.mxu0 %v7038
    %8702 = vmatprep.subr.mxu0 0.0
    %8703 = vmatpush1.msra.mxu0 %v7039
    %8704 = vmatprep.subr.mxu0 0.0
    %8705 = vmatpush1.msra.mxu0 %v7040
    %8706 = vmatprep.subr.mxu0 0.0
    %8707 = vmatpush1.msra.mxu0 0.0
    %8708 = vmatprep.subr.mxu0 0.0
    %8709 = vmatpush1.msra.mxu0 0.0
    %8710 = vmatprep.subr.mxu0 0.0
    %8711 = vmatpush1.msra.mxu0 0.0
    %8712 = vmatprep.subr.mxu0 0.0
    %8713 = vmatpush1.msra.mxu0 0.0
    %8714 = vmatprep.subr.mxu0 0.0
    %8715 = vmatpush1.msra.mxu0 0.0
    %8716 = vmatprep.subr.mxu0 0.0
    %8717 = vmatpush1.msra.mxu0 0.0
    %8718 = vmatprep.subr.mxu0 0.0
    %8719 = vmatpush1.msra.mxu0 0.0
    %8720 = vmatprep.subr.mxu0 0.0
    %8721 = vmatpush1.msra.mxu0 0.0
    %8722 = vmatprep.subr.mxu0 0.0
    %8723 = vmatpush1.msra.mxu0 0.0
    %8724 = vmatprep.subr.mxu0 0.0
    %8725 = vmatpush1.msra.mxu0 0.0
    %8726 = vmatprep.subr.mxu0 0.0
    %8727 = vmatpush1.msra.mxu0 0.0
    %8728 = vmatprep.subr.mxu0 0.0
    %8729 = vmatpush1.msra.mxu0 0.0
    %8730 = vmatprep.subr.mxu0 0.0
    %8731 = vmatpush1.msra.mxu0 0.0
    %8732 = vmatprep.subr.mxu0 0.0
    %8733 = vmatpush1.msra.mxu0 0.0
    %8734 = vmatprep.subr.mxu0 0.0
    %8735 = vmatpush1.msra.mxu0 0.0
    %8736 = vmatprep.subr.mxu0 0.0
    %8737 = vmatpush1.msra.mxu0 0.0
    %8738 = vmatprep.subr.mxu0 0.0
    %8739 = vmatpush1.msra.mxu0 0.0
    %8740 = vmatprep.subr.mxu0 0.0
    %8741 = vmatpush1.msra.mxu0 0.0
    %8742 = vmatprep.subr.mxu0 0.0
    %8743 = vmatpush1.msra.mxu0 0.0
    %8744 = vmatprep.subr.mxu0 0.0
    %8745 = vmatpush1.msra.mxu0 0.0
    %8746 = vmatprep.subr.mxu0 0.0
    %8747 = vmatpush1.msra.mxu0 0.0
    %8748 = vmatprep.subr.mxu0 0.0
    %8749 = vmatpush1.msra.mxu0 0.0
    %8750 = vmatprep.subr.mxu0 0.0
    %8751 = vmatpush1.msra.mxu0 0.0
    %8752 = vmatprep.subr.mxu0 0.0
    %8753 = vmatpush1.msra.mxu0 0.0
    %8754 = vmatprep.subr.mxu0 0.0
    %8755 = vmatpush1.msra.mxu0 0.0
    %8756 = vmatprep.subr.mxu0 0.0
    %8757 = vmatpush1.msra.mxu0 0.0
    %8758 = vmatprep.subr.mxu0 0.0
    %8759 = vmatpush1.msra.mxu0 0.0
    %8760 = vmatprep.subr.mxu0 0.0
    %8761 = vmatpush1.msra.mxu0 0.0
    %8762 = vmatprep.mubr.f32.mxu0 0.0
    %8763 = vmatmul.mubr.f32.gmra.mrb[0].mxu0 %v8696
    %v8764 = vpop.f32.mrb[0].mxu0
    %v8765 = vadd.f32 %v8191, %v8764
    %v8766 = vpop.f32.mrb[0].mxu0
    %8767 = vdwg.mxu0
    %v8768 = vadd.f32 %v7899, %v8765
    %v8769 = vxor.u32 %v8768, 2147483648
    %v8770 = vmul.f32 %v8769, 1.442695
    %v8771 = vpow.pop %v8770
    %v8772 = vadd.f32 %v8771, 1.0
    %v8773 = vrcp.pop %v8772
    %v8774 = vmul.f32 1.0, %v8773
    %8776 = vrot.lane.b32.xlu0 %v8765, 64
    %v8777 = vpop.permute.xlu0 %8776
    %v8779 = vmul.f32 %v8774, %v8777
    %8781 = vrot.lane.b32.xlu0 %v8779, 64
    %v8782 = vpop.permute.xlu0 %8781
    %v8784 = vadd.f32 %v7899, %v8782
    %v8785 = vtanh.pop %v8784
    %v8786 = vsub.f32 1.0, %v8774
    %8788 = vrot.lane.b32.xlu0 %v8785, 96
    %v8789 = vpop.permute.xlu0 %8788
    %v8791 = vmul.f32 %v8786, %v8789
    %v8792 = vmul.f32 %v8774, %v8692
    %v8793 = vadd.f32 %v8791, %v8792
    %8795 = vrot.lane.b32.xlu0 %v8793, 96
    %v8796 = vpop.permute.xlu0 %8795
    %v8797 = vsel %vm913, %v8796, 0
    %8799 = vmatprep.subr.mxu0 0.0
    %8800 = vmatpush1.msra.mxu0 %v7037
    %8801 = vmatprep.subr.mxu0 0.0
    %8802 = vmatpush1.msra.mxu0 %v7038
    %8803 = vmatprep.subr.mxu0 0.0
    %8804 = vmatpush1.msra.mxu0 %v7039
    %8805 = vmatprep.subr.mxu0 0.0
    %8806 = vmatpush1.msra.mxu0 %v7040
    %8807 = vmatprep.subr.mxu0 0.0
    %8808 = vmatpush1.msra.mxu0 0.0
    %8809 = vmatprep.subr.mxu0 0.0
    %8810 = vmatpush1.msra.mxu0 0.0
    %8811 = vmatprep.subr.mxu0 0.0
    %8812 = vmatpush1.msra.mxu0 0.0
    %8813 = vmatprep.subr.mxu0 0.0
    %8814 = vmatpush1.msra.mxu0 0.0
    %8815 = vmatprep.subr.mxu0 0.0
    %8816 = vmatpush1.msra.mxu0 0.0
    %8817 = vmatprep.subr.mxu0 0.0
    %8818 = vmatpush1.msra.mxu0 0.0
    %8819 = vmatprep.subr.mxu0 0.0
    %8820 = vmatpush1.msra.mxu0 0.0
    %8821 = vmatprep.subr.mxu0 0.0
    %8822 = vmatpush1.msra.mxu0 0.0
    %8823 = vmatprep.subr.mxu0 0.0
    %8824 = vmatpush1.msra.mxu0 0.0
    %8825 = vmatprep.subr.mxu0 0.0
    %8826 = vmatpush1.msra.mxu0 0.0
    %8827 = vmatprep.subr.mxu0 0.0
    %8828 = vmatpush1.msra.mxu0 0.0
    %8829 = vmatprep.subr.mxu0 0.0
    %8830 = vmatpush1.msra.mxu0 0.0
    %8831 = vmatprep.subr.mxu0 0.0
    %8832 = vmatpush1.msra.mxu0 0.0
    %8833 = vmatprep.subr.mxu0 0.0
    %8834 = vmatpush1.msra.mxu0 0.0
    %8835 = vmatprep.subr.mxu0 0.0
    %8836 = vmatpush1.msra.mxu0 0.0
    %8837 = vmatprep.subr.mxu0 0.0
    %8838 = vmatpush1.msra.mxu0 0.0
    %8839 = vmatprep.subr.mxu0 0.0
    %8840 = vmatpush1.msra.mxu0 0.0
    %8841 = vmatprep.subr.mxu0 0.0
    %8842 = vmatpush1.msra.mxu0 0.0
    %8843 = vmatprep.subr.mxu0 0.0
    %8844 = vmatpush1.msra.mxu0 0.0
    %8845 = vmatprep.subr.mxu0 0.0
    %8846 = vmatpush1.msra.mxu0 0.0
    %8847 = vmatprep.subr.mxu0 0.0
    %8848 = vmatpush1.msra.mxu0 0.0
    %8849 = vmatprep.subr.mxu0 0.0
    %8850 = vmatpush1.msra.mxu0 0.0
    %8851 = vmatprep.subr.mxu0 0.0
    %8852 = vmatpush1.msra.mxu0 0.0
    %8853 = vmatprep.subr.mxu0 0.0
    %8854 = vmatpush1.msra.mxu0 0.0
    %8855 = vmatprep.subr.mxu0 0.0
    %8856 = vmatpush1.msra.mxu0 0.0
    %8857 = vmatprep.subr.mxu0 0.0
    %8858 = vmatpush1.msra.mxu0 0.0
    %8859 = vmatprep.subr.mxu0 0.0
    %8860 = vmatpush1.msra.mxu0 0.0
    %8861 = vmatprep.subr.mxu0 0.0
    %8862 = vmatpush1.msra.mxu0 0.0
    %8863 = vmatprep.mubr.f32.mxu0 0.0
    %8864 = vmatmul.mubr.f32.gmra.mrb[0].mxu0 %v8797
    %v8865 = vpop.f32.mrb[0].mxu0
    %v8866 = vadd.f32 %v8191, %v8865
    %v8867 = vpop.f32.mrb[0].mxu0
    %8868 = vdwg.mxu0
    %v8869 = vadd.f32 %v8040, %v8866
    %v8870 = vxor.u32 %v8869, 2147483648
    %v8871 = vmul.f32 %v8870, 1.442695
    %v8872 = vpow.pop %v8871
    %v8873 = vadd.f32 %v8872, 1.0
    %v8874 = vrcp.pop %v8873
    %v8875 = vmul.f32 1.0, %v8874
    %8877 = vrot.lane.b32.xlu0 %v8866, 64
    %v8878 = vpop.permute.xlu0 %8877
    %v8880 = vmul.f32 %v8875, %v8878
    %8882 = vrot.lane.b32.xlu0 %v8880, 64
    %v8883 = vpop.permute.xlu0 %8882
    %v8885 = vadd.f32 %v8040, %v8883
    %v8886 = vtanh.pop %v8885
    %v8887 = vsub.f32 1.0, %v8875
    %8889 = vrot.lane.b32.xlu0 %v8886, 96
    %v8890 = vpop.permute.xlu0 %8889
    %v8892 = vmul.f32 %v8887, %v8890
    %v8893 = vmul.f32 %v8875, %v8793
    %v8894 = vadd.f32 %v8892, %v8893
    %8896 = vrot.lane.b32.xlu0 %v8894, 96
    %v8897 = vpop.permute.xlu0 %8896
    %v8898 = vsel %vm913, %v8897, 0
    %8900 = vmatprep.subr.mxu0 0.0
    %8901 = vmatpush1.msra.mxu0 %v7037
    %8902 = vmatprep.subr.mxu0 0.0
    %8903 = vmatpush1.msra.mxu0 %v7038
    %8904 = vmatprep.subr.mxu0 0.0
    %8905 = vmatpush1.msra.mxu0 %v7039
    %8906 = vmatprep.subr.mxu0 0.0
    %8907 = vmatpush1.msra.mxu0 %v7040
    %8908 = vmatprep.subr.mxu0 0.0
    %8909 = vmatpush1.msra.mxu0 0.0
    %8910 = vmatprep.subr.mxu0 0.0
    %8911 = vmatpush1.msra.mxu0 0.0
    %8912 = vmatprep.subr.mxu0 0.0
    %8913 = vmatpush1.msra.mxu0 0.0
    %8914 = vmatprep.subr.mxu0 0.0
    %8915 = vmatpush1.msra.mxu0 0.0
    %8916 = vmatprep.subr.mxu0 0.0
    %8917 = vmatpush1.msra.mxu0 0.0
    %8918 = vmatprep.subr.mxu0 0.0
    %8919 = vmatpush1.msra.mxu0 0.0
    %8920 = vmatprep.subr.mxu0 0.0
    %8921 = vmatpush1.msra.mxu0 0.0
    %8922 = vmatprep.subr.mxu0 0.0
    %8923 = vmatpush1.msra.mxu0 0.0
    %8924 = vmatprep.subr.mxu0 0.0
    %8925 = vmatpush1.msra.mxu0 0.0
    %8926 = vmatprep.subr.mxu0 0.0
    %8927 = vmatpush1.msra.mxu0 0.0
    %8928 = vmatprep.subr.mxu0 0.0
    %8929 = vmatpush1.msra.mxu0 0.0
    %8930 = vmatprep.subr.mxu0 0.0
    %8931 = vmatpush1.msra.mxu0 0.0
    %8932 = vmatprep.subr.mxu0 0.0
    %8933 = vmatpush1.msra.mxu0 0.0
    %8934 = vmatprep.subr.mxu0 0.0
    %8935 = vmatpush1.msra.mxu0 0.0
    %8936 = vmatprep.subr.mxu0 0.0
    %8937 = vmatpush1.msra.mxu0 0.0
    %8938 = vmatprep.subr.mxu0 0.0
    %8939 = vmatpush1.msra.mxu0 0.0
    %8940 = vmatprep.subr.mxu0 0.0
    %8941 = vmatpush1.msra.mxu0 0.0
    %8942 = vmatprep.subr.mxu0 0.0
    %8943 = vmatpush1.msra.mxu0 0.0
    %8944 = vmatprep.subr.mxu0 0.0
    %8945 = vmatpush1.msra.mxu0 0.0
    %8946 = vmatprep.subr.mxu0 0.0
    %8947 = vmatpush1.msra.mxu0 0.0
    %8948 = vmatprep.subr.mxu0 0.0
    %8949 = vmatpush1.msra.mxu0 0.0
    %8950 = vmatprep.subr.mxu0 0.0
    %8951 = vmatpush1.msra.mxu0 0.0
    %8952 = vmatprep.subr.mxu0 0.0
    %8953 = vmatpush1.msra.mxu0 0.0
    %8954 = vmatprep.subr.mxu0 0.0
    %8955 = vmatpush1.msra.mxu0 0.0
    %8956 = vmatprep.subr.mxu0 0.0
    %8957 = vmatpush1.msra.mxu0 0.0
    %8958 = vmatprep.subr.mxu0 0.0
    %8959 = vmatpush1.msra.mxu0 0.0
    %8960 = vmatprep.subr.mxu0 0.0
    %8961 = vmatpush1.msra.mxu0 0.0
    %8962 = vmatprep.subr.mxu0 0.0
    %8963 = vmatpush1.msra.mxu0 0.0
    %8964 = vmatprep.mubr.f32.mxu0 0.0
    %8965 = vmatmul.mubr.f32.gmra.mrb[0].mxu0 %v8898
    %v8966 = vpop.f32.mrb[0].mxu0
    %v8967 = vadd.f32 %v8191, %v8966
    %v8968 = vpop.f32.mrb[0].mxu0
    %8969 = vdwg.mxu0
    %v8970 = vadd.f32 %v8186, %v8967
    %v8971 = vxor.u32 %v8970, 2147483648
    %v8972 = vmul.f32 %v8971, 1.442695
    %v8973 = vpow.pop %v8972
    %v8974 = vadd.f32 %v8973, 1.0
    %v8975 = vrcp.pop %v8974
    %v8976 = vmul.f32 1.0, %v8975
    %8978 = vrot.lane.b32.xlu0 %v8967, 64
    %v8979 = vpop.permute.xlu0 %8978
    %v8981 = vmul.f32 %v8976, %v8979
    %8983 = vrot.lane.b32.xlu0 %v8981, 64
    %v8984 = vpop.permute.xlu0 %8983
    %v8986 = vadd.f32 %v8186, %v8984
    %v8987 = vtanh.pop %v8986
    %v8988 = vsub.f32 1.0, %v8976
    %8990 = vrot.lane.b32.xlu0 %v8987, 96
    %v8991 = vpop.permute.xlu0 %8990
    %v8993 = vmul.f32 %v8988, %v8991
    %v8994 = vmul.f32 %v8976, %v8894
    %v8995 = vadd.f32 %v8993, %v8994
    %v8996 = vld [vmem:[#allocation25] sm:$0xff]
    %v8997 = vld [vmem:[#allocation25 + $0x8] sm:$0xff]
    %v8998 = vld [vmem:[#allocation25 + $0x10] sm:$0xff]
    %v8999 = vld [vmem:[#allocation25 + $0x18] sm:$0xff]
    %v9000 = vld [vmem:[#allocation25 + $0x20] sm:$0xff]
    %v9001 = vld [vmem:[#allocation25 + $0x28] sm:$0xff]
    %v9002 = vld [vmem:[#allocation25 + $0x30] sm:$0xff]
    %v9003 = vld [vmem:[#allocation25 + $0x38] sm:$0xff]
    %v9004 = vld [vmem:[#allocation26] sm:$0xff]
    %v9005 = vld [vmem:[#allocation26 + $0x8] sm:$0xff]
    %v9006 = vld [vmem:[#allocation26 + $0x10] sm:$0xff]
    %v9007 = vld [vmem:[#allocation26 + $0x18] sm:$0xff]
    %v9008 = vld [vmem:[%s23] sm:$0x1]
    %v9009 = vld [vmem:[%s24] sm:$0x1]
    %9010 = vmatprep.subr.mxu0 0.0
    %9011 = vmatpush1.msra.mxu0 %v9000
    %9012 = vmatprep.subr.mxu0 0.0
    %9013 = vmatpush1.msra.mxu0 %v9001
    %9014 = vmatprep.subr.mxu0 0.0
    %9015 = vmatpush1.msra.mxu0 %v9002
    %9016 = vmatprep.subr.mxu0 0.0
    %9017 = vmatpush1.msra.mxu0 %v9003
    %9018 = vmatprep.subr.mxu0 0.0
    %9019 = vmatpush1.msra.mxu0 0.0
    %9020 = vmatprep.subr.mxu0 0.0
    %9021 = vmatpush1.msra.mxu0 0.0
    %9022 = vmatprep.subr.mxu0 0.0
    %9023 = vmatpush1.msra.mxu0 0.0
    %9024 = vmatprep.subr.mxu0 0.0
    %9025 = vmatpush1.msra.mxu0 0.0
    %9026 = vmatprep.subr.mxu0 0.0
    %9027 = vmatpush1.msra.mxu0 0.0
    %9028 = vmatprep.subr.mxu0 0.0
    %9029 = vmatpush1.msra.mxu0 0.0
    %9030 = vmatprep.subr.mxu0 0.0
    %9031 = vmatpush1.msra.mxu0 0.0
    %9032 = vmatprep.subr.mxu0 0.0
    %9033 = vmatpush1.msra.mxu0 0.0
    %9034 = vmatprep.subr.mxu0 0.0
    %9035 = vmatpush1.msra.mxu0 0.0
    %9036 = vmatprep.subr.mxu0 0.0
    %9037 = vmatpush1.msra.mxu0 0.0
    %9038 = vmatprep.subr.mxu0 0.0
    %9039 = vmatpush1.msra.mxu0 0.0
    %9040 = vmatprep.subr.mxu0 0.0
    %9041 = vmatpush1.msra.mxu0 0.0
    %9042 = vmatprep.subr.mxu0 0.0
    %9043 = vmatpush1.msra.mxu0 0.0
    %9044 = vmatprep.subr.mxu0 0.0
    %9045 = vmatpush1.msra.mxu0 0.0
    %9046 = vmatprep.subr.mxu0 0.0
    %9047 = vmatpush1.msra.mxu0 0.0
    %9048 = vmatprep.subr.mxu0 0.0
    %9049 = vmatpush1.msra.mxu0 0.0
    %9050 = vmatprep.subr.mxu0 0.0
    %9051 = vmatpush1.msra.mxu0 0.0
    %9052 = vmatprep.subr.mxu0 0.0
    %9053 = vmatpush1.msra.mxu0 0.0
    %9054 = vmatprep.subr.mxu0 0.0
    %9055 = vmatpush1.msra.mxu0 0.0
    %9056 = vmatprep.subr.mxu0 0.0
    %9057 = vmatpush1.msra.mxu0 0.0
    %9058 = vmatprep.subr.mxu0 0.0
    %9059 = vmatpush1.msra.mxu0 0.0
    %9060 = vmatprep.subr.mxu0 0.0
    %9061 = vmatpush1.msra.mxu0 0.0
    %9062 = vmatprep.subr.mxu0 0.0
    %9063 = vmatpush1.msra.mxu0 0.0
    %9064 = vmatprep.subr.mxu0 0.0
    %9065 = vmatpush1.msra.mxu0 0.0
    %9066 = vmatprep.subr.mxu0 0.0
    %9067 = vmatpush1.msra.mxu0 0.0
    %9068 = vmatprep.subr.mxu0 0.0
    %9069 = vmatpush1.msra.mxu0 0.0
    %9070 = vmatprep.subr.mxu0 0.0
    %9071 = vmatpush1.msra.mxu0 0.0
    %9072 = vmatprep.subr.mxu0 0.0
    %9073 = vmatpush1.msra.mxu0 0.0
    %9074 = vmatprep.mubr.f32.mxu0 0.0
    %9075 = vmatmul.mubr.f32.gmra.mrb[0].mxu0 %v6325
    %v9076 = vpop.f32.mrb[0].mxu0
    %v9077 = vadd.f32 0.0, %v9076
    %v9078 = vpop.f32.mrb[0].mxu0
    %9079 = vdwg.mxu0
    %9080 = vmatprep.subr.mxu0 0.0
    %9081 = vmatpush1.msra.mxu0 %v8996
    %9082 = vmatprep.subr.mxu0 0.0
    %9083 = vmatpush1.msra.mxu0 %v8997
    %9084 = vmatprep.subr.mxu0 0.0
    %9085 = vmatpush1.msra.mxu0 %v8998
    %9086 = vmatprep.subr.mxu0 0.0
    %9087 = vmatpush1.msra.mxu0 %v8999
    %9088 = vmatprep.subr.mxu0 0.0
    %9089 = vmatpush1.msra.mxu0 0.0
    %9090 = vmatprep.subr.mxu0 0.0
    %9091 = vmatpush1.msra.mxu0 0.0
    %9092 = vmatprep.subr.mxu0 0.0
    %9093 = vmatpush1.msra.mxu0 0.0
    %9094 = vmatprep.subr.mxu0 0.0
    %9095 = vmatpush1.msra.mxu0 0.0
    %9096 = vmatprep.subr.mxu0 0.0
    %9097 = vmatpush1.msra.mxu0 0.0
    %9098 = vmatprep.subr.mxu0 0.0
    %9099 = vmatpush1.msra.mxu0 0.0
    %9100 = vmatprep.subr.mxu0 0.0
    %9101 = vmatpush1.msra.mxu0 0.0
    %9102 = vmatprep.subr.mxu0 0.0
    %9103 = vmatpush1.msra.mxu0 0.0
    %9104 = vmatprep.subr.mxu0 0.0
    %9105 = vmatpush1.msra.mxu0 0.0
    %9106 = vmatprep.subr.mxu0 0.0
    %9107 = vmatpush1.msra.mxu0 0.0
    %9108 = vmatprep.subr.mxu0 0.0
    %9109 = vmatpush1.msra.mxu0 0.0
    %9110 = vmatprep.subr.mxu0 0.0
    %9111 = vmatpush1.msra.mxu0 0.0
    %9112 = vmatprep.subr.mxu0 0.0
    %9113 = vmatpush1.msra.mxu0 0.0
    %9114 = vmatprep.subr.mxu0 0.0
    %9115 = vmatpush1.msra.mxu0 0.0
    %9116 = vmatprep.subr.mxu0 0.0
    %9117 = vmatpush1.msra.mxu0 0.0
    %9118 = vmatprep.subr.mxu0 0.0
    %9119 = vmatpush1.msra.mxu0 0.0
    %9120 = vmatprep.subr.mxu0 0.0
    %9121 = vmatpush1.msra.mxu0 0.0
    %9122 = vmatprep.subr.mxu0 0.0
    %9123 = vmatpush1.msra.mxu0 0.0
    %9124 = vmatprep.subr.mxu0 0.0
    %9125 = vmatpush1.msra.mxu0 0.0
    %9126 = vmatprep.subr.mxu0 0.0
    %9127 = vmatpush1.msra.mxu0 0.0
    %9128 = vmatprep.subr.mxu0 0.0
    %9129 = vmatpush1.msra.mxu0 0.0
    %9130 = vmatprep.subr.mxu0 0.0
    %9131 = vmatpush1.msra.mxu0 0.0
    %9132 = vmatprep.subr.mxu0 0.0
    %9133 = vmatpush1.msra.mxu0 0.0
    %9134 = vmatprep.subr.mxu0 0.0
    %9135 = vmatpush1.msra.mxu0 0.0
    %9136 = vmatprep.subr.mxu0 0.0
    %9137 = vmatpush1.msra.mxu0 0.0
    %9138 = vmatprep.subr.mxu0 0.0
    %9139 = vmatpush1.msra.mxu0 0.0
    %9140 = vmatprep.subr.mxu0 0.0
    %9141 = vmatpush1.msra.mxu0 0.0
    %9142 = vmatprep.subr.mxu0 0.0
    %9143 = vmatpush1.msra.mxu0 0.0
    %9144 = vmatprep.mubr.f32.mxu0 0.0
    %9145 = vmatmul.mubr.f32.gmra.mrb[0].mxu0 %v8114
    %v9146 = vpop.f32.mrb[0].mxu0
    %v9147 = vadd.f32 %v9077, %v9146
    %v9148 = vpop.f32.mrb[0].mxu0
    %9149 = vdwg.mxu0
    %v9151 = vlaneseq
    %v9152 = vshrl.u32 %v9151, 7
    %v9153 = vsub.s32 0, %v9152
    %v9154 = vrot.slane %v9008, %v9153
    %v9156 = vadd.f32 %v9147, %v9154
    %v9158 = vlaneseq
    %v9159 = vshrl.u32 %v9158, 7
    %v9160 = vsub.s32 0, %v9159
    %v9161 = vrot.slane %v9009, %v9160
    %9163 = vmatprep.subr.mxu0 0.0
    %9164 = vmatpush1.msra.mxu0 %v9004
    %9165 = vmatprep.subr.mxu0 0.0
    %9166 = vmatpush1.msra.mxu0 %v9005
    %9167 = vmatprep.subr.mxu0 0.0
    %9168 = vmatpush1.msra.mxu0 %v9006
    %9169 = vmatprep.subr.mxu0 0.0
    %9170 = vmatpush1.msra.mxu0 %v9007
    %9171 = vmatprep.subr.mxu0 0.0
    %9172 = vmatpush1.msra.mxu0 0.0
    %9173 = vmatprep.subr.mxu0 0.0
    %9174 = vmatpush1.msra.mxu0 0.0
    %9175 = vmatprep.subr.mxu0 0.0
    %9176 = vmatpush1.msra.mxu0 0.0
    %9177 = vmatprep.subr.mxu0 0.0
    %9178 = vmatpush1.msra.mxu0 0.0
    %9179 = vmatprep.subr.mxu0 0.0
    %9180 = vmatpush1.msra.mxu0 0.0
    %9181 = vmatprep.subr.mxu0 0.0
    %9182 = vmatpush1.msra.mxu0 0.0
    %9183 = vmatprep.subr.mxu0 0.0
    %9184 = vmatpush1.msra.mxu0 0.0
    %9185 = vmatprep.subr.mxu0 0.0
    %9186 = vmatpush1.msra.mxu0 0.0
    %9187 = vmatprep.subr.mxu0 0.0
    %9188 = vmatpush1.msra.mxu0 0.0
    %9189 = vmatprep.subr.mxu0 0.0
    %9190 = vmatpush1.msra.mxu0 0.0
    %9191 = vmatprep.subr.mxu0 0.0
    %9192 = vmatpush1.msra.mxu0 0.0
    %9193 = vmatprep.subr.mxu0 0.0
    %9194 = vmatpush1.msra.mxu0 0.0
    %9195 = vmatprep.subr.mxu0 0.0
    %9196 = vmatpush1.msra.mxu0 0.0
    %9197 = vmatprep.subr.mxu0 0.0
    %9198 = vmatpush1.msra.mxu0 0.0
    %9199 = vmatprep.subr.mxu0 0.0
    %9200 = vmatpush1.msra.mxu0 0.0
    %9201 = vmatprep.subr.mxu0 0.0
    %9202 = vmatpush1.msra.mxu0 0.0
    %9203 = vmatprep.subr.mxu0 0.0
    %9204 = vmatpush1.msra.mxu0 0.0
    %9205 = vmatprep.subr.mxu0 0.0
    %9206 = vmatpush1.msra.mxu0 0.0
    %9207 = vmatprep.subr.mxu0 0.0
    %9208 = vmatpush1.msra.mxu0 0.0
    %9209 = vmatprep.subr.mxu0 0.0
    %9210 = vmatpush1.msra.mxu0 0.0
    %9211 = vmatprep.subr.mxu0 0.0
    %9212 = vmatpush1.msra.mxu0 0.0
    %9213 = vmatprep.subr.mxu0 0.0
    %9214 = vmatpush1.msra.mxu0 0.0
    %9215 = vmatprep.subr.mxu0 0.0
    %9216 = vmatpush1.msra.mxu0 0.0
    %9217 = vmatprep.subr.mxu0 0.0
    %9218 = vmatpush1.msra.mxu0 0.0
    %9219 = vmatprep.subr.mxu0 0.0
    %9220 = vmatpush1.msra.mxu0 0.0
    %9221 = vmatprep.subr.mxu0 0.0
    %9222 = vmatpush1.msra.mxu0 0.0
    %9223 = vmatprep.subr.mxu0 0.0
    %9224 = vmatpush1.msra.mxu0 0.0
    %9225 = vmatprep.subr.mxu0 0.0
    %9226 = vmatpush1.msra.mxu0 0.0
    %9227 = vmatprep.mubr.f32.mxu0 0.0
    %9228 = vmatmul.mubr.f32.gmra.mrb[0].mxu0 %v915
    %v9229 = vpop.f32.mrb[0].mxu0
    %v9230 = vadd.f32 %v9161, %v9229
    %v9231 = vpop.f32.mrb[0].mxu0
    %9232 = vdwg.mxu0
    %v9233 = vadd.f32 %v9156, %v9230
    %v9234 = vxor.u32 %v9233, 2147483648
    %v9235 = vmul.f32 %v9234, 1.442695
    %v9236 = vpow.pop %v9235
    %v9237 = vadd.f32 %v9236, 1.0
    %v9238 = vrcp.pop %v9237
    %v9239 = vmul.f32 1.0, %v9238
    %9241 = vrot.lane.b32.xlu0 %v9230, 64
    %v9242 = vpop.permute.xlu0 %9241
    %v9244 = vmul.f32 %v9239, %v9242
    %9246 = vrot.lane.b32.xlu0 %v9244, 64
    %v9247 = vpop.permute.xlu0 %9246
    %v9249 = vadd.f32 %v9156, %v9247
    %v9250 = vtanh.pop %v9249
    %v9251 = vsub.f32 1.0, %v9239
    %9253 = vrot.lane.b32.xlu0 %v9250, 96
    %v9254 = vpop.permute.xlu0 %9253
    %v9256 = vmul.f32 %v9251, %v9254
    %v9257 = vmul.f32 %v9239, 0.0
    %v9258 = vadd.f32 %v9256, %v9257
    %v9259 = vld [vmem:[%s25] sm:$0xff]
    %v9260 = vld [vmem:[%s25 + $0x8] sm:$0xff]
    %v9261 = vld [vmem:[%s25 + $0x10] sm:$0xff]
    %v9262 = vld [vmem:[%s25 + $0x18] sm:$0xff]
    %v9263 = vld [vmem:[%s25 + $0x20] sm:$0xff]
    %v9264 = vld [vmem:[%s25 + $0x28] sm:$0xff]
    %v9265 = vld [vmem:[%s25 + $0x30] sm:$0xff]
    %v9266 = vld [vmem:[%s25 + $0x38] sm:$0xff]
    %v9267 = vld [vmem:[#allocation28] sm:$0x1]
    %9269 = vrot.lane.b32.xlu0 %v9258, 96
    %v9270 = vpop.permute.xlu0 %9269
    %v9271 = vsel %vm913, %v9270, 0
    %9273 = vmatprep.subr.mxu0 0.0
    %9274 = vmatpush1.msra.mxu0 %v9263
    %9275 = vmatprep.subr.mxu0 0.0
    %9276 = vmatpush1.msra.mxu0 %v9264
    %9277 = vmatprep.subr.mxu0 0.0
    %9278 = vmatpush1.msra.mxu0 %v9265
    %9279 = vmatprep.subr.mxu0 0.0
    %9280 = vmatpush1.msra.mxu0 %v9266
    %9281 = vmatprep.subr.mxu0 0.0
    %9282 = vmatpush1.msra.mxu0 0.0
    %9283 = vmatprep.subr.mxu0 0.0
    %9284 = vmatpush1.msra.mxu0 0.0
    %9285 = vmatprep.subr.mxu0 0.0
    %9286 = vmatpush1.msra.mxu0 0.0
    %9287 = vmatprep.subr.mxu0 0.0
    %9288 = vmatpush1.msra.mxu0 0.0
    %9289 = vmatprep.subr.mxu0 0.0
    %9290 = vmatpush1.msra.mxu0 0.0
    %9291 = vmatprep.subr.mxu0 0.0
    %9292 = vmatpush1.msra.mxu0 0.0
    %9293 = vmatprep.subr.mxu0 0.0
    %9294 = vmatpush1.msra.mxu0 0.0
    %9295 = vmatprep.subr.mxu0 0.0
    %9296 = vmatpush1.msra.mxu0 0.0
    %9297 = vmatprep.subr.mxu0 0.0
    %9298 = vmatpush1.msra.mxu0 0.0
    %9299 = vmatprep.subr.mxu0 0.0
    %9300 = vmatpush1.msra.mxu0 0.0
    %9301 = vmatprep.subr.mxu0 0.0
    %9302 = vmatpush1.msra.mxu0 0.0
    %9303 = vmatprep.subr.mxu0 0.0
    %9304 = vmatpush1.msra.mxu0 0.0
    %9305 = vmatprep.subr.mxu0 0.0
    %9306 = vmatpush1.msra.mxu0 0.0
    %9307 = vmatprep.subr.mxu0 0.0
    %9308 = vmatpush1.msra.mxu0 0.0
    %9309 = vmatprep.subr.mxu0 0.0
    %9310 = vmatpush1.msra.mxu0 0.0
    %9311 = vmatprep.subr.mxu0 0.0
    %9312 = vmatpush1.msra.mxu0 0.0
    %9313 = vmatprep.subr.mxu0 0.0
    %9314 = vmatpush1.msra.mxu0 0.0
    %9315 = vmatprep.subr.mxu0 0.0
    %9316 = vmatpush1.msra.mxu0 0.0
    %9317 = vmatprep.subr.mxu0 0.0
    %9318 = vmatpush1.msra.mxu0 0.0
    %9319 = vmatprep.subr.mxu0 0.0
    %9320 = vmatpush1.msra.mxu0 0.0
    %9321 = vmatprep.subr.mxu0 0.0
    %9322 = vmatpush1.msra.mxu0 0.0
    %9323 = vmatprep.subr.mxu0 0.0
    %9324 = vmatpush1.msra.mxu0 0.0
    %9325 = vmatprep.subr.mxu0 0.0
    %9326 = vmatpush1.msra.mxu0 0.0
    %9327 = vmatprep.subr.mxu0 0.0
    %9328 = vmatpush1.msra.mxu0 0.0
    %9329 = vmatprep.subr.mxu0 0.0
    %9330 = vmatpush1.msra.mxu0 0.0
    %9331 = vmatprep.subr.mxu0 0.0
    %9332 = vmatpush1.msra.mxu0 0.0
    %9333 = vmatprep.subr.mxu0 0.0
    %9334 = vmatpush1.msra.mxu0 0.0
    %9335 = vmatprep.subr.mxu0 0.0
    %9336 = vmatpush1.msra.mxu0 0.0
    %9337 = vmatprep.mubr.f32.mxu0 0.0
    %9338 = vmatmul.mubr.f32.gmra.mrb[0].mxu0 %v9271
    %v9339 = vpop.f32.mrb[0].mxu0
    %v9340 = vadd.f32 0.0, %v9339
    %v9341 = vpop.f32.mrb[0].mxu0
    %9342 = vdwg.mxu0
    %9344 = vrot.lane.b32.xlu0 %v8995, 96
    %v9345 = vpop.permute.xlu0 %9344
    %v9346 = vsel %vm913, %v9345, 0
    %9348 = vmatprep.subr.mxu0 0.0
    %9349 = vmatpush1.msra.mxu0 %v9259
    %9350 = vmatprep.subr.mxu0 0.0
    %9351 = vmatpush1.msra.mxu0 %v9260
    %9352 = vmatprep.subr.mxu0 0.0
    %9353 = vmatpush1.msra.mxu0 %v9261
    %9354 = vmatprep.subr.mxu0 0.0
    %9355 = vmatpush1.msra.mxu0 %v9262
    %9356 = vmatprep.subr.mxu0 0.0
    %9357 = vmatpush1.msra.mxu0 0.0
    %9358 = vmatprep.subr.mxu0 0.0
    %9359 = vmatpush1.msra.mxu0 0.0
    %9360 = vmatprep.subr.mxu0 0.0
    %9361 = vmatpush1.msra.mxu0 0.0
    %9362 = vmatprep.subr.mxu0 0.0
    %9363 = vmatpush1.msra.mxu0 0.0
    %9364 = vmatprep.subr.mxu0 0.0
    %9365 = vmatpush1.msra.mxu0 0.0
    %9366 = vmatprep.subr.mxu0 0.0
    %9367 = vmatpush1.msra.mxu0 0.0
    %9368 = vmatprep.subr.mxu0 0.0
    %9369 = vmatpush1.msra.mxu0 0.0
    %9370 = vmatprep.subr.mxu0 0.0
    %9371 = vmatpush1.msra.mxu0 0.0
    %9372 = vmatprep.subr.mxu0 0.0
    %9373 = vmatpush1.msra.mxu0 0.0
    %9374 = vmatprep.subr.mxu0 0.0
    %9375 = vmatpush1.msra.mxu0 0.0
    %9376 = vmatprep.subr.mxu0 0.0
    %9377 = vmatpush1.msra.mxu0 0.0
    %9378 = vmatprep.subr.mxu0 0.0
    %9379 = vmatpush1.msra.mxu0 0.0
    %9380 = vmatprep.subr.mxu0 0.0
    %9381 = vmatpush1.msra.mxu0 0.0
    %9382 = vmatprep.subr.mxu0 0.0
    %9383 = vmatpush1.msra.mxu0 0.0
    %9384 = vmatprep.subr.mxu0 0.0
    %9385 = vmatpush1.msra.mxu0 0.0
    %9386 = vmatprep.subr.mxu0 0.0
    %9387 = vmatpush1.msra.mxu0 0.0
    %9388 = vmatprep.subr.mxu0 0.0
    %9389 = vmatpush1.msra.mxu0 0.0
    %9390 = vmatprep.subr.mxu0 0.0
    %9391 = vmatpush1.msra.mxu0 0.0
    %9392 = vmatprep.subr.mxu0 0.0
    %9393 = vmatpush1.msra.mxu0 0.0
    %9394 = vmatprep.subr.mxu0 0.0
    %9395 = vmatpush1.msra.mxu0 0.0
    %9396 = vmatprep.subr.mxu0 0.0
    %9397 = vmatpush1.msra.mxu0 0.0
    %9398 = vmatprep.subr.mxu0 0.0
    %9399 = vmatpush1.msra.mxu0 0.0
    %9400 = vmatprep.subr.mxu0 0.0
    %9401 = vmatpush1.msra.mxu0 0.0
    %9402 = vmatprep.subr.mxu0 0.0
    %9403 = vmatpush1.msra.mxu0 0.0
    %9404 = vmatprep.subr.mxu0 0.0
    %9405 = vmatpush1.msra.mxu0 0.0
    %9406 = vmatprep.subr.mxu0 0.0
    %9407 = vmatpush1.msra.mxu0 0.0
    %9408 = vmatprep.subr.mxu0 0.0
    %9409 = vmatpush1.msra.mxu0 0.0
    %9410 = vmatprep.subr.mxu0 0.0
    %9411 = vmatpush1.msra.mxu0 0.0
    %9412 = vmatprep.mubr.f32.mxu0 0.0
    %9413 = vmatmul.mubr.f32.gmra.mrb[0].mxu0 %v9346
    %v9414 = vpop.f32.mrb[0].mxu0
    %v9415 = vadd.f32 %v9340, %v9414
    %v9416 = vpop.f32.mrb[0].mxu0
    %9417 = vdwg.mxu0
    %v9419 = vlaneseq
    %v9420 = vshrl.u32 %v9419, 7
    %v9421 = vsub.s32 0, %v9420
    %v9422 = vrot.slane %v9267, %v9421
    %v9424 = vadd.f32 %v9415, %v9422
    %v9425 = vadd.f32 %v9424, %v297
    %vm9426 = vcmask 25600
    %9427 = vst.msk [vmem:[#allocation29] sm:$0x3] %vm9426, %v9425
    // Predicated region
    $region178: #{baseline_forward.1} parent=1 // pred_check
      _
    $region179: #{baseline_forward.1} parent=1 // pred_check_branch
      %9429 = sbr.rel (0) target = $region181
    $region180: #{baseline_forward.1} parent=1 // pred_region
      %s9431 = ssub.s32 32, 32
      %9432 = vsyncadd [#allocation4], %s9431
      %s9434 = sshll.u32 [#allocation29], 4
      %s9435 = int_to_ptr.vmem [resolvable:$true] %s9434
      %9437 = dma.vmem_to_hbm [thread:$0]  %s9435, 32, %s27, [#allocation4]
    $region181: #{baseline_forward.1} parent=1 // pred_fallthru
      _
    // Predicated region
    $region182: #{baseline_forward.1} parent=1 // pred_check
      _
    $region183: #{baseline_forward.1} parent=1 // pred_check_branch
      %9439 = sbr.rel (0) target = $region185
    $region184: #{baseline_forward.1} parent=1 // pred_region
      %9440 = dma.done [#allocation4], 32
    $region185: #{baseline_forward.1} parent=1 // pred_fallthru
      _
    %9441 = vsyncpa [#allocation3], 1
    %9442 = vsyncpa [#allocation6], 1
    %9443 = vsyncpa [#allocation9], 1
    %9444 = vsyncpa [#allocation12], 1
    %9445 = vsyncpa [#allocation15], 1
    %9446 = vsyncpa [#allocation18], 1
    %9447 = vsyncpa [#allocation21], 1
    %9448 = vsyncpa [#allocation24], 1
    %9449 = vsyncpa [#allocation27], 1
    %9450 = vsyncpa [#allocation4], 1

</llo_original>
